<compile_context>
chip_gen: v6e
topology: v6e:2x2x1
jax: 0.10.0
libtpu: 0.0.40
codegen_flags: <defaults>
</compile_context>

<pallas_src>
import functools
import math

import jax
import jax.numpy as jnp
from jax.experimental import pallas as pl
from jax.experimental.pallas import tpu as pltpu

# ----------------------------- small config ---------------------------------
BATCH = 2
C_IN = 3
IMG = 32
PATCH = 16                 # real vit_base_patch16_224: 16 (kept)
SEQ = 8                    # text sequence length
D = 128                    # hidden size (real models: 768) -- lane-dense
HEADS = 4                  # attention heads (real: 12)
DH = D // HEADS
MLP = 4 * D
LANE = 128                 # TPU lane width; used for padding tiny last dims
N_LAYERS_VIT = 2           # real vit_base: 12 (kept small for the demo)
N_LAYERS_BERT = 2          # real roberta-base: 12
VOCAB = 100
PAD_ID = 1                 # RoBERTa padding_idx
MAX_POS = SEQ + 4
VIT_EPS = 1e-6
BERT_EPS = 1e-5
NEG_INF = -1e9
PATCH_DIM = C_IN * PATCH * PATCH   # 768, lane-dense


# --------------------------- in-kernel helpers -------------------------------
def _gelu_tanh(y):
    # TODO(synk): HF/timm use exact erf GELU; tanh approximation used for a
    # clean TPU lowering (relative difference ~1e-3).
    return 0.5 * y * (1.0 + jnp.tanh(0.7978845608028654 * (y + 0.044715 * y * y * y)))


def _ln_rows(x, g, b, eps):
    mu = jnp.mean(x, axis=-1, keepdims=True)
    var = jnp.mean(jnp.square(x - mu), axis=-1, keepdims=True)
    return (x - mu) * jax.lax.rsqrt(var + eps) * g + b


def _bf16_dot(a, b):
    # bf16 MXU operands, f32 accumulation (safe on v5e/v6e/v7x).
    return jnp.dot(a.astype(jnp.bfloat16), b.astype(jnp.bfloat16),
                   preferred_element_type=jnp.float32)


def _mha(h, wqkv, bqkv, wo, key_bias, B, S):
    """Fused multi-head self-attention; returns the (T, D) out-projection
    (pre-bias) as a register value (no VMEM scratch round trip).

    h: (B*S, D) f32; wqkv: (D, 3D) bf16; wo: (D, D) bf16;
    key_bias: (B, LANE) f32 additive key bias (first S columns used) or None.
    Heads are processed one at a time but batched over B with 3-D einsums
    (single batch dim -- the documented-safe Mosaic batched-matmul pattern).
    """
    T = B * S
    qkv = _bf16_dot(h, wqkv) + bqkv                       # (T, 3D) f32
    scale = 1.0 / math.sqrt(DH)
    out = jnp.zeros((T, D), jnp.float32)
    for hd in range(HEADS):
        # 32-lane static slices (head split); acceptable at this latency-bound
        # size -- the head-merge is folded into the out-projection below.
        q = qkv[:, hd * DH:(hd + 1) * DH].reshape(B, S, DH)
        k = qkv[:, D + hd * DH:D + (hd + 1) * DH].reshape(B, S, DH)
        v = qkv[:, 2 * D + hd * DH:2 * D + (hd + 1) * DH].reshape(B, S, DH)
        s = jnp.einsum('bqd,bkd->bqk',
                       q.astype(jnp.bfloat16), k.astype(jnp.bfloat16),
                       preferred_element_type=jnp.float32) * scale   # (B, S, S)
        if key_bias is not None:
            s = s + key_bias[:, None, :S]                 # broadcast over queries
        m = jnp.max(s, axis=-1, keepdims=True)
        p = jnp.exp(s - m)
        # approx reciprocal (EUP): attention rows ~1e-3 from exact normalization.
        p = p * pl.reciprocal(jnp.sum(p, axis=-1, keepdims=True), approx=True)
        ctx = jnp.einsum('bqk,bkd->bqd',
                         p.astype(jnp.bfloat16), v.astype(jnp.bfloat16),
                         preferred_element_type=jnp.float32)          # (B, S, DH)
        # fold head-merge into the output projection: sum_h ctx_h @ Wo_h
        out = out + _bf16_dot(ctx.reshape(T, DH), wo[hd * DH:(hd + 1) * DH, :])
    return out


# ------------------------------- kernels -------------------------------------
@functools.lru_cache(maxsize=None)
def _make_vit_tower_kernel(B, S):
    """One grid step == one pre-LN ViT block; patch-embed fused into step 0.
    The output ref is the VMEM-resident activation carried across layers."""
    def kernel(patches_ref, pw_ref, pb_ref,
               ln1g, ln1b, wqkv, bqkv, wo, bo, ln2g, ln2b, w1, b1, w2, b2,
               o_ref):
        @pl.when(pl.program_id(0) == 0)
        def _():   # PatchEmbed conv as one matmul (im2col done outside).
            o_ref[...] = (_bf16_dot(patches_ref[...], pw_ref[...])
                          + pb_ref[...]).astype(o_ref.dtype)
        x = o_ref[...]
        h = _ln_rows(x, ln1g[0], ln1b[0], VIT_EPS)
        x = x + _mha(h, wqkv[0], bqkv[0], wo[0], None, B, S) + bo[0]   # residual 1
        h = _ln_rows(x, ln2g[0], ln2b[0], VIT_EPS)
        h = _gelu_tanh(_bf16_dot(h, w1[0]) + b1[0])
        h = _bf16_dot(h, w2[0]) + b2[0]
        o_ref[...] = (x + h).astype(o_ref.dtype)                        # residual 2
    return kernel


@functools.lru_cache(maxsize=None)
def _make_bert_tower_kernel(B, S):
    """One grid step == one post-LN RoBERTa layer; embedding LN fused into
    step 0. Output ref is the resident activation."""
    def kernel(emb_ref, elng, elnb, bias_ref,
               wqkv, bqkv, wo, bo, lnag, lnab, wi, bi, w2, b2, lnog, lnob,
               o_ref):
        @pl.when(pl.program_id(0) == 0)
        def _():
            o_ref[...] = _ln_rows(emb_ref[...], elng[...], elnb[...],
                                  BERT_EPS).astype(o_ref.dtype)
        x = o_ref[...]
        a = _mha(x, wqkv[0], bqkv[0], wo[0], bias_ref[...], B, S)
        x = _ln_rows(x + a + bo[0], lnag[0], lnab[0], BERT_EPS)
        h = _gelu_tanh(_bf16_dot(x, wi[0]) + bi[0])
        h = _bf16_dot(h, w2[0]) + b2[0]
        o_ref[...] = _ln_rows(x + h, lnog[0], lnob[0], BERT_EPS).astype(o_ref.dtype)
    return kernel


def _head_kernel(txt_ref, img_ref, ng_ref, nb_ref, wt_ref, wi_ref, b_ref, o_ref):
    # Final ViT `norm` applied to the CLS rows only (row-wise LN => identical to
    # norm-then-slice). concat(text, image) @ W realized as block matmul:
    # text @ W[:D] + image @ W[D:], output lane-padded to 128 (sliced outside).
    img = _ln_rows(img_ref[...], ng_ref[...], nb_ref[...], VIT_EPS)
    y = _bf16_dot(txt_ref[...], wt_ref[...]) + _bf16_dot(img, wi_ref[...]) + b_ref[...]
    o_ref[...] = jax.nn.sigmoid(y).astype(o_ref.dtype)


# ------------------------------ wrappers --------------------------------------
def _const_spec(shape):
    # Same block every grid step -> fetched once, stays resident in VMEM.
    nd = len(shape)
    return pl.BlockSpec(shape, lambda l, _nd=nd: (0,) * _nd)


def _layer_spec(shape):
    # Per-layer stacked weight: leading axis indexed by the layer grid step, so
    # layer l+1's weights are double-buffer prefetched under layer l's compute.
    nd = len(shape)
    return pl.BlockSpec((1,) + tuple(shape[1:]),
                        lambda l, _nd=nd: (l,) + (0,) * (_nd - 1))


def pallas_vit_tower(patches, p, B, S):
    T = B * S
    const_args = (patches, p["patch_w"], p["patch_b"])
    layer_args = (p["ln1_g"], p["ln1_b"], p["wqkv"], p["bqkv"], p["wo"], p["bo"],
                  p["ln2_g"], p["ln2_b"], p["mlp_w1"], p["mlp_b1"],
                  p["mlp_w2"], p["mlp_b2"])
    return pl.pallas_call(
        _make_vit_tower_kernel(B, S),
        out_shape=jax.ShapeDtypeStruct((T, D), jnp.float32),
        grid=(N_LAYERS_VIT,),
        in_specs=([_const_spec(a.shape) for a in const_args]
                  + [_layer_spec(a.shape) for a in layer_args]),
        out_specs=pl.BlockSpec((T, D), lambda l: (0, 0)),
        compiler_params=pltpu.CompilerParams(dimension_semantics=("arbitrary",)),
    )(*const_args, *layer_args)


def pallas_bert_tower(emb, key_bias, p, B, S):
    T = B * S
    const_args = (emb, p["emb_ln_g"], p["emb_ln_b"], key_bias)
    layer_args = (p["wqkv"], p["bqkv"], p["wo"], p["bo"],
                  p["attn_ln_g"], p["attn_ln_b"],
                  p["inter_w"], p["inter_b"], p["out_w"], p["out_b"],
                  p["out_ln_g"], p["out_ln_b"])
    return pl.pallas_call(
        _make_bert_tower_kernel(B, S),
        out_shape=jax.ShapeDtypeStruct((T, D), jnp.float32),
        grid=(N_LAYERS_BERT,),
        in_specs=([_const_spec(a.shape) for a in const_args]
                  + [_layer_spec(a.shape) for a in layer_args]),
        out_specs=pl.BlockSpec((T, D), lambda l: (0, 0)),
        compiler_params=pltpu.CompilerParams(dimension_semantics=("arbitrary",)),
    )(*const_args, *layer_args)


def pallas_head(txt_cls, img_cls, norm_g, norm_b, w_txt, w_img, b):
    B = txt_cls.shape[0]
    args = (txt_cls, img_cls, norm_g, norm_b, w_txt, w_img, b)
    out = pl.pallas_call(
        _head_kernel,
        out_shape=jax.ShapeDtypeStruct((B, LANE), jnp.float32),
        grid=(1,),
        in_specs=[_const_spec(a.shape) for a in args],
        out_specs=_const_spec((B, LANE)),
    )(*args)
    return out[:, :1]                                   # Linear(2D, 1) column


# ------------------------------- model ---------------------------------------
def vit_forward(spectos, p):
    B = spectos.shape[0]
    gh = gw = IMG // PATCH
    S = gh * gw
    # im2col patchify (NCHW): flatten each 16x16 patch in (c, ph, pw) order to
    # match nn.Conv2d weight flattening -> PatchEmbed conv as one matmul, fused
    # into grid step 0 of the tower kernel.
    x = spectos.reshape(B, C_IN, gh, PATCH, gw, PATCH)
    x = x.transpose(0, 2, 4, 1, 3, 5).reshape(B * S, PATCH_DIM)
    # cls token / pos embed intentionally skipped (Sequential-of-children semantics)
    x = pallas_vit_tower(x, p, B, S)                     # one fused layer-grid call
    # final `norm` is applied to the CLS row inside the classifier-head kernel.
    return x.reshape(B, S, D)[:, 0, :]                   # vit_out[:, 0, :] (pre-norm)


def roberta_forward(input_ids, attention_mask, p):
    B, S = input_ids.shape
    mask_pos = (input_ids != PAD_ID).astype(jnp.int32)
    positions = jnp.cumsum(mask_pos, axis=1) * mask_pos + PAD_ID   # RoBERTa pos ids
    # embedding gathers kept in plain-JAX glue (no clean rectangular BlockSpec).
    emb = (jnp.take(p["word_emb"], input_ids, axis=0)
           + jnp.take(p["pos_emb"], positions, axis=0)
           + p["type_emb"][0][None, None, :])
    emb = emb.reshape(B * S, D)
    # additive key bias, lane-padded to 128 columns (kernel reads [:, :S]).
    key_bias = jnp.zeros((B, LANE), jnp.float32)
    key_bias = key_bias.at[:, :S].set(
        (1.0 - attention_mask.astype(jnp.float32)) * NEG_INF)
    x = pallas_bert_tower(emb, key_bias, p, B, S)        # one fused layer-grid call
    return x.reshape(B, S, D)[:, 0]                      # last_hidden_state[:, 0]


@jax.jit
def bert_image_forward(params, spectos, input_ids, attention_mask):
    img_cls = vit_forward(spectos, params["vit"])                     # (B, D)
    txt_cls = roberta_forward(input_ids, attention_mask, params["bert"])  # (B, D)
    # concat + Linear(2D,1) + sigmoid fused into one lane-padded head kernel.
    return pallas_head(txt_cls, img_cls,
                       params["vit"]["norm_g"], params["vit"]["norm_b"],
                       params["cls_w_txt"], params["cls_w_img"], params["cls_b"])


# ----------------------------- parameter init --------------------------------
def init_params(key):
    keys = iter(jax.random.split(key, 64))

    def w_init(*shape):  # matmul weights stored bf16 (MXU-native, half the DMA)
        return (jax.random.normal(next(keys), shape, jnp.float32) * 0.02
                ).astype(jnp.bfloat16)

    def zeros(*shape):
        return jnp.zeros(shape, jnp.float32)

    def ones(*shape):
        return jnp.ones(shape, jnp.float32)

    # --- ViT (per-layer weights stacked on a leading layer axis) ---
    Lv = N_LAYERS_VIT
    vit = dict(
        patch_w=w_init(PATCH_DIM, D), patch_b=zeros(1, D),
        ln1_g=ones(Lv, 1, D), ln1_b=zeros(Lv, 1, D),
        wqkv=w_init(Lv, D, 3 * D), bqkv=zeros(Lv, 1, 3 * D),
        wo=w_init(Lv, D, D), bo=zeros(Lv, 1, D),
        ln2_g=ones(Lv, 1, D), ln2_b=zeros(Lv, 1, D),
        mlp_w1=w_init(Lv, D, MLP), mlp_b1=zeros(Lv, 1, MLP),
        mlp_w2=w_init(Lv, MLP, D), mlp_b2=zeros(Lv, 1, D),
        norm_g=ones(1, D), norm_b=zeros(1, D))

    # --- RoBERTa ---
    Lb = N_LAYERS_BERT
    bert = dict(
        word_emb=jax.random.normal(next(keys), (VOCAB, D), jnp.float32) * 0.02,
        pos_emb=jax.random.normal(next(keys), (MAX_POS, D), jnp.float32) * 0.02,
        type_emb=jax.random.normal(next(keys), (1, D), jnp.float32) * 0.02,
        emb_ln_g=ones(1, D), emb_ln_b=zeros(1, D),
        wqkv=w_init(Lb, D, 3 * D), bqkv=zeros(Lb, 1, 3 * D),
        wo=w_init(Lb, D, D), bo=zeros(Lb, 1, D),
        attn_ln_g=ones(Lb, 1, D), attn_ln_b=zeros(Lb, 1, D),
        inter_w=w_init(Lb, D, MLP), inter_b=zeros(Lb, 1, MLP),
        out_w=w_init(Lb, MLP, D), out_b=zeros(Lb, 1, D),
        out_ln_g=ones(Lb, 1, D), out_ln_b=zeros(Lb, 1, D))

    # --- binary classifier Linear(2D, 1): split into text/image halves and
    #     lane-pad the single output column to 128 (sliced back outside).
    w_full = jax.random.normal(next(keys), (2 * D, 1), jnp.float32) * 0.02
    cls_w_txt = jnp.zeros((D, LANE), jnp.float32).at[:, 0].set(
        w_full[:D, 0]).astype(jnp.bfloat16)
    cls_w_img = jnp.zeros((D, LANE), jnp.float32).at[:, 0].set(
        w_full[D:, 0]).astype(jnp.bfloat16)
    cls_b = jnp.zeros((1, LANE), jnp.float32)

    return dict(vit=vit, bert=bert,
                cls_w_txt=cls_w_txt, cls_w_img=cls_w_img, cls_b=cls_b)


# --------------------------------- main ---------------------------------------
if __name__ == "__main__":
    key = jax.random.PRNGKey(0)
    k_param, k_img, k_ids = jax.random.split(key, 3)

    params = init_params(k_param)
    spectos = jax.random.normal(k_img, (BATCH, C_IN, IMG, IMG), jnp.float32)
    input_ids = jax.random.randint(k_ids, (BATCH, SEQ), 2, VOCAB, dtype=jnp.int32)
    # pad the tail of the second sample (RoBERTa pad id = 1) + matching mask.
    input_ids = input_ids.at[1, SEQ - 2:].set(PAD_ID)
    attention_mask = jnp.ones((BATCH, SEQ), jnp.int32).at[1, SEQ - 2:].set(0)

    out = bert_image_forward(params, spectos, input_ids, attention_mask)
    out = jax.block_until_ready(out)

    assert out.shape == (BATCH, 1), out.shape
    assert bool(jnp.all((out >= 0.0) & (out <= 1.0)))
    print("KERNEL_OK")
</pallas_src>

<mosaic_0001>
module attributes {stable_mosaic.version = 11 : i64} {
  func.func @kernel(%arg0: i32, %arg1: memref<16x128xf32, #tpu.memory_space<vmem>>, %arg2: memref<1x128xf32, #tpu.memory_space<vmem>>, %arg3: memref<1x128xf32, #tpu.memory_space<vmem>>, %arg4: memref<2x128xf32, #tpu.memory_space<vmem>>, %arg5: memref<1x128x384xbf16, #tpu.memory_space<vmem>>, %arg6: memref<1x1x384xf32, #tpu.memory_space<vmem>>, %arg7: memref<1x128x128xbf16, #tpu.memory_space<vmem>>, %arg8: memref<1x1x128xf32, #tpu.memory_space<vmem>>, %arg9: memref<1x1x128xf32, #tpu.memory_space<vmem>>, %arg10: memref<1x1x128xf32, #tpu.memory_space<vmem>>, %arg11: memref<1x128x512xbf16, #tpu.memory_space<vmem>>, %arg12: memref<1x1x512xf32, #tpu.memory_space<vmem>>, %arg13: memref<1x512x128xbf16, #tpu.memory_space<vmem>>, %arg14: memref<1x1x128xf32, #tpu.memory_space<vmem>>, %arg15: memref<1x1x128xf32, #tpu.memory_space<vmem>>, %arg16: memref<1x1x128xf32, #tpu.memory_space<vmem>>, %arg17: memref<16x128xf32, #tpu.memory_space<vmem>>) attributes {dimension_semantics = [#tpu.dimension_semantics<arbitrary>], iteration_bounds = array<i64: 2>, scalar_prefetch = 0 : i64, scratch_operands = 0 : i64, tpu.core_type = #tpu.core_type<tc>, window_params = [{pipeline_mode = #tpu.pipeline_mode<synchronous>, transform_indices = @transform_0, window_bounds = array<i64: 16, 128>}, {pipeline_mode = #tpu.pipeline_mode<synchronous>, transform_indices = @transform_1, window_bounds = array<i64: 1, 128>}, {pipeline_mode = #tpu.pipeline_mode<synchronous>, transform_indices = @transform_2, window_bounds = array<i64: 1, 128>}, {pipeline_mode = #tpu.pipeline_mode<synchronous>, transform_indices = @transform_3, window_bounds = array<i64: 2, 128>}, {transform_indices = @transform_4, window_bounds = array<i64: 1, 128, 384>}, {transform_indices = @transform_5, window_bounds = array<i64: 1, 1, 384>}, {transform_indices = @transform_6, window_bounds = array<i64: 1, 128, 128>}, {transform_indices = @transform_7, window_bounds = array<i64: 1, 1, 128>}, {transform_indices = @transform_8, window_bounds = array<i64: 1, 1, 128>}, {transform_indices = @transform_9, window_bounds = array<i64: 1, 1, 128>}, {transform_indices = @transform_10, window_bounds = array<i64: 1, 128, 512>}, {transform_indices = @transform_11, window_bounds = array<i64: 1, 1, 512>}, {transform_indices = @transform_12, window_bounds = array<i64: 1, 512, 128>}, {transform_indices = @transform_13, window_bounds = array<i64: 1, 1, 128>}, {transform_indices = @transform_14, window_bounds = array<i64: 1, 1, 128>}, {transform_indices = @transform_15, window_bounds = array<i64: 1, 1, 128>}, {pipeline_mode = #tpu.pipeline_mode<synchronous>, transform_indices = @transform_16, window_bounds = array<i64: 16, 128>}]} {
    %c0_i32 = arith.constant 0 : i32
    %0 = arith.cmpi eq, %arg0, %c0_i32 : i32
    %1 = arith.extui %0 : i1 to i32
    %c0_i32_0 = arith.constant 0 : i32
    %2 = arith.cmpi ne, %1, %c0_i32_0 : i32
    scf.if %2 {
      %c0_83 = arith.constant 0 : index
      %c0_84 = arith.constant 0 : index
      %236 = vector.load %arg1[%c0_83, %c0_84] : memref<16x128xf32, #tpu.memory_space<vmem>>, vector<16x128xf32>
      %c0_85 = arith.constant 0 : index
      %c0_86 = arith.constant 0 : index
      %237 = vector.load %arg2[%c0_85, %c0_86] : memref<1x128xf32, #tpu.memory_space<vmem>>, vector<1x128xf32>
      %c0_87 = arith.constant 0 : index
      %c0_88 = arith.constant 0 : index
      %238 = vector.load %arg3[%c0_87, %c0_88] : memref<1x128xf32, #tpu.memory_space<vmem>>, vector<1x128xf32>
      %cst_89 = arith.constant dense<0.000000e+00> : vector<16xf32>
      %239 = vector.multi_reduction <add>, %236, %cst_89 [1] : vector<16x128xf32> to vector<16xf32>
      %240 = vector.shape_cast %239 : vector<16xf32> to vector<16x1xf32>
      %cst_90 = arith.constant 1.280000e+02 : f32
      %241 = vector.broadcast %cst_90 : f32 to vector<16x1xf32>
      %242 = arith.divf %240, %241 : vector<16x1xf32>
      %243 = vector.broadcast %242 : vector<16x1xf32> to vector<16x128xf32>
      %244 = arith.subf %236, %243 : vector<16x128xf32>
      %245 = arith.mulf %244, %244 : vector<16x128xf32>
      %cst_91 = arith.constant dense<0.000000e+00> : vector<16xf32>
      %246 = vector.multi_reduction <add>, %245, %cst_91 [1] : vector<16x128xf32> to vector<16xf32>
      %247 = vector.shape_cast %246 : vector<16xf32> to vector<16x1xf32>
      %cst_92 = arith.constant 1.280000e+02 : f32
      %248 = vector.broadcast %cst_92 : f32 to vector<16x1xf32>
      %249 = arith.divf %247, %248 : vector<16x1xf32>
      %250 = vector.broadcast %242 : vector<16x1xf32> to vector<16x128xf32>
      %251 = arith.subf %236, %250 : vector<16x128xf32>
      %cst_93 = arith.constant 9.99999974E-6 : f32
      %252 = vector.broadcast %cst_93 : f32 to vector<16x1xf32>
      %253 = arith.addf %249, %252 : vector<16x1xf32>
      %254 = math.rsqrt %253 : vector<16x1xf32>
      %255 = vector.broadcast %254 : vector<16x1xf32> to vector<16x128xf32>
      %256 = arith.mulf %251, %255 : vector<16x128xf32>
      %257 = vector.broadcast %237 : vector<1x128xf32> to vector<16x128xf32>
      %258 = arith.mulf %256, %257 : vector<16x128xf32>
      %259 = vector.broadcast %238 : vector<1x128xf32> to vector<16x128xf32>
      %260 = arith.addf %258, %259 : vector<16x128xf32>
      %c0_94 = arith.constant 0 : index
      %c0_95 = arith.constant 0 : index
      %261 = vector.load %arg17[%c0_94, %c0_95] : memref<16x128xf32, #tpu.memory_space<vmem>>, vector<16x128xf32>
      tpu.vector_store %arg17[%c0_94, %c0_95], %260 {strides = array<i32>} : memref<16x128xf32, #tpu.memory_space<vmem>>, vector<16x128xf32>,
    } else {
    }
    %c0 = arith.constant 0 : index
    %c0_1 = arith.constant 0 : index
    %3 = vector.load %arg17[%c0, %c0_1] : memref<16x128xf32, #tpu.memory_space<vmem>>, vector<16x128xf32>
    %c0_2 = arith.constant 0 : index
    %c0_3 = arith.constant 0 : index
    %c0_4 = arith.constant 0 : index
    %4 = vector.load %arg5[%c0_2, %c0_3, %c0_4] : memref<1x128x384xbf16, #tpu.memory_space<vmem>>, vector<1x128x384xbf16>
    %5 = vector.shape_cast %4 : vector<1x128x384xbf16> to vector<128x384xbf16>
    %c0_5 = arith.constant 0 : index
    %c0_6 = arith.constant 0 : index
    %c0_7 = arith.constant 0 : index
    %6 = vector.load %arg6[%c0_5, %c0_6, %c0_7] : memref<1x1x384xf32, #tpu.memory_space<vmem>>, vector<1x1x384xf32>
    %7 = vector.shape_cast %6 : vector<1x1x384xf32> to vector<1x384xf32>
    %c0_8 = arith.constant 0 : index
    %c0_9 = arith.constant 0 : index
    %c0_10 = arith.constant 0 : index
    %8 = vector.load %arg7[%c0_8, %c0_9, %c0_10] : memref<1x128x128xbf16, #tpu.memory_space<vmem>>, vector<1x128x128xbf16>
    %9 = vector.shape_cast %8 : vector<1x128x128xbf16> to vector<128x128xbf16>
    %c0_11 = arith.constant 0 : index
    %c0_12 = arith.constant 0 : index
    %10 = vector.load %arg4[%c0_11, %c0_12] : memref<2x128xf32, #tpu.memory_space<vmem>>, vector<2x128xf32>
    %11 = arith.truncf %3 : vector<16x128xf32> to vector<16x128xbf16>
    %cst = arith.constant dense<0.000000e+00> : vector<16x384xf32>
    %12 = tpu.matmul %11, %5, %cst {dimension_numbers = #tpu.dot_dimension_numbers<[1], [0], [0], [1], [0, 0, 1, 1], [], []>} : vector<16x128xbf16>, vector<128x384xbf16>, vector<16x384xf32> -> vector<16x384xf32>
    %13 = vector.broadcast %7 : vector<1x384xf32> to vector<16x384xf32>
    %14 = arith.addf %12, %13 : vector<16x384xf32>
    %cst_13 = arith.constant 0.000000e+00 : f32
    %15 = vector.broadcast %cst_13 : f32 to vector<16x128xf32>
    %16 = vector.extract_strided_slice %14 {offsets = [0, 0], sizes = [16, 32], strides = [1, 1]} : vector<16x384xf32> to vector<16x32xf32>
    %17 = vector.shape_cast %16 : vector<16x32xf32> to vector<2x8x32xf32>
    %18 = vector.extract_strided_slice %14 {offsets = [0, 128], sizes = [16, 32], strides = [1, 1]} : vector<16x384xf32> to vector<16x32xf32>
    %19 = vector.shape_cast %18 : vector<16x32xf32> to vector<2x8x32xf32>
    %20 = vector.extract_strided_slice %14 {offsets = [0, 256], sizes = [16, 32], strides = [1, 1]} : vector<16x384xf32> to vector<16x32xf32>
    %21 = vector.shape_cast %20 : vector<16x32xf32> to vector<2x8x32xf32>
    %22 = arith.truncf %17 : vector<2x8x32xf32> to vector<2x8x32xbf16>
    %23 = arith.truncf %19 : vector<2x8x32xf32> to vector<2x8x32xbf16>
    "tpu.trace_start"() <{level = 10 : i32, message = "bqd,bkd->bqk"}> : () -> ()
    %cst_14 = arith.constant dense<0.000000e+00> : vector<2x8x8xf32>
    %24 = tpu.matmul %22, %23, %cst_14 {dimension_numbers = #tpu.dot_dimension_numbers<[2], [2], [1], [1], [0, 0, 0, 1, 1, 1], [0], [0]>} : vector<2x8x32xbf16>, vector<2x8x32xbf16>, vector<2x8x8xf32> -> vector<2x8x8xf32>
    "tpu.trace_stop"() : () -> ()
    %cst_15 = arith.constant 0.176776692 : f32
    %25 = vector.broadcast %cst_15 : f32 to vector<2x8x8xf32>
    %26 = arith.mulf %24, %25 : vector<2x8x8xf32>
    %27 = vector.extract_strided_slice %10 {offsets = [0, 0], sizes = [2, 8], strides = [1, 1]} : vector<2x128xf32> to vector<2x8xf32>
    %28 = vector.shape_cast %27 : vector<2x8xf32> to vector<2x1x8xf32>
    %29 = vector.broadcast %28 : vector<2x1x8xf32> to vector<2x8x8xf32>
    %30 = arith.addf %26, %29 : vector<2x8x8xf32>
    %cst_16 = arith.constant dense<0xFF800000> : vector<2x8xf32>
    %31 = vector.multi_reduction <maximumf>, %30, %cst_16 [2] : vector<2x8x8xf32> to vector<2x8xf32>
    %32 = vector.shape_cast %31 : vector<2x8xf32> to vector<2x8x1xf32>
    %33 = vector.broadcast %32 : vector<2x8x1xf32> to vector<2x8x8xf32>
    %34 = arith.subf %30, %33 : vector<2x8x8xf32>
    %35 = math.exp %34 : vector<2x8x8xf32>
    %cst_17 = arith.constant dense<0.000000e+00> : vector<2x8xf32>
    %36 = vector.multi_reduction <add>, %35, %cst_17 [2] : vector<2x8x8xf32> to vector<2x8xf32>
    %37 = vector.shape_cast %36 : vector<2x8xf32> to vector<2x8x1xf32>
    %38 = tpu.reciprocal %37 {approx = true} : vector<2x8x1xf32> -> vector<2x8x1xf32>
    %39 = vector.broadcast %38 : vector<2x8x1xf32> to vector<2x8x8xf32>
    %40 = arith.mulf %35, %39 : vector<2x8x8xf32>
    %41 = arith.truncf %40 : vector<2x8x8xf32> to vector<2x8x8xbf16>
    %42 = arith.truncf %21 : vector<2x8x32xf32> to vector<2x8x32xbf16>
    "tpu.trace_start"() <{level = 10 : i32, message = "bqk,bkd->bqd"}> : () -> ()
    %cst_18 = arith.constant dense<0.000000e+00> : vector<2x8x32xf32>
    %43 = tpu.matmul %41, %42, %cst_18 {dimension_numbers = #tpu.dot_dimension_numbers<[2], [1], [1], [2], [0, 0, 0, 1, 1, 2], [0], [0]>} : vector<2x8x8xbf16>, vector<2x8x32xbf16>, vector<2x8x32xf32> -> vector<2x8x32xf32>
    "tpu.trace_stop"() : () -> ()
    %44 = vector.shape_cast %43 : vector<2x8x32xf32> to vector<16x32xf32>
    %45 = vector.extract_strided_slice %9 {offsets = [0, 0], sizes = [32, 128], strides = [1, 1]} : vector<128x128xbf16> to vector<32x128xbf16>
    %46 = arith.truncf %44 : vector<16x32xf32> to vector<16x32xbf16>
    %cst_19 = arith.constant dense<0.000000e+00> : vector<16x128xf32>
    %47 = tpu.matmul %46, %45, %cst_19 {dimension_numbers = #tpu.dot_dimension_numbers<[1], [0], [0], [1], [0, 0, 1, 1], [], []>} : vector<16x32xbf16>, vector<32x128xbf16>, vector<16x128xf32> -> vector<16x128xf32>
    %48 = arith.addf %15, %47 : vector<16x128xf32>
    %49 = vector.extract_strided_slice %14 {offsets = [0, 32], sizes = [16, 32], strides = [1, 1]} : vector<16x384xf32> to vector<16x32xf32>
    %50 = vector.shape_cast %49 : vector<16x32xf32> to vector<2x8x32xf32>
    %51 = vector.extract_strided_slice %14 {offsets = [0, 160], sizes = [16, 32], strides = [1, 1]} : vector<16x384xf32> to vector<16x32xf32>
    %52 = vector.shape_cast %51 : vector<16x32xf32> to vector<2x8x32xf32>
    %53 = vector.extract_strided_slice %14 {offsets = [0, 288], sizes = [16, 32], strides = [1, 1]} : vector<16x384xf32> to vector<16x32xf32>
    %54 = vector.shape_cast %53 : vector<16x32xf32> to vector<2x8x32xf32>
    %55 = arith.truncf %50 : vector<2x8x32xf32> to vector<2x8x32xbf16>
    %56 = arith.truncf %52 : vector<2x8x32xf32> to vector<2x8x32xbf16>
    "tpu.trace_start"() <{level = 10 : i32, message = "bqd,bkd->bqk"}> : () -> ()
    %cst_20 = arith.constant dense<0.000000e+00> : vector<2x8x8xf32>
    %57 = tpu.matmul %55, %56, %cst_20 {dimension_numbers = #tpu.dot_dimension_numbers<[2], [2], [1], [1], [0, 0, 0, 1, 1, 1], [0], [0]>} : vector<2x8x32xbf16>, vector<2x8x32xbf16>, vector<2x8x8xf32> -> vector<2x8x8xf32>
    "tpu.trace_stop"() : () -> ()
    %cst_21 = arith.constant 0.176776692 : f32
    %58 = vector.broadcast %cst_21 : f32 to vector<2x8x8xf32>
    %59 = arith.mulf %57, %58 : vector<2x8x8xf32>
    %60 = vector.extract_strided_slice %10 {offsets = [0, 0], sizes = [2, 8], strides = [1, 1]} : vector<2x128xf32> to vector<2x8xf32>
    %61 = vector.shape_cast %60 : vector<2x8xf32> to vector<2x1x8xf32>
    %62 = vector.broadcast %61 : vector<2x1x8xf32> to vector<2x8x8xf32>
    %63 = arith.addf %59, %62 : vector<2x8x8xf32>
    %cst_22 = arith.constant dense<0xFF800000> : vector<2x8xf32>
    %64 = vector.multi_reduction <maximumf>, %63, %cst_22 [2] : vector<2x8x8xf32> to vector<2x8xf32>
    %65 = vector.shape_cast %64 : vector<2x8xf32> to vector<2x8x1xf32>
    %66 = vector.broadcast %65 : vector<2x8x1xf32> to vector<2x8x8xf32>
    %67 = arith.subf %63, %66 : vector<2x8x8xf32>
    %68 = math.exp %67 : vector<2x8x8xf32>
    %cst_23 = arith.constant dense<0.000000e+00> : vector<2x8xf32>
    %69 = vector.multi_reduction <add>, %68, %cst_23 [2] : vector<2x8x8xf32> to vector<2x8xf32>
    %70 = vector.shape_cast %69 : vector<2x8xf32> to vector<2x8x1xf32>
    %71 = tpu.reciprocal %70 {approx = true} : vector<2x8x1xf32> -> vector<2x8x1xf32>
    %72 = vector.broadcast %71 : vector<2x8x1xf32> to vector<2x8x8xf32>
    %73 = arith.mulf %68, %72 : vector<2x8x8xf32>
    %74 = arith.truncf %73 : vector<2x8x8xf32> to vector<2x8x8xbf16>
    %75 = arith.truncf %54 : vector<2x8x32xf32> to vector<2x8x32xbf16>
    "tpu.trace_start"() <{level = 10 : i32, message = "bqk,bkd->bqd"}> : () -> ()
    %cst_24 = arith.constant dense<0.000000e+00> : vector<2x8x32xf32>
    %76 = tpu.matmul %74, %75, %cst_24 {dimension_numbers = #tpu.dot_dimension_numbers<[2], [1], [1], [2], [0, 0, 0, 1, 1, 2], [0], [0]>} : vector<2x8x8xbf16>, vector<2x8x32xbf16>, vector<2x8x32xf32> -> vector<2x8x32xf32>
    "tpu.trace_stop"() : () -> ()
    %77 = vector.shape_cast %76 : vector<2x8x32xf32> to vector<16x32xf32>
    %78 = vector.extract_strided_slice %9 {offsets = [32, 0], sizes = [32, 128], strides = [1, 1]} : vector<128x128xbf16> to vector<32x128xbf16>
    %79 = arith.truncf %77 : vector<16x32xf32> to vector<16x32xbf16>
    %cst_25 = arith.constant dense<0.000000e+00> : vector<16x128xf32>
    %80 = tpu.matmul %79, %78, %cst_25 {dimension_numbers = #tpu.dot_dimension_numbers<[1], [0], [0], [1], [0, 0, 1, 1], [], []>} : vector<16x32xbf16>, vector<32x128xbf16>, vector<16x128xf32> -> vector<16x128xf32>
    %81 = arith.addf %48, %80 : vector<16x128xf32>
    %82 = vector.extract_strided_slice %14 {offsets = [0, 64], sizes = [16, 32], strides = [1, 1]} : vector<16x384xf32> to vector<16x32xf32>
    %83 = vector.shape_cast %82 : vector<16x32xf32> to vector<2x8x32xf32>
    %84 = vector.extract_strided_slice %14 {offsets = [0, 192], sizes = [16, 32], strides = [1, 1]} : vector<16x384xf32> to vector<16x32xf32>
    %85 = vector.shape_cast %84 : vector<16x32xf32> to vector<2x8x32xf32>
    %86 = vector.extract_strided_slice %14 {offsets = [0, 320], sizes = [16, 32], strides = [1, 1]} : vector<16x384xf32> to vector<16x32xf32>
    %87 = vector.shape_cast %86 : vector<16x32xf32> to vector<2x8x32xf32>
    %88 = arith.truncf %83 : vector<2x8x32xf32> to vector<2x8x32xbf16>
    %89 = arith.truncf %85 : vector<2x8x32xf32> to vector<2x8x32xbf16>
    "tpu.trace_start"() <{level = 10 : i32, message = "bqd,bkd->bqk"}> : () -> ()
    %cst_26 = arith.constant dense<0.000000e+00> : vector<2x8x8xf32>
    %90 = tpu.matmul %88, %89, %cst_26 {dimension_numbers = #tpu.dot_dimension_numbers<[2], [2], [1], [1], [0, 0, 0, 1, 1, 1], [0], [0]>} : vector<2x8x32xbf16>, vector<2x8x32xbf16>, vector<2x8x8xf32> -> vector<2x8x8xf32>
    "tpu.trace_stop"() : () -> ()
    %cst_27 = arith.constant 0.176776692 : f32
    %91 = vector.broadcast %cst_27 : f32 to vector<2x8x8xf32>
    %92 = arith.mulf %90, %91 : vector<2x8x8xf32>
    %93 = vector.extract_strided_slice %10 {offsets = [0, 0], sizes = [2, 8], strides = [1, 1]} : vector<2x128xf32> to vector<2x8xf32>
    %94 = vector.shape_cast %93 : vector<2x8xf32> to vector<2x1x8xf32>
    %95 = vector.broadcast %94 : vector<2x1x8xf32> to vector<2x8x8xf32>
    %96 = arith.addf %92, %95 : vector<2x8x8xf32>
    %cst_28 = arith.constant dense<0xFF800000> : vector<2x8xf32>
    %97 = vector.multi_reduction <maximumf>, %96, %cst_28 [2] : vector<2x8x8xf32> to vector<2x8xf32>
    %98 = vector.shape_cast %97 : vector<2x8xf32> to vector<2x8x1xf32>
    %99 = vector.broadcast %98 : vector<2x8x1xf32> to vector<2x8x8xf32>
    %100 = arith.subf %96, %99 : vector<2x8x8xf32>
    %101 = math.exp %100 : vector<2x8x8xf32>
    %cst_29 = arith.constant dense<0.000000e+00> : vector<2x8xf32>
    %102 = vector.multi_reduction <add>, %101, %cst_29 [2] : vector<2x8x8xf32> to vector<2x8xf32>
    %103 = vector.shape_cast %102 : vector<2x8xf32> to vector<2x8x1xf32>
    %104 = tpu.reciprocal %103 {approx = true} : vector<2x8x1xf32> -> vector<2x8x1xf32>
    %105 = vector.broadcast %104 : vector<2x8x1xf32> to vector<2x8x8xf32>
    %106 = arith.mulf %101, %105 : vector<2x8x8xf32>
    %107 = arith.truncf %106 : vector<2x8x8xf32> to vector<2x8x8xbf16>
    %108 = arith.truncf %87 : vector<2x8x32xf32> to vector<2x8x32xbf16>
    "tpu.trace_start"() <{level = 10 : i32, message = "bqk,bkd->bqd"}> : () -> ()
    %cst_30 = arith.constant dense<0.000000e+00> : vector<2x8x32xf32>
    %109 = tpu.matmul %107, %108, %cst_30 {dimension_numbers = #tpu.dot_dimension_numbers<[2], [1], [1], [2], [0, 0, 0, 1, 1, 2], [0], [0]>} : vector<2x8x8xbf16>, vector<2x8x32xbf16>, vector<2x8x32xf32> -> vector<2x8x32xf32>
    "tpu.trace_stop"() : () -> ()
    %110 = vector.shape_cast %109 : vector<2x8x32xf32> to vector<16x32xf32>
    %111 = vector.extract_strided_slice %9 {offsets = [64, 0], sizes = [32, 128], strides = [1, 1]} : vector<128x128xbf16> to vector<32x128xbf16>
    %112 = arith.truncf %110 : vector<16x32xf32> to vector<16x32xbf16>
    %cst_31 = arith.constant dense<0.000000e+00> : vector<16x128xf32>
    %113 = tpu.matmul %112, %111, %cst_31 {dimension_numbers = #tpu.dot_dimension_numbers<[1], [0], [0], [1], [0, 0, 1, 1], [], []>} : vector<16x32xbf16>, vector<32x128xbf16>, vector<16x128xf32> -> vector<16x128xf32>
    %114 = arith.addf %81, %113 : vector<16x128xf32>
    %115 = vector.extract_strided_slice %14 {offsets = [0, 96], sizes = [16, 32], strides = [1, 1]} : vector<16x384xf32> to vector<16x32xf32>
    %116 = vector.shape_cast %115 : vector<16x32xf32> to vector<2x8x32xf32>
    %117 = vector.extract_strided_slice %14 {offsets = [0, 224], sizes = [16, 32], strides = [1, 1]} : vector<16x384xf32> to vector<16x32xf32>
    %118 = vector.shape_cast %117 : vector<16x32xf32> to vector<2x8x32xf32>
    %119 = vector.extract_strided_slice %14 {offsets = [0, 352], sizes = [16, 32], strides = [1, 1]} : vector<16x384xf32> to vector<16x32xf32>
    %120 = vector.shape_cast %119 : vector<16x32xf32> to vector<2x8x32xf32>
    %121 = arith.truncf %116 : vector<2x8x32xf32> to vector<2x8x32xbf16>
    %122 = arith.truncf %118 : vector<2x8x32xf32> to vector<2x8x32xbf16>
    "tpu.trace_start"() <{level = 10 : i32, message = "bqd,bkd->bqk"}> : () -> ()
    %cst_32 = arith.constant dense<0.000000e+00> : vector<2x8x8xf32>
    %123 = tpu.matmul %121, %122, %cst_32 {dimension_numbers = #tpu.dot_dimension_numbers<[2], [2], [1], [1], [0, 0, 0, 1, 1, 1], [0], [0]>} : vector<2x8x32xbf16>, vector<2x8x32xbf16>, vector<2x8x8xf32> -> vector<2x8x8xf32>
    "tpu.trace_stop"() : () -> ()
    %cst_33 = arith.constant 0.176776692 : f32
    %124 = vector.broadcast %cst_33 : f32 to vector<2x8x8xf32>
    %125 = arith.mulf %123, %124 : vector<2x8x8xf32>
    %126 = vector.extract_strided_slice %10 {offsets = [0, 0], sizes = [2, 8], strides = [1, 1]} : vector<2x128xf32> to vector<2x8xf32>
    %127 = vector.shape_cast %126 : vector<2x8xf32> to vector<2x1x8xf32>
    %128 = vector.broadcast %127 : vector<2x1x8xf32> to vector<2x8x8xf32>
    %129 = arith.addf %125, %128 : vector<2x8x8xf32>
    %cst_34 = arith.constant dense<0xFF800000> : vector<2x8xf32>
    %130 = vector.multi_reduction <maximumf>, %129, %cst_34 [2] : vector<2x8x8xf32> to vector<2x8xf32>
    %131 = vector.shape_cast %130 : vector<2x8xf32> to vector<2x8x1xf32>
    %132 = vector.broadcast %131 : vector<2x8x1xf32> to vector<2x8x8xf32>
    %133 = arith.subf %129, %132 : vector<2x8x8xf32>
    %134 = math.exp %133 : vector<2x8x8xf32>
    %cst_35 = arith.constant dense<0.000000e+00> : vector<2x8xf32>
    %135 = vector.multi_reduction <add>, %134, %cst_35 [2] : vector<2x8x8xf32> to vector<2x8xf32>
    %136 = vector.shape_cast %135 : vector<2x8xf32> to vector<2x8x1xf32>
    %137 = tpu.reciprocal %136 {approx = true} : vector<2x8x1xf32> -> vector<2x8x1xf32>
    %138 = vector.broadcast %137 : vector<2x8x1xf32> to vector<2x8x8xf32>
    %139 = arith.mulf %134, %138 : vector<2x8x8xf32>
    %140 = arith.truncf %139 : vector<2x8x8xf32> to vector<2x8x8xbf16>
    %141 = arith.truncf %120 : vector<2x8x32xf32> to vector<2x8x32xbf16>
    "tpu.trace_start"() <{level = 10 : i32, message = "bqk,bkd->bqd"}> : () -> ()
    %cst_36 = arith.constant dense<0.000000e+00> : vector<2x8x32xf32>
    %142 = tpu.matmul %140, %141, %cst_36 {dimension_numbers = #tpu.dot_dimension_numbers<[2], [1], [1], [2], [0, 0, 0, 1, 1, 2], [0], [0]>} : vector<2x8x8xbf16>, vector<2x8x32xbf16>, vector<2x8x32xf32> -> vector<2x8x32xf32>
    "tpu.trace_stop"() : () -> ()
    %143 = vector.shape_cast %142 : vector<2x8x32xf32> to vector<16x32xf32>
    %144 = vector.extract_strided_slice %9 {offsets = [96, 0], sizes = [32, 128], strides = [1, 1]} : vector<128x128xbf16> to vector<32x128xbf16>
    %145 = arith.truncf %143 : vector<16x32xf32> to vector<16x32xbf16>
    %cst_37 = arith.constant dense<0.000000e+00> : vector<16x128xf32>
    %146 = tpu.matmul %145, %144, %cst_37 {dimension_numbers = #tpu.dot_dimension_numbers<[1], [0], [0], [1], [0, 0, 1, 1], [], []>} : vector<16x32xbf16>, vector<32x128xbf16>, vector<16x128xf32> -> vector<16x128xf32>
    %147 = arith.addf %114, %146 : vector<16x128xf32>
    %148 = arith.addf %3, %147 : vector<16x128xf32>
    %c0_38 = arith.constant 0 : index
    %c0_39 = arith.constant 0 : index
    %c0_40 = arith.constant 0 : index
    %149 = vector.load %arg8[%c0_38, %c0_39, %c0_40] : memref<1x1x128xf32, #tpu.memory_space<vmem>>, vector<1x1x128xf32>
    %150 = vector.shape_cast %149 : vector<1x1x128xf32> to vector<1x128xf32>
    %151 = vector.broadcast %150 : vector<1x128xf32> to vector<16x128xf32>
    %152 = arith.addf %148, %151 : vector<16x128xf32>
    %c0_41 = arith.constant 0 : index
    %c0_42 = arith.constant 0 : index
    %c0_43 = arith.constant 0 : index
    %153 = vector.load %arg9[%c0_41, %c0_42, %c0_43] : memref<1x1x128xf32, #tpu.memory_space<vmem>>, vector<1x1x128xf32>
    %154 = vector.shape_cast %153 : vector<1x1x128xf32> to vector<1x128xf32>
    %c0_44 = arith.constant 0 : index
    %c0_45 = arith.constant 0 : index
    %c0_46 = arith.constant 0 : index
    %155 = vector.load %arg10[%c0_44, %c0_45, %c0_46] : memref<1x1x128xf32, #tpu.memory_space<vmem>>, vector<1x1x128xf32>
    %156 = vector.shape_cast %155 : vector<1x1x128xf32> to vector<1x128xf32>
    %cst_47 = arith.constant dense<0.000000e+00> : vector<16xf32>
    %157 = vector.multi_reduction <add>, %152, %cst_47 [1] : vector<16x128xf32> to vector<16xf32>
    %158 = vector.shape_cast %157 : vector<16xf32> to vector<16x1xf32>
    %cst_48 = arith.constant 1.280000e+02 : f32
    %159 = vector.broadcast %cst_48 : f32 to vector<16x1xf32>
    %160 = arith.divf %158, %159 : vector<16x1xf32>
    %161 = vector.broadcast %160 : vector<16x1xf32> to vector<16x128xf32>
    %162 = arith.subf %152, %161 : vector<16x128xf32>
    %163 = arith.mulf %162, %162 : vector<16x128xf32>
    %cst_49 = arith.constant dense<0.000000e+00> : vector<16xf32>
    %164 = vector.multi_reduction <add>, %163, %cst_49 [1] : vector<16x128xf32> to vector<16xf32>
    %165 = vector.shape_cast %164 : vector<16xf32> to vector<16x1xf32>
    %cst_50 = arith.constant 1.280000e+02 : f32
    %166 = vector.broadcast %cst_50 : f32 to vector<16x1xf32>
    %167 = arith.divf %165, %166 : vector<16x1xf32>
    %168 = vector.broadcast %160 : vector<16x1xf32> to vector<16x128xf32>
    %169 = arith.subf %152, %168 : vector<16x128xf32>
    %cst_51 = arith.constant 9.99999974E-6 : f32
    %170 = vector.broadcast %cst_51 : f32 to vector<16x1xf32>
    %171 = arith.addf %167, %170 : vector<16x1xf32>
    %172 = math.rsqrt %171 : vector<16x1xf32>
    %173 = vector.broadcast %172 : vector<16x1xf32> to vector<16x128xf32>
    %174 = arith.mulf %169, %173 : vector<16x128xf32>
    %175 = vector.broadcast %154 : vector<1x128xf32> to vector<16x128xf32>
    %176 = arith.mulf %174, %175 : vector<16x128xf32>
    %177 = vector.broadcast %156 : vector<1x128xf32> to vector<16x128xf32>
    %178 = arith.addf %176, %177 : vector<16x128xf32>
    %c0_52 = arith.constant 0 : index
    %c0_53 = arith.constant 0 : index
    %c0_54 = arith.constant 0 : index
    %179 = vector.load %arg11[%c0_52, %c0_53, %c0_54] : memref<1x128x512xbf16, #tpu.memory_space<vmem>>, vector<1x128x512xbf16>
    %180 = vector.shape_cast %179 : vector<1x128x512xbf16> to vector<128x512xbf16>
    %181 = arith.truncf %178 : vector<16x128xf32> to vector<16x128xbf16>
    %cst_55 = arith.constant dense<0.000000e+00> : vector<16x512xf32>
    %182 = tpu.matmul %181, %180, %cst_55 {dimension_numbers = #tpu.dot_dimension_numbers<[1], [0], [0], [1], [0, 0, 1, 1], [], []>} : vector<16x128xbf16>, vector<128x512xbf16>, vector<16x512xf32> -> vector<16x512xf32>
    %c0_56 = arith.constant 0 : index
    %c0_57 = arith.constant 0 : index
    %c0_58 = arith.constant 0 : index
    %183 = vector.load %arg12[%c0_56, %c0_57, %c0_58] : memref<1x1x512xf32, #tpu.memory_space<vmem>>, vector<1x1x512xf32>
    %184 = vector.shape_cast %183 : vector<1x1x512xf32> to vector<1x512xf32>
    %185 = vector.broadcast %184 : vector<1x512xf32> to vector<16x512xf32>
    %186 = arith.addf %182, %185 : vector<16x512xf32>
    %cst_59 = arith.constant 5.000000e-01 : f32
    %187 = vector.broadcast %cst_59 : f32 to vector<16x512xf32>
    %188 = arith.mulf %187, %186 : vector<16x512xf32>
    %cst_60 = arith.constant 4.471500e-02 : f32
    %189 = vector.broadcast %cst_60 : f32 to vector<16x512xf32>
    %190 = arith.mulf %189, %186 : vector<16x512xf32>
    %191 = arith.mulf %190, %186 : vector<16x512xf32>
    %192 = arith.mulf %191, %186 : vector<16x512xf32>
    %193 = arith.addf %186, %192 : vector<16x512xf32>
    %cst_61 = arith.constant 0.797884583 : f32
    %194 = vector.broadcast %cst_61 : f32 to vector<16x512xf32>
    %195 = arith.mulf %194, %193 : vector<16x512xf32>
    %196 = math.tanh %195 : vector<16x512xf32>
    %cst_62 = arith.constant 1.000000e+00 : f32
    %197 = vector.broadcast %cst_62 : f32 to vector<16x512xf32>
    %198 = arith.addf %197, %196 : vector<16x512xf32>
    %199 = arith.mulf %188, %198 : vector<16x512xf32>
    %c0_63 = arith.constant 0 : index
    %c0_64 = arith.constant 0 : index
    %c0_65 = arith.constant 0 : index
    %200 = vector.load %arg13[%c0_63, %c0_64, %c0_65] : memref<1x512x128xbf16, #tpu.memory_space<vmem>>, vector<1x512x128xbf16>
    %201 = vector.shape_cast %200 : vector<1x512x128xbf16> to vector<512x128xbf16>
    %202 = arith.truncf %199 : vector<16x512xf32> to vector<16x512xbf16>
    %cst_66 = arith.constant dense<0.000000e+00> : vector<16x128xf32>
    %203 = tpu.matmul %202, %201, %cst_66 {dimension_numbers = #tpu.dot_dimension_numbers<[1], [0], [0], [1], [0, 0, 1, 1], [], []>} : vector<16x512xbf16>, vector<512x128xbf16>, vector<16x128xf32> -> vector<16x128xf32>
    %c0_67 = arith.constant 0 : index
    %c0_68 = arith.constant 0 : index
    %c0_69 = arith.constant 0 : index
    %204 = vector.load %arg14[%c0_67, %c0_68, %c0_69] : memref<1x1x128xf32, #tpu.memory_space<vmem>>, vector<1x1x128xf32>
    %205 = vector.shape_cast %204 : vector<1x1x128xf32> to vector<1x128xf32>
    %206 = vector.broadcast %205 : vector<1x128xf32> to vector<16x128xf32>
    %207 = arith.addf %203, %206 : vector<16x128xf32>
    %208 = arith.addf %178, %207 : vector<16x128xf32>
    %c0_70 = arith.constant 0 : index
    %c0_71 = arith.constant 0 : index
    %c0_72 = arith.constant 0 : index
    %209 = vector.load %arg15[%c0_70, %c0_71, %c0_72] : memref<1x1x128xf32, #tpu.memory_space<vmem>>, vector<1x1x128xf32>
    %210 = vector.shape_cast %209 : vector<1x1x128xf32> to vector<1x128xf32>
    %c0_73 = arith.constant 0 : index
    %c0_74 = arith.constant 0 : index
    %c0_75 = arith.constant 0 : index
    %211 = vector.load %arg16[%c0_73, %c0_74, %c0_75] : memref<1x1x128xf32, #tpu.memory_space<vmem>>, vector<1x1x128xf32>
    %212 = vector.shape_cast %211 : vector<1x1x128xf32> to vector<1x128xf32>
    %cst_76 = arith.constant dense<0.000000e+00> : vector<16xf32>
    %213 = vector.multi_reduction <add>, %208, %cst_76 [1] : vector<16x128xf32> to vector<16xf32>
    %214 = vector.shape_cast %213 : vector<16xf32> to vector<16x1xf32>
    %cst_77 = arith.constant 1.280000e+02 : f32
    %215 = vector.broadcast %cst_77 : f32 to vector<16x1xf32>
    %216 = arith.divf %214, %215 : vector<16x1xf32>
    %217 = vector.broadcast %216 : vector<16x1xf32> to vector<16x128xf32>
    %218 = arith.subf %208, %217 : vector<16x128xf32>
    %219 = arith.mulf %218, %218 : vector<16x128xf32>
    %cst_78 = arith.constant dense<0.000000e+00> : vector<16xf32>
    %220 = vector.multi_reduction <add>, %219, %cst_78 [1] : vector<16x128xf32> to vector<16xf32>
    %221 = vector.shape_cast %220 : vector<16xf32> to vector<16x1xf32>
    %cst_79 = arith.constant 1.280000e+02 : f32
    %222 = vector.broadcast %cst_79 : f32 to vector<16x1xf32>
    %223 = arith.divf %221, %222 : vector<16x1xf32>
    %224 = vector.broadcast %216 : vector<16x1xf32> to vector<16x128xf32>
    %225 = arith.subf %208, %224 : vector<16x128xf32>
    %cst_80 = arith.constant 9.99999974E-6 : f32
    %226 = vector.broadcast %cst_80 : f32 to vector<16x1xf32>
    %227 = arith.addf %223, %226 : vector<16x1xf32>
    %228 = math.rsqrt %227 : vector<16x1xf32>
    %229 = vector.broadcast %228 : vector<16x1xf32> to vector<16x128xf32>
    %230 = arith.mulf %225, %229 : vector<16x128xf32>
    %231 = vector.broadcast %210 : vector<1x128xf32> to vector<16x128xf32>
    %232 = arith.mulf %230, %231 : vector<16x128xf32>
    %233 = vector.broadcast %212 : vector<1x128xf32> to vector<16x128xf32>
    %234 = arith.addf %232, %233 : vector<16x128xf32>
    %c0_81 = arith.constant 0 : index
    %c0_82 = arith.constant 0 : index
    %235 = vector.load %arg17[%c0_81, %c0_82] : memref<16x128xf32, #tpu.memory_space<vmem>>, vector<16x128xf32>
    tpu.vector_store %arg17[%c0_81, %c0_82], %234 {strides = array<i32>} : memref<16x128xf32, #tpu.memory_space<vmem>>, vector<16x128xf32>,
    return
  }
  func.func @transform_0(%arg0: i32) -> (i32, i32) {
    %c0_i32 = arith.constant 0 : i32
    %c0_i32_0 = arith.constant 0 : i32
    %c0_i32_1 = arith.constant 0 : i32
    return %c0_i32, %c0_i32_0 : i32, i32
  }
  func.func @transform_1(%arg0: i32) -> (i32, i32) {
    %c0_i32 = arith.constant 0 : i32
    %c0_i32_0 = arith.constant 0 : i32
    %c0_i32_1 = arith.constant 0 : i32
    return %c0_i32, %c0_i32_0 : i32, i32
  }
  func.func @transform_2(%arg0: i32) -> (i32, i32) {
    %c0_i32 = arith.constant 0 : i32
    %c0_i32_0 = arith.constant 0 : i32
    %c0_i32_1 = arith.constant 0 : i32
    return %c0_i32, %c0_i32_0 : i32, i32
  }
  func.func @transform_3(%arg0: i32) -> (i32, i32) {
    %c0_i32 = arith.constant 0 : i32
    %c0_i32_0 = arith.constant 0 : i32
    %c0_i32_1 = arith.constant 0 : i32
    return %c0_i32, %c0_i32_0 : i32, i32
  }
  func.func @transform_4(%arg0: i32) -> (i32, i32, i32) {
    %c0_i32 = arith.constant 0 : i32
    %c0_i32_0 = arith.constant 0 : i32
    %c0_i32_1 = arith.constant 0 : i32
    return %arg0, %c0_i32, %c0_i32_0 : i32, i32, i32
  }
  func.func @transform_5(%arg0: i32) -> (i32, i32, i32) {
    %c0_i32 = arith.constant 0 : i32
    %c0_i32_0 = arith.constant 0 : i32
    %c0_i32_1 = arith.constant 0 : i32
    return %arg0, %c0_i32, %c0_i32_0 : i32, i32, i32
  }
  func.func @transform_6(%arg0: i32) -> (i32, i32, i32) {
    %c0_i32 = arith.constant 0 : i32
    %c0_i32_0 = arith.constant 0 : i32
    %c0_i32_1 = arith.constant 0 : i32
    return %arg0, %c0_i32, %c0_i32_0 : i32, i32, i32
  }
  func.func @transform_7(%arg0: i32) -> (i32, i32, i32) {
    %c0_i32 = arith.constant 0 : i32
    %c0_i32_0 = arith.constant 0 : i32
    %c0_i32_1 = arith.constant 0 : i32
    return %arg0, %c0_i32, %c0_i32_0 : i32, i32, i32
  }
  func.func @transform_8(%arg0: i32) -> (i32, i32, i32) {
    %c0_i32 = arith.constant 0 : i32
    %c0_i32_0 = arith.constant 0 : i32
    %c0_i32_1 = arith.constant 0 : i32
    return %arg0, %c0_i32, %c0_i32_0 : i32, i32, i32
  }
  func.func @transform_9(%arg0: i32) -> (i32, i32, i32) {
    %c0_i32 = arith.constant 0 : i32
    %c0_i32_0 = arith.constant 0 : i32
    %c0_i32_1 = arith.constant 0 : i32
    return %arg0, %c0_i32, %c0_i32_0 : i32, i32, i32
  }
  func.func @transform_10(%arg0: i32) -> (i32, i32, i32) {
    %c0_i32 = arith.constant 0 : i32
    %c0_i32_0 = arith.constant 0 : i32
    %c0_i32_1 = arith.constant 0 : i32
    return %arg0, %c0_i32, %c0_i32_0 : i32, i32, i32
  }
  func.func @transform_11(%arg0: i32) -> (i32, i32, i32) {
    %c0_i32 = arith.constant 0 : i32
    %c0_i32_0 = arith.constant 0 : i32
    %c0_i32_1 = arith.constant 0 : i32
    return %arg0, %c0_i32, %c0_i32_0 : i32, i32, i32
  }
  func.func @transform_12(%arg0: i32) -> (i32, i32, i32) {
    %c0_i32 = arith.constant 0 : i32
    %c0_i32_0 = arith.constant 0 : i32
    %c0_i32_1 = arith.constant 0 : i32
    return %arg0, %c0_i32, %c0_i32_0 : i32, i32, i32
  }
  func.func @transform_13(%arg0: i32) -> (i32, i32, i32) {
    %c0_i32 = arith.constant 0 : i32
    %c0_i32_0 = arith.constant 0 : i32
    %c0_i32_1 = arith.constant 0 : i32
    return %arg0, %c0_i32, %c0_i32_0 : i32, i32, i32
  }
  func.func @transform_14(%arg0: i32) -> (i32, i32, i32) {
    %c0_i32 = arith.constant 0 : i32
    %c0_i32_0 = arith.constant 0 : i32
    %c0_i32_1 = arith.constant 0 : i32
    return %arg0, %c0_i32, %c0_i32_0 : i32, i32, i32
  }
  func.func @transform_15(%arg0: i32) -> (i32, i32, i32) {
    %c0_i32 = arith.constant 0 : i32
    %c0_i32_0 = arith.constant 0 : i32
    %c0_i32_1 = arith.constant 0 : i32
    return %arg0, %c0_i32, %c0_i32_0 : i32, i32, i32
  }
  func.func @transform_16(%arg0: i32) -> (i32, i32) {
    %c0_i32 = arith.constant 0 : i32
    %c0_i32_0 = arith.constant 0 : i32
    %c0_i32_1 = arith.constant 0 : i32
    return %c0_i32, %c0_i32_0 : i32, i32
  }
}

module attributes {stable_mosaic.version = 11 : i64} {
  func.func @kernel(%arg0: i32, %arg1: memref<8x768xf32, #tpu.memory_space<vmem>>, %arg2: memref<768x128xbf16, #tpu.memory_space<vmem>>, %arg3: memref<1x128xf32, #tpu.memory_space<vmem>>, %arg4: memref<1x1x128xf32, #tpu.memory_space<vmem>>, %arg5: memref<1x1x128xf32, #tpu.memory_space<vmem>>, %arg6: memref<1x128x384xbf16, #tpu.memory_space<vmem>>, %arg7: memref<1x1x384xf32, #tpu.memory_space<vmem>>, %arg8: memref<1x128x128xbf16, #tpu.memory_space<vmem>>, %arg9: memref<1x1x128xf32, #tpu.memory_space<vmem>>, %arg10: memref<1x1x128xf32, #tpu.memory_space<vmem>>, %arg11: memref<1x1x128xf32, #tpu.memory_space<vmem>>, %arg12: memref<1x128x512xbf16, #tpu.memory_space<vmem>>, %arg13: memref<1x1x512xf32, #tpu.memory_space<vmem>>, %arg14: memref<1x512x128xbf16, #tpu.memory_space<vmem>>, %arg15: memref<1x1x128xf32, #tpu.memory_space<vmem>>, %arg16: memref<8x128xf32, #tpu.memory_space<vmem>>) attributes {dimension_semantics = [#tpu.dimension_semantics<arbitrary>], iteration_bounds = array<i64: 2>, scalar_prefetch = 0 : i64, scratch_operands = 0 : i64, tpu.core_type = #tpu.core_type<tc>, window_params = [{pipeline_mode = #tpu.pipeline_mode<synchronous>, transform_indices = @transform_0, window_bounds = array<i64: 8, 768>}, {pipeline_mode = #tpu.pipeline_mode<synchronous>, transform_indices = @transform_1, window_bounds = array<i64: 768, 128>}, {pipeline_mode = #tpu.pipeline_mode<synchronous>, transform_indices = @transform_2, window_bounds = array<i64: 1, 128>}, {transform_indices = @transform_3, window_bounds = array<i64: 1, 1, 128>}, {transform_indices = @transform_4, window_bounds = array<i64: 1, 1, 128>}, {transform_indices = @transform_5, window_bounds = array<i64: 1, 128, 384>}, {transform_indices = @transform_6, window_bounds = array<i64: 1, 1, 384>}, {transform_indices = @transform_7, window_bounds = array<i64: 1, 128, 128>}, {transform_indices = @transform_8, window_bounds = array<i64: 1, 1, 128>}, {transform_indices = @transform_9, window_bounds = array<i64: 1, 1, 128>}, {transform_indices = @transform_10, window_bounds = array<i64: 1, 1, 128>}, {transform_indices = @transform_11, window_bounds = array<i64: 1, 128, 512>}, {transform_indices = @transform_12, window_bounds = array<i64: 1, 1, 512>}, {transform_indices = @transform_13, window_bounds = array<i64: 1, 512, 128>}, {transform_indices = @transform_14, window_bounds = array<i64: 1, 1, 128>}, {pipeline_mode = #tpu.pipeline_mode<synchronous>, transform_indices = @transform_15, window_bounds = array<i64: 8, 128>}]} {
    %c0_i32 = arith.constant 0 : i32
    %0 = arith.cmpi eq, %arg0, %c0_i32 : i32
    %1 = arith.extui %0 : i1 to i32
    %c0_i32_0 = arith.constant 0 : i32
    %2 = arith.cmpi ne, %1, %c0_i32_0 : i32
    scf.if %2 {
      %c0_81 = arith.constant 0 : index
      %c0_82 = arith.constant 0 : index
      %219 = vector.load %arg1[%c0_81, %c0_82] : memref<8x768xf32, #tpu.memory_space<vmem>>, vector<8x768xf32>
      %c0_83 = arith.constant 0 : index
      %c0_84 = arith.constant 0 : index
      %220 = vector.load %arg2[%c0_83, %c0_84] : memref<768x128xbf16, #tpu.memory_space<vmem>>, vector<768x128xbf16>
      %221 = arith.truncf %219 : vector<8x768xf32> to vector<8x768xbf16>
      %cst_85 = arith.constant dense<0.000000e+00> : vector<8x128xf32>
      %222 = tpu.matmul %221, %220, %cst_85 {dimension_numbers = #tpu.dot_dimension_numbers<[1], [0], [0], [1], [0, 0, 1, 1], [], []>} : vector<8x768xbf16>, vector<768x128xbf16>, vector<8x128xf32> -> vector<8x128xf32>
      %c0_86 = arith.constant 0 : index
      %c0_87 = arith.constant 0 : index
      %223 = vector.load %arg3[%c0_86, %c0_87] : memref<1x128xf32, #tpu.memory_space<vmem>>, vector<1x128xf32>
      %224 = vector.broadcast %223 : vector<1x128xf32> to vector<8x128xf32>
      %225 = arith.addf %222, %224 : vector<8x128xf32>
      %c0_88 = arith.constant 0 : index
      %c0_89 = arith.constant 0 : index
      %226 = vector.load %arg16[%c0_88, %c0_89] : memref<8x128xf32, #tpu.memory_space<vmem>>, vector<8x128xf32>
      tpu.vector_store %arg16[%c0_88, %c0_89], %225 {strides = array<i32>} : memref<8x128xf32, #tpu.memory_space<vmem>>, vector<8x128xf32>,
    } else {
    }
    %c0 = arith.constant 0 : index
    %c0_1 = arith.constant 0 : index
    %3 = vector.load %arg16[%c0, %c0_1] : memref<8x128xf32, #tpu.memory_space<vmem>>, vector<8x128xf32>
    %c0_2 = arith.constant 0 : index
    %c0_3 = arith.constant 0 : index
    %c0_4 = arith.constant 0 : index
    %4 = vector.load %arg4[%c0_2, %c0_3, %c0_4] : memref<1x1x128xf32, #tpu.memory_space<vmem>>, vector<1x1x128xf32>
    %5 = vector.shape_cast %4 : vector<1x1x128xf32> to vector<1x128xf32>
    %c0_5 = arith.constant 0 : index
    %c0_6 = arith.constant 0 : index
    %c0_7 = arith.constant 0 : index
    %6 = vector.load %arg5[%c0_5, %c0_6, %c0_7] : memref<1x1x128xf32, #tpu.memory_space<vmem>>, vector<1x1x128xf32>
    %7 = vector.shape_cast %6 : vector<1x1x128xf32> to vector<1x128xf32>
    %cst = arith.constant dense<0.000000e+00> : vector<8xf32>
    %8 = vector.multi_reduction <add>, %3, %cst [1] : vector<8x128xf32> to vector<8xf32>
    %9 = vector.shape_cast %8 : vector<8xf32> to vector<8x1xf32>
    %cst_8 = arith.constant 1.280000e+02 : f32
    %10 = vector.broadcast %cst_8 : f32 to vector<8x1xf32>
    %11 = arith.divf %9, %10 : vector<8x1xf32>
    %12 = vector.broadcast %11 : vector<8x1xf32> to vector<8x128xf32>
    %13 = arith.subf %3, %12 : vector<8x128xf32>
    %14 = arith.mulf %13, %13 : vector<8x128xf32>
    %cst_9 = arith.constant dense<0.000000e+00> : vector<8xf32>
    %15 = vector.multi_reduction <add>, %14, %cst_9 [1] : vector<8x128xf32> to vector<8xf32>
    %16 = vector.shape_cast %15 : vector<8xf32> to vector<8x1xf32>
    %cst_10 = arith.constant 1.280000e+02 : f32
    %17 = vector.broadcast %cst_10 : f32 to vector<8x1xf32>
    %18 = arith.divf %16, %17 : vector<8x1xf32>
    %19 = vector.broadcast %11 : vector<8x1xf32> to vector<8x128xf32>
    %20 = arith.subf %3, %19 : vector<8x128xf32>
    %cst_11 = arith.constant 9.99999997E-7 : f32
    %21 = vector.broadcast %cst_11 : f32 to vector<8x1xf32>
    %22 = arith.addf %18, %21 : vector<8x1xf32>
    %23 = math.rsqrt %22 : vector<8x1xf32>
    %24 = vector.broadcast %23 : vector<8x1xf32> to vector<8x128xf32>
    %25 = arith.mulf %20, %24 : vector<8x128xf32>
    %26 = vector.broadcast %5 : vector<1x128xf32> to vector<8x128xf32>
    %27 = arith.mulf %25, %26 : vector<8x128xf32>
    %28 = vector.broadcast %7 : vector<1x128xf32> to vector<8x128xf32>
    %29 = arith.addf %27, %28 : vector<8x128xf32>
    %c0_12 = arith.constant 0 : index
    %c0_13 = arith.constant 0 : index
    %c0_14 = arith.constant 0 : index
    %30 = vector.load %arg6[%c0_12, %c0_13, %c0_14] : memref<1x128x384xbf16, #tpu.memory_space<vmem>>, vector<1x128x384xbf16>
    %31 = vector.shape_cast %30 : vector<1x128x384xbf16> to vector<128x384xbf16>
    %c0_15 = arith.constant 0 : index
    %c0_16 = arith.constant 0 : index
    %c0_17 = arith.constant 0 : index
    %32 = vector.load %arg7[%c0_15, %c0_16, %c0_17] : memref<1x1x384xf32, #tpu.memory_space<vmem>>, vector<1x1x384xf32>
    %33 = vector.shape_cast %32 : vector<1x1x384xf32> to vector<1x384xf32>
    %c0_18 = arith.constant 0 : index
    %c0_19 = arith.constant 0 : index
    %c0_20 = arith.constant 0 : index
    %34 = vector.load %arg8[%c0_18, %c0_19, %c0_20] : memref<1x128x128xbf16, #tpu.memory_space<vmem>>, vector<1x128x128xbf16>
    %35 = vector.shape_cast %34 : vector<1x128x128xbf16> to vector<128x128xbf16>
    %36 = arith.truncf %29 : vector<8x128xf32> to vector<8x128xbf16>
    %cst_21 = arith.constant dense<0.000000e+00> : vector<8x384xf32>
    %37 = tpu.matmul %36, %31, %cst_21 {dimension_numbers = #tpu.dot_dimension_numbers<[1], [0], [0], [1], [0, 0, 1, 1], [], []>} : vector<8x128xbf16>, vector<128x384xbf16>, vector<8x384xf32> -> vector<8x384xf32>
    %38 = vector.broadcast %33 : vector<1x384xf32> to vector<8x384xf32>
    %39 = arith.addf %37, %38 : vector<8x384xf32>
    %cst_22 = arith.constant 0.000000e+00 : f32
    %40 = vector.broadcast %cst_22 : f32 to vector<8x128xf32>
    %41 = vector.extract_strided_slice %39 {offsets = [0, 0], sizes = [8, 32], strides = [1, 1]} : vector<8x384xf32> to vector<8x32xf32>
    %42 = vector.shape_cast %41 : vector<8x32xf32> to vector<2x4x32xf32>
    %43 = vector.extract_strided_slice %39 {offsets = [0, 128], sizes = [8, 32], strides = [1, 1]} : vector<8x384xf32> to vector<8x32xf32>
    %44 = vector.shape_cast %43 : vector<8x32xf32> to vector<2x4x32xf32>
    %45 = vector.extract_strided_slice %39 {offsets = [0, 256], sizes = [8, 32], strides = [1, 1]} : vector<8x384xf32> to vector<8x32xf32>
    %46 = vector.shape_cast %45 : vector<8x32xf32> to vector<2x4x32xf32>
    %47 = arith.truncf %42 : vector<2x4x32xf32> to vector<2x4x32xbf16>
    %48 = arith.truncf %44 : vector<2x4x32xf32> to vector<2x4x32xbf16>
    "tpu.trace_start"() <{level = 10 : i32, message = "bqd,bkd->bqk"}> : () -> ()
    %cst_23 = arith.constant dense<0.000000e+00> : vector<2x4x4xf32>
    %49 = tpu.matmul %47, %48, %cst_23 {dimension_numbers = #tpu.dot_dimension_numbers<[2], [2], [1], [1], [0, 0, 0, 1, 1, 1], [0], [0]>} : vector<2x4x32xbf16>, vector<2x4x32xbf16>, vector<2x4x4xf32> -> vector<2x4x4xf32>
    "tpu.trace_stop"() : () -> ()
    %cst_24 = arith.constant 0.176776692 : f32
    %50 = vector.broadcast %cst_24 : f32 to vector<2x4x4xf32>
    %51 = arith.mulf %49, %50 : vector<2x4x4xf32>
    %cst_25 = arith.constant dense<0xFF800000> : vector<2x4xf32>
    %52 = vector.multi_reduction <maximumf>, %51, %cst_25 [2] : vector<2x4x4xf32> to vector<2x4xf32>
    %53 = vector.shape_cast %52 : vector<2x4xf32> to vector<2x4x1xf32>
    %54 = vector.broadcast %53 : vector<2x4x1xf32> to vector<2x4x4xf32>
    %55 = arith.subf %51, %54 : vector<2x4x4xf32>
    %56 = math.exp %55 : vector<2x4x4xf32>
    %cst_26 = arith.constant dense<0.000000e+00> : vector<2x4xf32>
    %57 = vector.multi_reduction <add>, %56, %cst_26 [2] : vector<2x4x4xf32> to vector<2x4xf32>
    %58 = vector.shape_cast %57 : vector<2x4xf32> to vector<2x4x1xf32>
    %59 = tpu.reciprocal %58 {approx = true} : vector<2x4x1xf32> -> vector<2x4x1xf32>
    %60 = vector.broadcast %59 : vector<2x4x1xf32> to vector<2x4x4xf32>
    %61 = arith.mulf %56, %60 : vector<2x4x4xf32>
    %62 = arith.truncf %61 : vector<2x4x4xf32> to vector<2x4x4xbf16>
    %63 = arith.truncf %46 : vector<2x4x32xf32> to vector<2x4x32xbf16>
    "tpu.trace_start"() <{level = 10 : i32, message = "bqk,bkd->bqd"}> : () -> ()
    %cst_27 = arith.constant dense<0.000000e+00> : vector<2x4x32xf32>
    %64 = tpu.matmul %62, %63, %cst_27 {dimension_numbers = #tpu.dot_dimension_numbers<[2], [1], [1], [2], [0, 0, 0, 1, 1, 2], [0], [0]>} : vector<2x4x4xbf16>, vector<2x4x32xbf16>, vector<2x4x32xf32> -> vector<2x4x32xf32>
    "tpu.trace_stop"() : () -> ()
    %65 = vector.shape_cast %64 : vector<2x4x32xf32> to vector<8x32xf32>
    %66 = vector.extract_strided_slice %35 {offsets = [0, 0], sizes = [32, 128], strides = [1, 1]} : vector<128x128xbf16> to vector<32x128xbf16>
    %67 = arith.truncf %65 : vector<8x32xf32> to vector<8x32xbf16>
    %cst_28 = arith.constant dense<0.000000e+00> : vector<8x128xf32>
    %68 = tpu.matmul %67, %66, %cst_28 {dimension_numbers = #tpu.dot_dimension_numbers<[1], [0], [0], [1], [0, 0, 1, 1], [], []>} : vector<8x32xbf16>, vector<32x128xbf16>, vector<8x128xf32> -> vector<8x128xf32>
    %69 = arith.addf %40, %68 : vector<8x128xf32>
    %70 = vector.extract_strided_slice %39 {offsets = [0, 32], sizes = [8, 32], strides = [1, 1]} : vector<8x384xf32> to vector<8x32xf32>
    %71 = vector.shape_cast %70 : vector<8x32xf32> to vector<2x4x32xf32>
    %72 = vector.extract_strided_slice %39 {offsets = [0, 160], sizes = [8, 32], strides = [1, 1]} : vector<8x384xf32> to vector<8x32xf32>
    %73 = vector.shape_cast %72 : vector<8x32xf32> to vector<2x4x32xf32>
    %74 = vector.extract_strided_slice %39 {offsets = [0, 288], sizes = [8, 32], strides = [1, 1]} : vector<8x384xf32> to vector<8x32xf32>
    %75 = vector.shape_cast %74 : vector<8x32xf32> to vector<2x4x32xf32>
    %76 = arith.truncf %71 : vector<2x4x32xf32> to vector<2x4x32xbf16>
    %77 = arith.truncf %73 : vector<2x4x32xf32> to vector<2x4x32xbf16>
    "tpu.trace_start"() <{level = 10 : i32, message = "bqd,bkd->bqk"}> : () -> ()
    %cst_29 = arith.constant dense<0.000000e+00> : vector<2x4x4xf32>
    %78 = tpu.matmul %76, %77, %cst_29 {dimension_numbers = #tpu.dot_dimension_numbers<[2], [2], [1], [1], [0, 0, 0, 1, 1, 1], [0], [0]>} : vector<2x4x32xbf16>, vector<2x4x32xbf16>, vector<2x4x4xf32> -> vector<2x4x4xf32>
    "tpu.trace_stop"() : () -> ()
    %cst_30 = arith.constant 0.176776692 : f32
    %79 = vector.broadcast %cst_30 : f32 to vector<2x4x4xf32>
    %80 = arith.mulf %78, %79 : vector<2x4x4xf32>
    %cst_31 = arith.constant dense<0xFF800000> : vector<2x4xf32>
    %81 = vector.multi_reduction <maximumf>, %80, %cst_31 [2] : vector<2x4x4xf32> to vector<2x4xf32>
    %82 = vector.shape_cast %81 : vector<2x4xf32> to vector<2x4x1xf32>
    %83 = vector.broadcast %82 : vector<2x4x1xf32> to vector<2x4x4xf32>
    %84 = arith.subf %80, %83 : vector<2x4x4xf32>
    %85 = math.exp %84 : vector<2x4x4xf32>
    %cst_32 = arith.constant dense<0.000000e+00> : vector<2x4xf32>
    %86 = vector.multi_reduction <add>, %85, %cst_32 [2] : vector<2x4x4xf32> to vector<2x4xf32>
    %87 = vector.shape_cast %86 : vector<2x4xf32> to vector<2x4x1xf32>
    %88 = tpu.reciprocal %87 {approx = true} : vector<2x4x1xf32> -> vector<2x4x1xf32>
    %89 = vector.broadcast %88 : vector<2x4x1xf32> to vector<2x4x4xf32>
    %90 = arith.mulf %85, %89 : vector<2x4x4xf32>
    %91 = arith.truncf %90 : vector<2x4x4xf32> to vector<2x4x4xbf16>
    %92 = arith.truncf %75 : vector<2x4x32xf32> to vector<2x4x32xbf16>
    "tpu.trace_start"() <{level = 10 : i32, message = "bqk,bkd->bqd"}> : () -> ()
    %cst_33 = arith.constant dense<0.000000e+00> : vector<2x4x32xf32>
    %93 = tpu.matmul %91, %92, %cst_33 {dimension_numbers = #tpu.dot_dimension_numbers<[2], [1], [1], [2], [0, 0, 0, 1, 1, 2], [0], [0]>} : vector<2x4x4xbf16>, vector<2x4x32xbf16>, vector<2x4x32xf32> -> vector<2x4x32xf32>
    "tpu.trace_stop"() : () -> ()
    %94 = vector.shape_cast %93 : vector<2x4x32xf32> to vector<8x32xf32>
    %95 = vector.extract_strided_slice %35 {offsets = [32, 0], sizes = [32, 128], strides = [1, 1]} : vector<128x128xbf16> to vector<32x128xbf16>
    %96 = arith.truncf %94 : vector<8x32xf32> to vector<8x32xbf16>
    %cst_34 = arith.constant dense<0.000000e+00> : vector<8x128xf32>
    %97 = tpu.matmul %96, %95, %cst_34 {dimension_numbers = #tpu.dot_dimension_numbers<[1], [0], [0], [1], [0, 0, 1, 1], [], []>} : vector<8x32xbf16>, vector<32x128xbf16>, vector<8x128xf32> -> vector<8x128xf32>
    %98 = arith.addf %69, %97 : vector<8x128xf32>
    %99 = vector.extract_strided_slice %39 {offsets = [0, 64], sizes = [8, 32], strides = [1, 1]} : vector<8x384xf32> to vector<8x32xf32>
    %100 = vector.shape_cast %99 : vector<8x32xf32> to vector<2x4x32xf32>
    %101 = vector.extract_strided_slice %39 {offsets = [0, 192], sizes = [8, 32], strides = [1, 1]} : vector<8x384xf32> to vector<8x32xf32>
    %102 = vector.shape_cast %101 : vector<8x32xf32> to vector<2x4x32xf32>
    %103 = vector.extract_strided_slice %39 {offsets = [0, 320], sizes = [8, 32], strides = [1, 1]} : vector<8x384xf32> to vector<8x32xf32>
    %104 = vector.shape_cast %103 : vector<8x32xf32> to vector<2x4x32xf32>
    %105 = arith.truncf %100 : vector<2x4x32xf32> to vector<2x4x32xbf16>
    %106 = arith.truncf %102 : vector<2x4x32xf32> to vector<2x4x32xbf16>
    "tpu.trace_start"() <{level = 10 : i32, message = "bqd,bkd->bqk"}> : () -> ()
    %cst_35 = arith.constant dense<0.000000e+00> : vector<2x4x4xf32>
    %107 = tpu.matmul %105, %106, %cst_35 {dimension_numbers = #tpu.dot_dimension_numbers<[2], [2], [1], [1], [0, 0, 0, 1, 1, 1], [0], [0]>} : vector<2x4x32xbf16>, vector<2x4x32xbf16>, vector<2x4x4xf32> -> vector<2x4x4xf32>
    "tpu.trace_stop"() : () -> ()
    %cst_36 = arith.constant 0.176776692 : f32
    %108 = vector.broadcast %cst_36 : f32 to vector<2x4x4xf32>
    %109 = arith.mulf %107, %108 : vector<2x4x4xf32>
    %cst_37 = arith.constant dense<0xFF800000> : vector<2x4xf32>
    %110 = vector.multi_reduction <maximumf>, %109, %cst_37 [2] : vector<2x4x4xf32> to vector<2x4xf32>
    %111 = vector.shape_cast %110 : vector<2x4xf32> to vector<2x4x1xf32>
    %112 = vector.broadcast %111 : vector<2x4x1xf32> to vector<2x4x4xf32>
    %113 = arith.subf %109, %112 : vector<2x4x4xf32>
    %114 = math.exp %113 : vector<2x4x4xf32>
    %cst_38 = arith.constant dense<0.000000e+00> : vector<2x4xf32>
    %115 = vector.multi_reduction <add>, %114, %cst_38 [2] : vector<2x4x4xf32> to vector<2x4xf32>
    %116 = vector.shape_cast %115 : vector<2x4xf32> to vector<2x4x1xf32>
    %117 = tpu.reciprocal %116 {approx = true} : vector<2x4x1xf32> -> vector<2x4x1xf32>
    %118 = vector.broadcast %117 : vector<2x4x1xf32> to vector<2x4x4xf32>
    %119 = arith.mulf %114, %118 : vector<2x4x4xf32>
    %120 = arith.truncf %119 : vector<2x4x4xf32> to vector<2x4x4xbf16>
    %121 = arith.truncf %104 : vector<2x4x32xf32> to vector<2x4x32xbf16>
    "tpu.trace_start"() <{level = 10 : i32, message = "bqk,bkd->bqd"}> : () -> ()
    %cst_39 = arith.constant dense<0.000000e+00> : vector<2x4x32xf32>
    %122 = tpu.matmul %120, %121, %cst_39 {dimension_numbers = #tpu.dot_dimension_numbers<[2], [1], [1], [2], [0, 0, 0, 1, 1, 2], [0], [0]>} : vector<2x4x4xbf16>, vector<2x4x32xbf16>, vector<2x4x32xf32> -> vector<2x4x32xf32>
    "tpu.trace_stop"() : () -> ()
    %123 = vector.shape_cast %122 : vector<2x4x32xf32> to vector<8x32xf32>
    %124 = vector.extract_strided_slice %35 {offsets = [64, 0], sizes = [32, 128], strides = [1, 1]} : vector<128x128xbf16> to vector<32x128xbf16>
    %125 = arith.truncf %123 : vector<8x32xf32> to vector<8x32xbf16>
    %cst_40 = arith.constant dense<0.000000e+00> : vector<8x128xf32>
    %126 = tpu.matmul %125, %124, %cst_40 {dimension_numbers = #tpu.dot_dimension_numbers<[1], [0], [0], [1], [0, 0, 1, 1], [], []>} : vector<8x32xbf16>, vector<32x128xbf16>, vector<8x128xf32> -> vector<8x128xf32>
    %127 = arith.addf %98, %126 : vector<8x128xf32>
    %128 = vector.extract_strided_slice %39 {offsets = [0, 96], sizes = [8, 32], strides = [1, 1]} : vector<8x384xf32> to vector<8x32xf32>
    %129 = vector.shape_cast %128 : vector<8x32xf32> to vector<2x4x32xf32>
    %130 = vector.extract_strided_slice %39 {offsets = [0, 224], sizes = [8, 32], strides = [1, 1]} : vector<8x384xf32> to vector<8x32xf32>
    %131 = vector.shape_cast %130 : vector<8x32xf32> to vector<2x4x32xf32>
    %132 = vector.extract_strided_slice %39 {offsets = [0, 352], sizes = [8, 32], strides = [1, 1]} : vector<8x384xf32> to vector<8x32xf32>
    %133 = vector.shape_cast %132 : vector<8x32xf32> to vector<2x4x32xf32>
    %134 = arith.truncf %129 : vector<2x4x32xf32> to vector<2x4x32xbf16>
    %135 = arith.truncf %131 : vector<2x4x32xf32> to vector<2x4x32xbf16>
    "tpu.trace_start"() <{level = 10 : i32, message = "bqd,bkd->bqk"}> : () -> ()
    %cst_41 = arith.constant dense<0.000000e+00> : vector<2x4x4xf32>
    %136 = tpu.matmul %134, %135, %cst_41 {dimension_numbers = #tpu.dot_dimension_numbers<[2], [2], [1], [1], [0, 0, 0, 1, 1, 1], [0], [0]>} : vector<2x4x32xbf16>, vector<2x4x32xbf16>, vector<2x4x4xf32> -> vector<2x4x4xf32>
    "tpu.trace_stop"() : () -> ()
    %cst_42 = arith.constant 0.176776692 : f32
    %137 = vector.broadcast %cst_42 : f32 to vector<2x4x4xf32>
    %138 = arith.mulf %136, %137 : vector<2x4x4xf32>
    %cst_43 = arith.constant dense<0xFF800000> : vector<2x4xf32>
    %139 = vector.multi_reduction <maximumf>, %138, %cst_43 [2] : vector<2x4x4xf32> to vector<2x4xf32>
    %140 = vector.shape_cast %139 : vector<2x4xf32> to vector<2x4x1xf32>
    %141 = vector.broadcast %140 : vector<2x4x1xf32> to vector<2x4x4xf32>
    %142 = arith.subf %138, %141 : vector<2x4x4xf32>
    %143 = math.exp %142 : vector<2x4x4xf32>
    %cst_44 = arith.constant dense<0.000000e+00> : vector<2x4xf32>
    %144 = vector.multi_reduction <add>, %143, %cst_44 [2] : vector<2x4x4xf32> to vector<2x4xf32>
    %145 = vector.shape_cast %144 : vector<2x4xf32> to vector<2x4x1xf32>
    %146 = tpu.reciprocal %145 {approx = true} : vector<2x4x1xf32> -> vector<2x4x1xf32>
    %147 = vector.broadcast %146 : vector<2x4x1xf32> to vector<2x4x4xf32>
    %148 = arith.mulf %143, %147 : vector<2x4x4xf32>
    %149 = arith.truncf %148 : vector<2x4x4xf32> to vector<2x4x4xbf16>
    %150 = arith.truncf %133 : vector<2x4x32xf32> to vector<2x4x32xbf16>
    "tpu.trace_start"() <{level = 10 : i32, message = "bqk,bkd->bqd"}> : () -> ()
    %cst_45 = arith.constant dense<0.000000e+00> : vector<2x4x32xf32>
    %151 = tpu.matmul %149, %150, %cst_45 {dimension_numbers = #tpu.dot_dimension_numbers<[2], [1], [1], [2], [0, 0, 0, 1, 1, 2], [0], [0]>} : vector<2x4x4xbf16>, vector<2x4x32xbf16>, vector<2x4x32xf32> -> vector<2x4x32xf32>
    "tpu.trace_stop"() : () -> ()
    %152 = vector.shape_cast %151 : vector<2x4x32xf32> to vector<8x32xf32>
    %153 = vector.extract_strided_slice %35 {offsets = [96, 0], sizes = [32, 128], strides = [1, 1]} : vector<128x128xbf16> to vector<32x128xbf16>
    %154 = arith.truncf %152 : vector<8x32xf32> to vector<8x32xbf16>
    %cst_46 = arith.constant dense<0.000000e+00> : vector<8x128xf32>
    %155 = tpu.matmul %154, %153, %cst_46 {dimension_numbers = #tpu.dot_dimension_numbers<[1], [0], [0], [1], [0, 0, 1, 1], [], []>} : vector<8x32xbf16>, vector<32x128xbf16>, vector<8x128xf32> -> vector<8x128xf32>
    %156 = arith.addf %127, %155 : vector<8x128xf32>
    %157 = arith.addf %3, %156 : vector<8x128xf32>
    %c0_47 = arith.constant 0 : index
    %c0_48 = arith.constant 0 : index
    %c0_49 = arith.constant 0 : index
    %158 = vector.load %arg9[%c0_47, %c0_48, %c0_49] : memref<1x1x128xf32, #tpu.memory_space<vmem>>, vector<1x1x128xf32>
    %159 = vector.shape_cast %158 : vector<1x1x128xf32> to vector<1x128xf32>
    %160 = vector.broadcast %159 : vector<1x128xf32> to vector<8x128xf32>
    %161 = arith.addf %157, %160 : vector<8x128xf32>
    %c0_50 = arith.constant 0 : index
    %c0_51 = arith.constant 0 : index
    %c0_52 = arith.constant 0 : index
    %162 = vector.load %arg10[%c0_50, %c0_51, %c0_52] : memref<1x1x128xf32, #tpu.memory_space<vmem>>, vector<1x1x128xf32>
    %163 = vector.shape_cast %162 : vector<1x1x128xf32> to vector<1x128xf32>
    %c0_53 = arith.constant 0 : index
    %c0_54 = arith.constant 0 : index
    %c0_55 = arith.constant 0 : index
    %164 = vector.load %arg11[%c0_53, %c0_54, %c0_55] : memref<1x1x128xf32, #tpu.memory_space<vmem>>, vector<1x1x128xf32>
    %165 = vector.shape_cast %164 : vector<1x1x128xf32> to vector<1x128xf32>
    %cst_56 = arith.constant dense<0.000000e+00> : vector<8xf32>
    %166 = vector.multi_reduction <add>, %161, %cst_56 [1] : vector<8x128xf32> to vector<8xf32>
    %167 = vector.shape_cast %166 : vector<8xf32> to vector<8x1xf32>
    %cst_57 = arith.constant 1.280000e+02 : f32
    %168 = vector.broadcast %cst_57 : f32 to vector<8x1xf32>
    %169 = arith.divf %167, %168 : vector<8x1xf32>
    %170 = vector.broadcast %169 : vector<8x1xf32> to vector<8x128xf32>
    %171 = arith.subf %161, %170 : vector<8x128xf32>
    %172 = arith.mulf %171, %171 : vector<8x128xf32>
    %cst_58 = arith.constant dense<0.000000e+00> : vector<8xf32>
    %173 = vector.multi_reduction <add>, %172, %cst_58 [1] : vector<8x128xf32> to vector<8xf32>
    %174 = vector.shape_cast %173 : vector<8xf32> to vector<8x1xf32>
    %cst_59 = arith.constant 1.280000e+02 : f32
    %175 = vector.broadcast %cst_59 : f32 to vector<8x1xf32>
    %176 = arith.divf %174, %175 : vector<8x1xf32>
    %177 = vector.broadcast %169 : vector<8x1xf32> to vector<8x128xf32>
    %178 = arith.subf %161, %177 : vector<8x128xf32>
    %cst_60 = arith.constant 9.99999997E-7 : f32
    %179 = vector.broadcast %cst_60 : f32 to vector<8x1xf32>
    %180 = arith.addf %176, %179 : vector<8x1xf32>
    %181 = math.rsqrt %180 : vector<8x1xf32>
    %182 = vector.broadcast %181 : vector<8x1xf32> to vector<8x128xf32>
    %183 = arith.mulf %178, %182 : vector<8x128xf32>
    %184 = vector.broadcast %163 : vector<1x128xf32> to vector<8x128xf32>
    %185 = arith.mulf %183, %184 : vector<8x128xf32>
    %186 = vector.broadcast %165 : vector<1x128xf32> to vector<8x128xf32>
    %187 = arith.addf %185, %186 : vector<8x128xf32>
    %c0_61 = arith.constant 0 : index
    %c0_62 = arith.constant 0 : index
    %c0_63 = arith.constant 0 : index
    %188 = vector.load %arg12[%c0_61, %c0_62, %c0_63] : memref<1x128x512xbf16, #tpu.memory_space<vmem>>, vector<1x128x512xbf16>
    %189 = vector.shape_cast %188 : vector<1x128x512xbf16> to vector<128x512xbf16>
    %190 = arith.truncf %187 : vector<8x128xf32> to vector<8x128xbf16>
    %cst_64 = arith.constant dense<0.000000e+00> : vector<8x512xf32>
    %191 = tpu.matmul %190, %189, %cst_64 {dimension_numbers = #tpu.dot_dimension_numbers<[1], [0], [0], [1], [0, 0, 1, 1], [], []>} : vector<8x128xbf16>, vector<128x512xbf16>, vector<8x512xf32> -> vector<8x512xf32>
    %c0_65 = arith.constant 0 : index
    %c0_66 = arith.constant 0 : index
    %c0_67 = arith.constant 0 : index
    %192 = vector.load %arg13[%c0_65, %c0_66, %c0_67] : memref<1x1x512xf32, #tpu.memory_space<vmem>>, vector<1x1x512xf32>
    %193 = vector.shape_cast %192 : vector<1x1x512xf32> to vector<1x512xf32>
    %194 = vector.broadcast %193 : vector<1x512xf32> to vector<8x512xf32>
    %195 = arith.addf %191, %194 : vector<8x512xf32>
    %cst_68 = arith.constant 5.000000e-01 : f32
    %196 = vector.broadcast %cst_68 : f32 to vector<8x512xf32>
    %197 = arith.mulf %196, %195 : vector<8x512xf32>
    %cst_69 = arith.constant 4.471500e-02 : f32
    %198 = vector.broadcast %cst_69 : f32 to vector<8x512xf32>
    %199 = arith.mulf %198, %195 : vector<8x512xf32>
    %200 = arith.mulf %199, %195 : vector<8x512xf32>
    %201 = arith.mulf %200, %195 : vector<8x512xf32>
    %202 = arith.addf %195, %201 : vector<8x512xf32>
    %cst_70 = arith.constant 0.797884583 : f32
    %203 = vector.broadcast %cst_70 : f32 to vector<8x512xf32>
    %204 = arith.mulf %203, %202 : vector<8x512xf32>
    %205 = math.tanh %204 : vector<8x512xf32>
    %cst_71 = arith.constant 1.000000e+00 : f32
    %206 = vector.broadcast %cst_71 : f32 to vector<8x512xf32>
    %207 = arith.addf %206, %205 : vector<8x512xf32>
    %208 = arith.mulf %197, %207 : vector<8x512xf32>
    %c0_72 = arith.constant 0 : index
    %c0_73 = arith.constant 0 : index
    %c0_74 = arith.constant 0 : index
    %209 = vector.load %arg14[%c0_72, %c0_73, %c0_74] : memref<1x512x128xbf16, #tpu.memory_space<vmem>>, vector<1x512x128xbf16>
    %210 = vector.shape_cast %209 : vector<1x512x128xbf16> to vector<512x128xbf16>
    %211 = arith.truncf %208 : vector<8x512xf32> to vector<8x512xbf16>
    %cst_75 = arith.constant dense<0.000000e+00> : vector<8x128xf32>
    %212 = tpu.matmul %211, %210, %cst_75 {dimension_numbers = #tpu.dot_dimension_numbers<[1], [0], [0], [1], [0, 0, 1, 1], [], []>} : vector<8x512xbf16>, vector<512x128xbf16>, vector<8x128xf32> -> vector<8x128xf32>
    %c0_76 = arith.constant 0 : index
    %c0_77 = arith.constant 0 : index
    %c0_78 = arith.constant 0 : index
    %213 = vector.load %arg15[%c0_76, %c0_77, %c0_78] : memref<1x1x128xf32, #tpu.memory_space<vmem>>, vector<1x1x128xf32>
    %214 = vector.shape_cast %213 : vector<1x1x128xf32> to vector<1x128xf32>
    %215 = vector.broadcast %214 : vector<1x128xf32> to vector<8x128xf32>
    %216 = arith.addf %212, %215 : vector<8x128xf32>
    %217 = arith.addf %161, %216 : vector<8x128xf32>
    %c0_79 = arith.constant 0 : index
    %c0_80 = arith.constant 0 : index
    %218 = vector.load %arg16[%c0_79, %c0_80] : memref<8x128xf32, #tpu.memory_space<vmem>>, vector<8x128xf32>
    tpu.vector_store %arg16[%c0_79, %c0_80], %217 {strides = array<i32>} : memref<8x128xf32, #tpu.memory_space<vmem>>, vector<8x128xf32>,
    return
  }
  func.func @transform_0(%arg0: i32) -> (i32, i32) {
    %c0_i32 = arith.constant 0 : i32
    %c0_i32_0 = arith.constant 0 : i32
    %c0_i32_1 = arith.constant 0 : i32
    return %c0_i32, %c0_i32_0 : i32, i32
  }
  func.func @transform_1(%arg0: i32) -> (i32, i32) {
    %c0_i32 = arith.constant 0 : i32
    %c0_i32_0 = arith.constant 0 : i32
    %c0_i32_1 = arith.constant 0 : i32
    return %c0_i32, %c0_i32_0 : i32, i32
  }
  func.func @transform_2(%arg0: i32) -> (i32, i32) {
    %c0_i32 = arith.constant 0 : i32
    %c0_i32_0 = arith.constant 0 : i32
    %c0_i32_1 = arith.constant 0 : i32
    return %c0_i32, %c0_i32_0 : i32, i32
  }
  func.func @transform_3(%arg0: i32) -> (i32, i32, i32) {
    %c0_i32 = arith.constant 0 : i32
    %c0_i32_0 = arith.constant 0 : i32
    %c0_i32_1 = arith.constant 0 : i32
    return %arg0, %c0_i32, %c0_i32_0 : i32, i32, i32
  }
  func.func @transform_4(%arg0: i32) -> (i32, i32, i32) {
    %c0_i32 = arith.constant 0 : i32
    %c0_i32_0 = arith.constant 0 : i32
    %c0_i32_1 = arith.constant 0 : i32
    return %arg0, %c0_i32, %c0_i32_0 : i32, i32, i32
  }
  func.func @transform_5(%arg0: i32) -> (i32, i32, i32) {
    %c0_i32 = arith.constant 0 : i32
    %c0_i32_0 = arith.constant 0 : i32
    %c0_i32_1 = arith.constant 0 : i32
    return %arg0, %c0_i32, %c0_i32_0 : i32, i32, i32
  }
  func.func @transform_6(%arg0: i32) -> (i32, i32, i32) {
    %c0_i32 = arith.constant 0 : i32
    %c0_i32_0 = arith.constant 0 : i32
    %c0_i32_1 = arith.constant 0 : i32
    return %arg0, %c0_i32, %c0_i32_0 : i32, i32, i32
  }
  func.func @transform_7(%arg0: i32) -> (i32, i32, i32) {
    %c0_i32 = arith.constant 0 : i32
    %c0_i32_0 = arith.constant 0 : i32
    %c0_i32_1 = arith.constant 0 : i32
    return %arg0, %c0_i32, %c0_i32_0 : i32, i32, i32
  }
  func.func @transform_8(%arg0: i32) -> (i32, i32, i32) {
    %c0_i32 = arith.constant 0 : i32
    %c0_i32_0 = arith.constant 0 : i32
    %c0_i32_1 = arith.constant 0 : i32
    return %arg0, %c0_i32, %c0_i32_0 : i32, i32, i32
  }
  func.func @transform_9(%arg0: i32) -> (i32, i32, i32) {
    %c0_i32 = arith.constant 0 : i32
    %c0_i32_0 = arith.constant 0 : i32
    %c0_i32_1 = arith.constant 0 : i32
    return %arg0, %c0_i32, %c0_i32_0 : i32, i32, i32
  }
  func.func @transform_10(%arg0: i32) -> (i32, i32, i32) {
    %c0_i32 = arith.constant 0 : i32
    %c0_i32_0 = arith.constant 0 : i32
    %c0_i32_1 = arith.constant 0 : i32
    return %arg0, %c0_i32, %c0_i32_0 : i32, i32, i32
  }
  func.func @transform_11(%arg0: i32) -> (i32, i32, i32) {
    %c0_i32 = arith.constant 0 : i32
    %c0_i32_0 = arith.constant 0 : i32
    %c0_i32_1 = arith.constant 0 : i32
    return %arg0, %c0_i32, %c0_i32_0 : i32, i32, i32
  }
  func.func @transform_12(%arg0: i32) -> (i32, i32, i32) {
    %c0_i32 = arith.constant 0 : i32
    %c0_i32_0 = arith.constant 0 : i32
    %c0_i32_1 = arith.constant 0 : i32
    return %arg0, %c0_i32, %c0_i32_0 : i32, i32, i32
  }
  func.func @transform_13(%arg0: i32) -> (i32, i32, i32) {
    %c0_i32 = arith.constant 0 : i32
    %c0_i32_0 = arith.constant 0 : i32
    %c0_i32_1 = arith.constant 0 : i32
    return %arg0, %c0_i32, %c0_i32_0 : i32, i32, i32
  }
  func.func @transform_14(%arg0: i32) -> (i32, i32, i32) {
    %c0_i32 = arith.constant 0 : i32
    %c0_i32_0 = arith.constant 0 : i32
    %c0_i32_1 = arith.constant 0 : i32
    return %arg0, %c0_i32, %c0_i32_0 : i32, i32, i32
  }
  func.func @transform_15(%arg0: i32) -> (i32, i32) {
    %c0_i32 = arith.constant 0 : i32
    %c0_i32_0 = arith.constant 0 : i32
    %c0_i32_1 = arith.constant 0 : i32
    return %c0_i32, %c0_i32_0 : i32, i32
  }
}

module attributes {stable_mosaic.version = 11 : i64} {
  func.func @_head_kernel(%arg0: i32, %arg1: memref<2x128xf32, #tpu.memory_space<vmem>>, %arg2: memref<2x128xf32, #tpu.memory_space<vmem>>, %arg3: memref<1x128xf32, #tpu.memory_space<vmem>>, %arg4: memref<1x128xf32, #tpu.memory_space<vmem>>, %arg5: memref<128x128xbf16, #tpu.memory_space<vmem>>, %arg6: memref<128x128xbf16, #tpu.memory_space<vmem>>, %arg7: memref<1x128xf32, #tpu.memory_space<vmem>>, %arg8: memref<2x128xf32, #tpu.memory_space<vmem>>) attributes {dimension_semantics = [#tpu.dimension_semantics<arbitrary>], iteration_bounds = array<i64: 1>, scalar_prefetch = 0 : i64, scratch_operands = 0 : i64, tpu.core_type = #tpu.core_type<tc>, window_params = [{pipeline_mode = #tpu.pipeline_mode<synchronous>, transform_indices = @transform_0, window_bounds = array<i64: 2, 128>}, {pipeline_mode = #tpu.pipeline_mode<synchronous>, transform_indices = @transform_1, window_bounds = array<i64: 2, 128>}, {pipeline_mode = #tpu.pipeline_mode<synchronous>, transform_indices = @transform_2, window_bounds = array<i64: 1, 128>}, {pipeline_mode = #tpu.pipeline_mode<synchronous>, transform_indices = @transform_3, window_bounds = array<i64: 1, 128>}, {pipeline_mode = #tpu.pipeline_mode<synchronous>, transform_indices = @transform_4, window_bounds = array<i64: 128, 128>}, {pipeline_mode = #tpu.pipeline_mode<synchronous>, transform_indices = @transform_5, window_bounds = array<i64: 128, 128>}, {pipeline_mode = #tpu.pipeline_mode<synchronous>, transform_indices = @transform_6, window_bounds = array<i64: 1, 128>}, {pipeline_mode = #tpu.pipeline_mode<synchronous>, transform_indices = @transform_7, window_bounds = array<i64: 2, 128>}]} {
    %c0 = arith.constant 0 : index
    %c0_0 = arith.constant 0 : index
    %0 = vector.load %arg2[%c0, %c0_0] : memref<2x128xf32, #tpu.memory_space<vmem>>, vector<2x128xf32>
    %c0_1 = arith.constant 0 : index
    %c0_2 = arith.constant 0 : index
    %1 = vector.load %arg3[%c0_1, %c0_2] : memref<1x128xf32, #tpu.memory_space<vmem>>, vector<1x128xf32>
    %c0_3 = arith.constant 0 : index
    %c0_4 = arith.constant 0 : index
    %2 = vector.load %arg4[%c0_3, %c0_4] : memref<1x128xf32, #tpu.memory_space<vmem>>, vector<1x128xf32>
    %cst = arith.constant dense<0.000000e+00> : vector<2xf32>
    %3 = vector.multi_reduction <add>, %0, %cst [1] : vector<2x128xf32> to vector<2xf32>
    %4 = vector.shape_cast %3 : vector<2xf32> to vector<2x1xf32>
    %cst_5 = arith.constant 1.280000e+02 : f32
    %5 = vector.broadcast %cst_5 : f32 to vector<2x1xf32>
    %6 = arith.divf %4, %5 : vector<2x1xf32>
    %7 = vector.broadcast %6 : vector<2x1xf32> to vector<2x128xf32>
    %8 = arith.subf %0, %7 : vector<2x128xf32>
    %9 = arith.mulf %8, %8 : vector<2x128xf32>
    %cst_6 = arith.constant dense<0.000000e+00> : vector<2xf32>
    %10 = vector.multi_reduction <add>, %9, %cst_6 [1] : vector<2x128xf32> to vector<2xf32>
    %11 = vector.shape_cast %10 : vector<2xf32> to vector<2x1xf32>
    %cst_7 = arith.constant 1.280000e+02 : f32
    %12 = vector.broadcast %cst_7 : f32 to vector<2x1xf32>
    %13 = arith.divf %11, %12 : vector<2x1xf32>
    %14 = vector.broadcast %6 : vector<2x1xf32> to vector<2x128xf32>
    %15 = arith.subf %0, %14 : vector<2x128xf32>
    %cst_8 = arith.constant 9.99999997E-7 : f32
    %16 = vector.broadcast %cst_8 : f32 to vector<2x1xf32>
    %17 = arith.addf %13, %16 : vector<2x1xf32>
    %18 = math.rsqrt %17 : vector<2x1xf32>
    %19 = vector.broadcast %18 : vector<2x1xf32> to vector<2x128xf32>
    %20 = arith.mulf %15, %19 : vector<2x128xf32>
    %21 = vector.broadcast %1 : vector<1x128xf32> to vector<2x128xf32>
    %22 = arith.mulf %20, %21 : vector<2x128xf32>
    %23 = vector.broadcast %2 : vector<1x128xf32> to vector<2x128xf32>
    %24 = arith.addf %22, %23 : vector<2x128xf32>
    %c0_9 = arith.constant 0 : index
    %c0_10 = arith.constant 0 : index
    %25 = vector.load %arg1[%c0_9, %c0_10] : memref<2x128xf32, #tpu.memory_space<vmem>>, vector<2x128xf32>
    %c0_11 = arith.constant 0 : index
    %c0_12 = arith.constant 0 : index
    %26 = vector.load %arg5[%c0_11, %c0_12] : memref<128x128xbf16, #tpu.memory_space<vmem>>, vector<128x128xbf16>
    %27 = arith.truncf %25 : vector<2x128xf32> to vector<2x128xbf16>
    %cst_13 = arith.constant dense<0.000000e+00> : vector<2x128xf32>
    %28 = tpu.matmul %27, %26, %cst_13 {dimension_numbers = #tpu.dot_dimension_numbers<[1], [0], [0], [1], [0, 0, 1, 1], [], []>} : vector<2x128xbf16>, vector<128x128xbf16>, vector<2x128xf32> -> vector<2x128xf32>
    %c0_14 = arith.constant 0 : index
    %c0_15 = arith.constant 0 : index
    %29 = vector.load %arg6[%c0_14, %c0_15] : memref<128x128xbf16, #tpu.memory_space<vmem>>, vector<128x128xbf16>
    %30 = arith.truncf %24 : vector<2x128xf32> to vector<2x128xbf16>
    %cst_16 = arith.constant dense<0.000000e+00> : vector<2x128xf32>
    %31 = tpu.matmul %30, %29, %cst_16 {dimension_numbers = #tpu.dot_dimension_numbers<[1], [0], [0], [1], [0, 0, 1, 1], [], []>} : vector<2x128xbf16>, vector<128x128xbf16>, vector<2x128xf32> -> vector<2x128xf32>
    %32 = arith.addf %28, %31 : vector<2x128xf32>
    %c0_17 = arith.constant 0 : index
    %c0_18 = arith.constant 0 : index
    %33 = vector.load %arg7[%c0_17, %c0_18] : memref<1x128xf32, #tpu.memory_space<vmem>>, vector<1x128xf32>
    %34 = vector.broadcast %33 : vector<1x128xf32> to vector<2x128xf32>
    %35 = arith.addf %32, %34 : vector<2x128xf32>
    %36 = arith.negf %35 : vector<2x128xf32>
    %37 = math.exp %36 : vector<2x128xf32>
    %cst_19 = arith.constant 1.000000e+00 : f32
    %38 = vector.broadcast %cst_19 : f32 to vector<2x128xf32>
    %39 = arith.addf %38, %37 : vector<2x128xf32>
    %40 = arith.divf %38, %39 : vector<2x128xf32>
    %c0_20 = arith.constant 0 : index
    %c0_21 = arith.constant 0 : index
    %41 = vector.load %arg8[%c0_20, %c0_21] : memref<2x128xf32, #tpu.memory_space<vmem>>, vector<2x128xf32>
    tpu.vector_store %arg8[%c0_20, %c0_21], %40 {strides = array<i32>} : memref<2x128xf32, #tpu.memory_space<vmem>>, vector<2x128xf32>,
    return
  }
  func.func @transform_0(%arg0: i32) -> (i32, i32) {
    %c0_i32 = arith.constant 0 : i32
    %c0_i32_0 = arith.constant 0 : i32
    %c0_i32_1 = arith.constant 0 : i32
    return %c0_i32, %c0_i32_0 : i32, i32
  }
  func.func @transform_1(%arg0: i32) -> (i32, i32) {
    %c0_i32 = arith.constant 0 : i32
    %c0_i32_0 = arith.constant 0 : i32
    %c0_i32_1 = arith.constant 0 : i32
    return %c0_i32, %c0_i32_0 : i32, i32
  }
  func.func @transform_2(%arg0: i32) -> (i32, i32) {
    %c0_i32 = arith.constant 0 : i32
    %c0_i32_0 = arith.constant 0 : i32
    %c0_i32_1 = arith.constant 0 : i32
    return %c0_i32, %c0_i32_0 : i32, i32
  }
  func.func @transform_3(%arg0: i32) -> (i32, i32) {
    %c0_i32 = arith.constant 0 : i32
    %c0_i32_0 = arith.constant 0 : i32
    %c0_i32_1 = arith.constant 0 : i32
    return %c0_i32, %c0_i32_0 : i32, i32
  }
  func.func @transform_4(%arg0: i32) -> (i32, i32) {
    %c0_i32 = arith.constant 0 : i32
    %c0_i32_0 = arith.constant 0 : i32
    %c0_i32_1 = arith.constant 0 : i32
    return %c0_i32, %c0_i32_0 : i32, i32
  }
  func.func @transform_5(%arg0: i32) -> (i32, i32) {
    %c0_i32 = arith.constant 0 : i32
    %c0_i32_0 = arith.constant 0 : i32
    %c0_i32_1 = arith.constant 0 : i32
    return %c0_i32, %c0_i32_0 : i32, i32
  }
  func.func @transform_6(%arg0: i32) -> (i32, i32) {
    %c0_i32 = arith.constant 0 : i32
    %c0_i32_0 = arith.constant 0 : i32
    %c0_i32_1 = arith.constant 0 : i32
    return %c0_i32, %c0_i32_0 : i32, i32
  }
  func.func @transform_7(%arg0: i32) -> (i32, i32) {
    %c0_i32 = arith.constant 0 : i32
    %c0_i32_0 = arith.constant 0 : i32
    %c0_i32_1 = arith.constant 0 : i32
    return %c0_i32, %c0_i32_0 : i32, i32
  }
}

</mosaic_0001>

<llo_original>
// kernel: bert_image_forward.5
$region0: #{bert_image_forward.5}
  #allocation0 [shape = 'u32[]', space=smem, size = 0x4, offset = 0x4, fixed_abs, tag = 'smem constant byte address 0x4 - core index']
  #allocation1 [shape = 'u32[144,128]{1,0:T(1,128)}', space=vmem, size = 0x12000, scoped, tag = 'internal scratch']
  %s0 = inlined_call_operand.vmem [shape: f32[2,128], index: 0, kind: input, shape index: {}]
  %s1 = inlined_call_operand.vmem [shape: f32[2,128], index: 1, kind: input, shape index: {}]
  %s2 = inlined_call_operand.vmem [shape: f32[1,128], index: 2, kind: input, shape index: {}]
  %s3 = inlined_call_operand.vmem [shape: f32[1,128], index: 3, kind: input, shape index: {}]
  %s4 = inlined_call_operand.vmem [shape: bf16[128,128], index: 4, kind: input, shape index: {}]
  %s5 = inlined_call_operand.vmem [shape: bf16[128,128], index: 5, kind: input, shape index: {}]
  %s6 = inlined_call_operand.vmem [shape: f32[1,128], index: 6, kind: input, shape index: {}]
  %s7 = inlined_call_operand.vmem [shape: f32[2,128], index: 7, kind: output, shape index: {}]
  %s8 = sld [smem:[#allocation0]]
  $region38: #{bert_image_forward.5} parent=0
    _
  %s10 = ssub.s32 1, %s8
  %s11 = scalar_select 0, %s10, %s8
  // Predicated region
  $region2: #{bert_image_forward.5} parent=0 // pred_check
    _
  $region3: #{bert_image_forward.5} parent=0 // pred_check_branch
    %13 = sbr.rel (0) target = $region5
  $region4: #{bert_image_forward.5} parent=0 // pred_region
    _
  $region5: #{bert_image_forward.5} parent=0 // pred_fallthru
    _
  // Predicated region
  $region6: #{bert_image_forward.5} parent=0 // pred_check
    _
  $region7: #{bert_image_forward.5} parent=0 // pred_check_branch
    %15 = sbr.rel (0) target = $region9
  $region8: #{bert_image_forward.5} parent=0 // pred_region
    _
  $region9: #{bert_image_forward.5} parent=0 // pred_fallthru
    _
  // Predicated region
  $region10: #{bert_image_forward.5} parent=0 // pred_check
    _
  $region11: #{bert_image_forward.5} parent=0 // pred_check_branch
    %17 = sbr.rel (0) target = $region13
  $region12: #{bert_image_forward.5} parent=0 // pred_region
    _
  $region13: #{bert_image_forward.5} parent=0 // pred_fallthru
    _
  // Predicated region
  $region14: #{bert_image_forward.5} parent=0 // pred_check
    _
  $region15: #{bert_image_forward.5} parent=0 // pred_check_branch
    %19 = sbr.rel (0) target = $region17
  $region16: #{bert_image_forward.5} parent=0 // pred_region
    _
  $region17: #{bert_image_forward.5} parent=0 // pred_fallthru
    _
  // Predicated region
  $region18: #{bert_image_forward.5} parent=0 // pred_check
    _
  $region19: #{bert_image_forward.5} parent=0 // pred_check_branch
    %21 = sbr.rel (0) target = $region21
  $region20: #{bert_image_forward.5} parent=0 // pred_region
    _
  $region21: #{bert_image_forward.5} parent=0 // pred_fallthru
    _
  // Predicated region
  $region22: #{bert_image_forward.5} parent=0 // pred_check
    _
  $region23: #{bert_image_forward.5} parent=0 // pred_check_branch
    %23 = sbr.rel (0) target = $region25
  $region24: #{bert_image_forward.5} parent=0 // pred_region
    _
  $region25: #{bert_image_forward.5} parent=0 // pred_fallthru
    _
  // Predicated region
  $region26: #{bert_image_forward.5} parent=0 // pred_check
    _
  $region27: #{bert_image_forward.5} parent=0 // pred_check_branch
    %25 = sbr.rel (0) target = $region29
  $region28: #{bert_image_forward.5} parent=0 // pred_region
    _
  $region29: #{bert_image_forward.5} parent=0 // pred_fallthru
    _
  %v27 = vld [vmem:[%s1] sm:$0x3]
  %v28 = vld [vmem:[%s2] sm:$0x1]
  %v29 = vld [vmem:[%s3] sm:$0x1]
  %vm30 = vcmask 1041408
  %v31 = vsel %vm30, %v27, 0.0
  %32 = vadd.xlane.f32.xlu0 %v31
  %v33 = vpop.xlane.xlu0 %32
  %v34 = vrcp.pop 128.0
  %v35 = vmul.f32 %v33, %v34
  %v36 = vsub.f32 %v27, %v35
  %v37 = vmul.f32 %v36, %v36
  %v38 = vsel %vm30, %v37, 0.0
  %39 = vadd.xlane.f32.xlu0 %v38
  %v40 = vpop.xlane.xlu0 %39
  %v41 = vmul.f32 %v40, %v34
  %v42 = vadd.f32 %v41, 1e-06
  %v43 = vrsqrt.pop %v42
  %v44 = vmul.f32 %v36, %v43
  %v46 = vlaneseq
  %v47 = vshrl.u32 %v46, 7
  %v48 = vsub.s32 0, %v47
  %v49 = vrot.slane %v28, %v48
  %v51 = vmul.f32 %v44, %v49
  %v53 = vlaneseq
  %v54 = vshrl.u32 %v53, 7
  %v55 = vsub.s32 0, %v54
  %v56 = vrot.slane %v29, %v55
  %v58 = vadd.f32 %v51, %v56
  %v59 = vld [vmem:[%s0] sm:$0x3]
  %v60 = vld [vmem:[%s4] sm:$0xf]
  %v61 = vld [vmem:[%s4 + $0x4] sm:$0xf]
  %v62 = vld [vmem:[%s4 + $0x8] sm:$0xf]
  %v63 = vld [vmem:[%s4 + $0xc] sm:$0xf]
  %v64 = vld [vmem:[%s4 + $0x10] sm:$0xf]
  %v65 = vld [vmem:[%s4 + $0x14] sm:$0xf]
  %v66 = vld [vmem:[%s4 + $0x18] sm:$0xf]
  %v67 = vld [vmem:[%s4 + $0x1c] sm:$0xf]
  %v68 = vld [vmem:[%s4 + $0x20] sm:$0xf]
  %v69 = vld [vmem:[%s4 + $0x24] sm:$0xf]
  %v70 = vld [vmem:[%s4 + $0x28] sm:$0xf]
  %v71 = vld [vmem:[%s4 + $0x2c] sm:$0xf]
  %v72 = vld [vmem:[%s4 + $0x30] sm:$0xf]
  %v73 = vld [vmem:[%s4 + $0x34] sm:$0xf]
  %v74 = vld [vmem:[%s4 + $0x38] sm:$0xf]
  %v75 = vld [vmem:[%s4 + $0x3c] sm:$0xf]
  %v76 = vpack.c.bf16 %v59, %v59
  %v77 = vld [vmem:[%s5] sm:$0xf]
  %v78 = vld [vmem:[%s5 + $0x4] sm:$0xf]
  %v79 = vld [vmem:[%s5 + $0x8] sm:$0xf]
  %v80 = vld [vmem:[%s5 + $0xc] sm:$0xf]
  %v81 = vld [vmem:[%s5 + $0x10] sm:$0xf]
  %v82 = vld [vmem:[%s5 + $0x14] sm:$0xf]
  %v83 = vld [vmem:[%s5 + $0x18] sm:$0xf]
  %v84 = vld [vmem:[%s5 + $0x1c] sm:$0xf]
  %v85 = vld [vmem:[%s5 + $0x20] sm:$0xf]
  %v86 = vld [vmem:[%s5 + $0x24] sm:$0xf]
  %v87 = vld [vmem:[%s5 + $0x28] sm:$0xf]
  %v88 = vld [vmem:[%s5 + $0x2c] sm:$0xf]
  %v89 = vld [vmem:[%s5 + $0x30] sm:$0xf]
  %v90 = vld [vmem:[%s5 + $0x34] sm:$0xf]
  %v91 = vld [vmem:[%s5 + $0x38] sm:$0xf]
  %v92 = vld [vmem:[%s5 + $0x3c] sm:$0xf]
  %v93 = vpack.c.bf16 %v58, %v58
  %v110 = vunpack.c.l.b16 %v77
  %v111 = vunpack.c.l.b16 %v78
  %v112 = vunpack.c.l.b16 %v79
  %v113 = vunpack.c.l.b16 %v80
  %v114 = vunpack.c.l.b16 %v81
  %v115 = vunpack.c.l.b16 %v82
  %v116 = vunpack.c.l.b16 %v83
  %v117 = vunpack.c.l.b16 %v84
  %v118 = vunpack.c.l.b16 %v85
  %v119 = vunpack.c.l.b16 %v86
  %v120 = vunpack.c.l.b16 %v87
  %v121 = vunpack.c.l.b16 %v88
  %v122 = vunpack.c.l.b16 %v89
  %v123 = vunpack.c.l.b16 %v90
  %v124 = vunpack.c.l.b16 %v91
  %v125 = vunpack.c.l.b16 %v92
  %v126 = vpack.c.b16 %v111, %v110
  %v127 = vpack.c.b16 %v113, %v112
  %v128 = vpack.c.b16 %v115, %v114
  %v129 = vpack.c.b16 %v117, %v116
  %v130 = vpack.c.b16 %v119, %v118
  %v131 = vpack.c.b16 %v121, %v120
  %v132 = vpack.c.b16 %v123, %v122
  %v133 = vpack.c.b16 %v125, %v124
  %142 = vmatprep.subr.bf16.mxu0 0
  %143 = vmatpush1.bf16.msra.mxu0 %v133
  %144 = vmatprep.subr.bf16.mxu0 0
  %145 = vmatpush1.bf16.msra.mxu0 %v132
  %146 = vmatprep.subr.bf16.mxu0 0
  %147 = vmatpush1.bf16.msra.mxu0 %v131
  %148 = vmatprep.subr.bf16.mxu0 0
  %149 = vmatpush1.bf16.msra.mxu0 %v130
  %150 = vmatprep.subr.bf16.mxu0 0
  %151 = vmatpush1.bf16.msra.mxu0 %v129
  %152 = vmatprep.subr.bf16.mxu0 0
  %153 = vmatpush1.bf16.msra.mxu0 %v128
  %154 = vmatprep.subr.bf16.mxu0 0
  %155 = vmatpush1.bf16.msra.mxu0 %v127
  %156 = vmatprep.subr.bf16.mxu0 0
  %157 = vmatpush1.bf16.msra.mxu0 %v126
  %158 = vmatprep.subr.bf16.mxu0 0
  %159 = vmatpush2.bf16.msra.mxu0 0
  %160 = vmatprep.subr.bf16.mxu0 0
  %161 = vmatpush2.bf16.msra.mxu0 0
  %162 = vmatprep.subr.bf16.mxu0 0
  %163 = vmatpush2.bf16.msra.mxu0 0
  %164 = vmatprep.subr.bf16.mxu0 0
  %165 = vmatpush2.bf16.msra.mxu0 0
  %166 = vmatprep.subr.bf16.mxu0 0
  %167 = vmatpush2.bf16.msra.mxu0 0
  %168 = vmatprep.subr.bf16.mxu0 0
  %169 = vmatpush2.bf16.msra.mxu0 0
  %170 = vmatprep.subr.bf16.mxu0 0
  %171 = vmatpush2.bf16.msra.mxu0 0
  %172 = vmatprep.subr.bf16.mxu0 0
  %173 = vmatpush2.bf16.msra.mxu0 0
  %174 = vmatprep.mubr.bf16.mxu0 0
  %175 = vmatmul.mubr.bf16.gmra.mxu0 %v93
  %v176 = vpop.f32.mrf.mxu0
  %v177 = vadd.f32 0.0, %v176
  %v178 = vpop.f32.mrf.mxu0
  %v179 = vpop.f32.mrf.mxu0
  %v180 = vpop.f32.mrf.mxu0
  %181 = vdwg.mxu0
  %v198 = vunpack.c.l.b16 %v60
  %v199 = vunpack.c.l.b16 %v61
  %v200 = vunpack.c.l.b16 %v62
  %v201 = vunpack.c.l.b16 %v63
  %v202 = vunpack.c.l.b16 %v64
  %v203 = vunpack.c.l.b16 %v65
  %v204 = vunpack.c.l.b16 %v66
  %v205 = vunpack.c.l.b16 %v67
  %v206 = vunpack.c.l.b16 %v68
  %v207 = vunpack.c.l.b16 %v69
  %v208 = vunpack.c.l.b16 %v70
  %v209 = vunpack.c.l.b16 %v71
  %v210 = vunpack.c.l.b16 %v72
  %v211 = vunpack.c.l.b16 %v73
  %v212 = vunpack.c.l.b16 %v74
  %v213 = vunpack.c.l.b16 %v75
  %v214 = vpack.c.b16 %v199, %v198
  %v215 = vpack.c.b16 %v201, %v200
  %v216 = vpack.c.b16 %v203, %v202
  %v217 = vpack.c.b16 %v205, %v204
  %v218 = vpack.c.b16 %v207, %v206
  %v219 = vpack.c.b16 %v209, %v208
  %v220 = vpack.c.b16 %v211, %v210
  %v221 = vpack.c.b16 %v213, %v212
  %230 = vmatprep.subr.bf16.mxu0 0
  %231 = vmatpush1.bf16.msra.mxu0 %v221
  %232 = vmatprep.subr.bf16.mxu0 0
  %233 = vmatpush1.bf16.msra.mxu0 %v220
  %234 = vmatprep.subr.bf16.mxu0 0
  %235 = vmatpush1.bf16.msra.mxu0 %v219
  %236 = vmatprep.subr.bf16.mxu0 0
  %237 = vmatpush1.bf16.msra.mxu0 %v218
  %238 = vmatprep.subr.bf16.mxu0 0
  %239 = vmatpush1.bf16.msra.mxu0 %v217
  %240 = vmatprep.subr.bf16.mxu0 0
  %241 = vmatpush1.bf16.msra.mxu0 %v216
  %242 = vmatprep.subr.bf16.mxu0 0
  %243 = vmatpush1.bf16.msra.mxu0 %v215
  %244 = vmatprep.subr.bf16.mxu0 0
  %245 = vmatpush1.bf16.msra.mxu0 %v214
  %246 = vmatprep.subr.bf16.mxu0 0
  %247 = vmatpush2.bf16.msra.mxu0 0
  %248 = vmatprep.subr.bf16.mxu0 0
  %249 = vmatpush2.bf16.msra.mxu0 0
  %250 = vmatprep.subr.bf16.mxu0 0
  %251 = vmatpush2.bf16.msra.mxu0 0
  %252 = vmatprep.subr.bf16.mxu0 0
  %253 = vmatpush2.bf16.msra.mxu0 0
  %254 = vmatprep.subr.bf16.mxu0 0
  %255 = vmatpush2.bf16.msra.mxu0 0
  %256 = vmatprep.subr.bf16.mxu0 0
  %257 = vmatpush2.bf16.msra.mxu0 0
  %258 = vmatprep.subr.bf16.mxu0 0
  %259 = vmatpush2.bf16.msra.mxu0 0
  %260 = vmatprep.subr.bf16.mxu0 0
  %261 = vmatpush2.bf16.msra.mxu0 0
  %262 = vmatprep.mubr.bf16.mxu0 0
  %263 = vmatmul.mubr.bf16.gmra.mxu0 %v76
  %v264 = vpop.f32.mrf.mxu0
  %v265 = vadd.f32 %v177, %v264
  %v266 = vpop.f32.mrf.mxu0
  %v267 = vpop.f32.mrf.mxu0
  %v268 = vpop.f32.mrf.mxu0
  %269 = vdwg.mxu0
  %v270 = vld [vmem:[%s6] sm:$0x1]
  %v272 = vlaneseq
  %v273 = vshrl.u32 %v272, 7
  %v274 = vsub.s32 0, %v273
  %v275 = vrot.slane %v270, %v274
  %v277 = vadd.f32 %v265, %v275
  %v278 = vxor.u32 %v277, 2147483648
  %v279 = vmul.f32 %v278, 1.442695
  %v280 = vpow.pop %v279
  %v281 = vadd.f32 %v280, 1.0
  %v282 = vrcp.pop %v281
  %v283 = vmul.f32 1.0, %v282
  %284 = vst [vmem:[%s7] sm:$0x3] %v283
  // Predicated region
  $region30: #{bert_image_forward.5} parent=0 // pred_check
    _
  $region31: #{bert_image_forward.5} parent=0 // pred_check_branch
    %286 = sbr.rel (0) target = $region33
  $region32: #{bert_image_forward.5} parent=0 // pred_region
    _
  $region33: #{bert_image_forward.5} parent=0 // pred_fallthru
    _
  // Predicated region
  $region34: #{bert_image_forward.5} parent=0 // pred_check
    _
  $region35: #{bert_image_forward.5} parent=0 // pred_check_branch
    %288 = sbr.rel (0) target = $region37
  $region36: #{bert_image_forward.5} parent=0 // pred_region
    _
  $region37: #{bert_image_forward.5} parent=0 // pred_fallthru
    _

// kernel: bert_image_forward.4
$region0: #{bert_image_forward.4}
  #allocation0 [shape = 'u32[]', space=smem, size = 0x4, offset = 0x4, fixed_abs, tag = 'smem constant byte address 0x4 - core index']
  #allocation1 [shape = 'u32[144,128]{1,0:T(1,128)}', space=vmem, size = 0x12000, scoped, tag = 'internal scratch']
  %s0 = inlined_call_operand.vmem [shape: f32[16,128], index: 0, kind: input, shape index: {}]
  %s1 = inlined_call_operand.vmem [shape: f32[1,128], index: 1, kind: input, shape index: {}]
  %s2 = inlined_call_operand.vmem [shape: f32[1,128], index: 2, kind: input, shape index: {}]
  %s3 = inlined_call_operand.vmem [shape: f32[2,128], index: 3, kind: input, shape index: {}]
  %s4 = inlined_call_operand.hbm [shape: bf16[2,128,384], index: 4, kind: input, shape index: {}]
  %s5 = inlined_call_operand.vmem [shape: f32[2,1,384], index: 5, kind: input, shape index: {}]
  %s6 = inlined_call_operand.vmem [shape: bf16[2,128,128], index: 6, kind: input, shape index: {}]
  %s7 = inlined_call_operand.vmem [shape: f32[2,1,128], index: 7, kind: input, shape index: {}]
  %s8 = inlined_call_operand.vmem [shape: f32[2,1,128], index: 8, kind: input, shape index: {}]
  %s9 = inlined_call_operand.vmem [shape: f32[2,1,128], index: 9, kind: input, shape index: {}]
  %s10 = inlined_call_operand.hbm [shape: bf16[2,128,512], index: 10, kind: input, shape index: {}]
  %s11 = inlined_call_operand.vmem [shape: f32[2,1,512], index: 11, kind: input, shape index: {}]
  %s12 = inlined_call_operand.hbm [shape: bf16[2,512,128], index: 12, kind: input, shape index: {}]
  %s13 = inlined_call_operand.vmem [shape: f32[2,1,128], index: 13, kind: input, shape index: {}]
  %s14 = inlined_call_operand.vmem [shape: f32[2,1,128], index: 14, kind: input, shape index: {}]
  %s15 = inlined_call_operand.vmem [shape: f32[2,1,128], index: 15, kind: input, shape index: {}]
  %s16 = inlined_call_operand.vmem [shape: f32[16,128], index: 16, kind: output, shape index: {}]
  %s17 = sld [smem:[#allocation0]]
  $region113: #{bert_image_forward.4} parent=0
    _
  %s19 = ssub.s32 1, %s17
  %s20 = scalar_select 0, %s19, %s17
  $region1: #{bert_image_forward.4} parent=0
    #allocation2 [shape = 'u8[196608]{0}', space=vmem, size = 0x30000, scoped, tag = 'input window, operand 4']
    #allocation3 [shape = 's32[2]{0}', space=sflag, size = 0x8, scoped, tag = 'scoped memory for bert_image_forward.4']
    #allocation4 [shape = 'u8[262144]{0}', space=vmem, size = 0x40000, scoped, tag = 'input window, operand 10']
    #allocation5 [shape = 's32[2]{0}', space=sflag, size = 0x8, scoped, tag = 'scoped memory for bert_image_forward.4']
    #allocation6 [shape = 'u8[262144]{0}', space=vmem, size = 0x40000, scoped, tag = 'input window, operand 12']
    %21 = vsyncpa [#allocation3], 0
    %s22 = scalar_lea.sflag [#allocation3], 1
    %23 = vsyncpa %s22, 0
    %24 = vsyncpa [#allocation5], 0
    %s25 = scalar_lea.sflag [#allocation5], 1
    %26 = vsyncpa %s25, 0
    loop: start=0, step=1, limit=4
    $region2: #{bert_image_forward.4} parent=1 // loop_pre_header
      _
    $region3: #{bert_image_forward.4} parent=1 // loop_header
      %s28 = sphi 0, %s32
      %p29 = scmp.ge.s32.totalorder %s28, 4
      %s36 = sphi 0, %s36
      %s38 = sphi 0, %s36
      %s39 = sphi 0, %s38
      %s53 = sphi 0, %s39
      %s57 = sphi 0, %s57
      %s59 = sphi 0, %s57
      %s60 = sphi 0, %s59
      %s74 = sphi 0, %s60
      %s78 = sphi 0, %s78
      %s80 = sphi 0, %s78
      %s81 = sphi 0, %s80
      %s95 = sphi 0, %s81
      %s99 = sphi 0, %s99
      %s101 = sphi 0, %s99
      %s102 = sphi 0, %s101
      %s116 = sphi 0, %s102
      %s122 = sphi 0, %s124
      %s125 = sphi 0, %s122
      %s126 = sphi 0, %s125
      %s142 = sphi 0, %s126
      %s148 = sphi 0, %s150
      %s151 = sphi 0, %s148
      %s152 = sphi 0, %s151
      %s168 = sphi 0, %s152
      %s174 = sphi 0, %s176
      %s177 = sphi 0, %s174
      %s178 = sphi 0, %s177
      %s194 = sphi 0, %s178
      %s200 = sphi 0, %s202
      %s203 = sphi 0, %s200
      %s204 = sphi 0, %s203
      %s220 = sphi 0, %s204
      %s226 = sphi 0, %s228
      %s229 = sphi 0, %s226
      %s230 = sphi 0, %s229
      %s246 = sphi 0, %s230
      %s252 = sphi 0, %s254
      %s255 = sphi 0, %s252
      %s256 = sphi 0, %s255
      %s272 = sphi 0, %s256
      %s278 = sphi 0, %s280
      %s281 = sphi 0, %s278
      %s282 = sphi 0, %s281
      %s298 = sphi 0, %s282
      %s304 = sphi 0, %s306
      %s307 = sphi 0, %s304
      %s308 = sphi 0, %s307
      %s324 = sphi 0, %s308
      %s330 = sphi 0, %s332
      %s333 = sphi 0, %s330
      %s334 = sphi 0, %s333
      %s350 = sphi 0, %s334
      %s356 = sphi 0, %s358
      %s359 = sphi 0, %s356
      %s360 = sphi 0, %s359
      %s376 = sphi 0, %s360
      %s382 = sphi 0, %s384
      %s385 = sphi 0, %s382
      %s386 = sphi 0, %s385
      %s402 = sphi 0, %s386
      %s408 = sphi 0, %s410
      %s411 = sphi 0, %s408
      %s412 = sphi 0, %s411
      %s428 = sphi 0, %s412
      %s432 = sphi 0, %s432
      %s434 = sphi 0, %s432
      %s435 = sphi 0, %s434
      %s449 = sphi 0, %s435
    $region4: #{bert_image_forward.4} parent=1 // loop_header_branch
      %31 = sbr.rel (%p29) target = $region8
    $region5: #{bert_image_forward.4} parent=1 // loop_body
      %s33 = ssub.s32 %s28, 1
      %s34 = ssub.s32 %s28, 2
      %s35 = sadd.s32 %s28, 1
      %s37 = sadd.s32 %s36, 1
      %p40 = scmp.eq.s32.totalorder %s28, 1
      %p41 = scmp.ne.s32.totalorder %s36, %s38
      %p42 = scmp.eq.s32.totalorder %s28, 0
      %p43 = por %p41, %p42
      %p44 = scmp.ne.s32.totalorder %s36, %s38
      %p45 = scmp.eq.s32.totalorder %s33, 1
      %p46 = por %p44, %p45
      %p47 = scmp.ne.s32.totalorder %s38, %s39
      %p48 = scmp.eq.s32.totalorder %s33, 0
      %p49 = por %p47, %p48
      %p50 = scmp.ne.s32.totalorder %s38, %s39
      %p51 = scmp.eq.s32.totalorder %s34, 1
      %p52 = por %p50, %p51
      %p54 = scmp.ne.s32.totalorder %s39, %s53
      %p55 = scmp.eq.s32.totalorder %s34, 0
      %p56 = por %p54, %p55
      %s58 = sadd.s32 %s57, 1
      %p61 = scmp.eq.s32.totalorder %s28, 1
      %p62 = scmp.ne.s32.totalorder %s57, %s59
      %p63 = scmp.eq.s32.totalorder %s28, 0
      %p64 = por %p62, %p63
      %p65 = scmp.ne.s32.totalorder %s57, %s59
      %p66 = scmp.eq.s32.totalorder %s33, 1
      %p67 = por %p65, %p66
      %p68 = scmp.ne.s32.totalorder %s59, %s60
      %p69 = scmp.eq.s32.totalorder %s33, 0
      %p70 = por %p68, %p69
      %p71 = scmp.ne.s32.totalorder %s59, %s60
      %p72 = scmp.eq.s32.totalorder %s34, 1
      %p73 = por %p71, %p72
      %p75 = scmp.ne.s32.totalorder %s60, %s74
      %p76 = scmp.eq.s32.totalorder %s34, 0
      %p77 = por %p75, %p76
      %s79 = sadd.s32 %s78, 1
      %p82 = scmp.eq.s32.totalorder %s28, 1
      %p83 = scmp.ne.s32.totalorder %s78, %s80
      %p84 = scmp.eq.s32.totalorder %s28, 0
      %p85 = por %p83, %p84
      %p86 = scmp.ne.s32.totalorder %s78, %s80
      %p87 = scmp.eq.s32.totalorder %s33, 1
      %p88 = por %p86, %p87
      %p89 = scmp.ne.s32.totalorder %s80, %s81
      %p90 = scmp.eq.s32.totalorder %s33, 0
      %p91 = por %p89, %p90
      %p92 = scmp.ne.s32.totalorder %s80, %s81
      %p93 = scmp.eq.s32.totalorder %s34, 1
      %p94 = por %p92, %p93
      %p96 = scmp.ne.s32.totalorder %s81, %s95
      %p97 = scmp.eq.s32.totalorder %s34, 0
      %p98 = por %p96, %p97
      %s100 = sadd.s32 %s99, 1
      %p103 = scmp.eq.s32.totalorder %s28, 1
      %p104 = scmp.ne.s32.totalorder %s99, %s101
      %p105 = scmp.eq.s32.totalorder %s28, 0
      %p106 = por %p104, %p105
      %p107 = scmp.ne.s32.totalorder %s99, %s101
      %p108 = scmp.eq.s32.totalorder %s33, 1
      %p109 = por %p107, %p108
      %p110 = scmp.ne.s32.totalorder %s101, %s102
      %p111 = scmp.eq.s32.totalorder %s33, 0
      %p112 = por %p110, %p111
      %p113 = scmp.ne.s32.totalorder %s101, %s102
      %p114 = scmp.eq.s32.totalorder %s34, 1
      %p115 = por %p113, %p114
      %p117 = scmp.ne.s32.totalorder %s102, %s116
      %p118 = scmp.eq.s32.totalorder %s34, 0
      %p119 = por %p117, %p118
      %s120 = ssub.s32 %s28, %s35
      %p121 = scmp.eq.s32.totalorder %s120, 0
      %s123 = sadd.s32 %s122, 1
      %s124 = scalar_select %p121, %s122, %s123
      %p127 = pneg %p121
      %p128 = scmp.eq.s32.totalorder %s28, 1
      %p129 = por %p127, %p128
      %p130 = scmp.ne.s32.totalorder %s122, %s125
      %p131 = scmp.eq.s32.totalorder %s28, 0
      %p132 = por %p130, %p131
      %p133 = scmp.ne.s32.totalorder %s122, %s125
      %p134 = scmp.eq.s32.totalorder %s33, 1
      %p135 = por %p133, %p134
      %p136 = scmp.ne.s32.totalorder %s125, %s126
      %p137 = scmp.eq.s32.totalorder %s33, 0
      %p138 = por %p136, %p137
      %p139 = scmp.ne.s32.totalorder %s125, %s126
      %p140 = scmp.eq.s32.totalorder %s34, 1
      %p141 = por %p139, %p140
      %p143 = scmp.ne.s32.totalorder %s126, %s142
      %p144 = scmp.eq.s32.totalorder %s34, 0
      %p145 = por %p143, %p144
      %s146 = ssub.s32 %s28, %s35
      %p147 = scmp.eq.s32.totalorder %s146, 0
      %s149 = sadd.s32 %s148, 1
      %s150 = scalar_select %p147, %s148, %s149
      %p153 = pneg %p147
      %p154 = scmp.eq.s32.totalorder %s28, 1
      %p155 = por %p153, %p154
      %p156 = scmp.ne.s32.totalorder %s148, %s151
      %p157 = scmp.eq.s32.totalorder %s28, 0
      %p158 = por %p156, %p157
      %p159 = scmp.ne.s32.totalorder %s148, %s151
      %p160 = scmp.eq.s32.totalorder %s33, 1
      %p161 = por %p159, %p160
      %p162 = scmp.ne.s32.totalorder %s151, %s152
      %p163 = scmp.eq.s32.totalorder %s33, 0
      %p164 = por %p162, %p163
      %p165 = scmp.ne.s32.totalorder %s151, %s152
      %p166 = scmp.eq.s32.totalorder %s34, 1
      %p167 = por %p165, %p166
      %p169 = scmp.ne.s32.totalorder %s152, %s168
      %p170 = scmp.eq.s32.totalorder %s34, 0
      %p171 = por %p169, %p170
      %s172 = ssub.s32 %s28, %s35
      %p173 = scmp.eq.s32.totalorder %s172, 0
      %s175 = sadd.s32 %s174, 1
      %s176 = scalar_select %p173, %s174, %s175
      %p179 = pneg %p173
      %p180 = scmp.eq.s32.totalorder %s28, 1
      %p181 = por %p179, %p180
      %p182 = scmp.ne.s32.totalorder %s174, %s177
      %p183 = scmp.eq.s32.totalorder %s28, 0
      %p184 = por %p182, %p183
      %p185 = scmp.ne.s32.totalorder %s174, %s177
      %p186 = scmp.eq.s32.totalorder %s33, 1
      %p187 = por %p185, %p186
      %p188 = scmp.ne.s32.totalorder %s177, %s178
      %p189 = scmp.eq.s32.totalorder %s33, 0
      %p190 = por %p188, %p189
      %p191 = scmp.ne.s32.totalorder %s177, %s178
      %p192 = scmp.eq.s32.totalorder %s34, 1
      %p193 = por %p191, %p192
      %p195 = scmp.ne.s32.totalorder %s178, %s194
      %p196 = scmp.eq.s32.totalorder %s34, 0
      %p197 = por %p195, %p196
      %s198 = ssub.s32 %s28, %s35
      %p199 = scmp.eq.s32.totalorder %s198, 0
      %s201 = sadd.s32 %s200, 1
      %s202 = scalar_select %p199, %s200, %s201
      %p205 = pneg %p199
      %p206 = scmp.eq.s32.totalorder %s28, 1
      %p207 = por %p205, %p206
      %p208 = scmp.ne.s32.totalorder %s200, %s203
      %p209 = scmp.eq.s32.totalorder %s28, 0
      %p210 = por %p208, %p209
      %p211 = scmp.ne.s32.totalorder %s200, %s203
      %p212 = scmp.eq.s32.totalorder %s33, 1
      %p213 = por %p211, %p212
      %p214 = scmp.ne.s32.totalorder %s203, %s204
      %p215 = scmp.eq.s32.totalorder %s33, 0
      %p216 = por %p214, %p215
      %p217 = scmp.ne.s32.totalorder %s203, %s204
      %p218 = scmp.eq.s32.totalorder %s34, 1
      %p219 = por %p217, %p218
      %p221 = scmp.ne.s32.totalorder %s204, %s220
      %p222 = scmp.eq.s32.totalorder %s34, 0
      %p223 = por %p221, %p222
      %s224 = ssub.s32 %s28, %s35
      %p225 = scmp.eq.s32.totalorder %s224, 0
      %s227 = sadd.s32 %s226, 1
      %s228 = scalar_select %p225, %s226, %s227
      %p231 = pneg %p225
      %p232 = scmp.eq.s32.totalorder %s28, 1
      %p233 = por %p231, %p232
      %p234 = scmp.ne.s32.totalorder %s226, %s229
      %p235 = scmp.eq.s32.totalorder %s28, 0
      %p236 = por %p234, %p235
      %p237 = scmp.ne.s32.totalorder %s226, %s229
      %p238 = scmp.eq.s32.totalorder %s33, 1
      %p239 = por %p237, %p238
      %p240 = scmp.ne.s32.totalorder %s229, %s230
      %p241 = scmp.eq.s32.totalorder %s33, 0
      %p242 = por %p240, %p241
      %p243 = scmp.ne.s32.totalorder %s229, %s230
      %p244 = scmp.eq.s32.totalorder %s34, 1
      %p245 = por %p243, %p244
      %p247 = scmp.ne.s32.totalorder %s230, %s246
      %p248 = scmp.eq.s32.totalorder %s34, 0
      %p249 = por %p247, %p248
      %s250 = ssub.s32 %s28, %s35
      %p251 = scmp.eq.s32.totalorder %s250, 0
      %s253 = sadd.s32 %s252, 1
      %s254 = scalar_select %p251, %s252, %s253
      %p257 = pneg %p251
      %p258 = scmp.eq.s32.totalorder %s28, 1
      %p259 = por %p257, %p258
      %p260 = scmp.ne.s32.totalorder %s252, %s255
      %p261 = scmp.eq.s32.totalorder %s28, 0
      %p262 = por %p260, %p261
      %p263 = scmp.ne.s32.totalorder %s252, %s255
      %p264 = scmp.eq.s32.totalorder %s33, 1
      %p265 = por %p263, %p264
      %p266 = scmp.ne.s32.totalorder %s255, %s256
      %p267 = scmp.eq.s32.totalorder %s33, 0
      %p268 = por %p266, %p267
      %p269 = scmp.ne.s32.totalorder %s255, %s256
      %p270 = scmp.eq.s32.totalorder %s34, 1
      %p271 = por %p269, %p270
      %p273 = scmp.ne.s32.totalorder %s256, %s272
      %p274 = scmp.eq.s32.totalorder %s34, 0
      %p275 = por %p273, %p274
      %s276 = ssub.s32 %s28, %s35
      %p277 = scmp.eq.s32.totalorder %s276, 0
      %s279 = sadd.s32 %s278, 1
      %s280 = scalar_select %p277, %s278, %s279
      %p283 = pneg %p277
      %p284 = scmp.eq.s32.totalorder %s28, 1
      %p285 = por %p283, %p284
      %p286 = scmp.ne.s32.totalorder %s278, %s281
      %p287 = scmp.eq.s32.totalorder %s28, 0
      %p288 = por %p286, %p287
      %p289 = scmp.ne.s32.totalorder %s278, %s281
      %p290 = scmp.eq.s32.totalorder %s33, 1
      %p291 = por %p289, %p290
      %p292 = scmp.ne.s32.totalorder %s281, %s282
      %p293 = scmp.eq.s32.totalorder %s33, 0
      %p294 = por %p292, %p293
      %p295 = scmp.ne.s32.totalorder %s281, %s282
      %p296 = scmp.eq.s32.totalorder %s34, 1
      %p297 = por %p295, %p296
      %p299 = scmp.ne.s32.totalorder %s282, %s298
      %p300 = scmp.eq.s32.totalorder %s34, 0
      %p301 = por %p299, %p300
      %s302 = ssub.s32 %s28, %s35
      %p303 = scmp.eq.s32.totalorder %s302, 0
      %s305 = sadd.s32 %s304, 1
      %s306 = scalar_select %p303, %s304, %s305
      %p309 = pneg %p303
      %p310 = scmp.eq.s32.totalorder %s28, 1
      %p311 = por %p309, %p310
      %p312 = scmp.ne.s32.totalorder %s304, %s307
      %p313 = scmp.eq.s32.totalorder %s28, 0
      %p314 = por %p312, %p313
      %p315 = scmp.ne.s32.totalorder %s304, %s307
      %p316 = scmp.eq.s32.totalorder %s33, 1
      %p317 = por %p315, %p316
      %p318 = scmp.ne.s32.totalorder %s307, %s308
      %p319 = scmp.eq.s32.totalorder %s33, 0
      %p320 = por %p318, %p319
      %p321 = scmp.ne.s32.totalorder %s307, %s308
      %p322 = scmp.eq.s32.totalorder %s34, 1
      %p323 = por %p321, %p322
      %p325 = scmp.ne.s32.totalorder %s308, %s324
      %p326 = scmp.eq.s32.totalorder %s34, 0
      %p327 = por %p325, %p326
      %s328 = ssub.s32 %s28, %s35
      %p329 = scmp.eq.s32.totalorder %s328, 0
      %s331 = sadd.s32 %s330, 1
      %s332 = scalar_select %p329, %s330, %s331
      %p335 = pneg %p329
      %p336 = scmp.eq.s32.totalorder %s28, 1
      %p337 = por %p335, %p336
      %p338 = scmp.ne.s32.totalorder %s330, %s333
      %p339 = scmp.eq.s32.totalorder %s28, 0
      %p340 = por %p338, %p339
      %p341 = scmp.ne.s32.totalorder %s330, %s333
      %p342 = scmp.eq.s32.totalorder %s33, 1
      %p343 = por %p341, %p342
      %p344 = scmp.ne.s32.totalorder %s333, %s334
      %p345 = scmp.eq.s32.totalorder %s33, 0
      %p346 = por %p344, %p345
      %p347 = scmp.ne.s32.totalorder %s333, %s334
      %p348 = scmp.eq.s32.totalorder %s34, 1
      %p349 = por %p347, %p348
      %p351 = scmp.ne.s32.totalorder %s334, %s350
      %p352 = scmp.eq.s32.totalorder %s34, 0
      %p353 = por %p351, %p352
      %s354 = ssub.s32 %s28, %s35
      %p355 = scmp.eq.s32.totalorder %s354, 0
      %s357 = sadd.s32 %s356, 1
      %s358 = scalar_select %p355, %s356, %s357
      %p361 = pneg %p355
      %p362 = scmp.eq.s32.totalorder %s28, 1
      %p363 = por %p361, %p362
      %p364 = scmp.ne.s32.totalorder %s356, %s359
      %p365 = scmp.eq.s32.totalorder %s28, 0
      %p366 = por %p364, %p365
      %p367 = scmp.ne.s32.totalorder %s356, %s359
      %p368 = scmp.eq.s32.totalorder %s33, 1
      %p369 = por %p367, %p368
      %p370 = scmp.ne.s32.totalorder %s359, %s360
      %p371 = scmp.eq.s32.totalorder %s33, 0
      %p372 = por %p370, %p371
      %p373 = scmp.ne.s32.totalorder %s359, %s360
      %p374 = scmp.eq.s32.totalorder %s34, 1
      %p375 = por %p373, %p374
      %p377 = scmp.ne.s32.totalorder %s360, %s376
      %p378 = scmp.eq.s32.totalorder %s34, 0
      %p379 = por %p377, %p378
      %s380 = ssub.s32 %s28, %s35
      %p381 = scmp.eq.s32.totalorder %s380, 0
      %s383 = sadd.s32 %s382, 1
      %s384 = scalar_select %p381, %s382, %s383
      %p387 = pneg %p381
      %p388 = scmp.eq.s32.totalorder %s28, 1
      %p389 = por %p387, %p388
      %p390 = scmp.ne.s32.totalorder %s382, %s385
      %p391 = scmp.eq.s32.totalorder %s28, 0
      %p392 = por %p390, %p391
      %p393 = scmp.ne.s32.totalorder %s382, %s385
      %p394 = scmp.eq.s32.totalorder %s33, 1
      %p395 = por %p393, %p394
      %p396 = scmp.ne.s32.totalorder %s385, %s386
      %p397 = scmp.eq.s32.totalorder %s33, 0
      %p398 = por %p396, %p397
      %p399 = scmp.ne.s32.totalorder %s385, %s386
      %p400 = scmp.eq.s32.totalorder %s34, 1
      %p401 = por %p399, %p400
      %p403 = scmp.ne.s32.totalorder %s386, %s402
      %p404 = scmp.eq.s32.totalorder %s34, 0
      %p405 = por %p403, %p404
      %s406 = ssub.s32 %s28, %s35
      %p407 = scmp.eq.s32.totalorder %s406, 0
      %s409 = sadd.s32 %s408, 1
      %s410 = scalar_select %p407, %s408, %s409
      %p413 = pneg %p407
      %p414 = scmp.eq.s32.totalorder %s28, 1
      %p415 = por %p413, %p414
      %p416 = scmp.ne.s32.totalorder %s408, %s411
      %p417 = scmp.eq.s32.totalorder %s28, 0
      %p418 = por %p416, %p417
      %p419 = scmp.ne.s32.totalorder %s408, %s411
      %p420 = scmp.eq.s32.totalorder %s33, 1
      %p421 = por %p419, %p420
      %p422 = scmp.ne.s32.totalorder %s411, %s412
      %p423 = scmp.eq.s32.totalorder %s33, 0
      %p424 = por %p422, %p423
      %p425 = scmp.ne.s32.totalorder %s411, %s412
      %p426 = scmp.eq.s32.totalorder %s34, 1
      %p427 = por %p425, %p426
      %p429 = scmp.ne.s32.totalorder %s412, %s428
      %p430 = scmp.eq.s32.totalorder %s34, 0
      %p431 = por %p429, %p430
      %s433 = sadd.s32 %s432, 1
      %p436 = scmp.eq.s32.totalorder %s28, 1
      %p437 = scmp.ne.s32.totalorder %s432, %s434
      %p438 = scmp.eq.s32.totalorder %s28, 0
      %p439 = por %p437, %p438
      %p440 = scmp.ne.s32.totalorder %s432, %s434
      %p441 = scmp.eq.s32.totalorder %s33, 1
      %p442 = por %p440, %p441
      %p443 = scmp.ne.s32.totalorder %s434, %s435
      %p444 = scmp.eq.s32.totalorder %s33, 0
      %p445 = por %p443, %p444
      %p446 = scmp.ne.s32.totalorder %s434, %s435
      %p447 = scmp.eq.s32.totalorder %s34, 1
      %p448 = por %p446, %p447
      %p450 = scmp.ne.s32.totalorder %s435, %s449
      %p451 = scmp.eq.s32.totalorder %s34, 0
      %p452 = por %p450, %p451
      %p453 = scmp.le.s32.totalorder 1, %s28
      %p454 = scmp.lt.s32.totalorder %s28, 3
      %p455 = pnand %p453, %p454
      %p456 = pneg %p455
      // Predicated region
      $region9: #{bert_image_forward.4} parent=5 // pred_check
        _
      $region10: #{bert_image_forward.4} parent=5 // pred_check_branch
        %458 = sbr.rel (%p455) target = $region12
      $region11: #{bert_image_forward.4} parent=5 // pred_region
        %s459 = ssub.s32 %s28, 1
        // Predicated region
        $region13: #{bert_image_forward.4} parent=11 // pred_check
          %p460 = pneg %p49
        $region14: #{bert_image_forward.4} parent=11 // pred_check_branch
          %462 = sbr.rel (%p460) target = $region16
        $region15: #{bert_image_forward.4} parent=11 // pred_region
          _
        $region16: #{bert_image_forward.4} parent=11 // pred_fallthru
          _
        // Predicated region
        $region17: #{bert_image_forward.4} parent=11 // pred_check
          %p463 = pneg %p70
        $region18: #{bert_image_forward.4} parent=11 // pred_check_branch
          %465 = sbr.rel (%p463) target = $region20
        $region19: #{bert_image_forward.4} parent=11 // pred_region
          _
        $region20: #{bert_image_forward.4} parent=11 // pred_fallthru
          _
        // Predicated region
        $region21: #{bert_image_forward.4} parent=11 // pred_check
          %p466 = pneg %p91
        $region22: #{bert_image_forward.4} parent=11 // pred_check_branch
          %468 = sbr.rel (%p466) target = $region24
        $region23: #{bert_image_forward.4} parent=11 // pred_region
          _
        $region24: #{bert_image_forward.4} parent=11 // pred_fallthru
          _
        // Predicated region
        $region25: #{bert_image_forward.4} parent=11 // pred_check
          %p469 = pneg %p112
        $region26: #{bert_image_forward.4} parent=11 // pred_check_branch
          %471 = sbr.rel (%p469) target = $region28
        $region27: #{bert_image_forward.4} parent=11 // pred_region
          _
        $region28: #{bert_image_forward.4} parent=11 // pred_fallthru
          _
      $region12: #{bert_image_forward.4} parent=5 // pred_fallthru
        _
      %p472 = scmp.lt.s32.totalorder %s28, 2
      // Predicated region
      $region29: #{bert_image_forward.4} parent=5 // pred_check
        %p473 = pneg %p472
      $region30: #{bert_image_forward.4} parent=5 // pred_check_branch
        %475 = sbr.rel (%p473) target = $region32
      $region31: #{bert_image_forward.4} parent=5 // pred_region
        // Predicated region
        $region33: #{bert_image_forward.4} parent=31 // pred_check
          %p476 = pneg %p132
        $region34: #{bert_image_forward.4} parent=31 // pred_check_branch
          %478 = sbr.rel (%p476) target = $region36
        $region35: #{bert_image_forward.4} parent=31 // pred_region
          %s479 = sand.u32 %s122, 1
          %s480 = scalar_lea.sflag [#allocation3], %s479
          %s481 = sand.u32 %s122, 1
          %s482 = smul.addr %s481, 192
          %s483 = scalar_lea.vmem [#allocation2], %s482
          %s485 = ssub.s32 3072, 3072
          %486 = vsyncadd %s480, %s485
          %s487 = smul.addr %s28, 48
          %s488 = smul.addr %s487, 64
          %s489 = scalar_lea.hbm %s4, %s488
          %s490 = sshll.u32 %s483, 4
          %s491 = int_to_ptr.vmem [resolvable:$true] %s490
          %496 = dma.hbm_to_vmem [thread:$0]  %s489, 3072, %s491, %s480, 192, 192, 12
        $region36: #{bert_image_forward.4} parent=31 // pred_fallthru
          _
        // Predicated region
        $region37: #{bert_image_forward.4} parent=31 // pred_check
          %p497 = pneg %p158
        $region38: #{bert_image_forward.4} parent=31 // pred_check_branch
          %499 = sbr.rel (%p497) target = $region40
        $region39: #{bert_image_forward.4} parent=31 // pred_region
          %p500 = scmp.lt.s32.totalorder %s28, 1
          %s501 = scalar_select %p500, %s28, 1
          %s502 = smul.addr %s501, 3
          %s503 = scalar_lea.vmem %s5, %s502
        $region40: #{bert_image_forward.4} parent=31 // pred_fallthru
          _
        // Predicated region
        $region41: #{bert_image_forward.4} parent=31 // pred_check
          %p504 = pneg %p184
        $region42: #{bert_image_forward.4} parent=31 // pred_check_branch
          %506 = sbr.rel (%p504) target = $region44
        $region43: #{bert_image_forward.4} parent=31 // pred_region
          %p507 = scmp.lt.s32.totalorder %s28, 1
          %s508 = scalar_select %p507, %s28, 1
          %s509 = smul.addr %s508, 16
          %s510 = smul.addr %s509, 4
          %s511 = scalar_lea.vmem %s6, %s510
        $region44: #{bert_image_forward.4} parent=31 // pred_fallthru
          _
        // Predicated region
        $region45: #{bert_image_forward.4} parent=31 // pred_check
          %p512 = pneg %p210
        $region46: #{bert_image_forward.4} parent=31 // pred_check_branch
          %514 = sbr.rel (%p512) target = $region48
        $region47: #{bert_image_forward.4} parent=31 // pred_region
          %p515 = scmp.lt.s32.totalorder %s28, 1
          %s516 = scalar_select %p515, %s28, 1
          %s517 = scalar_lea.vmem %s7, %s516
        $region48: #{bert_image_forward.4} parent=31 // pred_fallthru
          _
        // Predicated region
        $region49: #{bert_image_forward.4} parent=31 // pred_check
          %p518 = pneg %p236
        $region50: #{bert_image_forward.4} parent=31 // pred_check_branch
          %520 = sbr.rel (%p518) target = $region52
        $region51: #{bert_image_forward.4} parent=31 // pred_region
          %p521 = scmp.lt.s32.totalorder %s28, 1
          %s522 = scalar_select %p521, %s28, 1
          %s523 = scalar_lea.vmem %s8, %s522
        $region52: #{bert_image_forward.4} parent=31 // pred_fallthru
          _
        // Predicated region
        $region53: #{bert_image_forward.4} parent=31 // pred_check
          %p524 = pneg %p262
        $region54: #{bert_image_forward.4} parent=31 // pred_check_branch
          %526 = sbr.rel (%p524) target = $region56
        $region55: #{bert_image_forward.4} parent=31 // pred_region
          %p527 = scmp.lt.s32.totalorder %s28, 1
          %s528 = scalar_select %p527, %s28, 1
          %s529 = scalar_lea.vmem %s9, %s528
        $region56: #{bert_image_forward.4} parent=31 // pred_fallthru
          _
        // Predicated region
        $region57: #{bert_image_forward.4} parent=31 // pred_check
          %p530 = pneg %p288
        $region58: #{bert_image_forward.4} parent=31 // pred_check_branch
          %532 = sbr.rel (%p530) target = $region60
        $region59: #{bert_image_forward.4} parent=31 // pred_region
          %s533 = sand.u32 %s28, 1
          %s534 = scalar_lea.sflag [#allocation5], %s533
          %s535 = sand.u32 %s278, 1
          %s536 = smul.addr %s535, 256
          %s537 = scalar_lea.vmem [#allocation4], %s536
          %s539 = ssub.s32 4096, 4096
          %540 = vsyncadd %s534, %s539
          %s541 = smul.addr %s28, 64
          %s542 = smul.addr %s541, 64
          %s543 = scalar_lea.hbm %s10, %s542
          %s544 = sshll.u32 %s537, 4
          %s545 = int_to_ptr.vmem [resolvable:$true] %s544
          %550 = dma.hbm_to_vmem [thread:$0]  %s543, 4096, %s545, %s534, 256, 256, 16
        $region60: #{bert_image_forward.4} parent=31 // pred_fallthru
          _
        // Predicated region
        $region61: #{bert_image_forward.4} parent=31 // pred_check
          %p551 = pneg %p314
        $region62: #{bert_image_forward.4} parent=31 // pred_check_branch
          %553 = sbr.rel (%p551) target = $region64
        $region63: #{bert_image_forward.4} parent=31 // pred_region
          %p554 = scmp.lt.s32.totalorder %s28, 1
          %s555 = scalar_select %p554, %s28, 1
          %s556 = smul.addr %s555, 4
          %s557 = scalar_lea.vmem %s11, %s556
        $region64: #{bert_image_forward.4} parent=31 // pred_fallthru
          _
        // Predicated region
        $region65: #{bert_image_forward.4} parent=31 // pred_check
          %p558 = pneg %p340
        $region66: #{bert_image_forward.4} parent=31 // pred_check_branch
          %560 = sbr.rel (%p558) target = $region68
        $region67: #{bert_image_forward.4} parent=31 // pred_region
          %s561 = sand.u32 %s28, 1
          %s562 = scalar_lea.sflag [#allocation5], %s561
          %s563 = sand.u32 %s330, 1
          %s564 = smul.addr %s563, 256
          %s565 = scalar_lea.vmem [#allocation6], %s564
          %s567 = ssub.s32 4096, 4096
          %568 = vsyncadd %s562, %s567
          %s569 = smul.addr %s28, 64
          %s570 = smul.addr %s569, 64
          %s571 = scalar_lea.hbm %s12, %s570
          %s572 = sshll.u32 %s565, 4
          %s573 = int_to_ptr.vmem [resolvable:$true] %s572
          %578 = dma.hbm_to_vmem [thread:$0]  %s571, 4096, %s573, %s562, 64, 64, 4
        $region68: #{bert_image_forward.4} parent=31 // pred_fallthru
          _
        // Predicated region
        $region69: #{bert_image_forward.4} parent=31 // pred_check
          %p579 = pneg %p366
        $region70: #{bert_image_forward.4} parent=31 // pred_check_branch
          %581 = sbr.rel (%p579) target = $region72
        $region71: #{bert_image_forward.4} parent=31 // pred_region
          %p582 = scmp.lt.s32.totalorder %s28, 1
          %s583 = scalar_select %p582, %s28, 1
          %s584 = scalar_lea.vmem %s13, %s583
        $region72: #{bert_image_forward.4} parent=31 // pred_fallthru
          _
        // Predicated region
        $region73: #{bert_image_forward.4} parent=31 // pred_check
          %p585 = pneg %p392
        $region74: #{bert_image_forward.4} parent=31 // pred_check_branch
          %587 = sbr.rel (%p585) target = $region76
        $region75: #{bert_image_forward.4} parent=31 // pred_region
          %p588 = scmp.lt.s32.totalorder %s28, 1
          %s589 = scalar_select %p588, %s28, 1
          %s590 = scalar_lea.vmem %s14, %s589
        $region76: #{bert_image_forward.4} parent=31 // pred_fallthru
          _
        // Predicated region
        $region77: #{bert_image_forward.4} parent=31 // pred_check
          %p591 = pneg %p418
        $region78: #{bert_image_forward.4} parent=31 // pred_check_branch
          %593 = sbr.rel (%p591) target = $region80
        $region79: #{bert_image_forward.4} parent=31 // pred_region
          %p594 = scmp.lt.s32.totalorder %s28, 1
          %s595 = scalar_select %p594, %s28, 1
          %s596 = scalar_lea.vmem %s15, %s595
        $region80: #{bert_image_forward.4} parent=31 // pred_fallthru
          _
      $region32: #{bert_image_forward.4} parent=5 // pred_fallthru
        _
      %p597 = scmp.le.s32.totalorder 1, %s28
      %p598 = scmp.lt.s32.totalorder %s28, 3
      %p599 = pnand %p597, %p598
      %p600 = pneg %p599
      // Predicated region
      $region81: #{bert_image_forward.4} parent=5 // pred_check
        _
      $region82: #{bert_image_forward.4} parent=5 // pred_check_branch
        %602 = sbr.rel (%p599) target = $region84
      $region83: #{bert_image_forward.4} parent=5 // pred_region
        %s603 = ssub.s32 %s28, 1
        %s604 = sand.u32 %s125, 1
        %s605 = scalar_lea.sflag [#allocation3], %s604
        %s606 = sand.u32 %s125, 1
        %s607 = smul.addr %s606, 192
        %s608 = scalar_lea.vmem [#allocation2], %s607
        // Predicated region
        $region85: #{bert_image_forward.4} parent=83 // pred_check
          %p609 = pneg %p138
        $region86: #{bert_image_forward.4} parent=83 // pred_check_branch
          %611 = sbr.rel (%p609) target = $region88
        $region87: #{bert_image_forward.4} parent=83 // pred_region
          %612 = dma.done %s605, 3072
        $region88: #{bert_image_forward.4} parent=83 // pred_fallthru
          _
        %s613 = sand.u32 %s33, 1
        %s614 = scalar_lea.sflag [#allocation5], %s613
        %s615 = sand.u32 %s281, 1
        %s616 = smul.addr %s615, 256
        %s617 = scalar_lea.vmem [#allocation4], %s616
        // Predicated region
        $region89: #{bert_image_forward.4} parent=83 // pred_check
          %p618 = pneg %p294
        $region90: #{bert_image_forward.4} parent=83 // pred_check_branch
          %620 = sbr.rel (%p618) target = $region92
        $region91: #{bert_image_forward.4} parent=83 // pred_region
          %621 = dma.done %s614, 4096
        $region92: #{bert_image_forward.4} parent=83 // pred_fallthru
          _
        %s622 = sand.u32 %s33, 1
        %s623 = scalar_lea.sflag [#allocation5], %s622
        %s624 = sand.u32 %s333, 1
        %s625 = smul.addr %s624, 256
        %s626 = scalar_lea.vmem [#allocation6], %s625
        // Predicated region
        $region93: #{bert_image_forward.4} parent=83 // pred_check
          %p627 = pneg %p346
        $region94: #{bert_image_forward.4} parent=83 // pred_check_branch
          %629 = sbr.rel (%p627) target = $region96
        $region95: #{bert_image_forward.4} parent=83 // pred_region
          %630 = dma.done %s623, 4096
        $region96: #{bert_image_forward.4} parent=83 // pred_fallthru
          _
        %p631 = pneg %p49
        %p632 = pneg %p46
        %p633 = pneg %p70
        %p634 = pneg %p67
        %p635 = pneg %p91
        %p636 = pneg %p88
        %p637 = pneg %p112
        %p638 = pneg %p109
        %s639 = sand.u32 %s125, 1
        %s640 = scalar_lea.sflag [#allocation3], %s639
        %s641 = sand.u32 %s125, 1
        %s642 = smul.addr %s641, 192
        %s643 = scalar_lea.vmem [#allocation2], %s642
        %p644 = pneg %p138
        %p645 = pneg %p135
        %p646 = scmp.lt.s32.totalorder %s33, 1
        %s647 = scalar_select %p646, %s33, 1
        %s648 = smul.addr %s647, 3
        %s649 = scalar_lea.vmem %s5, %s648
        %p650 = pneg %p164
        %p651 = pneg %p161
        %p652 = scmp.lt.s32.totalorder %s33, 1
        %s653 = scalar_select %p652, %s33, 1
        %s654 = smul.addr %s653, 16
        %s655 = smul.addr %s654, 4
        %s656 = scalar_lea.vmem %s6, %s655
        %p657 = pneg %p190
        %p658 = pneg %p187
        %p659 = scmp.lt.s32.totalorder %s33, 1
        %s660 = scalar_select %p659, %s33, 1
        %s661 = scalar_lea.vmem %s7, %s660
        %p662 = pneg %p216
        %p663 = pneg %p213
        %p664 = scmp.lt.s32.totalorder %s33, 1
        %s665 = scalar_select %p664, %s33, 1
        %s666 = scalar_lea.vmem %s8, %s665
        %p667 = pneg %p242
        %p668 = pneg %p239
        %p669 = scmp.lt.s32.totalorder %s33, 1
        %s670 = scalar_select %p669, %s33, 1
        %s671 = scalar_lea.vmem %s9, %s670
        %p672 = pneg %p268
        %p673 = pneg %p265
        %s674 = sand.u32 %s33, 1
        %s675 = scalar_lea.sflag [#allocation5], %s674
        %s676 = sand.u32 %s281, 1
        %s677 = smul.addr %s676, 256
        %s678 = scalar_lea.vmem [#allocation4], %s677
        %p679 = pneg %p294
        %p680 = pneg %p291
        %p681 = scmp.lt.s32.totalorder %s33, 1
        %s682 = scalar_select %p681, %s33, 1
        %s683 = smul.addr %s682, 4
        %s684 = scalar_lea.vmem %s11, %s683
        %p685 = pneg %p320
        %p686 = pneg %p317
        %s687 = sand.u32 %s33, 1
        %s688 = scalar_lea.sflag [#allocation5], %s687
        %s689 = sand.u32 %s333, 1
        %s690 = smul.addr %s689, 256
        %s691 = scalar_lea.vmem [#allocation6], %s690
        %p692 = pneg %p346
        %p693 = pneg %p343
        %p694 = scmp.lt.s32.totalorder %s33, 1
        %s695 = scalar_select %p694, %s33, 1
        %s696 = scalar_lea.vmem %s13, %s695
        %p697 = pneg %p372
        %p698 = pneg %p369
        %p699 = scmp.lt.s32.totalorder %s33, 1
        %s700 = scalar_select %p699, %s33, 1
        %s701 = scalar_lea.vmem %s14, %s700
        %p702 = pneg %p398
        %p703 = pneg %p395
        %p704 = scmp.lt.s32.totalorder %s33, 1
        %s705 = scalar_select %p704, %s33, 1
        %s706 = scalar_lea.vmem %s15, %s705
        %p707 = pneg %p424
        %p708 = pneg %p421
        %p709 = pneg %p445
        %p710 = pneg %p442
        %p711 = scmp.lt.s32.totalorder %s33, 1
        %s712 = scalar_select %p711, %s33, 1
        %s713 = smul.addr %s712, 3
        %s714 = scalar_lea.vmem %s5, %s713
        %p715 = scmp.lt.s32.totalorder %s33, 1
        %s716 = scalar_select %p715, %s33, 1
        %s717 = smul.addr %s716, 16
        %s718 = smul.addr %s717, 4
        %s719 = scalar_lea.vmem %s6, %s718
        %p720 = scmp.lt.s32.totalorder %s33, 1
        %s721 = scalar_select %p720, %s33, 1
        %s722 = scalar_lea.vmem %s7, %s721
        %p723 = scmp.lt.s32.totalorder %s33, 1
        %s724 = scalar_select %p723, %s33, 1
        %s725 = scalar_lea.vmem %s8, %s724
        %p726 = scmp.lt.s32.totalorder %s33, 1
        %s727 = scalar_select %p726, %s33, 1
        %s728 = scalar_lea.vmem %s9, %s727
        %p729 = scmp.lt.s32.totalorder %s33, 1
        %s730 = scalar_select %p729, %s33, 1
        %s731 = smul.addr %s730, 4
        %s732 = scalar_lea.vmem %s11, %s731
        %p733 = scmp.lt.s32.totalorder %s33, 1
        %s734 = scalar_select %p733, %s33, 1
        %s735 = scalar_lea.vmem %s13, %s734
        %p736 = scmp.lt.s32.totalorder %s33, 1
        %s737 = scalar_select %p736, %s33, 1
        %s738 = scalar_lea.vmem %s14, %s737
        %p739 = scmp.lt.s32.totalorder %s33, 1
        %s740 = scalar_select %p739, %s33, 1
        %s741 = scalar_lea.vmem %s15, %s740
        %p743 = scmp.eq.s32.totalorder %s33, 0
        // Predicated region
        $region97: #{bert_image_forward.4} parent=83 // pred_check
          %p744 = pneg %p743
        $region98: #{bert_image_forward.4} parent=83 // pred_check_branch
          %746 = sbr.rel (%p744) target = $region100
        $region99: #{bert_image_forward.4} parent=83 // pred_region
          %v747 = vld [vmem:[%s0] sm:$0xff]
          %v748 = vld [vmem:[%s0 + $0x8] sm:$0xff]
          %v749 = vld [vmem:[%s1] sm:$0x1]
          %v750 = vld [vmem:[%s2] sm:$0x1]
          %751 = vadd.xlane.f32.xlu0 %v747
          %v752 = vpop.xlane.xlu0 %751
          %753 = vadd.xlane.f32.xlu0 %v748
          %v754 = vpop.xlane.xlu0 %753
          %v755 = vrcp.pop 128.0
          %v756 = vmul.f32 %v752, %v755
          %v757 = vmul.f32 %v754, %v755
          %v758 = vsub.f32 %v747, %v756
          %v759 = vsub.f32 %v748, %v757
          %v760 = vmul.f32 %v758, %v758
          %v761 = vmul.f32 %v759, %v759
          %762 = vadd.xlane.f32.xlu0 %v760
          %v763 = vpop.xlane.xlu0 %762
          %764 = vadd.xlane.f32.xlu0 %v761
          %v765 = vpop.xlane.xlu0 %764
          %v766 = vmul.f32 %v763, %v755
          %v767 = vmul.f32 %v765, %v755
          %v768 = vadd.f32 %v766, 1e-05
          %v769 = vadd.f32 %v767, 1e-05
          %v770 = vrsqrt.pop %v768
          %v771 = vrsqrt.pop %v769
          %v772 = vmul.f32 %v758, %v770
          %v773 = vmul.f32 %v759, %v771
          %v775 = vlaneseq
          %v776 = vshrl.u32 %v775, 7
          %v777 = vsub.s32 0, %v776
          %v778 = vrot.slane %v749, %v777
          %v780 = vmul.f32 %v772, %v778
          %v781 = vmul.f32 %v773, %v778
          %v783 = vlaneseq
          %v784 = vshrl.u32 %v783, 7
          %v785 = vsub.s32 0, %v784
          %v786 = vrot.slane %v750, %v785
          %v788 = vadd.f32 %v780, %v786
          %v789 = vadd.f32 %v781, %v786
          %790 = vst [vmem:[%s16] sm:$0xff] %v788
          %791 = vst [vmem:[%s16 + $0x8] sm:$0xff] %v789
        $region100: #{bert_image_forward.4} parent=83 // pred_fallthru
          _
        %v792 = vld [vmem:[%s16] sm:$0xff]
        %v793 = vld [vmem:[%s16 + $0x8] sm:$0xff]
        %v794 = vld [vmem:[%s608] sm:$0xff]
        %v795 = vld [vmem:[%s608 + $0x8] sm:$0xf]
        %v796 = vld [vmem:[%s608 + $0xc] sm:$0xff]
        %v797 = vld [vmem:[%s608 + $0x14] sm:$0xf]
        %v798 = vld [vmem:[%s608 + $0x18] sm:$0xff]
        %v799 = vld [vmem:[%s608 + $0x20] sm:$0xf]
        %v800 = vld [vmem:[%s608 + $0x24] sm:$0xff]
        %v801 = vld [vmem:[%s608 + $0x2c] sm:$0xf]
        %v802 = vld [vmem:[%s608 + $0x30] sm:$0xff]
        %v803 = vld [vmem:[%s608 + $0x38] sm:$0xf]
        %v804 = vld [vmem:[%s608 + $0x3c] sm:$0xff]
        %v805 = vld [vmem:[%s608 + $0x44] sm:$0xf]
        %v806 = vld [vmem:[%s608 + $0x48] sm:$0xff]
        %v807 = vld [vmem:[%s608 + $0x50] sm:$0xf]
        %v808 = vld [vmem:[%s608 + $0x54] sm:$0xff]
        %v809 = vld [vmem:[%s608 + $0x5c] sm:$0xf]
        %v810 = vld [vmem:[%s608 + $0x60] sm:$0xff]
        %v811 = vld [vmem:[%s608 + $0x68] sm:$0xf]
        %v812 = vld [vmem:[%s608 + $0x6c] sm:$0xff]
        %v813 = vld [vmem:[%s608 + $0x74] sm:$0xf]
        %v814 = vld [vmem:[%s608 + $0x78] sm:$0xff]
        %v815 = vld [vmem:[%s608 + $0x80] sm:$0xf]
        %v816 = vld [vmem:[%s608 + $0x84] sm:$0xff]
        %v817 = vld [vmem:[%s608 + $0x8c] sm:$0xf]
        %v818 = vld [vmem:[%s608 + $0x90] sm:$0xff]
        %v819 = vld [vmem:[%s608 + $0x98] sm:$0xf]
        %v820 = vld [vmem:[%s608 + $0x9c] sm:$0xff]
        %v821 = vld [vmem:[%s608 + $0xa4] sm:$0xf]
        %v822 = vld [vmem:[%s608 + $0xa8] sm:$0xff]
        %v823 = vld [vmem:[%s608 + $0xb0] sm:$0xf]
        %v824 = vld [vmem:[%s608 + $0xb4] sm:$0xff]
        %v825 = vld [vmem:[%s608 + $0xbc] sm:$0xf]
        %v826 = vld [vmem:[%s714] sm:$0x7]
        %v827 = vld [vmem:[%s719] sm:$0xf]
        %v828 = vld [vmem:[%s719 + $0x4] sm:$0xf]
        %v829 = vld [vmem:[%s719 + $0x8] sm:$0xf]
        %v830 = vld [vmem:[%s719 + $0xc] sm:$0xf]
        %v831 = vld [vmem:[%s719 + $0x10] sm:$0xf]
        %v832 = vld [vmem:[%s719 + $0x14] sm:$0xf]
        %v833 = vld [vmem:[%s719 + $0x18] sm:$0xf]
        %v834 = vld [vmem:[%s719 + $0x1c] sm:$0xf]
        %v835 = vld [vmem:[%s719 + $0x20] sm:$0xf]
        %v836 = vld [vmem:[%s719 + $0x24] sm:$0xf]
        %v837 = vld [vmem:[%s719 + $0x28] sm:$0xf]
        %v838 = vld [vmem:[%s719 + $0x2c] sm:$0xf]
        %v839 = vld [vmem:[%s719 + $0x30] sm:$0xf]
        %v840 = vld [vmem:[%s719 + $0x34] sm:$0xf]
        %v841 = vld [vmem:[%s719 + $0x38] sm:$0xf]
        %v842 = vld [vmem:[%s719 + $0x3c] sm:$0xf]
        %v843 = vld [vmem:[%s3] sm:$0x3]
        %v844 = vpack.c.bf16 %v793, %v792
        %v846 = vlaneseq
        %v847 = vshrl.u32 %v846, 7
        %v848 = vsub.s32 0, %v847
        %v849 = vrot.slane %v826, %v848
        %v850 = vlaneseq
        %v851 = vshrl.u32 %v850, 7
        %v852 = vsub.s32 1, %v851
        %v853 = vrot.slane %v826, %v852
        %v854 = vlaneseq
        %v855 = vshrl.u32 %v854, 7
        %v856 = vsub.s32 2, %v855
        %v857 = vrot.slane %v826, %v856
        %v893 = vunpack.c.l.b16 %v794
        %v894 = vunpack.c.h.b16 %v794
        %v895 = vunpack.c.l.b16 %v795
        %v896 = vunpack.c.l.b16 %v796
        %v897 = vunpack.c.h.b16 %v796
        %v898 = vunpack.c.l.b16 %v797
        %v899 = vunpack.c.l.b16 %v798
        %v900 = vunpack.c.h.b16 %v798
        %v901 = vunpack.c.l.b16 %v799
        %v902 = vunpack.c.l.b16 %v800
        %v903 = vunpack.c.h.b16 %v800
        %v904 = vunpack.c.l.b16 %v801
        %v905 = vunpack.c.l.b16 %v802
        %v906 = vunpack.c.h.b16 %v802
        %v907 = vunpack.c.l.b16 %v803
        %v908 = vunpack.c.l.b16 %v804
        %v909 = vunpack.c.h.b16 %v804
        %v910 = vunpack.c.l.b16 %v805
        %v911 = vunpack.c.l.b16 %v806
        %v912 = vunpack.c.h.b16 %v806
        %v913 = vunpack.c.l.b16 %v807
        %v914 = vunpack.c.l.b16 %v808
        %v915 = vunpack.c.h.b16 %v808
        %v916 = vunpack.c.l.b16 %v809
        %v917 = vunpack.c.l.b16 %v810
        %v918 = vunpack.c.h.b16 %v810
        %v919 = vunpack.c.l.b16 %v811
        %v920 = vunpack.c.l.b16 %v812
        %v921 = vunpack.c.h.b16 %v812
        %v922 = vunpack.c.l.b16 %v813
        %v923 = vunpack.c.l.b16 %v814
        %v924 = vunpack.c.h.b16 %v814
        %v925 = vunpack.c.l.b16 %v815
        %v926 = vunpack.c.l.b16 %v816
        %v927 = vunpack.c.h.b16 %v816
        %v928 = vunpack.c.l.b16 %v817
        %v929 = vunpack.c.l.b16 %v818
        %v930 = vunpack.c.h.b16 %v818
        %v931 = vunpack.c.l.b16 %v819
        %v932 = vunpack.c.l.b16 %v820
        %v933 = vunpack.c.h.b16 %v820
        %v934 = vunpack.c.l.b16 %v821
        %v935 = vunpack.c.l.b16 %v822
        %v936 = vunpack.c.h.b16 %v822
        %v937 = vunpack.c.l.b16 %v823
        %v938 = vunpack.c.l.b16 %v824
        %v939 = vunpack.c.h.b16 %v824
        %v940 = vunpack.c.l.b16 %v825
        %v941 = vpack.c.b16 %v896, %v893
        %v942 = vpack.c.b16 %v897, %v894
        %v943 = vpack.c.b16 %v898, %v895
        %v944 = vpack.c.b16 %v902, %v899
        %v945 = vpack.c.b16 %v903, %v900
        %v946 = vpack.c.b16 %v904, %v901
        %v947 = vpack.c.b16 %v908, %v905
        %v948 = vpack.c.b16 %v909, %v906
        %v949 = vpack.c.b16 %v910, %v907
        %v950 = vpack.c.b16 %v914, %v911
        %v951 = vpack.c.b16 %v915, %v912
        %v952 = vpack.c.b16 %v916, %v913
        %v953 = vpack.c.b16 %v920, %v917
        %v954 = vpack.c.b16 %v921, %v918
        %v955 = vpack.c.b16 %v922, %v919
        %v956 = vpack.c.b16 %v926, %v923
        %v957 = vpack.c.b16 %v927, %v924
        %v958 = vpack.c.b16 %v928, %v925
        %v959 = vpack.c.b16 %v932, %v929
        %v960 = vpack.c.b16 %v933, %v930
        %v961 = vpack.c.b16 %v934, %v931
        %v962 = vpack.c.b16 %v938, %v935
        %v963 = vpack.c.b16 %v939, %v936
        %v964 = vpack.c.b16 %v940, %v937
        %989 = vmatprep.subr.bf16.mxu0 %v963
        %990 = vmatpush1.bf16.msra.mxu0 %v962
        %991 = vmatprep.subr.bf16.mxu0 %v960
        %992 = vmatpush1.bf16.msra.mxu0 %v959
        %993 = vmatprep.subr.bf16.mxu0 %v957
        %994 = vmatpush1.bf16.msra.mxu0 %v956
        %995 = vmatprep.subr.bf16.mxu0 %v954
        %996 = vmatpush1.bf16.msra.mxu0 %v953
        %997 = vmatprep.subr.bf16.mxu0 %v951
        %998 = vmatpush1.bf16.msra.mxu0 %v950
        %999 = vmatprep.subr.bf16.mxu0 %v948
        %1000 = vmatpush1.bf16.msra.mxu0 %v947
        %1001 = vmatprep.subr.bf16.mxu0 %v945
        %1002 = vmatpush1.bf16.msra.mxu0 %v944
        %1003 = vmatprep.subr.bf16.mxu0 %v942
        %1004 = vmatpush1.bf16.msra.mxu0 %v941
        %1005 = vmatprep.subr.bf16.mxu0 0
        %1006 = vmatpush2.bf16.msra.mxu0 0
        %1007 = vmatprep.subr.bf16.mxu0 0
        %1008 = vmatpush2.bf16.msra.mxu0 0
        %1009 = vmatprep.subr.bf16.mxu0 0
        %1010 = vmatpush2.bf16.msra.mxu0 0
        %1011 = vmatprep.subr.bf16.mxu0 0
        %1012 = vmatpush2.bf16.msra.mxu0 0
        %1013 = vmatprep.subr.bf16.mxu0 0
        %1014 = vmatpush2.bf16.msra.mxu0 0
        %1015 = vmatprep.subr.bf16.mxu0 0
        %1016 = vmatpush2.bf16.msra.mxu0 0
        %1017 = vmatprep.subr.bf16.mxu0 0
        %1018 = vmatpush2.bf16.msra.mxu0 0
        %1019 = vmatprep.subr.bf16.mxu0 0
        %1020 = vmatpush2.bf16.msra.mxu0 0
        %1021 = vmatprep.mubr.bf16.mxu0 0
        %1022 = vmatmul.mubr.bf16.gmra.mxu0 %v844
        %v1023 = vpop.f32.mrf.mxu0
        %v1024 = vadd.f32 %v849, %v1023
        %v1025 = vpop.f32.mrf.mxu0
        %v1026 = vadd.f32 %v853, %v1025
        %v1027 = vpop.f32.mrf.mxu0
        %v1028 = vadd.f32 %v849, %v1027
        %v1029 = vpop.f32.mrf.mxu0
        %v1030 = vadd.f32 %v853, %v1029
        %1031 = vdwg.mxu0
        %1032 = vmatprep.subr.bf16.mxu0 0
        %1033 = vmatpush1.bf16.msra.mxu0 %v964
        %1034 = vmatprep.subr.bf16.mxu0 0
        %1035 = vmatpush1.bf16.msra.mxu0 %v961
        %1036 = vmatprep.subr.bf16.mxu0 0
        %1037 = vmatpush1.bf16.msra.mxu0 %v958
        %1038 = vmatprep.subr.bf16.mxu0 0
        %1039 = vmatpush1.bf16.msra.mxu0 %v955
        %1040 = vmatprep.subr.bf16.mxu0 0
        %1041 = vmatpush1.bf16.msra.mxu0 %v952
        %1042 = vmatprep.subr.bf16.mxu0 0
        %1043 = vmatpush1.bf16.msra.mxu0 %v949
        %1044 = vmatprep.subr.bf16.mxu0 0
        %1045 = vmatpush1.bf16.msra.mxu0 %v946
        %1046 = vmatprep.subr.bf16.mxu0 0
        %1047 = vmatpush1.bf16.msra.mxu0 %v943
        %1048 = vmatprep.subr.bf16.mxu0 0
        %1049 = vmatpush2.bf16.msra.mxu0 0
        %1050 = vmatprep.subr.bf16.mxu0 0
        %1051 = vmatpush2.bf16.msra.mxu0 0
        %1052 = vmatprep.subr.bf16.mxu0 0
        %1053 = vmatpush2.bf16.msra.mxu0 0
        %1054 = vmatprep.subr.bf16.mxu0 0
        %1055 = vmatpush2.bf16.msra.mxu0 0
        %1056 = vmatprep.subr.bf16.mxu0 0
        %1057 = vmatpush2.bf16.msra.mxu0 0
        %1058 = vmatprep.subr.bf16.mxu0 0
        %1059 = vmatpush2.bf16.msra.mxu0 0
        %1060 = vmatprep.subr.bf16.mxu0 0
        %1061 = vmatpush2.bf16.msra.mxu0 0
        %1062 = vmatprep.subr.bf16.mxu0 0
        %1063 = vmatpush2.bf16.msra.mxu0 0
        %1064 = vmatprep.mubr.bf16.mxu0 0
        %1065 = vmatmul.mubr.bf16.gmra.mxu0 %v844
        %v1066 = vpop.f32.mrf.mxu0
        %v1067 = vadd.f32 %v857, %v1066
        %v1068 = vpop.f32.mrf.mxu0
        %v1069 = vpop.f32.mrf.mxu0
        %v1070 = vadd.f32 %v857, %v1069
        %v1071 = vpop.f32.mrf.mxu0
        %1072 = vdwg.mxu0
        %v1073 = vpack.c.bf16 %v1024, %v1024
        %v1074 = vpack.c.bf16 %v1028, %v1028
        %v1075 = vpack.c.bf16 %v1026, %v1026
        %v1076 = vpack.c.bf16 %v1030, %v1030
        %vm1077 = vcmask 261120
        %v1079 = vsel %vm1077, %v1073, 0
        %v1082 = vsel %vm1077, %v1075, 0
        %1084 = vmatprep.subr.bf16.mxu0 0
        %1085 = vmatpush1.bf16.xpose.msra.mxu0 0
        %1086 = vmatprep.subr.bf16.mxu0 0
        %1087 = vmatpush1.bf16.xpose.msra.mxu0 0
        %1088 = vmatprep.subr.bf16.mxu0 0
        %1089 = vmatpush1.bf16.xpose.msra.mxu0 0
        %1090 = vmatprep.subr.bf16.mxu0 0
        %1091 = vmatpush1.bf16.xpose.msra.mxu0 0
        %1092 = vmatprep.subr.bf16.mxu0 0
        %1093 = vmatpush1.bf16.xpose.msra.mxu0 0
        %1094 = vmatprep.subr.bf16.mxu0 0
        %1095 = vmatpush1.bf16.xpose.msra.mxu0 0
        %1096 = vmatprep.subr.bf16.mxu0 0
        %1097 = vmatpush1.bf16.xpose.msra.mxu0 0
        %1098 = vmatprep.subr.bf16.mxu0 0
        %1099 = vmatpush1.bf16.xpose.msra.mxu0 %v1082
        %1100 = vmatprep.subr.bf16.mxu0 0
        %1101 = vmatpush2.bf16.xpose.msra.mxu0 0
        %1102 = vmatprep.subr.bf16.mxu0 0
        %1103 = vmatpush2.bf16.xpose.msra.mxu0 0
        %1104 = vmatprep.subr.bf16.mxu0 0
        %1105 = vmatpush2.bf16.xpose.msra.mxu0 0
        %1106 = vmatprep.subr.bf16.mxu0 0
        %1107 = vmatpush2.bf16.xpose.msra.mxu0 0
        %1108 = vmatprep.subr.bf16.mxu0 0
        %1109 = vmatpush2.bf16.xpose.msra.mxu0 0
        %1110 = vmatprep.subr.bf16.mxu0 0
        %1111 = vmatpush2.bf16.xpose.msra.mxu0 0
        %1112 = vmatprep.subr.bf16.mxu0 0
        %1113 = vmatpush2.bf16.xpose.msra.mxu0 0
        %1114 = vmatprep.subr.bf16.mxu0 0
        %1115 = vmatpush2.bf16.xpose.msra.mxu0 0
        %1116 = vmatprep.mubr.bf16.mxu0 0
        %1117 = vmatmul.mubr.bf16.gmra.mxu0 %v1079
        %v1118 = vpop.f32.mrf.mxu0
        %v1119 = vadd.f32 0.0, %v1118
        %v1120 = vpop.f32.mrf.mxu0
        %v1121 = vpop.f32.mrf.mxu0
        %v1122 = vpop.f32.mrf.mxu0
        %1123 = vdwg.mxu0
        %v1125 = vsel %vm1077, %v1074, 0
        %v1128 = vsel %vm1077, %v1076, 0
        %1130 = vmatprep.subr.bf16.mxu0 0
        %1131 = vmatpush1.bf16.xpose.msra.mxu0 0
        %1132 = vmatprep.subr.bf16.mxu0 0
        %1133 = vmatpush1.bf16.xpose.msra.mxu0 0
        %1134 = vmatprep.subr.bf16.mxu0 0
        %1135 = vmatpush1.bf16.xpose.msra.mxu0 0
        %1136 = vmatprep.subr.bf16.mxu0 0
        %1137 = vmatpush1.bf16.xpose.msra.mxu0 0
        %1138 = vmatprep.subr.bf16.mxu0 0
        %1139 = vmatpush1.bf16.xpose.msra.mxu0 0
        %1140 = vmatprep.subr.bf16.mxu0 0
        %1141 = vmatpush1.bf16.xpose.msra.mxu0 0
        %1142 = vmatprep.subr.bf16.mxu0 0
        %1143 = vmatpush1.bf16.xpose.msra.mxu0 0
        %1144 = vmatprep.subr.bf16.mxu0 0
        %1145 = vmatpush1.bf16.xpose.msra.mxu0 %v1128
        %1146 = vmatprep.subr.bf16.mxu0 0
        %1147 = vmatpush2.bf16.xpose.msra.mxu0 0
        %1148 = vmatprep.subr.bf16.mxu0 0
        %1149 = vmatpush2.bf16.xpose.msra.mxu0 0
        %1150 = vmatprep.subr.bf16.mxu0 0
        %1151 = vmatpush2.bf16.xpose.msra.mxu0 0
        %1152 = vmatprep.subr.bf16.mxu0 0
        %1153 = vmatpush2.bf16.xpose.msra.mxu0 0
        %1154 = vmatprep.subr.bf16.mxu0 0
        %1155 = vmatpush2.bf16.xpose.msra.mxu0 0
        %1156 = vmatprep.subr.bf16.mxu0 0
        %1157 = vmatpush2.bf16.xpose.msra.mxu0 0
        %1158 = vmatprep.subr.bf16.mxu0 0
        %1159 = vmatpush2.bf16.xpose.msra.mxu0 0
        %1160 = vmatprep.subr.bf16.mxu0 0
        %1161 = vmatpush2.bf16.xpose.msra.mxu0 0
        %1162 = vmatprep.mubr.bf16.mxu0 0
        %1163 = vmatmul.mubr.bf16.gmra.mxu0 %v1125
        %v1164 = vpop.f32.mrf.mxu0
        %v1165 = vadd.f32 0.0, %v1164
        %v1166 = vpop.f32.mrf.mxu0
        %v1167 = vpop.f32.mrf.mxu0
        %v1168 = vpop.f32.mrf.mxu0
        %1169 = vdwg.mxu0
        %v1170 = vmul.f32 %v1119, 0.17677669
        %v1171 = vmul.f32 %v1165, 0.17677669
        %v1174 = vunpack.c.l.s4 1966171168
        %v1175 = vunpack.c.0.s8 %v1174
        %v1176 = vlaneseq
        %v1177 = vshrl.u32 %v1176, 7
        %v1178 = vsub.s32 %v1175, %v1177
        %v1179 = vrot.slane %v843, %v1178
        %v1180 = vcombine.high %v1179, %v1179
        %v1182 = vunpack.c.l.s4 1966171168
        %v1183 = vunpack.c.0.s8 %v1182
        %v1184 = vlaneseq
        %v1185 = vshrl.u32 %v1184, 7
        %v1186 = vsub.s32 %v1183, %v1185
        %v1187 = vrot.slane %v1179, %v1186
        %v1189 = vunpack.c.l.s4 1966171168
        %v1190 = vunpack.c.0.s8 %v1189
        %v1191 = vlaneseq
        %v1192 = vshrl.u32 %v1191, 7
        %v1193 = vsub.s32 %v1190, %v1192
        %v1194 = vrot.slane %v1180, %v1193
        %v1195 = vlaneseq
        %v1196 = vshrl.u32 %v1195, 7
        %v1197 = vsub.s32 0, %v1196
        %v1198 = vrot.slane %v1187, %v1197
        %v1199 = vlaneseq
        %v1200 = vshrl.u32 %v1199, 7
        %v1201 = vsub.s32 0, %v1200
        %v1202 = vrot.slane %v1194, %v1201
        %v1205 = vadd.f32 %v1170, %v1198
        %v1206 = vadd.f32 %v1171, %v1202
        %vm1207 = vcmask 64512
        %v1208 = vsel %vm1207, %v1205, -inf
        %1209 = vmax.xlane.f32.xlu0 %v1208
        %v1210 = vpop.xlane.xlu0 %1209
        %v1211 = vsel %vm1207, %v1206, -inf
        %1212 = vmax.xlane.f32.xlu0 %v1211
        %v1213 = vpop.xlane.xlu0 %1212
        %v1214 = vsub.f32 %v1205, %v1210
        %v1215 = vsub.f32 %v1206, %v1213
        %v1216 = vmul.f32 %v1214, 1.442695
        %v1217 = vpow.pop %v1216
        %v1218 = vmul.f32 %v1215, 1.442695
        %v1219 = vpow.pop %v1218
        %v1220 = vsel %vm1207, %v1217, 0.0
        %1221 = vadd.xlane.f32.xlu0 %v1220
        %v1222 = vpop.xlane.xlu0 %1221
        %v1223 = vsel %vm1207, %v1219, 0.0
        %1224 = vadd.xlane.f32.xlu0 %v1223
        %v1225 = vpop.xlane.xlu0 %1224
        %v1226 = vrcp.pop %v1222
        %v1227 = vrcp.pop %v1225
        %v1228 = vmul.f32 %v1217, %v1226
        %v1229 = vmul.f32 %v1219, %v1227
        %v1230 = vpack.c.bf16 %v1228, %v1228
        %v1231 = vpack.c.bf16 %v1229, %v1229
        %v1232 = vpack.c.bf16 %v1067, %v1067
        %v1233 = vpack.c.bf16 %v1070, %v1070
        %v1235 = vsel %vm1207, %v1230, 0
        %vm1237 = vcmask 1043456
        %v1239 = vsel %vm1237, %v1232, 0
        %1241 = vmatprep.subr.bf16.mxu0 0
        %1242 = vmatpush1.bf16.msra.mxu0 0
        %1243 = vmatprep.subr.bf16.mxu0 0
        %1244 = vmatpush1.bf16.msra.mxu0 0
        %1245 = vmatprep.subr.bf16.mxu0 0
        %1246 = vmatpush1.bf16.msra.mxu0 0
        %1247 = vmatprep.subr.bf16.mxu0 0
        %1248 = vmatpush1.bf16.msra.mxu0 0
        %1249 = vmatprep.subr.bf16.mxu0 0
        %1250 = vmatpush1.bf16.msra.mxu0 0
        %1251 = vmatprep.subr.bf16.mxu0 0
        %1252 = vmatpush1.bf16.msra.mxu0 0
        %1253 = vmatprep.subr.bf16.mxu0 0
        %1254 = vmatpush1.bf16.msra.mxu0 0
        %1255 = vmatprep.subr.bf16.mxu0 0
        %1256 = vmatpush1.bf16.msra.mxu0 %v1239
        %1257 = vmatprep.subr.bf16.mxu0 0
        %1258 = vmatpush2.bf16.msra.mxu0 0
        %1259 = vmatprep.subr.bf16.mxu0 0
        %1260 = vmatpush2.bf16.msra.mxu0 0
        %1261 = vmatprep.subr.bf16.mxu0 0
        %1262 = vmatpush2.bf16.msra.mxu0 0
        %1263 = vmatprep.subr.bf16.mxu0 0
        %1264 = vmatpush2.bf16.msra.mxu0 0
        %1265 = vmatprep.subr.bf16.mxu0 0
        %1266 = vmatpush2.bf16.msra.mxu0 0
        %1267 = vmatprep.subr.bf16.mxu0 0
        %1268 = vmatpush2.bf16.msra.mxu0 0
        %1269 = vmatprep.subr.bf16.mxu0 0
        %1270 = vmatpush2.bf16.msra.mxu0 0
        %1271 = vmatprep.subr.bf16.mxu0 0
        %1272 = vmatpush2.bf16.msra.mxu0 0
        %1273 = vmatprep.mubr.bf16.mxu0 0
        %1274 = vmatmul.mubr.bf16.gmra.mxu0 %v1235
        %v1275 = vpop.f32.mrf.mxu0
        %v1276 = vadd.f32 0.0, %v1275
        %v1277 = vpop.f32.mrf.mxu0
        %v1278 = vpop.f32.mrf.mxu0
        %v1279 = vpop.f32.mrf.mxu0
        %1280 = vdwg.mxu0
        %v1282 = vsel %vm1207, %v1231, 0
        %v1285 = vsel %vm1237, %v1233, 0
        %1287 = vmatprep.subr.bf16.mxu0 0
        %1288 = vmatpush1.bf16.msra.mxu0 0
        %1289 = vmatprep.subr.bf16.mxu0 0
        %1290 = vmatpush1.bf16.msra.mxu0 0
        %1291 = vmatprep.subr.bf16.mxu0 0
        %1292 = vmatpush1.bf16.msra.mxu0 0
        %1293 = vmatprep.subr.bf16.mxu0 0
        %1294 = vmatpush1.bf16.msra.mxu0 0
        %1295 = vmatprep.subr.bf16.mxu0 0
        %1296 = vmatpush1.bf16.msra.mxu0 0
        %1297 = vmatprep.subr.bf16.mxu0 0
        %1298 = vmatpush1.bf16.msra.mxu0 0
        %1299 = vmatprep.subr.bf16.mxu0 0
        %1300 = vmatpush1.bf16.msra.mxu0 0
        %1301 = vmatprep.subr.bf16.mxu0 0
        %1302 = vmatpush1.bf16.msra.mxu0 %v1285
        %1303 = vmatprep.subr.bf16.mxu0 0
        %1304 = vmatpush2.bf16.msra.mxu0 0
        %1305 = vmatprep.subr.bf16.mxu0 0
        %1306 = vmatpush2.bf16.msra.mxu0 0
        %1307 = vmatprep.subr.bf16.mxu0 0
        %1308 = vmatpush2.bf16.msra.mxu0 0
        %1309 = vmatprep.subr.bf16.mxu0 0
        %1310 = vmatpush2.bf16.msra.mxu0 0
        %1311 = vmatprep.subr.bf16.mxu0 0
        %1312 = vmatpush2.bf16.msra.mxu0 0
        %1313 = vmatprep.subr.bf16.mxu0 0
        %1314 = vmatpush2.bf16.msra.mxu0 0
        %1315 = vmatprep.subr.bf16.mxu0 0
        %1316 = vmatpush2.bf16.msra.mxu0 0
        %1317 = vmatprep.subr.bf16.mxu0 0
        %1318 = vmatpush2.bf16.msra.mxu0 0
        %1319 = vmatprep.mubr.bf16.mxu0 0
        %1320 = vmatmul.mubr.bf16.gmra.mxu0 %v1282
        %v1321 = vpop.f32.mrf.mxu0
        %v1322 = vadd.f32 0.0, %v1321
        %v1323 = vpop.f32.mrf.mxu0
        %v1324 = vpop.f32.mrf.mxu0
        %v1325 = vpop.f32.mrf.mxu0
        %1326 = vdwg.mxu0
        %v1327 = vpack.c.bf16 %v1322, %v1276
        %1329 = vrot.lane.b32.xlu0 %v1073, 96
        %v1330 = vpop.permute.xlu0 %1329
        %1332 = vrot.lane.b32.xlu0 %v1075, 96
        %v1333 = vpop.permute.xlu0 %1332
        %v1335 = vsel %vm1077, %v1330, 0
        %v1338 = vsel %vm1077, %v1333, 0
        %1340 = vmatprep.subr.bf16.mxu0 0
        %1341 = vmatpush1.bf16.xpose.msra.mxu0 0
        %1342 = vmatprep.subr.bf16.mxu0 0
        %1343 = vmatpush1.bf16.xpose.msra.mxu0 0
        %1344 = vmatprep.subr.bf16.mxu0 0
        %1345 = vmatpush1.bf16.xpose.msra.mxu0 0
        %1346 = vmatprep.subr.bf16.mxu0 0
        %1347 = vmatpush1.bf16.xpose.msra.mxu0 0
        %1348 = vmatprep.subr.bf16.mxu0 0
        %1349 = vmatpush1.bf16.xpose.msra.mxu0 0
        %1350 = vmatprep.subr.bf16.mxu0 0
        %1351 = vmatpush1.bf16.xpose.msra.mxu0 0
        %1352 = vmatprep.subr.bf16.mxu0 0
        %1353 = vmatpush1.bf16.xpose.msra.mxu0 0
        %1354 = vmatprep.subr.bf16.mxu0 0
        %1355 = vmatpush1.bf16.xpose.msra.mxu0 %v1338
        %1356 = vmatprep.subr.bf16.mxu0 0
        %1357 = vmatpush2.bf16.xpose.msra.mxu0 0
        %1358 = vmatprep.subr.bf16.mxu0 0
        %1359 = vmatpush2.bf16.xpose.msra.mxu0 0
        %1360 = vmatprep.subr.bf16.mxu0 0
        %1361 = vmatpush2.bf16.xpose.msra.mxu0 0
        %1362 = vmatprep.subr.bf16.mxu0 0
        %1363 = vmatpush2.bf16.xpose.msra.mxu0 0
        %1364 = vmatprep.subr.bf16.mxu0 0
        %1365 = vmatpush2.bf16.xpose.msra.mxu0 0
        %1366 = vmatprep.subr.bf16.mxu0 0
        %1367 = vmatpush2.bf16.xpose.msra.mxu0 0
        %1368 = vmatprep.subr.bf16.mxu0 0
        %1369 = vmatpush2.bf16.xpose.msra.mxu0 0
        %1370 = vmatprep.subr.bf16.mxu0 0
        %1371 = vmatpush2.bf16.xpose.msra.mxu0 0
        %1372 = vmatprep.mubr.bf16.mxu0 0
        %1373 = vmatmul.mubr.bf16.gmra.mxu0 %v1335
        %v1374 = vpop.f32.mrf.mxu0
        %v1375 = vadd.f32 0.0, %v1374
        %v1376 = vpop.f32.mrf.mxu0
        %v1377 = vpop.f32.mrf.mxu0
        %v1378 = vpop.f32.mrf.mxu0
        %1379 = vdwg.mxu0
        %1381 = vrot.lane.b32.xlu0 %v1074, 96
        %v1382 = vpop.permute.xlu0 %1381
        %1384 = vrot.lane.b32.xlu0 %v1076, 96
        %v1385 = vpop.permute.xlu0 %1384
        %v1387 = vsel %vm1077, %v1382, 0
        %v1390 = vsel %vm1077, %v1385, 0
        %1392 = vmatprep.subr.bf16.mxu0 0
        %1393 = vmatpush1.bf16.xpose.msra.mxu0 0
        %1394 = vmatprep.subr.bf16.mxu0 0
        %1395 = vmatpush1.bf16.xpose.msra.mxu0 0
        %1396 = vmatprep.subr.bf16.mxu0 0
        %1397 = vmatpush1.bf16.xpose.msra.mxu0 0
        %1398 = vmatprep.subr.bf16.mxu0 0
        %1399 = vmatpush1.bf16.xpose.msra.mxu0 0
        %1400 = vmatprep.subr.bf16.mxu0 0
        %1401 = vmatpush1.bf16.xpose.msra.mxu0 0
        %1402 = vmatprep.subr.bf16.mxu0 0
        %1403 = vmatpush1.bf16.xpose.msra.mxu0 0
        %1404 = vmatprep.subr.bf16.mxu0 0
        %1405 = vmatpush1.bf16.xpose.msra.mxu0 0
        %1406 = vmatprep.subr.bf16.mxu0 0
        %1407 = vmatpush1.bf16.xpose.msra.mxu0 %v1390
        %1408 = vmatprep.subr.bf16.mxu0 0
        %1409 = vmatpush2.bf16.xpose.msra.mxu0 0
        %1410 = vmatprep.subr.bf16.mxu0 0
        %1411 = vmatpush2.bf16.xpose.msra.mxu0 0
        %1412 = vmatprep.subr.bf16.mxu0 0
        %1413 = vmatpush2.bf16.xpose.msra.mxu0 0
        %1414 = vmatprep.subr.bf16.mxu0 0
        %1415 = vmatpush2.bf16.xpose.msra.mxu0 0
        %1416 = vmatprep.subr.bf16.mxu0 0
        %1417 = vmatpush2.bf16.xpose.msra.mxu0 0
        %1418 = vmatprep.subr.bf16.mxu0 0
        %1419 = vmatpush2.bf16.xpose.msra.mxu0 0
        %1420 = vmatprep.subr.bf16.mxu0 0
        %1421 = vmatpush2.bf16.xpose.msra.mxu0 0
        %1422 = vmatprep.subr.bf16.mxu0 0
        %1423 = vmatpush2.bf16.xpose.msra.mxu0 0
        %1424 = vmatprep.mubr.bf16.mxu0 0
        %1425 = vmatmul.mubr.bf16.gmra.mxu0 %v1387
        %v1426 = vpop.f32.mrf.mxu0
        %v1427 = vadd.f32 0.0, %v1426
        %v1428 = vpop.f32.mrf.mxu0
        %v1429 = vpop.f32.mrf.mxu0
        %v1430 = vpop.f32.mrf.mxu0
        %1431 = vdwg.mxu0
        %v1432 = vmul.f32 %v1375, 0.17677669
        %v1433 = vmul.f32 %v1427, 0.17677669
        %v1434 = vadd.f32 %v1432, %v1198
        %v1435 = vadd.f32 %v1433, %v1202
        %v1436 = vsel %vm1207, %v1434, -inf
        %1437 = vmax.xlane.f32.xlu0 %v1436
        %v1438 = vpop.xlane.xlu0 %1437
        %v1439 = vsel %vm1207, %v1435, -inf
        %1440 = vmax.xlane.f32.xlu0 %v1439
        %v1441 = vpop.xlane.xlu0 %1440
        %v1442 = vsub.f32 %v1434, %v1438
        %v1443 = vsub.f32 %v1435, %v1441
        %v1444 = vmul.f32 %v1442, 1.442695
        %v1445 = vpow.pop %v1444
        %v1446 = vmul.f32 %v1443, 1.442695
        %v1447 = vpow.pop %v1446
        %v1448 = vsel %vm1207, %v1445, 0.0
        %1449 = vadd.xlane.f32.xlu0 %v1448
        %v1450 = vpop.xlane.xlu0 %1449
        %v1451 = vsel %vm1207, %v1447, 0.0
        %1452 = vadd.xlane.f32.xlu0 %v1451
        %v1453 = vpop.xlane.xlu0 %1452
        %v1454 = vrcp.pop %v1450
        %v1455 = vrcp.pop %v1453
        %v1456 = vmul.f32 %v1445, %v1454
        %v1457 = vmul.f32 %v1447, %v1455
        %v1458 = vpack.c.bf16 %v1456, %v1456
        %v1459 = vpack.c.bf16 %v1457, %v1457
        %1461 = vrot.lane.b32.xlu0 %v1232, 96
        %v1462 = vpop.permute.xlu0 %1461
        %v1464 = vsel %vm1207, %v1458, 0
        %v1467 = vsel %vm1237, %v1462, 0
        %1469 = vmatprep.subr.bf16.mxu0 0
        %1470 = vmatpush1.bf16.msra.mxu0 0
        %1471 = vmatprep.subr.bf16.mxu0 0
        %1472 = vmatpush1.bf16.msra.mxu0 0
        %1473 = vmatprep.subr.bf16.mxu0 0
        %1474 = vmatpush1.bf16.msra.mxu0 0
        %1475 = vmatprep.subr.bf16.mxu0 0
        %1476 = vmatpush1.bf16.msra.mxu0 0
        %1477 = vmatprep.subr.bf16.mxu0 0
        %1478 = vmatpush1.bf16.msra.mxu0 0
        %1479 = vmatprep.subr.bf16.mxu0 0
        %1480 = vmatpush1.bf16.msra.mxu0 0
        %1481 = vmatprep.subr.bf16.mxu0 0
        %1482 = vmatpush1.bf16.msra.mxu0 0
        %1483 = vmatprep.subr.bf16.mxu0 0
        %1484 = vmatpush1.bf16.msra.mxu0 %v1467
        %1485 = vmatprep.subr.bf16.mxu0 0
        %1486 = vmatpush2.bf16.msra.mxu0 0
        %1487 = vmatprep.subr.bf16.mxu0 0
        %1488 = vmatpush2.bf16.msra.mxu0 0
        %1489 = vmatprep.subr.bf16.mxu0 0
        %1490 = vmatpush2.bf16.msra.mxu0 0
        %1491 = vmatprep.subr.bf16.mxu0 0
        %1492 = vmatpush2.bf16.msra.mxu0 0
        %1493 = vmatprep.subr.bf16.mxu0 0
        %1494 = vmatpush2.bf16.msra.mxu0 0
        %1495 = vmatprep.subr.bf16.mxu0 0
        %1496 = vmatpush2.bf16.msra.mxu0 0
        %1497 = vmatprep.subr.bf16.mxu0 0
        %1498 = vmatpush2.bf16.msra.mxu0 0
        %1499 = vmatprep.subr.bf16.mxu0 0
        %1500 = vmatpush2.bf16.msra.mxu0 0
        %1501 = vmatprep.mubr.bf16.mxu0 0
        %1502 = vmatmul.mubr.bf16.gmra.mxu0 %v1464
        %v1503 = vpop.f32.mrf.mxu0
        %v1504 = vadd.f32 0.0, %v1503
        %v1505 = vpop.f32.mrf.mxu0
        %v1506 = vpop.f32.mrf.mxu0
        %v1507 = vpop.f32.mrf.mxu0
        %1508 = vdwg.mxu0
        %1510 = vrot.lane.b32.xlu0 %v1233, 96
        %v1511 = vpop.permute.xlu0 %1510
        %v1513 = vsel %vm1207, %v1459, 0
        %v1516 = vsel %vm1237, %v1511, 0
        %1518 = vmatprep.subr.bf16.mxu0 0
        %1519 = vmatpush1.bf16.msra.mxu0 0
        %1520 = vmatprep.subr.bf16.mxu0 0
        %1521 = vmatpush1.bf16.msra.mxu0 0
        %1522 = vmatprep.subr.bf16.mxu0 0
        %1523 = vmatpush1.bf16.msra.mxu0 0
        %1524 = vmatprep.subr.bf16.mxu0 0
        %1525 = vmatpush1.bf16.msra.mxu0 0
        %1526 = vmatprep.subr.bf16.mxu0 0
        %1527 = vmatpush1.bf16.msra.mxu0 0
        %1528 = vmatprep.subr.bf16.mxu0 0
        %1529 = vmatpush1.bf16.msra.mxu0 0
        %1530 = vmatprep.subr.bf16.mxu0 0
        %1531 = vmatpush1.bf16.msra.mxu0 0
        %1532 = vmatprep.subr.bf16.mxu0 0
        %1533 = vmatpush1.bf16.msra.mxu0 %v1516
        %1534 = vmatprep.subr.bf16.mxu0 0
        %1535 = vmatpush2.bf16.msra.mxu0 0
        %1536 = vmatprep.subr.bf16.mxu0 0
        %1537 = vmatpush2.bf16.msra.mxu0 0
        %1538 = vmatprep.subr.bf16.mxu0 0
        %1539 = vmatpush2.bf16.msra.mxu0 0
        %1540 = vmatprep.subr.bf16.mxu0 0
        %1541 = vmatpush2.bf16.msra.mxu0 0
        %1542 = vmatprep.subr.bf16.mxu0 0
        %1543 = vmatpush2.bf16.msra.mxu0 0
        %1544 = vmatprep.subr.bf16.mxu0 0
        %1545 = vmatpush2.bf16.msra.mxu0 0
        %1546 = vmatprep.subr.bf16.mxu0 0
        %1547 = vmatpush2.bf16.msra.mxu0 0
        %1548 = vmatprep.subr.bf16.mxu0 0
        %1549 = vmatpush2.bf16.msra.mxu0 0
        %1550 = vmatprep.mubr.bf16.mxu0 0
        %1551 = vmatmul.mubr.bf16.gmra.mxu0 %v1513
        %v1552 = vpop.f32.mrf.mxu0
        %v1553 = vadd.f32 0.0, %v1552
        %v1554 = vpop.f32.mrf.mxu0
        %v1555 = vpop.f32.mrf.mxu0
        %v1556 = vpop.f32.mrf.mxu0
        %1557 = vdwg.mxu0
        %v1558 = vpack.c.bf16 %v1553, %v1504
        %v1563 = vunpack.c.l.b16 %v831
        %v1564 = vunpack.c.l.b16 %v832
        %v1565 = vunpack.c.l.b16 %v833
        %v1566 = vunpack.c.l.b16 %v834
        %v1567 = vpack.c.b16 %v1564, %v1563
        %v1568 = vpack.c.b16 %v1566, %v1565
        %v1572 = vsel %vm1077, %v1558, 0
        %1574 = vmatprep.subr.bf16.mxu0 0
        %1575 = vmatpush1.bf16.msra.mxu0 0
        %1576 = vmatprep.subr.bf16.mxu0 0
        %1577 = vmatpush1.bf16.msra.mxu0 0
        %1578 = vmatprep.subr.bf16.mxu0 0
        %1579 = vmatpush1.bf16.msra.mxu0 0
        %1580 = vmatprep.subr.bf16.mxu0 0
        %1581 = vmatpush1.bf16.msra.mxu0 0
        %1582 = vmatprep.subr.bf16.mxu0 0
        %1583 = vmatpush1.bf16.msra.mxu0 0
        %1584 = vmatprep.subr.bf16.mxu0 0
        %1585 = vmatpush1.bf16.msra.mxu0 0
        %1586 = vmatprep.subr.bf16.mxu0 0
        %1587 = vmatpush1.bf16.msra.mxu0 %v1568
        %1588 = vmatprep.subr.bf16.mxu0 0
        %1589 = vmatpush1.bf16.msra.mxu0 %v1567
        %1590 = vmatprep.subr.bf16.mxu0 0
        %1591 = vmatpush2.bf16.msra.mxu0 0
        %1592 = vmatprep.subr.bf16.mxu0 0
        %1593 = vmatpush2.bf16.msra.mxu0 0
        %1594 = vmatprep.subr.bf16.mxu0 0
        %1595 = vmatpush2.bf16.msra.mxu0 0
        %1596 = vmatprep.subr.bf16.mxu0 0
        %1597 = vmatpush2.bf16.msra.mxu0 0
        %1598 = vmatprep.subr.bf16.mxu0 0
        %1599 = vmatpush2.bf16.msra.mxu0 0
        %1600 = vmatprep.subr.bf16.mxu0 0
        %1601 = vmatpush2.bf16.msra.mxu0 0
        %1602 = vmatprep.subr.bf16.mxu0 0
        %1603 = vmatpush2.bf16.msra.mxu0 0
        %1604 = vmatprep.subr.bf16.mxu0 0
        %1605 = vmatpush2.bf16.msra.mxu0 0
        %1606 = vmatprep.mubr.bf16.mxu0 0
        %1607 = vmatmul.mubr.bf16.gmra.mxu0 %v1572
        %v1608 = vpop.f32.mrf.mxu0
        %v1609 = vadd.f32 0.0, %v1608
        %v1610 = vpop.f32.mrf.mxu0
        %v1611 = vpop.f32.mrf.mxu0
        %v1612 = vadd.f32 0.0, %v1611
        %v1613 = vpop.f32.mrf.mxu0
        %1614 = vdwg.mxu0
        %v1619 = vunpack.c.l.b16 %v827
        %v1620 = vunpack.c.l.b16 %v828
        %v1621 = vunpack.c.l.b16 %v829
        %v1622 = vunpack.c.l.b16 %v830
        %v1623 = vpack.c.b16 %v1620, %v1619
        %v1624 = vpack.c.b16 %v1622, %v1621
        %v1628 = vsel %vm1077, %v1327, 0
        %1630 = vmatprep.subr.bf16.mxu0 0
        %1631 = vmatpush1.bf16.msra.mxu0 0
        %1632 = vmatprep.subr.bf16.mxu0 0
        %1633 = vmatpush1.bf16.msra.mxu0 0
        %1634 = vmatprep.subr.bf16.mxu0 0
        %1635 = vmatpush1.bf16.msra.mxu0 0
        %1636 = vmatprep.subr.bf16.mxu0 0
        %1637 = vmatpush1.bf16.msra.mxu0 0
        %1638 = vmatprep.subr.bf16.mxu0 0
        %1639 = vmatpush1.bf16.msra.mxu0 0
        %1640 = vmatprep.subr.bf16.mxu0 0
        %1641 = vmatpush1.bf16.msra.mxu0 0
        %1642 = vmatprep.subr.bf16.mxu0 0
        %1643 = vmatpush1.bf16.msra.mxu0 %v1624
        %1644 = vmatprep.subr.bf16.mxu0 0
        %1645 = vmatpush1.bf16.msra.mxu0 %v1623
        %1646 = vmatprep.subr.bf16.mxu0 0
        %1647 = vmatpush2.bf16.msra.mxu0 0
        %1648 = vmatprep.subr.bf16.mxu0 0
        %1649 = vmatpush2.bf16.msra.mxu0 0
        %1650 = vmatprep.subr.bf16.mxu0 0
        %1651 = vmatpush2.bf16.msra.mxu0 0
        %1652 = vmatprep.subr.bf16.mxu0 0
        %1653 = vmatpush2.bf16.msra.mxu0 0
        %1654 = vmatprep.subr.bf16.mxu0 0
        %1655 = vmatpush2.bf16.msra.mxu0 0
        %1656 = vmatprep.subr.bf16.mxu0 0
        %1657 = vmatpush2.bf16.msra.mxu0 0
        %1658 = vmatprep.subr.bf16.mxu0 0
        %1659 = vmatpush2.bf16.msra.mxu0 0
        %1660 = vmatprep.subr.bf16.mxu0 0
        %1661 = vmatpush2.bf16.msra.mxu0 0
        %1662 = vmatprep.mubr.bf16.mxu0 0
        %1663 = vmatmul.mubr.bf16.gmra.mxu0 %v1628
        %v1664 = vpop.f32.mrf.mxu0
        %v1665 = vadd.f32 %v1609, %v1664
        %v1666 = vpop.f32.mrf.mxu0
        %v1667 = vpop.f32.mrf.mxu0
        %v1668 = vadd.f32 %v1612, %v1667
        %v1669 = vpop.f32.mrf.mxu0
        %1670 = vdwg.mxu0
        %1671 = vrot.lane.b32.xlu0 %v1073, 64
        %v1672 = vpop.permute.xlu0 %1671
        %1673 = vrot.lane.b32.xlu0 %v1075, 64
        %v1674 = vpop.permute.xlu0 %1673
        %v1676 = vsel %vm1077, %v1672, 0
        %v1679 = vsel %vm1077, %v1674, 0
        %1681 = vmatprep.subr.bf16.mxu0 0
        %1682 = vmatpush1.bf16.xpose.msra.mxu0 0
        %1683 = vmatprep.subr.bf16.mxu0 0
        %1684 = vmatpush1.bf16.xpose.msra.mxu0 0
        %1685 = vmatprep.subr.bf16.mxu0 0
        %1686 = vmatpush1.bf16.xpose.msra.mxu0 0
        %1687 = vmatprep.subr.bf16.mxu0 0
        %1688 = vmatpush1.bf16.xpose.msra.mxu0 0
        %1689 = vmatprep.subr.bf16.mxu0 0
        %1690 = vmatpush1.bf16.xpose.msra.mxu0 0
        %1691 = vmatprep.subr.bf16.mxu0 0
        %1692 = vmatpush1.bf16.xpose.msra.mxu0 0
        %1693 = vmatprep.subr.bf16.mxu0 0
        %1694 = vmatpush1.bf16.xpose.msra.mxu0 0
        %1695 = vmatprep.subr.bf16.mxu0 0
        %1696 = vmatpush1.bf16.xpose.msra.mxu0 %v1679
        %1697 = vmatprep.subr.bf16.mxu0 0
        %1698 = vmatpush2.bf16.xpose.msra.mxu0 0
        %1699 = vmatprep.subr.bf16.mxu0 0
        %1700 = vmatpush2.bf16.xpose.msra.mxu0 0
        %1701 = vmatprep.subr.bf16.mxu0 0
        %1702 = vmatpush2.bf16.xpose.msra.mxu0 0
        %1703 = vmatprep.subr.bf16.mxu0 0
        %1704 = vmatpush2.bf16.xpose.msra.mxu0 0
        %1705 = vmatprep.subr.bf16.mxu0 0
        %1706 = vmatpush2.bf16.xpose.msra.mxu0 0
        %1707 = vmatprep.subr.bf16.mxu0 0
        %1708 = vmatpush2.bf16.xpose.msra.mxu0 0
        %1709 = vmatprep.subr.bf16.mxu0 0
        %1710 = vmatpush2.bf16.xpose.msra.mxu0 0
        %1711 = vmatprep.subr.bf16.mxu0 0
        %1712 = vmatpush2.bf16.xpose.msra.mxu0 0
        %1713 = vmatprep.mubr.bf16.mxu0 0
        %1714 = vmatmul.mubr.bf16.gmra.mxu0 %v1676
        %v1715 = vpop.f32.mrf.mxu0
        %v1716 = vadd.f32 0.0, %v1715
        %v1717 = vpop.f32.mrf.mxu0
        %v1718 = vpop.f32.mrf.mxu0
        %v1719 = vpop.f32.mrf.mxu0
        %1720 = vdwg.mxu0
        %1721 = vrot.lane.b32.xlu0 %v1074, 64
        %v1722 = vpop.permute.xlu0 %1721
        %1723 = vrot.lane.b32.xlu0 %v1076, 64
        %v1724 = vpop.permute.xlu0 %1723
        %v1726 = vsel %vm1077, %v1722, 0
        %v1729 = vsel %vm1077, %v1724, 0
        %1731 = vmatprep.subr.bf16.mxu0 0
        %1732 = vmatpush1.bf16.xpose.msra.mxu0 0
        %1733 = vmatprep.subr.bf16.mxu0 0
        %1734 = vmatpush1.bf16.xpose.msra.mxu0 0
        %1735 = vmatprep.subr.bf16.mxu0 0
        %1736 = vmatpush1.bf16.xpose.msra.mxu0 0
        %1737 = vmatprep.subr.bf16.mxu0 0
        %1738 = vmatpush1.bf16.xpose.msra.mxu0 0
        %1739 = vmatprep.subr.bf16.mxu0 0
        %1740 = vmatpush1.bf16.xpose.msra.mxu0 0
        %1741 = vmatprep.subr.bf16.mxu0 0
        %1742 = vmatpush1.bf16.xpose.msra.mxu0 0
        %1743 = vmatprep.subr.bf16.mxu0 0
        %1744 = vmatpush1.bf16.xpose.msra.mxu0 0
        %1745 = vmatprep.subr.bf16.mxu0 0
        %1746 = vmatpush1.bf16.xpose.msra.mxu0 %v1729
        %1747 = vmatprep.subr.bf16.mxu0 0
        %1748 = vmatpush2.bf16.xpose.msra.mxu0 0
        %1749 = vmatprep.subr.bf16.mxu0 0
        %1750 = vmatpush2.bf16.xpose.msra.mxu0 0
        %1751 = vmatprep.subr.bf16.mxu0 0
        %1752 = vmatpush2.bf16.xpose.msra.mxu0 0
        %1753 = vmatprep.subr.bf16.mxu0 0
        %1754 = vmatpush2.bf16.xpose.msra.mxu0 0
        %1755 = vmatprep.subr.bf16.mxu0 0
        %1756 = vmatpush2.bf16.xpose.msra.mxu0 0
        %1757 = vmatprep.subr.bf16.mxu0 0
        %1758 = vmatpush2.bf16.xpose.msra.mxu0 0
        %1759 = vmatprep.subr.bf16.mxu0 0
        %1760 = vmatpush2.bf16.xpose.msra.mxu0 0
        %1761 = vmatprep.subr.bf16.mxu0 0
        %1762 = vmatpush2.bf16.xpose.msra.mxu0 0
        %1763 = vmatprep.mubr.bf16.mxu0 0
        %1764 = vmatmul.mubr.bf16.gmra.mxu0 %v1726
        %v1765 = vpop.f32.mrf.mxu0
        %v1766 = vadd.f32 0.0, %v1765
        %v1767 = vpop.f32.mrf.mxu0
        %v1768 = vpop.f32.mrf.mxu0
        %v1769 = vpop.f32.mrf.mxu0
        %1770 = vdwg.mxu0
        %v1771 = vmul.f32 %v1716, 0.17677669
        %v1772 = vmul.f32 %v1766, 0.17677669
        %v1773 = vadd.f32 %v1771, %v1198
        %v1774 = vadd.f32 %v1772, %v1202
        %v1775 = vsel %vm1207, %v1773, -inf
        %1776 = vmax.xlane.f32.xlu0 %v1775
        %v1777 = vpop.xlane.xlu0 %1776
        %v1778 = vsel %vm1207, %v1774, -inf
        %1779 = vmax.xlane.f32.xlu0 %v1778
        %v1780 = vpop.xlane.xlu0 %1779
        %v1781 = vsub.f32 %v1773, %v1777
        %v1782 = vsub.f32 %v1774, %v1780
        %v1783 = vmul.f32 %v1781, 1.442695
        %v1784 = vpow.pop %v1783
        %v1785 = vmul.f32 %v1782, 1.442695
        %v1786 = vpow.pop %v1785
        %v1787 = vsel %vm1207, %v1784, 0.0
        %1788 = vadd.xlane.f32.xlu0 %v1787
        %v1789 = vpop.xlane.xlu0 %1788
        %v1790 = vsel %vm1207, %v1786, 0.0
        %1791 = vadd.xlane.f32.xlu0 %v1790
        %v1792 = vpop.xlane.xlu0 %1791
        %v1793 = vrcp.pop %v1789
        %v1794 = vrcp.pop %v1792
        %v1795 = vmul.f32 %v1784, %v1793
        %v1796 = vmul.f32 %v1786, %v1794
        %v1797 = vpack.c.bf16 %v1795, %v1795
        %v1798 = vpack.c.bf16 %v1796, %v1796
        %1799 = vrot.lane.b32.xlu0 %v1232, 64
        %v1800 = vpop.permute.xlu0 %1799
        %v1802 = vsel %vm1207, %v1797, 0
        %v1805 = vsel %vm1237, %v1800, 0
        %1807 = vmatprep.subr.bf16.mxu0 0
        %1808 = vmatpush1.bf16.msra.mxu0 0
        %1809 = vmatprep.subr.bf16.mxu0 0
        %1810 = vmatpush1.bf16.msra.mxu0 0
        %1811 = vmatprep.subr.bf16.mxu0 0
        %1812 = vmatpush1.bf16.msra.mxu0 0
        %1813 = vmatprep.subr.bf16.mxu0 0
        %1814 = vmatpush1.bf16.msra.mxu0 0
        %1815 = vmatprep.subr.bf16.mxu0 0
        %1816 = vmatpush1.bf16.msra.mxu0 0
        %1817 = vmatprep.subr.bf16.mxu0 0
        %1818 = vmatpush1.bf16.msra.mxu0 0
        %1819 = vmatprep.subr.bf16.mxu0 0
        %1820 = vmatpush1.bf16.msra.mxu0 0
        %1821 = vmatprep.subr.bf16.mxu0 0
        %1822 = vmatpush1.bf16.msra.mxu0 %v1805
        %1823 = vmatprep.subr.bf16.mxu0 0
        %1824 = vmatpush2.bf16.msra.mxu0 0
        %1825 = vmatprep.subr.bf16.mxu0 0
        %1826 = vmatpush2.bf16.msra.mxu0 0
        %1827 = vmatprep.subr.bf16.mxu0 0
        %1828 = vmatpush2.bf16.msra.mxu0 0
        %1829 = vmatprep.subr.bf16.mxu0 0
        %1830 = vmatpush2.bf16.msra.mxu0 0
        %1831 = vmatprep.subr.bf16.mxu0 0
        %1832 = vmatpush2.bf16.msra.mxu0 0
        %1833 = vmatprep.subr.bf16.mxu0 0
        %1834 = vmatpush2.bf16.msra.mxu0 0
        %1835 = vmatprep.subr.bf16.mxu0 0
        %1836 = vmatpush2.bf16.msra.mxu0 0
        %1837 = vmatprep.subr.bf16.mxu0 0
        %1838 = vmatpush2.bf16.msra.mxu0 0
        %1839 = vmatprep.mubr.bf16.mxu0 0
        %1840 = vmatmul.mubr.bf16.gmra.mxu0 %v1802
        %v1841 = vpop.f32.mrf.mxu0
        %v1842 = vadd.f32 0.0, %v1841
        %v1843 = vpop.f32.mrf.mxu0
        %v1844 = vpop.f32.mrf.mxu0
        %v1845 = vpop.f32.mrf.mxu0
        %1846 = vdwg.mxu0
        %1847 = vrot.lane.b32.xlu0 %v1233, 64
        %v1848 = vpop.permute.xlu0 %1847
        %v1850 = vsel %vm1207, %v1798, 0
        %v1853 = vsel %vm1237, %v1848, 0
        %1855 = vmatprep.subr.bf16.mxu0 0
        %1856 = vmatpush1.bf16.msra.mxu0 0
        %1857 = vmatprep.subr.bf16.mxu0 0
        %1858 = vmatpush1.bf16.msra.mxu0 0
        %1859 = vmatprep.subr.bf16.mxu0 0
        %1860 = vmatpush1.bf16.msra.mxu0 0
        %1861 = vmatprep.subr.bf16.mxu0 0
        %1862 = vmatpush1.bf16.msra.mxu0 0
        %1863 = vmatprep.subr.bf16.mxu0 0
        %1864 = vmatpush1.bf16.msra.mxu0 0
        %1865 = vmatprep.subr.bf16.mxu0 0
        %1866 = vmatpush1.bf16.msra.mxu0 0
        %1867 = vmatprep.subr.bf16.mxu0 0
        %1868 = vmatpush1.bf16.msra.mxu0 0
        %1869 = vmatprep.subr.bf16.mxu0 0
        %1870 = vmatpush1.bf16.msra.mxu0 %v1853
        %1871 = vmatprep.subr.bf16.mxu0 0
        %1872 = vmatpush2.bf16.msra.mxu0 0
        %1873 = vmatprep.subr.bf16.mxu0 0
        %1874 = vmatpush2.bf16.msra.mxu0 0
        %1875 = vmatprep.subr.bf16.mxu0 0
        %1876 = vmatpush2.bf16.msra.mxu0 0
        %1877 = vmatprep.subr.bf16.mxu0 0
        %1878 = vmatpush2.bf16.msra.mxu0 0
        %1879 = vmatprep.subr.bf16.mxu0 0
        %1880 = vmatpush2.bf16.msra.mxu0 0
        %1881 = vmatprep.subr.bf16.mxu0 0
        %1882 = vmatpush2.bf16.msra.mxu0 0
        %1883 = vmatprep.subr.bf16.mxu0 0
        %1884 = vmatpush2.bf16.msra.mxu0 0
        %1885 = vmatprep.subr.bf16.mxu0 0
        %1886 = vmatpush2.bf16.msra.mxu0 0
        %1887 = vmatprep.mubr.bf16.mxu0 0
        %1888 = vmatmul.mubr.bf16.gmra.mxu0 %v1850
        %v1889 = vpop.f32.mrf.mxu0
        %v1890 = vadd.f32 0.0, %v1889
        %v1891 = vpop.f32.mrf.mxu0
        %v1892 = vpop.f32.mrf.mxu0
        %v1893 = vpop.f32.mrf.mxu0
        %1894 = vdwg.mxu0
        %v1895 = vpack.c.bf16 %v1890, %v1842
        %v1900 = vunpack.c.l.b16 %v835
        %v1901 = vunpack.c.l.b16 %v836
        %v1902 = vunpack.c.l.b16 %v837
        %v1903 = vunpack.c.l.b16 %v838
        %v1904 = vpack.c.b16 %v1901, %v1900
        %v1905 = vpack.c.b16 %v1903, %v1902
        %v1909 = vsel %vm1077, %v1895, 0
        %1911 = vmatprep.subr.bf16.mxu0 0
        %1912 = vmatpush1.bf16.msra.mxu0 0
        %1913 = vmatprep.subr.bf16.mxu0 0
        %1914 = vmatpush1.bf16.msra.mxu0 0
        %1915 = vmatprep.subr.bf16.mxu0 0
        %1916 = vmatpush1.bf16.msra.mxu0 0
        %1917 = vmatprep.subr.bf16.mxu0 0
        %1918 = vmatpush1.bf16.msra.mxu0 0
        %1919 = vmatprep.subr.bf16.mxu0 0
        %1920 = vmatpush1.bf16.msra.mxu0 0
        %1921 = vmatprep.subr.bf16.mxu0 0
        %1922 = vmatpush1.bf16.msra.mxu0 0
        %1923 = vmatprep.subr.bf16.mxu0 0
        %1924 = vmatpush1.bf16.msra.mxu0 %v1905
        %1925 = vmatprep.subr.bf16.mxu0 0
        %1926 = vmatpush1.bf16.msra.mxu0 %v1904
        %1927 = vmatprep.subr.bf16.mxu0 0
        %1928 = vmatpush2.bf16.msra.mxu0 0
        %1929 = vmatprep.subr.bf16.mxu0 0
        %1930 = vmatpush2.bf16.msra.mxu0 0
        %1931 = vmatprep.subr.bf16.mxu0 0
        %1932 = vmatpush2.bf16.msra.mxu0 0
        %1933 = vmatprep.subr.bf16.mxu0 0
        %1934 = vmatpush2.bf16.msra.mxu0 0
        %1935 = vmatprep.subr.bf16.mxu0 0
        %1936 = vmatpush2.bf16.msra.mxu0 0
        %1937 = vmatprep.subr.bf16.mxu0 0
        %1938 = vmatpush2.bf16.msra.mxu0 0
        %1939 = vmatprep.subr.bf16.mxu0 0
        %1940 = vmatpush2.bf16.msra.mxu0 0
        %1941 = vmatprep.subr.bf16.mxu0 0
        %1942 = vmatpush2.bf16.msra.mxu0 0
        %1943 = vmatprep.mubr.bf16.mxu0 0
        %1944 = vmatmul.mubr.bf16.gmra.mxu0 %v1909
        %v1945 = vpop.f32.mrf.mxu0
        %v1946 = vadd.f32 0.0, %v1945
        %v1947 = vpop.f32.mrf.mxu0
        %v1948 = vpop.f32.mrf.mxu0
        %v1949 = vadd.f32 0.0, %v1948
        %v1950 = vpop.f32.mrf.mxu0
        %1951 = vdwg.mxu0
        %v1952 = vadd.f32 %v1665, %v1946
        %v1953 = vadd.f32 %v1668, %v1949
        %1954 = vrot.lane.b32.xlu0 %v1073, 32
        %v1955 = vpop.permute.xlu0 %1954
        %1956 = vrot.lane.b32.xlu0 %v1075, 32
        %v1957 = vpop.permute.xlu0 %1956
        %v1959 = vsel %vm1077, %v1955, 0
        %v1962 = vsel %vm1077, %v1957, 0
        %1964 = vmatprep.subr.bf16.mxu0 0
        %1965 = vmatpush1.bf16.xpose.msra.mxu0 0
        %1966 = vmatprep.subr.bf16.mxu0 0
        %1967 = vmatpush1.bf16.xpose.msra.mxu0 0
        %1968 = vmatprep.subr.bf16.mxu0 0
        %1969 = vmatpush1.bf16.xpose.msra.mxu0 0
        %1970 = vmatprep.subr.bf16.mxu0 0
        %1971 = vmatpush1.bf16.xpose.msra.mxu0 0
        %1972 = vmatprep.subr.bf16.mxu0 0
        %1973 = vmatpush1.bf16.xpose.msra.mxu0 0
        %1974 = vmatprep.subr.bf16.mxu0 0
        %1975 = vmatpush1.bf16.xpose.msra.mxu0 0
        %1976 = vmatprep.subr.bf16.mxu0 0
        %1977 = vmatpush1.bf16.xpose.msra.mxu0 0
        %1978 = vmatprep.subr.bf16.mxu0 0
        %1979 = vmatpush1.bf16.xpose.msra.mxu0 %v1962
        %1980 = vmatprep.subr.bf16.mxu0 0
        %1981 = vmatpush2.bf16.xpose.msra.mxu0 0
        %1982 = vmatprep.subr.bf16.mxu0 0
        %1983 = vmatpush2.bf16.xpose.msra.mxu0 0
        %1984 = vmatprep.subr.bf16.mxu0 0
        %1985 = vmatpush2.bf16.xpose.msra.mxu0 0
        %1986 = vmatprep.subr.bf16.mxu0 0
        %1987 = vmatpush2.bf16.xpose.msra.mxu0 0
        %1988 = vmatprep.subr.bf16.mxu0 0
        %1989 = vmatpush2.bf16.xpose.msra.mxu0 0
        %1990 = vmatprep.subr.bf16.mxu0 0
        %1991 = vmatpush2.bf16.xpose.msra.mxu0 0
        %1992 = vmatprep.subr.bf16.mxu0 0
        %1993 = vmatpush2.bf16.xpose.msra.mxu0 0
        %1994 = vmatprep.subr.bf16.mxu0 0
        %1995 = vmatpush2.bf16.xpose.msra.mxu0 0
        %1996 = vmatprep.mubr.bf16.mxu0 0
        %1997 = vmatmul.mubr.bf16.gmra.mxu0 %v1959
        %v1998 = vpop.f32.mrf.mxu0
        %v1999 = vadd.f32 0.0, %v1998
        %v2000 = vpop.f32.mrf.mxu0
        %v2001 = vpop.f32.mrf.mxu0
        %v2002 = vpop.f32.mrf.mxu0
        %2003 = vdwg.mxu0
        %2004 = vrot.lane.b32.xlu0 %v1074, 32
        %v2005 = vpop.permute.xlu0 %2004
        %2006 = vrot.lane.b32.xlu0 %v1076, 32
        %v2007 = vpop.permute.xlu0 %2006
        %v2009 = vsel %vm1077, %v2005, 0
        %v2012 = vsel %vm1077, %v2007, 0
        %2014 = vmatprep.subr.bf16.mxu0 0
        %2015 = vmatpush1.bf16.xpose.msra.mxu0 0
        %2016 = vmatprep.subr.bf16.mxu0 0
        %2017 = vmatpush1.bf16.xpose.msra.mxu0 0
        %2018 = vmatprep.subr.bf16.mxu0 0
        %2019 = vmatpush1.bf16.xpose.msra.mxu0 0
        %2020 = vmatprep.subr.bf16.mxu0 0
        %2021 = vmatpush1.bf16.xpose.msra.mxu0 0
        %2022 = vmatprep.subr.bf16.mxu0 0
        %2023 = vmatpush1.bf16.xpose.msra.mxu0 0
        %2024 = vmatprep.subr.bf16.mxu0 0
        %2025 = vmatpush1.bf16.xpose.msra.mxu0 0
        %2026 = vmatprep.subr.bf16.mxu0 0
        %2027 = vmatpush1.bf16.xpose.msra.mxu0 0
        %2028 = vmatprep.subr.bf16.mxu0 0
        %2029 = vmatpush1.bf16.xpose.msra.mxu0 %v2012
        %2030 = vmatprep.subr.bf16.mxu0 0
        %2031 = vmatpush2.bf16.xpose.msra.mxu0 0
        %2032 = vmatprep.subr.bf16.mxu0 0
        %2033 = vmatpush2.bf16.xpose.msra.mxu0 0
        %2034 = vmatprep.subr.bf16.mxu0 0
        %2035 = vmatpush2.bf16.xpose.msra.mxu0 0
        %2036 = vmatprep.subr.bf16.mxu0 0
        %2037 = vmatpush2.bf16.xpose.msra.mxu0 0
        %2038 = vmatprep.subr.bf16.mxu0 0
        %2039 = vmatpush2.bf16.xpose.msra.mxu0 0
        %2040 = vmatprep.subr.bf16.mxu0 0
        %2041 = vmatpush2.bf16.xpose.msra.mxu0 0
        %2042 = vmatprep.subr.bf16.mxu0 0
        %2043 = vmatpush2.bf16.xpose.msra.mxu0 0
        %2044 = vmatprep.subr.bf16.mxu0 0
        %2045 = vmatpush2.bf16.xpose.msra.mxu0 0
        %2046 = vmatprep.mubr.bf16.mxu0 0
        %2047 = vmatmul.mubr.bf16.gmra.mxu0 %v2009
        %v2048 = vpop.f32.mrf.mxu0
        %v2049 = vadd.f32 0.0, %v2048
        %v2050 = vpop.f32.mrf.mxu0
        %v2051 = vpop.f32.mrf.mxu0
        %v2052 = vpop.f32.mrf.mxu0
        %2053 = vdwg.mxu0
        %v2054 = vmul.f32 %v1999, 0.17677669
        %v2055 = vmul.f32 %v2049, 0.17677669
        %v2056 = vadd.f32 %v2054, %v1198
        %v2057 = vadd.f32 %v2055, %v1202
        %v2058 = vsel %vm1207, %v2056, -inf
        %2059 = vmax.xlane.f32.xlu0 %v2058
        %v2060 = vpop.xlane.xlu0 %2059
        %v2061 = vsel %vm1207, %v2057, -inf
        %2062 = vmax.xlane.f32.xlu0 %v2061
        %v2063 = vpop.xlane.xlu0 %2062
        %v2064 = vsub.f32 %v2056, %v2060
        %v2065 = vsub.f32 %v2057, %v2063
        %v2066 = vmul.f32 %v2064, 1.442695
        %v2067 = vpow.pop %v2066
        %v2068 = vmul.f32 %v2065, 1.442695
        %v2069 = vpow.pop %v2068
        %v2070 = vsel %vm1207, %v2067, 0.0
        %2071 = vadd.xlane.f32.xlu0 %v2070
        %v2072 = vpop.xlane.xlu0 %2071
        %v2073 = vsel %vm1207, %v2069, 0.0
        %2074 = vadd.xlane.f32.xlu0 %v2073
        %v2075 = vpop.xlane.xlu0 %2074
        %v2076 = vrcp.pop %v2072
        %v2077 = vrcp.pop %v2075
        %v2078 = vmul.f32 %v2067, %v2076
        %v2079 = vmul.f32 %v2069, %v2077
        %v2080 = vpack.c.bf16 %v2078, %v2078
        %v2081 = vpack.c.bf16 %v2079, %v2079
        %2082 = vrot.lane.b32.xlu0 %v1232, 32
        %v2083 = vpop.permute.xlu0 %2082
        %v2085 = vsel %vm1207, %v2080, 0
        %v2088 = vsel %vm1237, %v2083, 0
        %2090 = vmatprep.subr.bf16.mxu0 0
        %2091 = vmatpush1.bf16.msra.mxu0 0
        %2092 = vmatprep.subr.bf16.mxu0 0
        %2093 = vmatpush1.bf16.msra.mxu0 0
        %2094 = vmatprep.subr.bf16.mxu0 0
        %2095 = vmatpush1.bf16.msra.mxu0 0
        %2096 = vmatprep.subr.bf16.mxu0 0
        %2097 = vmatpush1.bf16.msra.mxu0 0
        %2098 = vmatprep.subr.bf16.mxu0 0
        %2099 = vmatpush1.bf16.msra.mxu0 0
        %2100 = vmatprep.subr.bf16.mxu0 0
        %2101 = vmatpush1.bf16.msra.mxu0 0
        %2102 = vmatprep.subr.bf16.mxu0 0
        %2103 = vmatpush1.bf16.msra.mxu0 0
        %2104 = vmatprep.subr.bf16.mxu0 0
        %2105 = vmatpush1.bf16.msra.mxu0 %v2088
        %2106 = vmatprep.subr.bf16.mxu0 0
        %2107 = vmatpush2.bf16.msra.mxu0 0
        %2108 = vmatprep.subr.bf16.mxu0 0
        %2109 = vmatpush2.bf16.msra.mxu0 0
        %2110 = vmatprep.subr.bf16.mxu0 0
        %2111 = vmatpush2.bf16.msra.mxu0 0
        %2112 = vmatprep.subr.bf16.mxu0 0
        %2113 = vmatpush2.bf16.msra.mxu0 0
        %2114 = vmatprep.subr.bf16.mxu0 0
        %2115 = vmatpush2.bf16.msra.mxu0 0
        %2116 = vmatprep.subr.bf16.mxu0 0
        %2117 = vmatpush2.bf16.msra.mxu0 0
        %2118 = vmatprep.subr.bf16.mxu0 0
        %2119 = vmatpush2.bf16.msra.mxu0 0
        %2120 = vmatprep.subr.bf16.mxu0 0
        %2121 = vmatpush2.bf16.msra.mxu0 0
        %2122 = vmatprep.mubr.bf16.mxu0 0
        %2123 = vmatmul.mubr.bf16.gmra.mxu0 %v2085
        %v2124 = vpop.f32.mrf.mxu0
        %v2125 = vadd.f32 0.0, %v2124
        %v2126 = vpop.f32.mrf.mxu0
        %v2127 = vpop.f32.mrf.mxu0
        %v2128 = vpop.f32.mrf.mxu0
        %2129 = vdwg.mxu0
        %2130 = vrot.lane.b32.xlu0 %v1233, 32
        %v2131 = vpop.permute.xlu0 %2130
        %v2133 = vsel %vm1207, %v2081, 0
        %v2136 = vsel %vm1237, %v2131, 0
        %2138 = vmatprep.subr.bf16.mxu0 0
        %2139 = vmatpush1.bf16.msra.mxu0 0
        %2140 = vmatprep.subr.bf16.mxu0 0
        %2141 = vmatpush1.bf16.msra.mxu0 0
        %2142 = vmatprep.subr.bf16.mxu0 0
        %2143 = vmatpush1.bf16.msra.mxu0 0
        %2144 = vmatprep.subr.bf16.mxu0 0
        %2145 = vmatpush1.bf16.msra.mxu0 0
        %2146 = vmatprep.subr.bf16.mxu0 0
        %2147 = vmatpush1.bf16.msra.mxu0 0
        %2148 = vmatprep.subr.bf16.mxu0 0
        %2149 = vmatpush1.bf16.msra.mxu0 0
        %2150 = vmatprep.subr.bf16.mxu0 0
        %2151 = vmatpush1.bf16.msra.mxu0 0
        %2152 = vmatprep.subr.bf16.mxu0 0
        %2153 = vmatpush1.bf16.msra.mxu0 %v2136
        %2154 = vmatprep.subr.bf16.mxu0 0
        %2155 = vmatpush2.bf16.msra.mxu0 0
        %2156 = vmatprep.subr.bf16.mxu0 0
        %2157 = vmatpush2.bf16.msra.mxu0 0
        %2158 = vmatprep.subr.bf16.mxu0 0
        %2159 = vmatpush2.bf16.msra.mxu0 0
        %2160 = vmatprep.subr.bf16.mxu0 0
        %2161 = vmatpush2.bf16.msra.mxu0 0
        %2162 = vmatprep.subr.bf16.mxu0 0
        %2163 = vmatpush2.bf16.msra.mxu0 0
        %2164 = vmatprep.subr.bf16.mxu0 0
        %2165 = vmatpush2.bf16.msra.mxu0 0
        %2166 = vmatprep.subr.bf16.mxu0 0
        %2167 = vmatpush2.bf16.msra.mxu0 0
        %2168 = vmatprep.subr.bf16.mxu0 0
        %2169 = vmatpush2.bf16.msra.mxu0 0
        %2170 = vmatprep.mubr.bf16.mxu0 0
        %2171 = vmatmul.mubr.bf16.gmra.mxu0 %v2133
        %v2172 = vpop.f32.mrf.mxu0
        %v2173 = vadd.f32 0.0, %v2172
        %v2174 = vpop.f32.mrf.mxu0
        %v2175 = vpop.f32.mrf.mxu0
        %v2176 = vpop.f32.mrf.mxu0
        %2177 = vdwg.mxu0
        %v2178 = vpack.c.bf16 %v2173, %v2125
        %v2183 = vunpack.c.l.b16 %v839
        %v2184 = vunpack.c.l.b16 %v840
        %v2185 = vunpack.c.l.b16 %v841
        %v2186 = vunpack.c.l.b16 %v842
        %v2187 = vpack.c.b16 %v2184, %v2183
        %v2188 = vpack.c.b16 %v2186, %v2185
        %v2192 = vsel %vm1077, %v2178, 0
        %2194 = vmatprep.subr.bf16.mxu0 0
        %2195 = vmatpush1.bf16.msra.mxu0 0
        %2196 = vmatprep.subr.bf16.mxu0 0
        %2197 = vmatpush1.bf16.msra.mxu0 0
        %2198 = vmatprep.subr.bf16.mxu0 0
        %2199 = vmatpush1.bf16.msra.mxu0 0
        %2200 = vmatprep.subr.bf16.mxu0 0
        %2201 = vmatpush1.bf16.msra.mxu0 0
        %2202 = vmatprep.subr.bf16.mxu0 0
        %2203 = vmatpush1.bf16.msra.mxu0 0
        %2204 = vmatprep.subr.bf16.mxu0 0
        %2205 = vmatpush1.bf16.msra.mxu0 0
        %2206 = vmatprep.subr.bf16.mxu0 0
        %2207 = vmatpush1.bf16.msra.mxu0 %v2188
        %2208 = vmatprep.subr.bf16.mxu0 0
        %2209 = vmatpush1.bf16.msra.mxu0 %v2187
        %2210 = vmatprep.subr.bf16.mxu0 0
        %2211 = vmatpush2.bf16.msra.mxu0 0
        %2212 = vmatprep.subr.bf16.mxu0 0
        %2213 = vmatpush2.bf16.msra.mxu0 0
        %2214 = vmatprep.subr.bf16.mxu0 0
        %2215 = vmatpush2.bf16.msra.mxu0 0
        %2216 = vmatprep.subr.bf16.mxu0 0
        %2217 = vmatpush2.bf16.msra.mxu0 0
        %2218 = vmatprep.subr.bf16.mxu0 0
        %2219 = vmatpush2.bf16.msra.mxu0 0
        %2220 = vmatprep.subr.bf16.mxu0 0
        %2221 = vmatpush2.bf16.msra.mxu0 0
        %2222 = vmatprep.subr.bf16.mxu0 0
        %2223 = vmatpush2.bf16.msra.mxu0 0
        %2224 = vmatprep.subr.bf16.mxu0 0
        %2225 = vmatpush2.bf16.msra.mxu0 0
        %2226 = vmatprep.mubr.bf16.mxu0 0
        %2227 = vmatmul.mubr.bf16.gmra.mxu0 %v2192
        %v2228 = vpop.f32.mrf.mxu0
        %v2229 = vadd.f32 0.0, %v2228
        %v2230 = vpop.f32.mrf.mxu0
        %v2231 = vpop.f32.mrf.mxu0
        %v2232 = vadd.f32 0.0, %v2231
        %v2233 = vpop.f32.mrf.mxu0
        %2234 = vdwg.mxu0
        %v2235 = vadd.f32 %v1952, %v2229
        %v2236 = vadd.f32 %v1953, %v2232
        %v2237 = vadd.f32 %v792, %v2235
        %v2238 = vadd.f32 %v793, %v2236
        %v2239 = vld [vmem:[%s722] sm:$0x1]
        %v2241 = vlaneseq
        %v2242 = vshrl.u32 %v2241, 7
        %v2243 = vsub.s32 0, %v2242
        %v2244 = vrot.slane %v2239, %v2243
        %v2246 = vadd.f32 %v2237, %v2244
        %v2247 = vadd.f32 %v2238, %v2244
        %v2248 = vld [vmem:[%s725] sm:$0x1]
        %v2249 = vld [vmem:[%s728] sm:$0x1]
        %2250 = vadd.xlane.f32.xlu0 %v2246
        %v2251 = vpop.xlane.xlu0 %2250
        %2252 = vadd.xlane.f32.xlu0 %v2247
        %v2253 = vpop.xlane.xlu0 %2252
        %v2254 = vrcp.pop 128.0
        %v2255 = vmul.f32 %v2251, %v2254
        %v2256 = vmul.f32 %v2253, %v2254
        %v2257 = vsub.f32 %v2246, %v2255
        %v2258 = vsub.f32 %v2247, %v2256
        %v2259 = vmul.f32 %v2257, %v2257
        %v2260 = vmul.f32 %v2258, %v2258
        %2261 = vadd.xlane.f32.xlu0 %v2259
        %v2262 = vpop.xlane.xlu0 %2261
        %2263 = vadd.xlane.f32.xlu0 %v2260
        %v2264 = vpop.xlane.xlu0 %2263
        %v2265 = vmul.f32 %v2262, %v2254
        %v2266 = vmul.f32 %v2264, %v2254
        %v2267 = vadd.f32 %v2265, 1e-05
        %v2268 = vadd.f32 %v2266, 1e-05
        %v2269 = vrsqrt.pop %v2267
        %v2270 = vrsqrt.pop %v2268
        %v2271 = vmul.f32 %v2257, %v2269
        %v2272 = vmul.f32 %v2258, %v2270
        %v2274 = vlaneseq
        %v2275 = vshrl.u32 %v2274, 7
        %v2276 = vsub.s32 0, %v2275
        %v2277 = vrot.slane %v2248, %v2276
        %v2279 = vmul.f32 %v2271, %v2277
        %v2280 = vmul.f32 %v2272, %v2277
        %v2282 = vlaneseq
        %v2283 = vshrl.u32 %v2282, 7
        %v2284 = vsub.s32 0, %v2283
        %v2285 = vrot.slane %v2249, %v2284
        %v2287 = vadd.f32 %v2279, %v2285
        %v2288 = vadd.f32 %v2280, %v2285
        %v2289 = vld [vmem:[%s617] sm:$0xff]
        %v2290 = vld [vmem:[%s617 + $0x8] sm:$0xff]
        %v2291 = vld [vmem:[%s617 + $0x10] sm:$0xff]
        %v2292 = vld [vmem:[%s617 + $0x18] sm:$0xff]
        %v2293 = vld [vmem:[%s617 + $0x20] sm:$0xff]
        %v2294 = vld [vmem:[%s617 + $0x28] sm:$0xff]
        %v2295 = vld [vmem:[%s617 + $0x30] sm:$0xff]
        %v2296 = vld [vmem:[%s617 + $0x38] sm:$0xff]
        %v2297 = vld [vmem:[%s617 + $0x40] sm:$0xff]
        %v2298 = vld [vmem:[%s617 + $0x48] sm:$0xff]
        %v2299 = vld [vmem:[%s617 + $0x50] sm:$0xff]
        %v2300 = vld [vmem:[%s617 + $0x58] sm:$0xff]
        %v2301 = vld [vmem:[%s617 + $0x60] sm:$0xff]
        %v2302 = vld [vmem:[%s617 + $0x68] sm:$0xff]
        %v2303 = vld [vmem:[%s617 + $0x70] sm:$0xff]
        %v2304 = vld [vmem:[%s617 + $0x78] sm:$0xff]
        %v2305 = vld [vmem:[%s617 + $0x80] sm:$0xff]
        %v2306 = vld [vmem:[%s617 + $0x88] sm:$0xff]
        %v2307 = vld [vmem:[%s617 + $0x90] sm:$0xff]
        %v2308 = vld [vmem:[%s617 + $0x98] sm:$0xff]
        %v2309 = vld [vmem:[%s617 + $0xa0] sm:$0xff]
        %v2310 = vld [vmem:[%s617 + $0xa8] sm:$0xff]
        %v2311 = vld [vmem:[%s617 + $0xb0] sm:$0xff]
        %v2312 = vld [vmem:[%s617 + $0xb8] sm:$0xff]
        %v2313 = vld [vmem:[%s617 + $0xc0] sm:$0xff]
        %v2314 = vld [vmem:[%s617 + $0xc8] sm:$0xff]
        %v2315 = vld [vmem:[%s617 + $0xd0] sm:$0xff]
        %v2316 = vld [vmem:[%s617 + $0xd8] sm:$0xff]
        %v2317 = vld [vmem:[%s617 + $0xe0] sm:$0xff]
        %v2318 = vld [vmem:[%s617 + $0xe8] sm:$0xff]
        %v2319 = vld [vmem:[%s617 + $0xf0] sm:$0xff]
        %v2320 = vld [vmem:[%s617 + $0xf8] sm:$0xff]
        %v2321 = vpack.c.bf16 %v2288, %v2287
        %v2322 = vld [vmem:[%s732] sm:$0xf]
        %v2324 = vlaneseq
        %v2325 = vshrl.u32 %v2324, 7
        %v2326 = vsub.s32 0, %v2325
        %v2327 = vrot.slane %v2322, %v2326
        %v2328 = vlaneseq
        %v2329 = vshrl.u32 %v2328, 7
        %v2330 = vsub.s32 1, %v2329
        %v2331 = vrot.slane %v2322, %v2330
        %v2332 = vlaneseq
        %v2333 = vshrl.u32 %v2332, 7
        %v2334 = vsub.s32 2, %v2333
        %v2335 = vrot.slane %v2322, %v2334
        %v2336 = vlaneseq
        %v2337 = vshrl.u32 %v2336, 7
        %v2338 = vsub.s32 3, %v2337
        %v2339 = vrot.slane %v2322, %v2338
        %v2376 = vunpack.c.l.b16 %v2289
        %v2377 = vunpack.c.h.b16 %v2289
        %v2378 = vunpack.c.l.b16 %v2290
        %v2379 = vunpack.c.h.b16 %v2290
        %v2380 = vunpack.c.l.b16 %v2291
        %v2381 = vunpack.c.h.b16 %v2291
        %v2382 = vunpack.c.l.b16 %v2292
        %v2383 = vunpack.c.h.b16 %v2292
        %v2384 = vunpack.c.l.b16 %v2293
        %v2385 = vunpack.c.h.b16 %v2293
        %v2386 = vunpack.c.l.b16 %v2294
        %v2387 = vunpack.c.h.b16 %v2294
        %v2388 = vunpack.c.l.b16 %v2295
        %v2389 = vunpack.c.h.b16 %v2295
        %v2390 = vunpack.c.l.b16 %v2296
        %v2391 = vunpack.c.h.b16 %v2296
        %v2392 = vunpack.c.l.b16 %v2297
        %v2393 = vunpack.c.h.b16 %v2297
        %v2394 = vunpack.c.l.b16 %v2298
        %v2395 = vunpack.c.h.b16 %v2298
        %v2396 = vunpack.c.l.b16 %v2299
        %v2397 = vunpack.c.h.b16 %v2299
        %v2398 = vunpack.c.l.b16 %v2300
        %v2399 = vunpack.c.h.b16 %v2300
        %v2400 = vunpack.c.l.b16 %v2301
        %v2401 = vunpack.c.h.b16 %v2301
        %v2402 = vunpack.c.l.b16 %v2302
        %v2403 = vunpack.c.h.b16 %v2302
        %v2404 = vunpack.c.l.b16 %v2303
        %v2405 = vunpack.c.h.b16 %v2303
        %v2406 = vunpack.c.l.b16 %v2304
        %v2407 = vunpack.c.h.b16 %v2304
        %v2408 = vunpack.c.l.b16 %v2305
        %v2409 = vunpack.c.h.b16 %v2305
        %v2410 = vunpack.c.l.b16 %v2306
        %v2411 = vunpack.c.h.b16 %v2306
        %v2412 = vunpack.c.l.b16 %v2307
        %v2413 = vunpack.c.h.b16 %v2307
        %v2414 = vunpack.c.l.b16 %v2308
        %v2415 = vunpack.c.h.b16 %v2308
        %v2416 = vunpack.c.l.b16 %v2309
        %v2417 = vunpack.c.h.b16 %v2309
        %v2418 = vunpack.c.l.b16 %v2310
        %v2419 = vunpack.c.h.b16 %v2310
        %v2420 = vunpack.c.l.b16 %v2311
        %v2421 = vunpack.c.h.b16 %v2311
        %v2422 = vunpack.c.l.b16 %v2312
        %v2423 = vunpack.c.h.b16 %v2312
        %v2424 = vunpack.c.l.b16 %v2313
        %v2425 = vunpack.c.h.b16 %v2313
        %v2426 = vunpack.c.l.b16 %v2314
        %v2427 = vunpack.c.h.b16 %v2314
        %v2428 = vunpack.c.l.b16 %v2315
        %v2429 = vunpack.c.h.b16 %v2315
        %v2430 = vunpack.c.l.b16 %v2316
        %v2431 = vunpack.c.h.b16 %v2316
        %v2432 = vunpack.c.l.b16 %v2317
        %v2433 = vunpack.c.h.b16 %v2317
        %v2434 = vunpack.c.l.b16 %v2318
        %v2435 = vunpack.c.h.b16 %v2318
        %v2436 = vunpack.c.l.b16 %v2319
        %v2437 = vunpack.c.h.b16 %v2319
        %v2438 = vunpack.c.l.b16 %v2320
        %v2439 = vunpack.c.h.b16 %v2320
        %v2440 = vpack.c.b16 %v2380, %v2376
        %v2441 = vpack.c.b16 %v2381, %v2377
        %v2442 = vpack.c.b16 %v2382, %v2378
        %v2443 = vpack.c.b16 %v2383, %v2379
        %v2444 = vpack.c.b16 %v2388, %v2384
        %v2445 = vpack.c.b16 %v2389, %v2385
        %v2446 = vpack.c.b16 %v2390, %v2386
        %v2447 = vpack.c.b16 %v2391, %v2387
        %v2448 = vpack.c.b16 %v2396, %v2392
        %v2449 = vpack.c.b16 %v2397, %v2393
        %v2450 = vpack.c.b16 %v2398, %v2394
        %v2451 = vpack.c.b16 %v2399, %v2395
        %v2452 = vpack.c.b16 %v2404, %v2400
        %v2453 = vpack.c.b16 %v2405, %v2401
        %v2454 = vpack.c.b16 %v2406, %v2402
        %v2455 = vpack.c.b16 %v2407, %v2403
        %v2456 = vpack.c.b16 %v2412, %v2408
        %v2457 = vpack.c.b16 %v2413, %v2409
        %v2458 = vpack.c.b16 %v2414, %v2410
        %v2459 = vpack.c.b16 %v2415, %v2411
        %v2460 = vpack.c.b16 %v2420, %v2416
        %v2461 = vpack.c.b16 %v2421, %v2417
        %v2462 = vpack.c.b16 %v2422, %v2418
        %v2463 = vpack.c.b16 %v2423, %v2419
        %v2464 = vpack.c.b16 %v2428, %v2424
        %v2465 = vpack.c.b16 %v2429, %v2425
        %v2466 = vpack.c.b16 %v2430, %v2426
        %v2467 = vpack.c.b16 %v2431, %v2427
        %v2468 = vpack.c.b16 %v2436, %v2432
        %v2469 = vpack.c.b16 %v2437, %v2433
        %v2470 = vpack.c.b16 %v2438, %v2434
        %v2471 = vpack.c.b16 %v2439, %v2435
        %2504 = vmatprep.subr.bf16.mxu0 %v2469
        %2505 = vmatpush1.bf16.msra.mxu0 %v2468
        %2506 = vmatprep.subr.bf16.mxu0 %v2465
        %2507 = vmatpush1.bf16.msra.mxu0 %v2464
        %2508 = vmatprep.subr.bf16.mxu0 %v2461
        %2509 = vmatpush1.bf16.msra.mxu0 %v2460
        %2510 = vmatprep.subr.bf16.mxu0 %v2457
        %2511 = vmatpush1.bf16.msra.mxu0 %v2456
        %2512 = vmatprep.subr.bf16.mxu0 %v2453
        %2513 = vmatpush1.bf16.msra.mxu0 %v2452
        %2514 = vmatprep.subr.bf16.mxu0 %v2449
        %2515 = vmatpush1.bf16.msra.mxu0 %v2448
        %2516 = vmatprep.subr.bf16.mxu0 %v2445
        %2517 = vmatpush1.bf16.msra.mxu0 %v2444
        %2518 = vmatprep.subr.bf16.mxu0 %v2441
        %2519 = vmatpush1.bf16.msra.mxu0 %v2440
        %2520 = vmatprep.subr.bf16.mxu0 0
        %2521 = vmatpush2.bf16.msra.mxu0 0
        %2522 = vmatprep.subr.bf16.mxu0 0
        %2523 = vmatpush2.bf16.msra.mxu0 0
        %2524 = vmatprep.subr.bf16.mxu0 0
        %2525 = vmatpush2.bf16.msra.mxu0 0
        %2526 = vmatprep.subr.bf16.mxu0 0
        %2527 = vmatpush2.bf16.msra.mxu0 0
        %2528 = vmatprep.subr.bf16.mxu0 0
        %2529 = vmatpush2.bf16.msra.mxu0 0
        %2530 = vmatprep.subr.bf16.mxu0 0
        %2531 = vmatpush2.bf16.msra.mxu0 0
        %2532 = vmatprep.subr.bf16.mxu0 0
        %2533 = vmatpush2.bf16.msra.mxu0 0
        %2534 = vmatprep.subr.bf16.mxu0 0
        %2535 = vmatpush2.bf16.msra.mxu0 0
        %2536 = vmatprep.mubr.bf16.mxu0 0
        %2537 = vmatmul.mubr.bf16.gmra.mxu0 %v2321
        %v2538 = vpop.f32.mrf.mxu0
        %v2539 = vadd.f32 %v2327, %v2538
        %v2540 = vpop.f32.mrf.mxu0
        %v2541 = vadd.f32 %v2331, %v2540
        %v2542 = vpop.f32.mrf.mxu0
        %v2543 = vadd.f32 %v2327, %v2542
        %v2544 = vpop.f32.mrf.mxu0
        %v2545 = vadd.f32 %v2331, %v2544
        %2546 = vdwg.mxu0
        %2547 = vmatprep.subr.bf16.mxu0 %v2471
        %2548 = vmatpush1.bf16.msra.mxu0 %v2470
        %2549 = vmatprep.subr.bf16.mxu0 %v2467
        %2550 = vmatpush1.bf16.msra.mxu0 %v2466
        %2551 = vmatprep.subr.bf16.mxu0 %v2463
        %2552 = vmatpush1.bf16.msra.mxu0 %v2462
        %2553 = vmatprep.subr.bf16.mxu0 %v2459
        %2554 = vmatpush1.bf16.msra.mxu0 %v2458
        %2555 = vmatprep.subr.bf16.mxu0 %v2455
        %2556 = vmatpush1.bf16.msra.mxu0 %v2454
        %2557 = vmatprep.subr.bf16.mxu0 %v2451
        %2558 = vmatpush1.bf16.msra.mxu0 %v2450
        %2559 = vmatprep.subr.bf16.mxu0 %v2447
        %2560 = vmatpush1.bf16.msra.mxu0 %v2446
        %2561 = vmatprep.subr.bf16.mxu0 %v2443
        %2562 = vmatpush1.bf16.msra.mxu0 %v2442
        %2563 = vmatprep.subr.bf16.mxu0 0
        %2564 = vmatpush2.bf16.msra.mxu0 0
        %2565 = vmatprep.subr.bf16.mxu0 0
        %2566 = vmatpush2.bf16.msra.mxu0 0
        %2567 = vmatprep.subr.bf16.mxu0 0
        %2568 = vmatpush2.bf16.msra.mxu0 0
        %2569 = vmatprep.subr.bf16.mxu0 0
        %2570 = vmatpush2.bf16.msra.mxu0 0
        %2571 = vmatprep.subr.bf16.mxu0 0
        %2572 = vmatpush2.bf16.msra.mxu0 0
        %2573 = vmatprep.subr.bf16.mxu0 0
        %2574 = vmatpush2.bf16.msra.mxu0 0
        %2575 = vmatprep.subr.bf16.mxu0 0
        %2576 = vmatpush2.bf16.msra.mxu0 0
        %2577 = vmatprep.subr.bf16.mxu0 0
        %2578 = vmatpush2.bf16.msra.mxu0 0
        %2579 = vmatprep.mubr.bf16.mxu0 0
        %2580 = vmatmul.mubr.bf16.gmra.mxu0 %v2321
        %v2581 = vpop.f32.mrf.mxu0
        %v2582 = vadd.f32 %v2335, %v2581
        %v2583 = vpop.f32.mrf.mxu0
        %v2584 = vadd.f32 %v2339, %v2583
        %v2585 = vpop.f32.mrf.mxu0
        %v2586 = vadd.f32 %v2335, %v2585
        %v2587 = vpop.f32.mrf.mxu0
        %v2588 = vadd.f32 %v2339, %v2587
        %2589 = vdwg.mxu0
        %v2590 = vmul.f32 %v2539, 0.5
        %v2591 = vmul.f32 %v2541, 0.5
        %v2592 = vmul.f32 %v2582, 0.5
        %v2593 = vmul.f32 %v2584, 0.5
        %v2594 = vmul.f32 %v2543, 0.5
        %v2595 = vmul.f32 %v2545, 0.5
        %v2596 = vmul.f32 %v2586, 0.5
        %v2597 = vmul.f32 %v2588, 0.5
        %v2598 = vmul.f32 %v2539, 0.044715
        %v2599 = vmul.f32 %v2541, 0.044715
        %v2600 = vmul.f32 %v2582, 0.044715
        %v2601 = vmul.f32 %v2584, 0.044715
        %v2602 = vmul.f32 %v2543, 0.044715
        %v2603 = vmul.f32 %v2545, 0.044715
        %v2604 = vmul.f32 %v2586, 0.044715
        %v2605 = vmul.f32 %v2588, 0.044715
        %v2606 = vmul.f32 %v2598, %v2539
        %v2607 = vmul.f32 %v2599, %v2541
        %v2608 = vmul.f32 %v2600, %v2582
        %v2609 = vmul.f32 %v2601, %v2584
        %v2610 = vmul.f32 %v2602, %v2543
        %v2611 = vmul.f32 %v2603, %v2545
        %v2612 = vmul.f32 %v2604, %v2586
        %v2613 = vmul.f32 %v2605, %v2588
        %v2614 = vmul.f32 %v2606, %v2539
        %v2615 = vmul.f32 %v2607, %v2541
        %v2616 = vmul.f32 %v2608, %v2582
        %v2617 = vmul.f32 %v2609, %v2584
        %v2618 = vmul.f32 %v2610, %v2543
        %v2619 = vmul.f32 %v2611, %v2545
        %v2620 = vmul.f32 %v2612, %v2586
        %v2621 = vmul.f32 %v2613, %v2588
        %v2622 = vadd.f32 %v2539, %v2614
        %v2623 = vadd.f32 %v2541, %v2615
        %v2624 = vadd.f32 %v2582, %v2616
        %v2625 = vadd.f32 %v2584, %v2617
        %v2626 = vadd.f32 %v2543, %v2618
        %v2627 = vadd.f32 %v2545, %v2619
        %v2628 = vadd.f32 %v2586, %v2620
        %v2629 = vadd.f32 %v2588, %v2621
        %v2630 = vmul.f32 %v2622, 0.7978846
        %v2631 = vmul.f32 %v2623, 0.7978846
        %v2632 = vmul.f32 %v2624, 0.7978846
        %v2633 = vmul.f32 %v2625, 0.7978846
        %v2634 = vmul.f32 %v2626, 0.7978846
        %v2635 = vmul.f32 %v2627, 0.7978846
        %v2636 = vmul.f32 %v2628, 0.7978846
        %v2637 = vmul.f32 %v2629, 0.7978846
        %v2638 = vtanh.pop %v2630
        %v2639 = vtanh.pop %v2631
        %v2640 = vtanh.pop %v2632
        %v2641 = vtanh.pop %v2633
        %v2642 = vtanh.pop %v2634
        %v2643 = vtanh.pop %v2635
        %v2644 = vtanh.pop %v2636
        %v2645 = vtanh.pop %v2637
        %v2646 = vadd.f32 %v2638, 1.0
        %v2647 = vadd.f32 %v2639, 1.0
        %v2648 = vadd.f32 %v2640, 1.0
        %v2649 = vadd.f32 %v2641, 1.0
        %v2650 = vadd.f32 %v2642, 1.0
        %v2651 = vadd.f32 %v2643, 1.0
        %v2652 = vadd.f32 %v2644, 1.0
        %v2653 = vadd.f32 %v2645, 1.0
        %v2654 = vmul.f32 %v2590, %v2646
        %v2655 = vmul.f32 %v2591, %v2647
        %v2656 = vmul.f32 %v2592, %v2648
        %v2657 = vmul.f32 %v2593, %v2649
        %v2658 = vmul.f32 %v2594, %v2650
        %v2659 = vmul.f32 %v2595, %v2651
        %v2660 = vmul.f32 %v2596, %v2652
        %v2661 = vmul.f32 %v2597, %v2653
        %v2662 = vld [vmem:[%s626] sm:$0xf]
        %v2663 = vld [vmem:[%s626 + $0x4] sm:$0xf]
        %v2664 = vld [vmem:[%s626 + $0x8] sm:$0xf]
        %v2665 = vld [vmem:[%s626 + $0xc] sm:$0xf]
        %v2666 = vld [vmem:[%s626 + $0x10] sm:$0xf]
        %v2667 = vld [vmem:[%s626 + $0x14] sm:$0xf]
        %v2668 = vld [vmem:[%s626 + $0x18] sm:$0xf]
        %v2669 = vld [vmem:[%s626 + $0x1c] sm:$0xf]
        %v2670 = vld [vmem:[%s626 + $0x20] sm:$0xf]
        %v2671 = vld [vmem:[%s626 + $0x24] sm:$0xf]
        %v2672 = vld [vmem:[%s626 + $0x28] sm:$0xf]
        %v2673 = vld [vmem:[%s626 + $0x2c] sm:$0xf]
        %v2674 = vld [vmem:[%s626 + $0x30] sm:$0xf]
        %v2675 = vld [vmem:[%s626 + $0x34] sm:$0xf]
        %v2676 = vld [vmem:[%s626 + $0x38] sm:$0xf]
        %v2677 = vld [vmem:[%s626 + $0x3c] sm:$0xf]
        %v2678 = vld [vmem:[%s626 + $0x40] sm:$0xf]
        %v2679 = vld [vmem:[%s626 + $0x44] sm:$0xf]
        %v2680 = vld [vmem:[%s626 + $0x48] sm:$0xf]
        %v2681 = vld [vmem:[%s626 + $0x4c] sm:$0xf]
        %v2682 = vld [vmem:[%s626 + $0x50] sm:$0xf]
        %v2683 = vld [vmem:[%s626 + $0x54] sm:$0xf]
        %v2684 = vld [vmem:[%s626 + $0x58] sm:$0xf]
        %v2685 = vld [vmem:[%s626 + $0x5c] sm:$0xf]
        %v2686 = vld [vmem:[%s626 + $0x60] sm:$0xf]
        %v2687 = vld [vmem:[%s626 + $0x64] sm:$0xf]
        %v2688 = vld [vmem:[%s626 + $0x68] sm:$0xf]
        %v2689 = vld [vmem:[%s626 + $0x6c] sm:$0xf]
        %v2690 = vld [vmem:[%s626 + $0x70] sm:$0xf]
        %v2691 = vld [vmem:[%s626 + $0x74] sm:$0xf]
        %v2692 = vld [vmem:[%s626 + $0x78] sm:$0xf]
        %v2693 = vld [vmem:[%s626 + $0x7c] sm:$0xf]
        %v2694 = vld [vmem:[%s626 + $0x80] sm:$0xf]
        %v2695 = vld [vmem:[%s626 + $0x84] sm:$0xf]
        %v2696 = vld [vmem:[%s626 + $0x88] sm:$0xf]
        %v2697 = vld [vmem:[%s626 + $0x8c] sm:$0xf]
        %v2698 = vld [vmem:[%s626 + $0x90] sm:$0xf]
        %v2699 = vld [vmem:[%s626 + $0x94] sm:$0xf]
        %v2700 = vld [vmem:[%s626 + $0x98] sm:$0xf]
        %v2701 = vld [vmem:[%s626 + $0x9c] sm:$0xf]
        %v2702 = vld [vmem:[%s626 + $0xa0] sm:$0xf]
        %v2703 = vld [vmem:[%s626 + $0xa4] sm:$0xf]
        %v2704 = vld [vmem:[%s626 + $0xa8] sm:$0xf]
        %v2705 = vld [vmem:[%s626 + $0xac] sm:$0xf]
        %v2706 = vld [vmem:[%s626 + $0xb0] sm:$0xf]
        %v2707 = vld [vmem:[%s626 + $0xb4] sm:$0xf]
        %v2708 = vld [vmem:[%s626 + $0xb8] sm:$0xf]
        %v2709 = vld [vmem:[%s626 + $0xbc] sm:$0xf]
        %v2710 = vld [vmem:[%s626 + $0xc0] sm:$0xf]
        %v2711 = vld [vmem:[%s626 + $0xc4] sm:$0xf]
        %v2712 = vld [vmem:[%s626 + $0xc8] sm:$0xf]
        %v2713 = vld [vmem:[%s626 + $0xcc] sm:$0xf]
        %v2714 = vld [vmem:[%s626 + $0xd0] sm:$0xf]
        %v2715 = vld [vmem:[%s626 + $0xd4] sm:$0xf]
        %v2716 = vld [vmem:[%s626 + $0xd8] sm:$0xf]
        %v2717 = vld [vmem:[%s626 + $0xdc] sm:$0xf]
        %v2718 = vld [vmem:[%s626 + $0xe0] sm:$0xf]
        %v2719 = vld [vmem:[%s626 + $0xe4] sm:$0xf]
        %v2720 = vld [vmem:[%s626 + $0xe8] sm:$0xf]
        %v2721 = vld [vmem:[%s626 + $0xec] sm:$0xf]
        %v2722 = vld [vmem:[%s626 + $0xf0] sm:$0xf]
        %v2723 = vld [vmem:[%s626 + $0xf4] sm:$0xf]
        %v2724 = vld [vmem:[%s626 + $0xf8] sm:$0xf]
        %v2725 = vld [vmem:[%s626 + $0xfc] sm:$0xf]
        %v2726 = vpack.c.bf16 %v2658, %v2654
        %v2727 = vpack.c.bf16 %v2659, %v2655
        %v2728 = vpack.c.bf16 %v2660, %v2656
        %v2729 = vpack.c.bf16 %v2661, %v2657
        %v2730 = vld [vmem:[%s735] sm:$0x1]
        %v2732 = vlaneseq
        %v2733 = vshrl.u32 %v2732, 7
        %v2734 = vsub.s32 0, %v2733
        %v2735 = vrot.slane %v2730, %v2734
        %v2801 = vunpack.c.l.b16 %v2662
        %v2802 = vunpack.c.l.b16 %v2663
        %v2803 = vunpack.c.l.b16 %v2664
        %v2804 = vunpack.c.l.b16 %v2665
        %v2805 = vunpack.c.l.b16 %v2666
        %v2806 = vunpack.c.l.b16 %v2667
        %v2807 = vunpack.c.l.b16 %v2668
        %v2808 = vunpack.c.l.b16 %v2669
        %v2809 = vunpack.c.l.b16 %v2670
        %v2810 = vunpack.c.l.b16 %v2671
        %v2811 = vunpack.c.l.b16 %v2672
        %v2812 = vunpack.c.l.b16 %v2673
        %v2813 = vunpack.c.l.b16 %v2674
        %v2814 = vunpack.c.l.b16 %v2675
        %v2815 = vunpack.c.l.b16 %v2676
        %v2816 = vunpack.c.l.b16 %v2677
        %v2817 = vunpack.c.l.b16 %v2678
        %v2818 = vunpack.c.l.b16 %v2679
        %v2819 = vunpack.c.l.b16 %v2680
        %v2820 = vunpack.c.l.b16 %v2681
        %v2821 = vunpack.c.l.b16 %v2682
        %v2822 = vunpack.c.l.b16 %v2683
        %v2823 = vunpack.c.l.b16 %v2684
        %v2824 = vunpack.c.l.b16 %v2685
        %v2825 = vunpack.c.l.b16 %v2686
        %v2826 = vunpack.c.l.b16 %v2687
        %v2827 = vunpack.c.l.b16 %v2688
        %v2828 = vunpack.c.l.b16 %v2689
        %v2829 = vunpack.c.l.b16 %v2690
        %v2830 = vunpack.c.l.b16 %v2691
        %v2831 = vunpack.c.l.b16 %v2692
        %v2832 = vunpack.c.l.b16 %v2693
        %v2833 = vunpack.c.l.b16 %v2694
        %v2834 = vunpack.c.l.b16 %v2695
        %v2835 = vunpack.c.l.b16 %v2696
        %v2836 = vunpack.c.l.b16 %v2697
        %v2837 = vunpack.c.l.b16 %v2698
        %v2838 = vunpack.c.l.b16 %v2699
        %v2839 = vunpack.c.l.b16 %v2700
        %v2840 = vunpack.c.l.b16 %v2701
        %v2841 = vunpack.c.l.b16 %v2702
        %v2842 = vunpack.c.l.b16 %v2703
        %v2843 = vunpack.c.l.b16 %v2704
        %v2844 = vunpack.c.l.b16 %v2705
        %v2845 = vunpack.c.l.b16 %v2706
        %v2846 = vunpack.c.l.b16 %v2707
        %v2847 = vunpack.c.l.b16 %v2708
        %v2848 = vunpack.c.l.b16 %v2709
        %v2849 = vunpack.c.l.b16 %v2710
        %v2850 = vunpack.c.l.b16 %v2711
        %v2851 = vunpack.c.l.b16 %v2712
        %v2852 = vunpack.c.l.b16 %v2713
        %v2853 = vunpack.c.l.b16 %v2714
        %v2854 = vunpack.c.l.b16 %v2715
        %v2855 = vunpack.c.l.b16 %v2716
        %v2856 = vunpack.c.l.b16 %v2717
        %v2857 = vunpack.c.l.b16 %v2718
        %v2858 = vunpack.c.l.b16 %v2719
        %v2859 = vunpack.c.l.b16 %v2720
        %v2860 = vunpack.c.l.b16 %v2721
        %v2861 = vunpack.c.l.b16 %v2722
        %v2862 = vunpack.c.l.b16 %v2723
        %v2863 = vunpack.c.l.b16 %v2724
        %v2864 = vunpack.c.l.b16 %v2725
        %v2865 = vpack.c.b16 %v2802, %v2801
        %v2866 = vpack.c.b16 %v2804, %v2803
        %v2867 = vpack.c.b16 %v2806, %v2805
        %v2868 = vpack.c.b16 %v2808, %v2807
        %v2869 = vpack.c.b16 %v2810, %v2809
        %v2870 = vpack.c.b16 %v2812, %v2811
        %v2871 = vpack.c.b16 %v2814, %v2813
        %v2872 = vpack.c.b16 %v2816, %v2815
        %v2873 = vpack.c.b16 %v2818, %v2817
        %v2874 = vpack.c.b16 %v2820, %v2819
        %v2875 = vpack.c.b16 %v2822, %v2821
        %v2876 = vpack.c.b16 %v2824, %v2823
        %v2877 = vpack.c.b16 %v2826, %v2825
        %v2878 = vpack.c.b16 %v2828, %v2827
        %v2879 = vpack.c.b16 %v2830, %v2829
        %v2880 = vpack.c.b16 %v2832, %v2831
        %v2881 = vpack.c.b16 %v2834, %v2833
        %v2882 = vpack.c.b16 %v2836, %v2835
        %v2883 = vpack.c.b16 %v2838, %v2837
        %v2884 = vpack.c.b16 %v2840, %v2839
        %v2885 = vpack.c.b16 %v2842, %v2841
        %v2886 = vpack.c.b16 %v2844, %v2843
        %v2887 = vpack.c.b16 %v2846, %v2845
        %v2888 = vpack.c.b16 %v2848, %v2847
        %v2889 = vpack.c.b16 %v2850, %v2849
        %v2890 = vpack.c.b16 %v2852, %v2851
        %v2891 = vpack.c.b16 %v2854, %v2853
        %v2892 = vpack.c.b16 %v2856, %v2855
        %v2893 = vpack.c.b16 %v2858, %v2857
        %v2894 = vpack.c.b16 %v2860, %v2859
        %v2895 = vpack.c.b16 %v2862, %v2861
        %v2896 = vpack.c.b16 %v2864, %v2863
        %2929 = vmatprep.subr.bf16.mxu0 0
        %2930 = vmatpush1.bf16.msra.mxu0 %v2872
        %2931 = vmatprep.subr.bf16.mxu0 0
        %2932 = vmatpush1.bf16.msra.mxu0 %v2871
        %2933 = vmatprep.subr.bf16.mxu0 0
        %2934 = vmatpush1.bf16.msra.mxu0 %v2870
        %2935 = vmatprep.subr.bf16.mxu0 0
        %2936 = vmatpush1.bf16.msra.mxu0 %v2869
        %2937 = vmatprep.subr.bf16.mxu0 0
        %2938 = vmatpush1.bf16.msra.mxu0 %v2868
        %2939 = vmatprep.subr.bf16.mxu0 0
        %2940 = vmatpush1.bf16.msra.mxu0 %v2867
        %2941 = vmatprep.subr.bf16.mxu0 0
        %2942 = vmatpush1.bf16.msra.mxu0 %v2866
        %2943 = vmatprep.subr.bf16.mxu0 0
        %2944 = vmatpush1.bf16.msra.mxu0 %v2865
        %2945 = vmatprep.subr.bf16.mxu0 0
        %2946 = vmatpush2.bf16.msra.mxu0 %v2880
        %2947 = vmatprep.subr.bf16.mxu0 0
        %2948 = vmatpush2.bf16.msra.mxu0 %v2879
        %2949 = vmatprep.subr.bf16.mxu0 0
        %2950 = vmatpush2.bf16.msra.mxu0 %v2878
        %2951 = vmatprep.subr.bf16.mxu0 0
        %2952 = vmatpush2.bf16.msra.mxu0 %v2877
        %2953 = vmatprep.subr.bf16.mxu0 0
        %2954 = vmatpush2.bf16.msra.mxu0 %v2876
        %2955 = vmatprep.subr.bf16.mxu0 0
        %2956 = vmatpush2.bf16.msra.mxu0 %v2875
        %2957 = vmatprep.subr.bf16.mxu0 0
        %2958 = vmatpush2.bf16.msra.mxu0 %v2874
        %2959 = vmatprep.subr.bf16.mxu0 0
        %2960 = vmatpush2.bf16.msra.mxu0 %v2873
        %2961 = vmatprep.mubr.bf16.mxu0 %v2727
        %2962 = vmatmul.mubr.bf16.gmra.mxu0 %v2726
        %v2963 = vpop.f32.mrf.mxu0
        %v2964 = vadd.f32 %v2735, %v2963
        %v2965 = vpop.f32.mrf.mxu0
        %v2966 = vpop.f32.mrf.mxu0
        %v2967 = vadd.f32 %v2735, %v2966
        %v2968 = vpop.f32.mrf.mxu0
        %2969 = vdwg.mxu0
        %2970 = vmatprep.subr.bf16.mxu0 0
        %2971 = vmatpush1.bf16.msra.mxu0 %v2888
        %2972 = vmatprep.subr.bf16.mxu0 0
        %2973 = vmatpush1.bf16.msra.mxu0 %v2887
        %2974 = vmatprep.subr.bf16.mxu0 0
        %2975 = vmatpush1.bf16.msra.mxu0 %v2886
        %2976 = vmatprep.subr.bf16.mxu0 0
        %2977 = vmatpush1.bf16.msra.mxu0 %v2885
        %2978 = vmatprep.subr.bf16.mxu0 0
        %2979 = vmatpush1.bf16.msra.mxu0 %v2884
        %2980 = vmatprep.subr.bf16.mxu0 0
        %2981 = vmatpush1.bf16.msra.mxu0 %v2883
        %2982 = vmatprep.subr.bf16.mxu0 0
        %2983 = vmatpush1.bf16.msra.mxu0 %v2882
        %2984 = vmatprep.subr.bf16.mxu0 0
        %2985 = vmatpush1.bf16.msra.mxu0 %v2881
        %2986 = vmatprep.subr.bf16.mxu0 0
        %2987 = vmatpush2.bf16.msra.mxu0 %v2896
        %2988 = vmatprep.subr.bf16.mxu0 0
        %2989 = vmatpush2.bf16.msra.mxu0 %v2895
        %2990 = vmatprep.subr.bf16.mxu0 0
        %2991 = vmatpush2.bf16.msra.mxu0 %v2894
        %2992 = vmatprep.subr.bf16.mxu0 0
        %2993 = vmatpush2.bf16.msra.mxu0 %v2893
        %2994 = vmatprep.subr.bf16.mxu0 0
        %2995 = vmatpush2.bf16.msra.mxu0 %v2892
        %2996 = vmatprep.subr.bf16.mxu0 0
        %2997 = vmatpush2.bf16.msra.mxu0 %v2891
        %2998 = vmatprep.subr.bf16.mxu0 0
        %2999 = vmatpush2.bf16.msra.mxu0 %v2890
        %3000 = vmatprep.subr.bf16.mxu0 0
        %3001 = vmatpush2.bf16.msra.mxu0 %v2889
        %3002 = vmatprep.mubr.bf16.mxu0 %v2729
        %3003 = vmatmul.mubr.bf16.gmra.mxu0 %v2728
        %v3004 = vpop.f32.mrf.mxu0
        %v3005 = vadd.f32 %v2964, %v3004
        %v3006 = vpop.f32.mrf.mxu0
        %v3007 = vpop.f32.mrf.mxu0
        %v3008 = vadd.f32 %v2967, %v3007
        %v3009 = vpop.f32.mrf.mxu0
        %3010 = vdwg.mxu0
        %v3011 = vadd.f32 %v2287, %v3005
        %v3012 = vadd.f32 %v2288, %v3008
        %v3013 = vld [vmem:[%s738] sm:$0x1]
        %v3014 = vld [vmem:[%s741] sm:$0x1]
        %3015 = vadd.xlane.f32.xlu0 %v3011
        %v3016 = vpop.xlane.xlu0 %3015
        %3017 = vadd.xlane.f32.xlu0 %v3012
        %v3018 = vpop.xlane.xlu0 %3017
        %v3019 = vmul.f32 %v3016, %v2254
        %v3020 = vmul.f32 %v3018, %v2254
        %v3021 = vsub.f32 %v3011, %v3019
        %v3022 = vsub.f32 %v3012, %v3020
        %v3023 = vmul.f32 %v3021, %v3021
        %v3024 = vmul.f32 %v3022, %v3022
        %3025 = vadd.xlane.f32.xlu0 %v3023
        %v3026 = vpop.xlane.xlu0 %3025
        %3027 = vadd.xlane.f32.xlu0 %v3024
        %v3028 = vpop.xlane.xlu0 %3027
        %v3029 = vmul.f32 %v3026, %v2254
        %v3030 = vmul.f32 %v3028, %v2254
        %v3031 = vadd.f32 %v3029, 1e-05
        %v3032 = vadd.f32 %v3030, 1e-05
        %v3033 = vrsqrt.pop %v3031
        %v3034 = vrsqrt.pop %v3032
        %v3035 = vmul.f32 %v3021, %v3033
        %v3036 = vmul.f32 %v3022, %v3034
        %v3038 = vlaneseq
        %v3039 = vshrl.u32 %v3038, 7
        %v3040 = vsub.s32 0, %v3039
        %v3041 = vrot.slane %v3013, %v3040
        %v3043 = vmul.f32 %v3035, %v3041
        %v3044 = vmul.f32 %v3036, %v3041
        %v3046 = vlaneseq
        %v3047 = vshrl.u32 %v3046, 7
        %v3048 = vsub.s32 0, %v3047
        %v3049 = vrot.slane %v3014, %v3048
        %v3051 = vadd.f32 %v3043, %v3049
        %v3052 = vadd.f32 %v3044, %v3049
        %3053 = vst [vmem:[%s16] sm:$0xff] %v3051
        %3054 = vst [vmem:[%s16 + $0x8] sm:$0xff] %v3052
        // Predicated region
        $region101: #{bert_image_forward.4} parent=83 // pred_check
          %p3055 = pneg %p442
        $region102: #{bert_image_forward.4} parent=83 // pred_check_branch
          %3057 = sbr.rel (%p3055) target = $region104
        $region103: #{bert_image_forward.4} parent=83 // pred_region
          _
        $region104: #{bert_image_forward.4} parent=83 // pred_fallthru
          _
        // Predicated region
        $region105: #{bert_image_forward.4} parent=83 // pred_check
          %p3058 = pneg %p442
        $region106: #{bert_image_forward.4} parent=83 // pred_check_branch
          %3060 = sbr.rel (%p3058) target = $region108
        $region107: #{bert_image_forward.4} parent=83 // pred_region
          _
        $region108: #{bert_image_forward.4} parent=83 // pred_fallthru
          _
      $region84: #{bert_image_forward.4} parent=5 // pred_fallthru
        _
      %p3061 = scmp.le.s32.totalorder 2, %s28
      // Predicated region
      $region109: #{bert_image_forward.4} parent=5 // pred_check
        %p3062 = pneg %p3061
      $region110: #{bert_image_forward.4} parent=5 // pred_check_branch
        %3064 = sbr.rel (%p3062) target = $region112
      $region111: #{bert_image_forward.4} parent=5 // pred_region
        %s3065 = ssub.s32 %s28, 2
      $region112: #{bert_image_forward.4} parent=5 // pred_fallthru
        _
    $region6: #{bert_image_forward.4} parent=1 // loop_footer
      %s32 = sadd.s32 1, %s28
    $region7: #{bert_image_forward.4} parent=1 // loop_footer_branch
      %27 = sbr.rel target = $region3
    $region8: #{bert_image_forward.4} parent=1 // loop_exit
      _
    %3066 = vsyncpa [#allocation3], 1
    %s3067 = scalar_lea.sflag [#allocation3], 1
    %3068 = vsyncpa %s3067, 1
    %3069 = vsyncpa [#allocation5], 1
    %s3070 = scalar_lea.sflag [#allocation5], 1
    %3071 = vsyncpa %s3070, 1

// kernel: bert_image_forward.3
$region0: #{bert_image_forward.3}
  #allocation0 [shape = 'u32[]', space=smem, size = 0x4, offset = 0x4, fixed_abs, tag = 'smem constant byte address 0x4 - core index']
  #allocation1 [shape = 'u32[144,128]{1,0:T(1,128)}', space=vmem, size = 0x12000, scoped, tag = 'internal scratch']
  %s0 = inlined_call_operand.vmem [shape: f32[8,768], index: 0, kind: input, shape index: {}]
  %s1 = inlined_call_operand.vmem [shape: bf16[768,128], index: 1, kind: input, shape index: {}]
  %s2 = inlined_call_operand.vmem [shape: f32[1,128], index: 2, kind: input, shape index: {}]
  %s3 = inlined_call_operand.vmem [shape: f32[2,1,128], index: 3, kind: input, shape index: {}]
  %s4 = inlined_call_operand.vmem [shape: f32[2,1,128], index: 4, kind: input, shape index: {}]
  %s5 = inlined_call_operand.vmem [shape: bf16[2,128,384], index: 5, kind: input, shape index: {}]
  %s6 = inlined_call_operand.vmem [shape: f32[2,1,384], index: 6, kind: input, shape index: {}]
  %s7 = inlined_call_operand.vmem [shape: bf16[2,128,128], index: 7, kind: input, shape index: {}]
  %s8 = inlined_call_operand.vmem [shape: f32[2,1,128], index: 8, kind: input, shape index: {}]
  %s9 = inlined_call_operand.vmem [shape: f32[2,1,128], index: 9, kind: input, shape index: {}]
  %s10 = inlined_call_operand.vmem [shape: f32[2,1,128], index: 10, kind: input, shape index: {}]
  %s11 = inlined_call_operand.vmem [shape: bf16[2,128,512], index: 11, kind: input, shape index: {}]
  %s12 = inlined_call_operand.vmem [shape: f32[2,1,512], index: 12, kind: input, shape index: {}]
  %s13 = inlined_call_operand.vmem [shape: bf16[2,512,128], index: 13, kind: input, shape index: {}]
  %s14 = inlined_call_operand.vmem [shape: f32[2,1,128], index: 14, kind: input, shape index: {}]
  %s15 = inlined_call_operand.vmem [shape: f32[8,128], index: 15, kind: output, shape index: {}]
  %s16 = sld [smem:[#allocation0]]
  $region97: #{bert_image_forward.3} parent=0
    _
  %s18 = ssub.s32 1, %s16
  %s19 = scalar_select 0, %s18, %s16
  loop: start=0, step=1, limit=4
  $region2: #{bert_image_forward.3} parent=0 // loop_pre_header
    _
  $region3: #{bert_image_forward.3} parent=0 // loop_header
    %s21 = sphi 0, %s25
    %p22 = scmp.ge.s32.totalorder %s21, 4
    %s29 = sphi 0, %s29
    %s31 = sphi 0, %s29
    %s32 = sphi 0, %s31
    %s46 = sphi 0, %s32
    %s50 = sphi 0, %s50
    %s52 = sphi 0, %s50
    %s53 = sphi 0, %s52
    %s67 = sphi 0, %s53
    %s71 = sphi 0, %s71
    %s73 = sphi 0, %s71
    %s74 = sphi 0, %s73
    %s88 = sphi 0, %s74
    %s94 = sphi 0, %s96
    %s97 = sphi 0, %s94
    %s98 = sphi 0, %s97
    %s114 = sphi 0, %s98
    %s120 = sphi 0, %s122
    %s123 = sphi 0, %s120
    %s124 = sphi 0, %s123
    %s140 = sphi 0, %s124
    %s146 = sphi 0, %s148
    %s149 = sphi 0, %s146
    %s150 = sphi 0, %s149
    %s166 = sphi 0, %s150
    %s172 = sphi 0, %s174
    %s175 = sphi 0, %s172
    %s176 = sphi 0, %s175
    %s192 = sphi 0, %s176
    %s198 = sphi 0, %s200
    %s201 = sphi 0, %s198
    %s202 = sphi 0, %s201
    %s218 = sphi 0, %s202
    %s224 = sphi 0, %s226
    %s227 = sphi 0, %s224
    %s228 = sphi 0, %s227
    %s244 = sphi 0, %s228
    %s250 = sphi 0, %s252
    %s253 = sphi 0, %s250
    %s254 = sphi 0, %s253
    %s270 = sphi 0, %s254
    %s276 = sphi 0, %s278
    %s279 = sphi 0, %s276
    %s280 = sphi 0, %s279
    %s296 = sphi 0, %s280
    %s302 = sphi 0, %s304
    %s305 = sphi 0, %s302
    %s306 = sphi 0, %s305
    %s322 = sphi 0, %s306
    %s328 = sphi 0, %s330
    %s331 = sphi 0, %s328
    %s332 = sphi 0, %s331
    %s348 = sphi 0, %s332
    %s354 = sphi 0, %s356
    %s357 = sphi 0, %s354
    %s358 = sphi 0, %s357
    %s374 = sphi 0, %s358
    %s380 = sphi 0, %s382
    %s383 = sphi 0, %s380
    %s384 = sphi 0, %s383
    %s400 = sphi 0, %s384
    %s404 = sphi 0, %s404
    %s406 = sphi 0, %s404
    %s407 = sphi 0, %s406
    %s421 = sphi 0, %s407
  $region4: #{bert_image_forward.3} parent=0 // loop_header_branch
    %24 = sbr.rel (%p22) target = $region8
  $region5: #{bert_image_forward.3} parent=0 // loop_body
    %s26 = ssub.s32 %s21, 1
    %s27 = ssub.s32 %s21, 2
    %s28 = sadd.s32 %s21, 1
    %s30 = sadd.s32 %s29, 1
    %p33 = scmp.eq.s32.totalorder %s21, 1
    %p34 = scmp.ne.s32.totalorder %s29, %s31
    %p35 = scmp.eq.s32.totalorder %s21, 0
    %p36 = por %p34, %p35
    %p37 = scmp.ne.s32.totalorder %s29, %s31
    %p38 = scmp.eq.s32.totalorder %s26, 1
    %p39 = por %p37, %p38
    %p40 = scmp.ne.s32.totalorder %s31, %s32
    %p41 = scmp.eq.s32.totalorder %s26, 0
    %p42 = por %p40, %p41
    %p43 = scmp.ne.s32.totalorder %s31, %s32
    %p44 = scmp.eq.s32.totalorder %s27, 1
    %p45 = por %p43, %p44
    %p47 = scmp.ne.s32.totalorder %s32, %s46
    %p48 = scmp.eq.s32.totalorder %s27, 0
    %p49 = por %p47, %p48
    %s51 = sadd.s32 %s50, 1
    %p54 = scmp.eq.s32.totalorder %s21, 1
    %p55 = scmp.ne.s32.totalorder %s50, %s52
    %p56 = scmp.eq.s32.totalorder %s21, 0
    %p57 = por %p55, %p56
    %p58 = scmp.ne.s32.totalorder %s50, %s52
    %p59 = scmp.eq.s32.totalorder %s26, 1
    %p60 = por %p58, %p59
    %p61 = scmp.ne.s32.totalorder %s52, %s53
    %p62 = scmp.eq.s32.totalorder %s26, 0
    %p63 = por %p61, %p62
    %p64 = scmp.ne.s32.totalorder %s52, %s53
    %p65 = scmp.eq.s32.totalorder %s27, 1
    %p66 = por %p64, %p65
    %p68 = scmp.ne.s32.totalorder %s53, %s67
    %p69 = scmp.eq.s32.totalorder %s27, 0
    %p70 = por %p68, %p69
    %s72 = sadd.s32 %s71, 1
    %p75 = scmp.eq.s32.totalorder %s21, 1
    %p76 = scmp.ne.s32.totalorder %s71, %s73
    %p77 = scmp.eq.s32.totalorder %s21, 0
    %p78 = por %p76, %p77
    %p79 = scmp.ne.s32.totalorder %s71, %s73
    %p80 = scmp.eq.s32.totalorder %s26, 1
    %p81 = por %p79, %p80
    %p82 = scmp.ne.s32.totalorder %s73, %s74
    %p83 = scmp.eq.s32.totalorder %s26, 0
    %p84 = por %p82, %p83
    %p85 = scmp.ne.s32.totalorder %s73, %s74
    %p86 = scmp.eq.s32.totalorder %s27, 1
    %p87 = por %p85, %p86
    %p89 = scmp.ne.s32.totalorder %s74, %s88
    %p90 = scmp.eq.s32.totalorder %s27, 0
    %p91 = por %p89, %p90
    %s92 = ssub.s32 %s21, %s28
    %p93 = scmp.eq.s32.totalorder %s92, 0
    %s95 = sadd.s32 %s94, 1
    %s96 = scalar_select %p93, %s94, %s95
    %p99 = pneg %p93
    %p100 = scmp.eq.s32.totalorder %s21, 1
    %p101 = por %p99, %p100
    %p102 = scmp.ne.s32.totalorder %s94, %s97
    %p103 = scmp.eq.s32.totalorder %s21, 0
    %p104 = por %p102, %p103
    %p105 = scmp.ne.s32.totalorder %s94, %s97
    %p106 = scmp.eq.s32.totalorder %s26, 1
    %p107 = por %p105, %p106
    %p108 = scmp.ne.s32.totalorder %s97, %s98
    %p109 = scmp.eq.s32.totalorder %s26, 0
    %p110 = por %p108, %p109
    %p111 = scmp.ne.s32.totalorder %s97, %s98
    %p112 = scmp.eq.s32.totalorder %s27, 1
    %p113 = por %p111, %p112
    %p115 = scmp.ne.s32.totalorder %s98, %s114
    %p116 = scmp.eq.s32.totalorder %s27, 0
    %p117 = por %p115, %p116
    %s118 = ssub.s32 %s21, %s28
    %p119 = scmp.eq.s32.totalorder %s118, 0
    %s121 = sadd.s32 %s120, 1
    %s122 = scalar_select %p119, %s120, %s121
    %p125 = pneg %p119
    %p126 = scmp.eq.s32.totalorder %s21, 1
    %p127 = por %p125, %p126
    %p128 = scmp.ne.s32.totalorder %s120, %s123
    %p129 = scmp.eq.s32.totalorder %s21, 0
    %p130 = por %p128, %p129
    %p131 = scmp.ne.s32.totalorder %s120, %s123
    %p132 = scmp.eq.s32.totalorder %s26, 1
    %p133 = por %p131, %p132
    %p134 = scmp.ne.s32.totalorder %s123, %s124
    %p135 = scmp.eq.s32.totalorder %s26, 0
    %p136 = por %p134, %p135
    %p137 = scmp.ne.s32.totalorder %s123, %s124
    %p138 = scmp.eq.s32.totalorder %s27, 1
    %p139 = por %p137, %p138
    %p141 = scmp.ne.s32.totalorder %s124, %s140
    %p142 = scmp.eq.s32.totalorder %s27, 0
    %p143 = por %p141, %p142
    %s144 = ssub.s32 %s21, %s28
    %p145 = scmp.eq.s32.totalorder %s144, 0
    %s147 = sadd.s32 %s146, 1
    %s148 = scalar_select %p145, %s146, %s147
    %p151 = pneg %p145
    %p152 = scmp.eq.s32.totalorder %s21, 1
    %p153 = por %p151, %p152
    %p154 = scmp.ne.s32.totalorder %s146, %s149
    %p155 = scmp.eq.s32.totalorder %s21, 0
    %p156 = por %p154, %p155
    %p157 = scmp.ne.s32.totalorder %s146, %s149
    %p158 = scmp.eq.s32.totalorder %s26, 1
    %p159 = por %p157, %p158
    %p160 = scmp.ne.s32.totalorder %s149, %s150
    %p161 = scmp.eq.s32.totalorder %s26, 0
    %p162 = por %p160, %p161
    %p163 = scmp.ne.s32.totalorder %s149, %s150
    %p164 = scmp.eq.s32.totalorder %s27, 1
    %p165 = por %p163, %p164
    %p167 = scmp.ne.s32.totalorder %s150, %s166
    %p168 = scmp.eq.s32.totalorder %s27, 0
    %p169 = por %p167, %p168
    %s170 = ssub.s32 %s21, %s28
    %p171 = scmp.eq.s32.totalorder %s170, 0
    %s173 = sadd.s32 %s172, 1
    %s174 = scalar_select %p171, %s172, %s173
    %p177 = pneg %p171
    %p178 = scmp.eq.s32.totalorder %s21, 1
    %p179 = por %p177, %p178
    %p180 = scmp.ne.s32.totalorder %s172, %s175
    %p181 = scmp.eq.s32.totalorder %s21, 0
    %p182 = por %p180, %p181
    %p183 = scmp.ne.s32.totalorder %s172, %s175
    %p184 = scmp.eq.s32.totalorder %s26, 1
    %p185 = por %p183, %p184
    %p186 = scmp.ne.s32.totalorder %s175, %s176
    %p187 = scmp.eq.s32.totalorder %s26, 0
    %p188 = por %p186, %p187
    %p189 = scmp.ne.s32.totalorder %s175, %s176
    %p190 = scmp.eq.s32.totalorder %s27, 1
    %p191 = por %p189, %p190
    %p193 = scmp.ne.s32.totalorder %s176, %s192
    %p194 = scmp.eq.s32.totalorder %s27, 0
    %p195 = por %p193, %p194
    %s196 = ssub.s32 %s21, %s28
    %p197 = scmp.eq.s32.totalorder %s196, 0
    %s199 = sadd.s32 %s198, 1
    %s200 = scalar_select %p197, %s198, %s199
    %p203 = pneg %p197
    %p204 = scmp.eq.s32.totalorder %s21, 1
    %p205 = por %p203, %p204
    %p206 = scmp.ne.s32.totalorder %s198, %s201
    %p207 = scmp.eq.s32.totalorder %s21, 0
    %p208 = por %p206, %p207
    %p209 = scmp.ne.s32.totalorder %s198, %s201
    %p210 = scmp.eq.s32.totalorder %s26, 1
    %p211 = por %p209, %p210
    %p212 = scmp.ne.s32.totalorder %s201, %s202
    %p213 = scmp.eq.s32.totalorder %s26, 0
    %p214 = por %p212, %p213
    %p215 = scmp.ne.s32.totalorder %s201, %s202
    %p216 = scmp.eq.s32.totalorder %s27, 1
    %p217 = por %p215, %p216
    %p219 = scmp.ne.s32.totalorder %s202, %s218
    %p220 = scmp.eq.s32.totalorder %s27, 0
    %p221 = por %p219, %p220
    %s222 = ssub.s32 %s21, %s28
    %p223 = scmp.eq.s32.totalorder %s222, 0
    %s225 = sadd.s32 %s224, 1
    %s226 = scalar_select %p223, %s224, %s225
    %p229 = pneg %p223
    %p230 = scmp.eq.s32.totalorder %s21, 1
    %p231 = por %p229, %p230
    %p232 = scmp.ne.s32.totalorder %s224, %s227
    %p233 = scmp.eq.s32.totalorder %s21, 0
    %p234 = por %p232, %p233
    %p235 = scmp.ne.s32.totalorder %s224, %s227
    %p236 = scmp.eq.s32.totalorder %s26, 1
    %p237 = por %p235, %p236
    %p238 = scmp.ne.s32.totalorder %s227, %s228
    %p239 = scmp.eq.s32.totalorder %s26, 0
    %p240 = por %p238, %p239
    %p241 = scmp.ne.s32.totalorder %s227, %s228
    %p242 = scmp.eq.s32.totalorder %s27, 1
    %p243 = por %p241, %p242
    %p245 = scmp.ne.s32.totalorder %s228, %s244
    %p246 = scmp.eq.s32.totalorder %s27, 0
    %p247 = por %p245, %p246
    %s248 = ssub.s32 %s21, %s28
    %p249 = scmp.eq.s32.totalorder %s248, 0
    %s251 = sadd.s32 %s250, 1
    %s252 = scalar_select %p249, %s250, %s251
    %p255 = pneg %p249
    %p256 = scmp.eq.s32.totalorder %s21, 1
    %p257 = por %p255, %p256
    %p258 = scmp.ne.s32.totalorder %s250, %s253
    %p259 = scmp.eq.s32.totalorder %s21, 0
    %p260 = por %p258, %p259
    %p261 = scmp.ne.s32.totalorder %s250, %s253
    %p262 = scmp.eq.s32.totalorder %s26, 1
    %p263 = por %p261, %p262
    %p264 = scmp.ne.s32.totalorder %s253, %s254
    %p265 = scmp.eq.s32.totalorder %s26, 0
    %p266 = por %p264, %p265
    %p267 = scmp.ne.s32.totalorder %s253, %s254
    %p268 = scmp.eq.s32.totalorder %s27, 1
    %p269 = por %p267, %p268
    %p271 = scmp.ne.s32.totalorder %s254, %s270
    %p272 = scmp.eq.s32.totalorder %s27, 0
    %p273 = por %p271, %p272
    %s274 = ssub.s32 %s21, %s28
    %p275 = scmp.eq.s32.totalorder %s274, 0
    %s277 = sadd.s32 %s276, 1
    %s278 = scalar_select %p275, %s276, %s277
    %p281 = pneg %p275
    %p282 = scmp.eq.s32.totalorder %s21, 1
    %p283 = por %p281, %p282
    %p284 = scmp.ne.s32.totalorder %s276, %s279
    %p285 = scmp.eq.s32.totalorder %s21, 0
    %p286 = por %p284, %p285
    %p287 = scmp.ne.s32.totalorder %s276, %s279
    %p288 = scmp.eq.s32.totalorder %s26, 1
    %p289 = por %p287, %p288
    %p290 = scmp.ne.s32.totalorder %s279, %s280
    %p291 = scmp.eq.s32.totalorder %s26, 0
    %p292 = por %p290, %p291
    %p293 = scmp.ne.s32.totalorder %s279, %s280
    %p294 = scmp.eq.s32.totalorder %s27, 1
    %p295 = por %p293, %p294
    %p297 = scmp.ne.s32.totalorder %s280, %s296
    %p298 = scmp.eq.s32.totalorder %s27, 0
    %p299 = por %p297, %p298
    %s300 = ssub.s32 %s21, %s28
    %p301 = scmp.eq.s32.totalorder %s300, 0
    %s303 = sadd.s32 %s302, 1
    %s304 = scalar_select %p301, %s302, %s303
    %p307 = pneg %p301
    %p308 = scmp.eq.s32.totalorder %s21, 1
    %p309 = por %p307, %p308
    %p310 = scmp.ne.s32.totalorder %s302, %s305
    %p311 = scmp.eq.s32.totalorder %s21, 0
    %p312 = por %p310, %p311
    %p313 = scmp.ne.s32.totalorder %s302, %s305
    %p314 = scmp.eq.s32.totalorder %s26, 1
    %p315 = por %p313, %p314
    %p316 = scmp.ne.s32.totalorder %s305, %s306
    %p317 = scmp.eq.s32.totalorder %s26, 0
    %p318 = por %p316, %p317
    %p319 = scmp.ne.s32.totalorder %s305, %s306
    %p320 = scmp.eq.s32.totalorder %s27, 1
    %p321 = por %p319, %p320
    %p323 = scmp.ne.s32.totalorder %s306, %s322
    %p324 = scmp.eq.s32.totalorder %s27, 0
    %p325 = por %p323, %p324
    %s326 = ssub.s32 %s21, %s28
    %p327 = scmp.eq.s32.totalorder %s326, 0
    %s329 = sadd.s32 %s328, 1
    %s330 = scalar_select %p327, %s328, %s329
    %p333 = pneg %p327
    %p334 = scmp.eq.s32.totalorder %s21, 1
    %p335 = por %p333, %p334
    %p336 = scmp.ne.s32.totalorder %s328, %s331
    %p337 = scmp.eq.s32.totalorder %s21, 0
    %p338 = por %p336, %p337
    %p339 = scmp.ne.s32.totalorder %s328, %s331
    %p340 = scmp.eq.s32.totalorder %s26, 1
    %p341 = por %p339, %p340
    %p342 = scmp.ne.s32.totalorder %s331, %s332
    %p343 = scmp.eq.s32.totalorder %s26, 0
    %p344 = por %p342, %p343
    %p345 = scmp.ne.s32.totalorder %s331, %s332
    %p346 = scmp.eq.s32.totalorder %s27, 1
    %p347 = por %p345, %p346
    %p349 = scmp.ne.s32.totalorder %s332, %s348
    %p350 = scmp.eq.s32.totalorder %s27, 0
    %p351 = por %p349, %p350
    %s352 = ssub.s32 %s21, %s28
    %p353 = scmp.eq.s32.totalorder %s352, 0
    %s355 = sadd.s32 %s354, 1
    %s356 = scalar_select %p353, %s354, %s355
    %p359 = pneg %p353
    %p360 = scmp.eq.s32.totalorder %s21, 1
    %p361 = por %p359, %p360
    %p362 = scmp.ne.s32.totalorder %s354, %s357
    %p363 = scmp.eq.s32.totalorder %s21, 0
    %p364 = por %p362, %p363
    %p365 = scmp.ne.s32.totalorder %s354, %s357
    %p366 = scmp.eq.s32.totalorder %s26, 1
    %p367 = por %p365, %p366
    %p368 = scmp.ne.s32.totalorder %s357, %s358
    %p369 = scmp.eq.s32.totalorder %s26, 0
    %p370 = por %p368, %p369
    %p371 = scmp.ne.s32.totalorder %s357, %s358
    %p372 = scmp.eq.s32.totalorder %s27, 1
    %p373 = por %p371, %p372
    %p375 = scmp.ne.s32.totalorder %s358, %s374
    %p376 = scmp.eq.s32.totalorder %s27, 0
    %p377 = por %p375, %p376
    %s378 = ssub.s32 %s21, %s28
    %p379 = scmp.eq.s32.totalorder %s378, 0
    %s381 = sadd.s32 %s380, 1
    %s382 = scalar_select %p379, %s380, %s381
    %p385 = pneg %p379
    %p386 = scmp.eq.s32.totalorder %s21, 1
    %p387 = por %p385, %p386
    %p388 = scmp.ne.s32.totalorder %s380, %s383
    %p389 = scmp.eq.s32.totalorder %s21, 0
    %p390 = por %p388, %p389
    %p391 = scmp.ne.s32.totalorder %s380, %s383
    %p392 = scmp.eq.s32.totalorder %s26, 1
    %p393 = por %p391, %p392
    %p394 = scmp.ne.s32.totalorder %s383, %s384
    %p395 = scmp.eq.s32.totalorder %s26, 0
    %p396 = por %p394, %p395
    %p397 = scmp.ne.s32.totalorder %s383, %s384
    %p398 = scmp.eq.s32.totalorder %s27, 1
    %p399 = por %p397, %p398
    %p401 = scmp.ne.s32.totalorder %s384, %s400
    %p402 = scmp.eq.s32.totalorder %s27, 0
    %p403 = por %p401, %p402
    %s405 = sadd.s32 %s404, 1
    %p408 = scmp.eq.s32.totalorder %s21, 1
    %p409 = scmp.ne.s32.totalorder %s404, %s406
    %p410 = scmp.eq.s32.totalorder %s21, 0
    %p411 = por %p409, %p410
    %p412 = scmp.ne.s32.totalorder %s404, %s406
    %p413 = scmp.eq.s32.totalorder %s26, 1
    %p414 = por %p412, %p413
    %p415 = scmp.ne.s32.totalorder %s406, %s407
    %p416 = scmp.eq.s32.totalorder %s26, 0
    %p417 = por %p415, %p416
    %p418 = scmp.ne.s32.totalorder %s406, %s407
    %p419 = scmp.eq.s32.totalorder %s27, 1
    %p420 = por %p418, %p419
    %p422 = scmp.ne.s32.totalorder %s407, %s421
    %p423 = scmp.eq.s32.totalorder %s27, 0
    %p424 = por %p422, %p423
    %p425 = scmp.le.s32.totalorder 1, %s21
    %p426 = scmp.lt.s32.totalorder %s21, 3
    %p427 = pnand %p425, %p426
    %p428 = pneg %p427
    // Predicated region
    $region9: #{bert_image_forward.3} parent=5 // pred_check
      _
    $region10: #{bert_image_forward.3} parent=5 // pred_check_branch
      %430 = sbr.rel (%p427) target = $region12
    $region11: #{bert_image_forward.3} parent=5 // pred_region
      %s431 = ssub.s32 %s21, 1
      // Predicated region
      $region13: #{bert_image_forward.3} parent=11 // pred_check
        %p432 = pneg %p42
      $region14: #{bert_image_forward.3} parent=11 // pred_check_branch
        %434 = sbr.rel (%p432) target = $region16
      $region15: #{bert_image_forward.3} parent=11 // pred_region
        _
      $region16: #{bert_image_forward.3} parent=11 // pred_fallthru
        _
      // Predicated region
      $region17: #{bert_image_forward.3} parent=11 // pred_check
        %p435 = pneg %p63
      $region18: #{bert_image_forward.3} parent=11 // pred_check_branch
        %437 = sbr.rel (%p435) target = $region20
      $region19: #{bert_image_forward.3} parent=11 // pred_region
        _
      $region20: #{bert_image_forward.3} parent=11 // pred_fallthru
        _
      // Predicated region
      $region21: #{bert_image_forward.3} parent=11 // pred_check
        %p438 = pneg %p84
      $region22: #{bert_image_forward.3} parent=11 // pred_check_branch
        %440 = sbr.rel (%p438) target = $region24
      $region23: #{bert_image_forward.3} parent=11 // pred_region
        _
      $region24: #{bert_image_forward.3} parent=11 // pred_fallthru
        _
    $region12: #{bert_image_forward.3} parent=5 // pred_fallthru
      _
    %p441 = scmp.lt.s32.totalorder %s21, 2
    // Predicated region
    $region25: #{bert_image_forward.3} parent=5 // pred_check
      %p442 = pneg %p441
    $region26: #{bert_image_forward.3} parent=5 // pred_check_branch
      %444 = sbr.rel (%p442) target = $region28
    $region27: #{bert_image_forward.3} parent=5 // pred_region
      // Predicated region
      $region29: #{bert_image_forward.3} parent=27 // pred_check
        %p445 = pneg %p104
      $region30: #{bert_image_forward.3} parent=27 // pred_check_branch
        %447 = sbr.rel (%p445) target = $region32
      $region31: #{bert_image_forward.3} parent=27 // pred_region
        %p448 = scmp.lt.s32.totalorder %s21, 1
        %s449 = scalar_select %p448, %s21, 1
        %s450 = scalar_lea.vmem %s3, %s449
      $region32: #{bert_image_forward.3} parent=27 // pred_fallthru
        _
      // Predicated region
      $region33: #{bert_image_forward.3} parent=27 // pred_check
        %p451 = pneg %p130
      $region34: #{bert_image_forward.3} parent=27 // pred_check_branch
        %453 = sbr.rel (%p451) target = $region36
      $region35: #{bert_image_forward.3} parent=27 // pred_region
        %p454 = scmp.lt.s32.totalorder %s21, 1
        %s455 = scalar_select %p454, %s21, 1
        %s456 = scalar_lea.vmem %s4, %s455
      $region36: #{bert_image_forward.3} parent=27 // pred_fallthru
        _
      // Predicated region
      $region37: #{bert_image_forward.3} parent=27 // pred_check
        %p457 = pneg %p156
      $region38: #{bert_image_forward.3} parent=27 // pred_check_branch
        %459 = sbr.rel (%p457) target = $region40
      $region39: #{bert_image_forward.3} parent=27 // pred_region
        %p460 = scmp.lt.s32.totalorder %s21, 1
        %s461 = scalar_select %p460, %s21, 1
        %s462 = smul.addr %s461, 48
        %s463 = smul.addr %s462, 4
        %s464 = scalar_lea.vmem %s5, %s463
      $region40: #{bert_image_forward.3} parent=27 // pred_fallthru
        _
      // Predicated region
      $region41: #{bert_image_forward.3} parent=27 // pred_check
        %p465 = pneg %p182
      $region42: #{bert_image_forward.3} parent=27 // pred_check_branch
        %467 = sbr.rel (%p465) target = $region44
      $region43: #{bert_image_forward.3} parent=27 // pred_region
        %p468 = scmp.lt.s32.totalorder %s21, 1
        %s469 = scalar_select %p468, %s21, 1
        %s470 = smul.addr %s469, 3
        %s471 = scalar_lea.vmem %s6, %s470
      $region44: #{bert_image_forward.3} parent=27 // pred_fallthru
        _
      // Predicated region
      $region45: #{bert_image_forward.3} parent=27 // pred_check
        %p472 = pneg %p208
      $region46: #{bert_image_forward.3} parent=27 // pred_check_branch
        %474 = sbr.rel (%p472) target = $region48
      $region47: #{bert_image_forward.3} parent=27 // pred_region
        %p475 = scmp.lt.s32.totalorder %s21, 1
        %s476 = scalar_select %p475, %s21, 1
        %s477 = smul.addr %s476, 16
        %s478 = smul.addr %s477, 4
        %s479 = scalar_lea.vmem %s7, %s478
      $region48: #{bert_image_forward.3} parent=27 // pred_fallthru
        _
      // Predicated region
      $region49: #{bert_image_forward.3} parent=27 // pred_check
        %p480 = pneg %p234
      $region50: #{bert_image_forward.3} parent=27 // pred_check_branch
        %482 = sbr.rel (%p480) target = $region52
      $region51: #{bert_image_forward.3} parent=27 // pred_region
        %p483 = scmp.lt.s32.totalorder %s21, 1
        %s484 = scalar_select %p483, %s21, 1
        %s485 = scalar_lea.vmem %s8, %s484
      $region52: #{bert_image_forward.3} parent=27 // pred_fallthru
        _
      // Predicated region
      $region53: #{bert_image_forward.3} parent=27 // pred_check
        %p486 = pneg %p260
      $region54: #{bert_image_forward.3} parent=27 // pred_check_branch
        %488 = sbr.rel (%p486) target = $region56
      $region55: #{bert_image_forward.3} parent=27 // pred_region
        %p489 = scmp.lt.s32.totalorder %s21, 1
        %s490 = scalar_select %p489, %s21, 1
        %s491 = scalar_lea.vmem %s9, %s490
      $region56: #{bert_image_forward.3} parent=27 // pred_fallthru
        _
      // Predicated region
      $region57: #{bert_image_forward.3} parent=27 // pred_check
        %p492 = pneg %p286
      $region58: #{bert_image_forward.3} parent=27 // pred_check_branch
        %494 = sbr.rel (%p492) target = $region60
      $region59: #{bert_image_forward.3} parent=27 // pred_region
        %p495 = scmp.lt.s32.totalorder %s21, 1
        %s496 = scalar_select %p495, %s21, 1
        %s497 = scalar_lea.vmem %s10, %s496
      $region60: #{bert_image_forward.3} parent=27 // pred_fallthru
        _
      // Predicated region
      $region61: #{bert_image_forward.3} parent=27 // pred_check
        %p498 = pneg %p312
      $region62: #{bert_image_forward.3} parent=27 // pred_check_branch
        %500 = sbr.rel (%p498) target = $region64
      $region63: #{bert_image_forward.3} parent=27 // pred_region
        %p501 = scmp.lt.s32.totalorder %s21, 1
        %s502 = scalar_select %p501, %s21, 1
        %s503 = smul.addr %s502, 64
        %s504 = smul.addr %s503, 4
        %s505 = scalar_lea.vmem %s11, %s504
      $region64: #{bert_image_forward.3} parent=27 // pred_fallthru
        _
      // Predicated region
      $region65: #{bert_image_forward.3} parent=27 // pred_check
        %p506 = pneg %p338
      $region66: #{bert_image_forward.3} parent=27 // pred_check_branch
        %508 = sbr.rel (%p506) target = $region68
      $region67: #{bert_image_forward.3} parent=27 // pred_region
        %p509 = scmp.lt.s32.totalorder %s21, 1
        %s510 = scalar_select %p509, %s21, 1
        %s511 = smul.addr %s510, 4
        %s512 = scalar_lea.vmem %s12, %s511
      $region68: #{bert_image_forward.3} parent=27 // pred_fallthru
        _
      // Predicated region
      $region69: #{bert_image_forward.3} parent=27 // pred_check
        %p513 = pneg %p364
      $region70: #{bert_image_forward.3} parent=27 // pred_check_branch
        %515 = sbr.rel (%p513) target = $region72
      $region71: #{bert_image_forward.3} parent=27 // pred_region
        %p516 = scmp.lt.s32.totalorder %s21, 1
        %s517 = scalar_select %p516, %s21, 1
        %s518 = smul.addr %s517, 64
        %s519 = smul.addr %s518, 4
        %s520 = scalar_lea.vmem %s13, %s519
      $region72: #{bert_image_forward.3} parent=27 // pred_fallthru
        _
      // Predicated region
      $region73: #{bert_image_forward.3} parent=27 // pred_check
        %p521 = pneg %p390
      $region74: #{bert_image_forward.3} parent=27 // pred_check_branch
        %523 = sbr.rel (%p521) target = $region76
      $region75: #{bert_image_forward.3} parent=27 // pred_region
        %p524 = scmp.lt.s32.totalorder %s21, 1
        %s525 = scalar_select %p524, %s21, 1
        %s526 = scalar_lea.vmem %s14, %s525
      $region76: #{bert_image_forward.3} parent=27 // pred_fallthru
        _
    $region28: #{bert_image_forward.3} parent=5 // pred_fallthru
      _
    %p527 = scmp.le.s32.totalorder 1, %s21
    %p528 = scmp.lt.s32.totalorder %s21, 3
    %p529 = pnand %p527, %p528
    %p530 = pneg %p529
    // Predicated region
    $region77: #{bert_image_forward.3} parent=5 // pred_check
      _
    $region78: #{bert_image_forward.3} parent=5 // pred_check_branch
      %532 = sbr.rel (%p529) target = $region80
    $region79: #{bert_image_forward.3} parent=5 // pred_region
      %s533 = ssub.s32 %s21, 1
      %p534 = pneg %p42
      %p535 = pneg %p39
      %p536 = pneg %p63
      %p537 = pneg %p60
      %p538 = pneg %p84
      %p539 = pneg %p81
      %p540 = scmp.lt.s32.totalorder %s26, 1
      %s541 = scalar_select %p540, %s26, 1
      %s542 = scalar_lea.vmem %s3, %s541
      %p543 = pneg %p110
      %p544 = pneg %p107
      %p545 = scmp.lt.s32.totalorder %s26, 1
      %s546 = scalar_select %p545, %s26, 1
      %s547 = scalar_lea.vmem %s4, %s546
      %p548 = pneg %p136
      %p549 = pneg %p133
      %p550 = scmp.lt.s32.totalorder %s26, 1
      %s551 = scalar_select %p550, %s26, 1
      %s552 = smul.addr %s551, 48
      %s553 = smul.addr %s552, 4
      %s554 = scalar_lea.vmem %s5, %s553
      %p555 = pneg %p162
      %p556 = pneg %p159
      %p557 = scmp.lt.s32.totalorder %s26, 1
      %s558 = scalar_select %p557, %s26, 1
      %s559 = smul.addr %s558, 3
      %s560 = scalar_lea.vmem %s6, %s559
      %p561 = pneg %p188
      %p562 = pneg %p185
      %p563 = scmp.lt.s32.totalorder %s26, 1
      %s564 = scalar_select %p563, %s26, 1
      %s565 = smul.addr %s564, 16
      %s566 = smul.addr %s565, 4
      %s567 = scalar_lea.vmem %s7, %s566
      %p568 = pneg %p214
      %p569 = pneg %p211
      %p570 = scmp.lt.s32.totalorder %s26, 1
      %s571 = scalar_select %p570, %s26, 1
      %s572 = scalar_lea.vmem %s8, %s571
      %p573 = pneg %p240
      %p574 = pneg %p237
      %p575 = scmp.lt.s32.totalorder %s26, 1
      %s576 = scalar_select %p575, %s26, 1
      %s577 = scalar_lea.vmem %s9, %s576
      %p578 = pneg %p266
      %p579 = pneg %p263
      %p580 = scmp.lt.s32.totalorder %s26, 1
      %s581 = scalar_select %p580, %s26, 1
      %s582 = scalar_lea.vmem %s10, %s581
      %p583 = pneg %p292
      %p584 = pneg %p289
      %p585 = scmp.lt.s32.totalorder %s26, 1
      %s586 = scalar_select %p585, %s26, 1
      %s587 = smul.addr %s586, 64
      %s588 = smul.addr %s587, 4
      %s589 = scalar_lea.vmem %s11, %s588
      %p590 = pneg %p318
      %p591 = pneg %p315
      %p592 = scmp.lt.s32.totalorder %s26, 1
      %s593 = scalar_select %p592, %s26, 1
      %s594 = smul.addr %s593, 4
      %s595 = scalar_lea.vmem %s12, %s594
      %p596 = pneg %p344
      %p597 = pneg %p341
      %p598 = scmp.lt.s32.totalorder %s26, 1
      %s599 = scalar_select %p598, %s26, 1
      %s600 = smul.addr %s599, 64
      %s601 = smul.addr %s600, 4
      %s602 = scalar_lea.vmem %s13, %s601
      %p603 = pneg %p370
      %p604 = pneg %p367
      %p605 = scmp.lt.s32.totalorder %s26, 1
      %s606 = scalar_select %p605, %s26, 1
      %s607 = scalar_lea.vmem %s14, %s606
      %p608 = pneg %p396
      %p609 = pneg %p393
      %p610 = pneg %p417
      %p611 = pneg %p414
      %p612 = scmp.lt.s32.totalorder %s26, 1
      %s613 = scalar_select %p612, %s26, 1
      %s614 = scalar_lea.vmem %s3, %s613
      %p615 = scmp.lt.s32.totalorder %s26, 1
      %s616 = scalar_select %p615, %s26, 1
      %s617 = scalar_lea.vmem %s4, %s616
      %p618 = scmp.lt.s32.totalorder %s26, 1
      %s619 = scalar_select %p618, %s26, 1
      %s620 = smul.addr %s619, 48
      %s621 = smul.addr %s620, 4
      %s622 = scalar_lea.vmem %s5, %s621
      %p623 = scmp.lt.s32.totalorder %s26, 1
      %s624 = scalar_select %p623, %s26, 1
      %s625 = smul.addr %s624, 3
      %s626 = scalar_lea.vmem %s6, %s625
      %p627 = scmp.lt.s32.totalorder %s26, 1
      %s628 = scalar_select %p627, %s26, 1
      %s629 = smul.addr %s628, 16
      %s630 = smul.addr %s629, 4
      %s631 = scalar_lea.vmem %s7, %s630
      %p632 = scmp.lt.s32.totalorder %s26, 1
      %s633 = scalar_select %p632, %s26, 1
      %s634 = scalar_lea.vmem %s8, %s633
      %p635 = scmp.lt.s32.totalorder %s26, 1
      %s636 = scalar_select %p635, %s26, 1
      %s637 = scalar_lea.vmem %s9, %s636
      %p638 = scmp.lt.s32.totalorder %s26, 1
      %s639 = scalar_select %p638, %s26, 1
      %s640 = scalar_lea.vmem %s10, %s639
      %p641 = scmp.lt.s32.totalorder %s26, 1
      %s642 = scalar_select %p641, %s26, 1
      %s643 = smul.addr %s642, 64
      %s644 = smul.addr %s643, 4
      %s645 = scalar_lea.vmem %s11, %s644
      %p646 = scmp.lt.s32.totalorder %s26, 1
      %s647 = scalar_select %p646, %s26, 1
      %s648 = smul.addr %s647, 4
      %s649 = scalar_lea.vmem %s12, %s648
      %p650 = scmp.lt.s32.totalorder %s26, 1
      %s651 = scalar_select %p650, %s26, 1
      %s652 = smul.addr %s651, 64
      %s653 = smul.addr %s652, 4
      %s654 = scalar_lea.vmem %s13, %s653
      %p655 = scmp.lt.s32.totalorder %s26, 1
      %s656 = scalar_select %p655, %s26, 1
      %s657 = scalar_lea.vmem %s14, %s656
      %p659 = scmp.eq.s32.totalorder %s26, 0
      // Predicated region
      $region81: #{bert_image_forward.3} parent=79 // pred_check
        %p660 = pneg %p659
      $region82: #{bert_image_forward.3} parent=79 // pred_check_branch
        %662 = sbr.rel (%p660) target = $region84
      $region83: #{bert_image_forward.3} parent=79 // pred_region
        %v663 = vld [vmem:[%s0] sm:$0xff]
        %v664 = vld [vmem:[%s0 + $0x8] sm:$0xff]
        %v665 = vld [vmem:[%s0 + $0x10] sm:$0xff]
        %v666 = vld [vmem:[%s0 + $0x18] sm:$0xff]
        %v667 = vld [vmem:[%s0 + $0x20] sm:$0xff]
        %v668 = vld [vmem:[%s0 + $0x28] sm:$0xff]
        %v669 = vld [vmem:[%s1] sm:$0xf]
        %v670 = vld [vmem:[%s1 + $0x4] sm:$0xf]
        %v671 = vld [vmem:[%s1 + $0x8] sm:$0xf]
        %v672 = vld [vmem:[%s1 + $0xc] sm:$0xf]
        %v673 = vld [vmem:[%s1 + $0x10] sm:$0xf]
        %v674 = vld [vmem:[%s1 + $0x14] sm:$0xf]
        %v675 = vld [vmem:[%s1 + $0x18] sm:$0xf]
        %v676 = vld [vmem:[%s1 + $0x1c] sm:$0xf]
        %v677 = vld [vmem:[%s1 + $0x20] sm:$0xf]
        %v678 = vld [vmem:[%s1 + $0x24] sm:$0xf]
        %v679 = vld [vmem:[%s1 + $0x28] sm:$0xf]
        %v680 = vld [vmem:[%s1 + $0x2c] sm:$0xf]
        %v681 = vld [vmem:[%s1 + $0x30] sm:$0xf]
        %v682 = vld [vmem:[%s1 + $0x34] sm:$0xf]
        %v683 = vld [vmem:[%s1 + $0x38] sm:$0xf]
        %v684 = vld [vmem:[%s1 + $0x3c] sm:$0xf]
        %v685 = vld [vmem:[%s1 + $0x40] sm:$0xf]
        %v686 = vld [vmem:[%s1 + $0x44] sm:$0xf]
        %v687 = vld [vmem:[%s1 + $0x48] sm:$0xf]
        %v688 = vld [vmem:[%s1 + $0x4c] sm:$0xf]
        %v689 = vld [vmem:[%s1 + $0x50] sm:$0xf]
        %v690 = vld [vmem:[%s1 + $0x54] sm:$0xf]
        %v691 = vld [vmem:[%s1 + $0x58] sm:$0xf]
        %v692 = vld [vmem:[%s1 + $0x5c] sm:$0xf]
        %v693 = vld [vmem:[%s1 + $0x60] sm:$0xf]
        %v694 = vld [vmem:[%s1 + $0x64] sm:$0xf]
        %v695 = vld [vmem:[%s1 + $0x68] sm:$0xf]
        %v696 = vld [vmem:[%s1 + $0x6c] sm:$0xf]
        %v697 = vld [vmem:[%s1 + $0x70] sm:$0xf]
        %v698 = vld [vmem:[%s1 + $0x74] sm:$0xf]
        %v699 = vld [vmem:[%s1 + $0x78] sm:$0xf]
        %v700 = vld [vmem:[%s1 + $0x7c] sm:$0xf]
        %v701 = vld [vmem:[%s1 + $0x80] sm:$0xf]
        %v702 = vld [vmem:[%s1 + $0x84] sm:$0xf]
        %v703 = vld [vmem:[%s1 + $0x88] sm:$0xf]
        %v704 = vld [vmem:[%s1 + $0x8c] sm:$0xf]
        %v705 = vld [vmem:[%s1 + $0x90] sm:$0xf]
        %v706 = vld [vmem:[%s1 + $0x94] sm:$0xf]
        %v707 = vld [vmem:[%s1 + $0x98] sm:$0xf]
        %v708 = vld [vmem:[%s1 + $0x9c] sm:$0xf]
        %v709 = vld [vmem:[%s1 + $0xa0] sm:$0xf]
        %v710 = vld [vmem:[%s1 + $0xa4] sm:$0xf]
        %v711 = vld [vmem:[%s1 + $0xa8] sm:$0xf]
        %v712 = vld [vmem:[%s1 + $0xac] sm:$0xf]
        %v713 = vld [vmem:[%s1 + $0xb0] sm:$0xf]
        %v714 = vld [vmem:[%s1 + $0xb4] sm:$0xf]
        %v715 = vld [vmem:[%s1 + $0xb8] sm:$0xf]
        %v716 = vld [vmem:[%s1 + $0xbc] sm:$0xf]
        %v717 = vld [vmem:[%s1 + $0xc0] sm:$0xf]
        %v718 = vld [vmem:[%s1 + $0xc4] sm:$0xf]
        %v719 = vld [vmem:[%s1 + $0xc8] sm:$0xf]
        %v720 = vld [vmem:[%s1 + $0xcc] sm:$0xf]
        %v721 = vld [vmem:[%s1 + $0xd0] sm:$0xf]
        %v722 = vld [vmem:[%s1 + $0xd4] sm:$0xf]
        %v723 = vld [vmem:[%s1 + $0xd8] sm:$0xf]
        %v724 = vld [vmem:[%s1 + $0xdc] sm:$0xf]
        %v725 = vld [vmem:[%s1 + $0xe0] sm:$0xf]
        %v726 = vld [vmem:[%s1 + $0xe4] sm:$0xf]
        %v727 = vld [vmem:[%s1 + $0xe8] sm:$0xf]
        %v728 = vld [vmem:[%s1 + $0xec] sm:$0xf]
        %v729 = vld [vmem:[%s1 + $0xf0] sm:$0xf]
        %v730 = vld [vmem:[%s1 + $0xf4] sm:$0xf]
        %v731 = vld [vmem:[%s1 + $0xf8] sm:$0xf]
        %v732 = vld [vmem:[%s1 + $0xfc] sm:$0xf]
        %v733 = vld [vmem:[%s1 + $0x100] sm:$0xf]
        %v734 = vld [vmem:[%s1 + $0x104] sm:$0xf]
        %v735 = vld [vmem:[%s1 + $0x108] sm:$0xf]
        %v736 = vld [vmem:[%s1 + $0x10c] sm:$0xf]
        %v737 = vld [vmem:[%s1 + $0x110] sm:$0xf]
        %v738 = vld [vmem:[%s1 + $0x114] sm:$0xf]
        %v739 = vld [vmem:[%s1 + $0x118] sm:$0xf]
        %v740 = vld [vmem:[%s1 + $0x11c] sm:$0xf]
        %v741 = vld [vmem:[%s1 + $0x120] sm:$0xf]
        %v742 = vld [vmem:[%s1 + $0x124] sm:$0xf]
        %v743 = vld [vmem:[%s1 + $0x128] sm:$0xf]
        %v744 = vld [vmem:[%s1 + $0x12c] sm:$0xf]
        %v745 = vld [vmem:[%s1 + $0x130] sm:$0xf]
        %v746 = vld [vmem:[%s1 + $0x134] sm:$0xf]
        %v747 = vld [vmem:[%s1 + $0x138] sm:$0xf]
        %v748 = vld [vmem:[%s1 + $0x13c] sm:$0xf]
        %v749 = vld [vmem:[%s1 + $0x140] sm:$0xf]
        %v750 = vld [vmem:[%s1 + $0x144] sm:$0xf]
        %v751 = vld [vmem:[%s1 + $0x148] sm:$0xf]
        %v752 = vld [vmem:[%s1 + $0x14c] sm:$0xf]
        %v753 = vld [vmem:[%s1 + $0x150] sm:$0xf]
        %v754 = vld [vmem:[%s1 + $0x154] sm:$0xf]
        %v755 = vld [vmem:[%s1 + $0x158] sm:$0xf]
        %v756 = vld [vmem:[%s1 + $0x15c] sm:$0xf]
        %v757 = vld [vmem:[%s1 + $0x160] sm:$0xf]
        %v758 = vld [vmem:[%s1 + $0x164] sm:$0xf]
        %v759 = vld [vmem:[%s1 + $0x168] sm:$0xf]
        %v760 = vld [vmem:[%s1 + $0x16c] sm:$0xf]
        %v761 = vld [vmem:[%s1 + $0x170] sm:$0xf]
        %v762 = vld [vmem:[%s1 + $0x174] sm:$0xf]
        %v763 = vld [vmem:[%s1 + $0x178] sm:$0xf]
        %v764 = vld [vmem:[%s1 + $0x17c] sm:$0xf]
        %v765 = vpack.c.bf16 %v663, %v663
        %v766 = vpack.c.bf16 %v664, %v664
        %v767 = vpack.c.bf16 %v665, %v665
        %v768 = vpack.c.bf16 %v666, %v666
        %v769 = vpack.c.bf16 %v667, %v667
        %v770 = vpack.c.bf16 %v668, %v668
        %v771 = vld [vmem:[%s2] sm:$0x1]
        %v773 = vlaneseq
        %v774 = vshrl.u32 %v773, 7
        %v775 = vsub.s32 0, %v774
        %v776 = vrot.slane %v771, %v775
        %v874 = vunpack.c.l.b16 %v669
        %v875 = vunpack.c.l.b16 %v670
        %v876 = vunpack.c.l.b16 %v671
        %v877 = vunpack.c.l.b16 %v672
        %v878 = vunpack.c.l.b16 %v673
        %v879 = vunpack.c.l.b16 %v674
        %v880 = vunpack.c.l.b16 %v675
        %v881 = vunpack.c.l.b16 %v676
        %v882 = vunpack.c.l.b16 %v677
        %v883 = vunpack.c.l.b16 %v678
        %v884 = vunpack.c.l.b16 %v679
        %v885 = vunpack.c.l.b16 %v680
        %v886 = vunpack.c.l.b16 %v681
        %v887 = vunpack.c.l.b16 %v682
        %v888 = vunpack.c.l.b16 %v683
        %v889 = vunpack.c.l.b16 %v684
        %v890 = vunpack.c.l.b16 %v685
        %v891 = vunpack.c.l.b16 %v686
        %v892 = vunpack.c.l.b16 %v687
        %v893 = vunpack.c.l.b16 %v688
        %v894 = vunpack.c.l.b16 %v689
        %v895 = vunpack.c.l.b16 %v690
        %v896 = vunpack.c.l.b16 %v691
        %v897 = vunpack.c.l.b16 %v692
        %v898 = vunpack.c.l.b16 %v693
        %v899 = vunpack.c.l.b16 %v694
        %v900 = vunpack.c.l.b16 %v695
        %v901 = vunpack.c.l.b16 %v696
        %v902 = vunpack.c.l.b16 %v697
        %v903 = vunpack.c.l.b16 %v698
        %v904 = vunpack.c.l.b16 %v699
        %v905 = vunpack.c.l.b16 %v700
        %v906 = vunpack.c.l.b16 %v701
        %v907 = vunpack.c.l.b16 %v702
        %v908 = vunpack.c.l.b16 %v703
        %v909 = vunpack.c.l.b16 %v704
        %v910 = vunpack.c.l.b16 %v705
        %v911 = vunpack.c.l.b16 %v706
        %v912 = vunpack.c.l.b16 %v707
        %v913 = vunpack.c.l.b16 %v708
        %v914 = vunpack.c.l.b16 %v709
        %v915 = vunpack.c.l.b16 %v710
        %v916 = vunpack.c.l.b16 %v711
        %v917 = vunpack.c.l.b16 %v712
        %v918 = vunpack.c.l.b16 %v713
        %v919 = vunpack.c.l.b16 %v714
        %v920 = vunpack.c.l.b16 %v715
        %v921 = vunpack.c.l.b16 %v716
        %v922 = vunpack.c.l.b16 %v717
        %v923 = vunpack.c.l.b16 %v718
        %v924 = vunpack.c.l.b16 %v719
        %v925 = vunpack.c.l.b16 %v720
        %v926 = vunpack.c.l.b16 %v721
        %v927 = vunpack.c.l.b16 %v722
        %v928 = vunpack.c.l.b16 %v723
        %v929 = vunpack.c.l.b16 %v724
        %v930 = vunpack.c.l.b16 %v725
        %v931 = vunpack.c.l.b16 %v726
        %v932 = vunpack.c.l.b16 %v727
        %v933 = vunpack.c.l.b16 %v728
        %v934 = vunpack.c.l.b16 %v729
        %v935 = vunpack.c.l.b16 %v730
        %v936 = vunpack.c.l.b16 %v731
        %v937 = vunpack.c.l.b16 %v732
        %v938 = vunpack.c.l.b16 %v733
        %v939 = vunpack.c.l.b16 %v734
        %v940 = vunpack.c.l.b16 %v735
        %v941 = vunpack.c.l.b16 %v736
        %v942 = vunpack.c.l.b16 %v737
        %v943 = vunpack.c.l.b16 %v738
        %v944 = vunpack.c.l.b16 %v739
        %v945 = vunpack.c.l.b16 %v740
        %v946 = vunpack.c.l.b16 %v741
        %v947 = vunpack.c.l.b16 %v742
        %v948 = vunpack.c.l.b16 %v743
        %v949 = vunpack.c.l.b16 %v744
        %v950 = vunpack.c.l.b16 %v745
        %v951 = vunpack.c.l.b16 %v746
        %v952 = vunpack.c.l.b16 %v747
        %v953 = vunpack.c.l.b16 %v748
        %v954 = vunpack.c.l.b16 %v749
        %v955 = vunpack.c.l.b16 %v750
        %v956 = vunpack.c.l.b16 %v751
        %v957 = vunpack.c.l.b16 %v752
        %v958 = vunpack.c.l.b16 %v753
        %v959 = vunpack.c.l.b16 %v754
        %v960 = vunpack.c.l.b16 %v755
        %v961 = vunpack.c.l.b16 %v756
        %v962 = vunpack.c.l.b16 %v757
        %v963 = vunpack.c.l.b16 %v758
        %v964 = vunpack.c.l.b16 %v759
        %v965 = vunpack.c.l.b16 %v760
        %v966 = vunpack.c.l.b16 %v761
        %v967 = vunpack.c.l.b16 %v762
        %v968 = vunpack.c.l.b16 %v763
        %v969 = vunpack.c.l.b16 %v764
        %v970 = vpack.c.b16 %v875, %v874
        %v971 = vpack.c.b16 %v877, %v876
        %v972 = vpack.c.b16 %v879, %v878
        %v973 = vpack.c.b16 %v881, %v880
        %v974 = vpack.c.b16 %v883, %v882
        %v975 = vpack.c.b16 %v885, %v884
        %v976 = vpack.c.b16 %v887, %v886
        %v977 = vpack.c.b16 %v889, %v888
        %v978 = vpack.c.b16 %v891, %v890
        %v979 = vpack.c.b16 %v893, %v892
        %v980 = vpack.c.b16 %v895, %v894
        %v981 = vpack.c.b16 %v897, %v896
        %v982 = vpack.c.b16 %v899, %v898
        %v983 = vpack.c.b16 %v901, %v900
        %v984 = vpack.c.b16 %v903, %v902
        %v985 = vpack.c.b16 %v905, %v904
        %v986 = vpack.c.b16 %v907, %v906
        %v987 = vpack.c.b16 %v909, %v908
        %v988 = vpack.c.b16 %v911, %v910
        %v989 = vpack.c.b16 %v913, %v912
        %v990 = vpack.c.b16 %v915, %v914
        %v991 = vpack.c.b16 %v917, %v916
        %v992 = vpack.c.b16 %v919, %v918
        %v993 = vpack.c.b16 %v921, %v920
        %v994 = vpack.c.b16 %v923, %v922
        %v995 = vpack.c.b16 %v925, %v924
        %v996 = vpack.c.b16 %v927, %v926
        %v997 = vpack.c.b16 %v929, %v928
        %v998 = vpack.c.b16 %v931, %v930
        %v999 = vpack.c.b16 %v933, %v932
        %v1000 = vpack.c.b16 %v935, %v934
        %v1001 = vpack.c.b16 %v937, %v936
        %v1002 = vpack.c.b16 %v939, %v938
        %v1003 = vpack.c.b16 %v941, %v940
        %v1004 = vpack.c.b16 %v943, %v942
        %v1005 = vpack.c.b16 %v945, %v944
        %v1006 = vpack.c.b16 %v947, %v946
        %v1007 = vpack.c.b16 %v949, %v948
        %v1008 = vpack.c.b16 %v951, %v950
        %v1009 = vpack.c.b16 %v953, %v952
        %v1010 = vpack.c.b16 %v955, %v954
        %v1011 = vpack.c.b16 %v957, %v956
        %v1012 = vpack.c.b16 %v959, %v958
        %v1013 = vpack.c.b16 %v961, %v960
        %v1014 = vpack.c.b16 %v963, %v962
        %v1015 = vpack.c.b16 %v965, %v964
        %v1016 = vpack.c.b16 %v967, %v966
        %v1017 = vpack.c.b16 %v969, %v968
        %1066 = vmatprep.subr.bf16.mxu0 0
        %1067 = vmatpush1.bf16.msra.mxu0 %v977
        %1068 = vmatprep.subr.bf16.mxu0 0
        %1069 = vmatpush1.bf16.msra.mxu0 %v976
        %1070 = vmatprep.subr.bf16.mxu0 0
        %1071 = vmatpush1.bf16.msra.mxu0 %v975
        %1072 = vmatprep.subr.bf16.mxu0 0
        %1073 = vmatpush1.bf16.msra.mxu0 %v974
        %1074 = vmatprep.subr.bf16.mxu0 0
        %1075 = vmatpush1.bf16.msra.mxu0 %v973
        %1076 = vmatprep.subr.bf16.mxu0 0
        %1077 = vmatpush1.bf16.msra.mxu0 %v972
        %1078 = vmatprep.subr.bf16.mxu0 0
        %1079 = vmatpush1.bf16.msra.mxu0 %v971
        %1080 = vmatprep.subr.bf16.mxu0 0
        %1081 = vmatpush1.bf16.msra.mxu0 %v970
        %1082 = vmatprep.subr.bf16.mxu0 0
        %1083 = vmatpush2.bf16.msra.mxu0 %v985
        %1084 = vmatprep.subr.bf16.mxu0 0
        %1085 = vmatpush2.bf16.msra.mxu0 %v984
        %1086 = vmatprep.subr.bf16.mxu0 0
        %1087 = vmatpush2.bf16.msra.mxu0 %v983
        %1088 = vmatprep.subr.bf16.mxu0 0
        %1089 = vmatpush2.bf16.msra.mxu0 %v982
        %1090 = vmatprep.subr.bf16.mxu0 0
        %1091 = vmatpush2.bf16.msra.mxu0 %v981
        %1092 = vmatprep.subr.bf16.mxu0 0
        %1093 = vmatpush2.bf16.msra.mxu0 %v980
        %1094 = vmatprep.subr.bf16.mxu0 0
        %1095 = vmatpush2.bf16.msra.mxu0 %v979
        %1096 = vmatprep.subr.bf16.mxu0 0
        %1097 = vmatpush2.bf16.msra.mxu0 %v978
        %1098 = vmatprep.mubr.bf16.mxu0 %v766
        %1099 = vmatmul.mubr.bf16.gmra.mxu0 %v765
        %v1100 = vpop.f32.mrf.mxu0
        %v1101 = vadd.f32 %v776, %v1100
        %v1102 = vpop.f32.mrf.mxu0
        %v1103 = vpop.f32.mrf.mxu0
        %v1104 = vpop.f32.mrf.mxu0
        %1105 = vdwg.mxu0
        %1106 = vmatprep.subr.bf16.mxu0 0
        %1107 = vmatpush1.bf16.msra.mxu0 %v993
        %1108 = vmatprep.subr.bf16.mxu0 0
        %1109 = vmatpush1.bf16.msra.mxu0 %v992
        %1110 = vmatprep.subr.bf16.mxu0 0
        %1111 = vmatpush1.bf16.msra.mxu0 %v991
        %1112 = vmatprep.subr.bf16.mxu0 0
        %1113 = vmatpush1.bf16.msra.mxu0 %v990
        %1114 = vmatprep.subr.bf16.mxu0 0
        %1115 = vmatpush1.bf16.msra.mxu0 %v989
        %1116 = vmatprep.subr.bf16.mxu0 0
        %1117 = vmatpush1.bf16.msra.mxu0 %v988
        %1118 = vmatprep.subr.bf16.mxu0 0
        %1119 = vmatpush1.bf16.msra.mxu0 %v987
        %1120 = vmatprep.subr.bf16.mxu0 0
        %1121 = vmatpush1.bf16.msra.mxu0 %v986
        %1122 = vmatprep.subr.bf16.mxu0 0
        %1123 = vmatpush2.bf16.msra.mxu0 %v1001
        %1124 = vmatprep.subr.bf16.mxu0 0
        %1125 = vmatpush2.bf16.msra.mxu0 %v1000
        %1126 = vmatprep.subr.bf16.mxu0 0
        %1127 = vmatpush2.bf16.msra.mxu0 %v999
        %1128 = vmatprep.subr.bf16.mxu0 0
        %1129 = vmatpush2.bf16.msra.mxu0 %v998
        %1130 = vmatprep.subr.bf16.mxu0 0
        %1131 = vmatpush2.bf16.msra.mxu0 %v997
        %1132 = vmatprep.subr.bf16.mxu0 0
        %1133 = vmatpush2.bf16.msra.mxu0 %v996
        %1134 = vmatprep.subr.bf16.mxu0 0
        %1135 = vmatpush2.bf16.msra.mxu0 %v995
        %1136 = vmatprep.subr.bf16.mxu0 0
        %1137 = vmatpush2.bf16.msra.mxu0 %v994
        %1138 = vmatprep.mubr.bf16.mxu0 %v768
        %1139 = vmatmul.mubr.bf16.gmra.mxu0 %v767
        %v1140 = vpop.f32.mrf.mxu0
        %v1141 = vadd.f32 %v1101, %v1140
        %v1142 = vpop.f32.mrf.mxu0
        %v1143 = vpop.f32.mrf.mxu0
        %v1144 = vpop.f32.mrf.mxu0
        %1145 = vdwg.mxu0
        %1146 = vmatprep.subr.bf16.mxu0 0
        %1147 = vmatpush1.bf16.msra.mxu0 %v1009
        %1148 = vmatprep.subr.bf16.mxu0 0
        %1149 = vmatpush1.bf16.msra.mxu0 %v1008
        %1150 = vmatprep.subr.bf16.mxu0 0
        %1151 = vmatpush1.bf16.msra.mxu0 %v1007
        %1152 = vmatprep.subr.bf16.mxu0 0
        %1153 = vmatpush1.bf16.msra.mxu0 %v1006
        %1154 = vmatprep.subr.bf16.mxu0 0
        %1155 = vmatpush1.bf16.msra.mxu0 %v1005
        %1156 = vmatprep.subr.bf16.mxu0 0
        %1157 = vmatpush1.bf16.msra.mxu0 %v1004
        %1158 = vmatprep.subr.bf16.mxu0 0
        %1159 = vmatpush1.bf16.msra.mxu0 %v1003
        %1160 = vmatprep.subr.bf16.mxu0 0
        %1161 = vmatpush1.bf16.msra.mxu0 %v1002
        %1162 = vmatprep.subr.bf16.mxu0 0
        %1163 = vmatpush2.bf16.msra.mxu0 %v1017
        %1164 = vmatprep.subr.bf16.mxu0 0
        %1165 = vmatpush2.bf16.msra.mxu0 %v1016
        %1166 = vmatprep.subr.bf16.mxu0 0
        %1167 = vmatpush2.bf16.msra.mxu0 %v1015
        %1168 = vmatprep.subr.bf16.mxu0 0
        %1169 = vmatpush2.bf16.msra.mxu0 %v1014
        %1170 = vmatprep.subr.bf16.mxu0 0
        %1171 = vmatpush2.bf16.msra.mxu0 %v1013
        %1172 = vmatprep.subr.bf16.mxu0 0
        %1173 = vmatpush2.bf16.msra.mxu0 %v1012
        %1174 = vmatprep.subr.bf16.mxu0 0
        %1175 = vmatpush2.bf16.msra.mxu0 %v1011
        %1176 = vmatprep.subr.bf16.mxu0 0
        %1177 = vmatpush2.bf16.msra.mxu0 %v1010
        %1178 = vmatprep.mubr.bf16.mxu0 %v770
        %1179 = vmatmul.mubr.bf16.gmra.mxu0 %v769
        %v1180 = vpop.f32.mrf.mxu0
        %v1181 = vadd.f32 %v1141, %v1180
        %v1182 = vpop.f32.mrf.mxu0
        %v1183 = vpop.f32.mrf.mxu0
        %v1184 = vpop.f32.mrf.mxu0
        %1185 = vdwg.mxu0
        %1186 = vst [vmem:[%s15] sm:$0xff] %v1181
      $region84: #{bert_image_forward.3} parent=79 // pred_fallthru
        _
      %v1187 = vld [vmem:[%s15] sm:$0xff]
      %v1188 = vld [vmem:[%s614] sm:$0x1]
      %v1189 = vld [vmem:[%s617] sm:$0x1]
      %1190 = vadd.xlane.f32.xlu0 %v1187
      %v1191 = vpop.xlane.xlu0 %1190
      %v1192 = vrcp.pop 128.0
      %v1193 = vmul.f32 %v1191, %v1192
      %v1194 = vsub.f32 %v1187, %v1193
      %v1195 = vmul.f32 %v1194, %v1194
      %1196 = vadd.xlane.f32.xlu0 %v1195
      %v1197 = vpop.xlane.xlu0 %1196
      %v1198 = vmul.f32 %v1197, %v1192
      %v1199 = vadd.f32 %v1198, 1e-06
      %v1200 = vrsqrt.pop %v1199
      %v1201 = vmul.f32 %v1194, %v1200
      %v1203 = vlaneseq
      %v1204 = vshrl.u32 %v1203, 7
      %v1205 = vsub.s32 0, %v1204
      %v1206 = vrot.slane %v1188, %v1205
      %v1208 = vmul.f32 %v1201, %v1206
      %v1210 = vlaneseq
      %v1211 = vshrl.u32 %v1210, 7
      %v1212 = vsub.s32 0, %v1211
      %v1213 = vrot.slane %v1189, %v1212
      %v1215 = vadd.f32 %v1208, %v1213
      %v1216 = vld [vmem:[%s622] sm:$0xff]
      %v1217 = vld [vmem:[%s622 + $0x8] sm:$0xf]
      %v1218 = vld [vmem:[%s622 + $0xc] sm:$0xff]
      %v1219 = vld [vmem:[%s622 + $0x14] sm:$0xf]
      %v1220 = vld [vmem:[%s622 + $0x18] sm:$0xff]
      %v1221 = vld [vmem:[%s622 + $0x20] sm:$0xf]
      %v1222 = vld [vmem:[%s622 + $0x24] sm:$0xff]
      %v1223 = vld [vmem:[%s622 + $0x2c] sm:$0xf]
      %v1224 = vld [vmem:[%s622 + $0x30] sm:$0xff]
      %v1225 = vld [vmem:[%s622 + $0x38] sm:$0xf]
      %v1226 = vld [vmem:[%s622 + $0x3c] sm:$0xff]
      %v1227 = vld [vmem:[%s622 + $0x44] sm:$0xf]
      %v1228 = vld [vmem:[%s622 + $0x48] sm:$0xff]
      %v1229 = vld [vmem:[%s622 + $0x50] sm:$0xf]
      %v1230 = vld [vmem:[%s622 + $0x54] sm:$0xff]
      %v1231 = vld [vmem:[%s622 + $0x5c] sm:$0xf]
      %v1232 = vld [vmem:[%s622 + $0x60] sm:$0xff]
      %v1233 = vld [vmem:[%s622 + $0x68] sm:$0xf]
      %v1234 = vld [vmem:[%s622 + $0x6c] sm:$0xff]
      %v1235 = vld [vmem:[%s622 + $0x74] sm:$0xf]
      %v1236 = vld [vmem:[%s622 + $0x78] sm:$0xff]
      %v1237 = vld [vmem:[%s622 + $0x80] sm:$0xf]
      %v1238 = vld [vmem:[%s622 + $0x84] sm:$0xff]
      %v1239 = vld [vmem:[%s622 + $0x8c] sm:$0xf]
      %v1240 = vld [vmem:[%s622 + $0x90] sm:$0xff]
      %v1241 = vld [vmem:[%s622 + $0x98] sm:$0xf]
      %v1242 = vld [vmem:[%s622 + $0x9c] sm:$0xff]
      %v1243 = vld [vmem:[%s622 + $0xa4] sm:$0xf]
      %v1244 = vld [vmem:[%s622 + $0xa8] sm:$0xff]
      %v1245 = vld [vmem:[%s622 + $0xb0] sm:$0xf]
      %v1246 = vld [vmem:[%s622 + $0xb4] sm:$0xff]
      %v1247 = vld [vmem:[%s622 + $0xbc] sm:$0xf]
      %v1248 = vld [vmem:[%s626] sm:$0x7]
      %v1249 = vld [vmem:[%s631] sm:$0xf]
      %v1250 = vld [vmem:[%s631 + $0x4] sm:$0xf]
      %v1251 = vld [vmem:[%s631 + $0x8] sm:$0xf]
      %v1252 = vld [vmem:[%s631 + $0xc] sm:$0xf]
      %v1253 = vld [vmem:[%s631 + $0x10] sm:$0xf]
      %v1254 = vld [vmem:[%s631 + $0x14] sm:$0xf]
      %v1255 = vld [vmem:[%s631 + $0x18] sm:$0xf]
      %v1256 = vld [vmem:[%s631 + $0x1c] sm:$0xf]
      %v1257 = vld [vmem:[%s631 + $0x20] sm:$0xf]
      %v1258 = vld [vmem:[%s631 + $0x24] sm:$0xf]
      %v1259 = vld [vmem:[%s631 + $0x28] sm:$0xf]
      %v1260 = vld [vmem:[%s631 + $0x2c] sm:$0xf]
      %v1261 = vld [vmem:[%s631 + $0x30] sm:$0xf]
      %v1262 = vld [vmem:[%s631 + $0x34] sm:$0xf]
      %v1263 = vld [vmem:[%s631 + $0x38] sm:$0xf]
      %v1264 = vld [vmem:[%s631 + $0x3c] sm:$0xf]
      %v1265 = vpack.c.bf16 %v1215, %v1215
      %v1267 = vlaneseq
      %v1268 = vshrl.u32 %v1267, 7
      %v1269 = vsub.s32 0, %v1268
      %v1270 = vrot.slane %v1248, %v1269
      %v1271 = vlaneseq
      %v1272 = vshrl.u32 %v1271, 7
      %v1273 = vsub.s32 1, %v1272
      %v1274 = vrot.slane %v1248, %v1273
      %v1275 = vlaneseq
      %v1276 = vshrl.u32 %v1275, 7
      %v1277 = vsub.s32 2, %v1276
      %v1278 = vrot.slane %v1248, %v1277
      %v1314 = vunpack.c.l.b16 %v1216
      %v1315 = vunpack.c.h.b16 %v1216
      %v1316 = vunpack.c.l.b16 %v1217
      %v1317 = vunpack.c.l.b16 %v1218
      %v1318 = vunpack.c.h.b16 %v1218
      %v1319 = vunpack.c.l.b16 %v1219
      %v1320 = vunpack.c.l.b16 %v1220
      %v1321 = vunpack.c.h.b16 %v1220
      %v1322 = vunpack.c.l.b16 %v1221
      %v1323 = vunpack.c.l.b16 %v1222
      %v1324 = vunpack.c.h.b16 %v1222
      %v1325 = vunpack.c.l.b16 %v1223
      %v1326 = vunpack.c.l.b16 %v1224
      %v1327 = vunpack.c.h.b16 %v1224
      %v1328 = vunpack.c.l.b16 %v1225
      %v1329 = vunpack.c.l.b16 %v1226
      %v1330 = vunpack.c.h.b16 %v1226
      %v1331 = vunpack.c.l.b16 %v1227
      %v1332 = vunpack.c.l.b16 %v1228
      %v1333 = vunpack.c.h.b16 %v1228
      %v1334 = vunpack.c.l.b16 %v1229
      %v1335 = vunpack.c.l.b16 %v1230
      %v1336 = vunpack.c.h.b16 %v1230
      %v1337 = vunpack.c.l.b16 %v1231
      %v1338 = vunpack.c.l.b16 %v1232
      %v1339 = vunpack.c.h.b16 %v1232
      %v1340 = vunpack.c.l.b16 %v1233
      %v1341 = vunpack.c.l.b16 %v1234
      %v1342 = vunpack.c.h.b16 %v1234
      %v1343 = vunpack.c.l.b16 %v1235
      %v1344 = vunpack.c.l.b16 %v1236
      %v1345 = vunpack.c.h.b16 %v1236
      %v1346 = vunpack.c.l.b16 %v1237
      %v1347 = vunpack.c.l.b16 %v1238
      %v1348 = vunpack.c.h.b16 %v1238
      %v1349 = vunpack.c.l.b16 %v1239
      %v1350 = vunpack.c.l.b16 %v1240
      %v1351 = vunpack.c.h.b16 %v1240
      %v1352 = vunpack.c.l.b16 %v1241
      %v1353 = vunpack.c.l.b16 %v1242
      %v1354 = vunpack.c.h.b16 %v1242
      %v1355 = vunpack.c.l.b16 %v1243
      %v1356 = vunpack.c.l.b16 %v1244
      %v1357 = vunpack.c.h.b16 %v1244
      %v1358 = vunpack.c.l.b16 %v1245
      %v1359 = vunpack.c.l.b16 %v1246
      %v1360 = vunpack.c.h.b16 %v1246
      %v1361 = vunpack.c.l.b16 %v1247
      %v1362 = vpack.c.b16 %v1317, %v1314
      %v1363 = vpack.c.b16 %v1318, %v1315
      %v1364 = vpack.c.b16 %v1319, %v1316
      %v1365 = vpack.c.b16 %v1323, %v1320
      %v1366 = vpack.c.b16 %v1324, %v1321
      %v1367 = vpack.c.b16 %v1325, %v1322
      %v1368 = vpack.c.b16 %v1329, %v1326
      %v1369 = vpack.c.b16 %v1330, %v1327
      %v1370 = vpack.c.b16 %v1331, %v1328
      %v1371 = vpack.c.b16 %v1335, %v1332
      %v1372 = vpack.c.b16 %v1336, %v1333
      %v1373 = vpack.c.b16 %v1337, %v1334
      %v1374 = vpack.c.b16 %v1341, %v1338
      %v1375 = vpack.c.b16 %v1342, %v1339
      %v1376 = vpack.c.b16 %v1343, %v1340
      %v1377 = vpack.c.b16 %v1347, %v1344
      %v1378 = vpack.c.b16 %v1348, %v1345
      %v1379 = vpack.c.b16 %v1349, %v1346
      %v1380 = vpack.c.b16 %v1353, %v1350
      %v1381 = vpack.c.b16 %v1354, %v1351
      %v1382 = vpack.c.b16 %v1355, %v1352
      %v1383 = vpack.c.b16 %v1359, %v1356
      %v1384 = vpack.c.b16 %v1360, %v1357
      %v1385 = vpack.c.b16 %v1361, %v1358
      %1410 = vmatprep.subr.bf16.mxu0 %v1384
      %1411 = vmatpush1.bf16.msra.mxu0 %v1383
      %1412 = vmatprep.subr.bf16.mxu0 %v1381
      %1413 = vmatpush1.bf16.msra.mxu0 %v1380
      %1414 = vmatprep.subr.bf16.mxu0 %v1378
      %1415 = vmatpush1.bf16.msra.mxu0 %v1377
      %1416 = vmatprep.subr.bf16.mxu0 %v1375
      %1417 = vmatpush1.bf16.msra.mxu0 %v1374
      %1418 = vmatprep.subr.bf16.mxu0 %v1372
      %1419 = vmatpush1.bf16.msra.mxu0 %v1371
      %1420 = vmatprep.subr.bf16.mxu0 %v1369
      %1421 = vmatpush1.bf16.msra.mxu0 %v1368
      %1422 = vmatprep.subr.bf16.mxu0 %v1366
      %1423 = vmatpush1.bf16.msra.mxu0 %v1365
      %1424 = vmatprep.subr.bf16.mxu0 %v1363
      %1425 = vmatpush1.bf16.msra.mxu0 %v1362
      %1426 = vmatprep.subr.bf16.mxu0 0
      %1427 = vmatpush2.bf16.msra.mxu0 0
      %1428 = vmatprep.subr.bf16.mxu0 0
      %1429 = vmatpush2.bf16.msra.mxu0 0
      %1430 = vmatprep.subr.bf16.mxu0 0
      %1431 = vmatpush2.bf16.msra.mxu0 0
      %1432 = vmatprep.subr.bf16.mxu0 0
      %1433 = vmatpush2.bf16.msra.mxu0 0
      %1434 = vmatprep.subr.bf16.mxu0 0
      %1435 = vmatpush2.bf16.msra.mxu0 0
      %1436 = vmatprep.subr.bf16.mxu0 0
      %1437 = vmatpush2.bf16.msra.mxu0 0
      %1438 = vmatprep.subr.bf16.mxu0 0
      %1439 = vmatpush2.bf16.msra.mxu0 0
      %1440 = vmatprep.subr.bf16.mxu0 0
      %1441 = vmatpush2.bf16.msra.mxu0 0
      %1442 = vmatprep.mubr.bf16.mxu0 0
      %1443 = vmatmul.mubr.bf16.gmra.mxu0 %v1265
      %v1444 = vpop.f32.mrf.mxu0
      %v1445 = vadd.f32 %v1270, %v1444
      %v1446 = vpop.f32.mrf.mxu0
      %v1447 = vadd.f32 %v1274, %v1446
      %v1448 = vpop.f32.mrf.mxu0
      %v1449 = vpop.f32.mrf.mxu0
      %1450 = vdwg.mxu0
      %1451 = vmatprep.subr.bf16.mxu0 0
      %1452 = vmatpush1.bf16.msra.mxu0 %v1385
      %1453 = vmatprep.subr.bf16.mxu0 0
      %1454 = vmatpush1.bf16.msra.mxu0 %v1382
      %1455 = vmatprep.subr.bf16.mxu0 0
      %1456 = vmatpush1.bf16.msra.mxu0 %v1379
      %1457 = vmatprep.subr.bf16.mxu0 0
      %1458 = vmatpush1.bf16.msra.mxu0 %v1376
      %1459 = vmatprep.subr.bf16.mxu0 0
      %1460 = vmatpush1.bf16.msra.mxu0 %v1373
      %1461 = vmatprep.subr.bf16.mxu0 0
      %1462 = vmatpush1.bf16.msra.mxu0 %v1370
      %1463 = vmatprep.subr.bf16.mxu0 0
      %1464 = vmatpush1.bf16.msra.mxu0 %v1367
      %1465 = vmatprep.subr.bf16.mxu0 0
      %1466 = vmatpush1.bf16.msra.mxu0 %v1364
      %1467 = vmatprep.subr.bf16.mxu0 0
      %1468 = vmatpush2.bf16.msra.mxu0 0
      %1469 = vmatprep.subr.bf16.mxu0 0
      %1470 = vmatpush2.bf16.msra.mxu0 0
      %1471 = vmatprep.subr.bf16.mxu0 0
      %1472 = vmatpush2.bf16.msra.mxu0 0
      %1473 = vmatprep.subr.bf16.mxu0 0
      %1474 = vmatpush2.bf16.msra.mxu0 0
      %1475 = vmatprep.subr.bf16.mxu0 0
      %1476 = vmatpush2.bf16.msra.mxu0 0
      %1477 = vmatprep.subr.bf16.mxu0 0
      %1478 = vmatpush2.bf16.msra.mxu0 0
      %1479 = vmatprep.subr.bf16.mxu0 0
      %1480 = vmatpush2.bf16.msra.mxu0 0
      %1481 = vmatprep.subr.bf16.mxu0 0
      %1482 = vmatpush2.bf16.msra.mxu0 0
      %1483 = vmatprep.mubr.bf16.mxu0 0
      %1484 = vmatmul.mubr.bf16.gmra.mxu0 %v1265
      %v1485 = vpop.f32.mrf.mxu0
      %v1486 = vadd.f32 %v1278, %v1485
      %v1487 = vpop.f32.mrf.mxu0
      %v1488 = vpop.f32.mrf.mxu0
      %v1489 = vpop.f32.mrf.mxu0
      %1490 = vdwg.mxu0
      %v1492 = vcombine.high %v1445, %v1445
      %v1495 = vcombine.high %v1447, %v1447
      %v1498 = vcombine.high %v1486, %v1486
      %v1500 = vpack.c.bf16 %v1445, %v1445
      %v1501 = vpack.c.bf16 %v1492, %v1492
      %v1502 = vpack.c.bf16 %v1447, %v1447
      %v1503 = vpack.c.bf16 %v1495, %v1495
      %vm1504 = vcmask 261120
      %v1506 = vsel %vm1504, %v1500, 0
      %v1509 = vsel %vm1504, %v1502, 0
      %1511 = vmatprep.subr.bf16.mxu0 0
      %1512 = vmatpush1.bf16.xpose.msra.mxu0 0
      %1513 = vmatprep.subr.bf16.mxu0 0
      %1514 = vmatpush1.bf16.xpose.msra.mxu0 0
      %1515 = vmatprep.subr.bf16.mxu0 0
      %1516 = vmatpush1.bf16.xpose.msra.mxu0 0
      %1517 = vmatprep.subr.bf16.mxu0 0
      %1518 = vmatpush1.bf16.xpose.msra.mxu0 0
      %1519 = vmatprep.subr.bf16.mxu0 0
      %1520 = vmatpush1.bf16.xpose.msra.mxu0 0
      %1521 = vmatprep.subr.bf16.mxu0 0
      %1522 = vmatpush1.bf16.xpose.msra.mxu0 0
      %1523 = vmatprep.subr.bf16.mxu0 0
      %1524 = vmatpush1.bf16.xpose.msra.mxu0 0
      %1525 = vmatprep.subr.bf16.mxu0 0
      %1526 = vmatpush1.bf16.xpose.msra.mxu0 %v1509
      %1527 = vmatprep.subr.bf16.mxu0 0
      %1528 = vmatpush2.bf16.xpose.msra.mxu0 0
      %1529 = vmatprep.subr.bf16.mxu0 0
      %1530 = vmatpush2.bf16.xpose.msra.mxu0 0
      %1531 = vmatprep.subr.bf16.mxu0 0
      %1532 = vmatpush2.bf16.xpose.msra.mxu0 0
      %1533 = vmatprep.subr.bf16.mxu0 0
      %1534 = vmatpush2.bf16.xpose.msra.mxu0 0
      %1535 = vmatprep.subr.bf16.mxu0 0
      %1536 = vmatpush2.bf16.xpose.msra.mxu0 0
      %1537 = vmatprep.subr.bf16.mxu0 0
      %1538 = vmatpush2.bf16.xpose.msra.mxu0 0
      %1539 = vmatprep.subr.bf16.mxu0 0
      %1540 = vmatpush2.bf16.xpose.msra.mxu0 0
      %1541 = vmatprep.subr.bf16.mxu0 0
      %1542 = vmatpush2.bf16.xpose.msra.mxu0 0
      %1543 = vmatprep.mubr.bf16.mxu0 0
      %1544 = vmatmul.mubr.bf16.gmra.mxu0 %v1506
      %v1545 = vpop.f32.mrf.mxu0
      %v1546 = vadd.f32 0.0, %v1545
      %v1547 = vpop.f32.mrf.mxu0
      %v1548 = vpop.f32.mrf.mxu0
      %v1549 = vpop.f32.mrf.mxu0
      %1550 = vdwg.mxu0
      %v1552 = vsel %vm1504, %v1501, 0
      %v1555 = vsel %vm1504, %v1503, 0
      %1557 = vmatprep.subr.bf16.mxu0 0
      %1558 = vmatpush1.bf16.xpose.msra.mxu0 0
      %1559 = vmatprep.subr.bf16.mxu0 0
      %1560 = vmatpush1.bf16.xpose.msra.mxu0 0
      %1561 = vmatprep.subr.bf16.mxu0 0
      %1562 = vmatpush1.bf16.xpose.msra.mxu0 0
      %1563 = vmatprep.subr.bf16.mxu0 0
      %1564 = vmatpush1.bf16.xpose.msra.mxu0 0
      %1565 = vmatprep.subr.bf16.mxu0 0
      %1566 = vmatpush1.bf16.xpose.msra.mxu0 0
      %1567 = vmatprep.subr.bf16.mxu0 0
      %1568 = vmatpush1.bf16.xpose.msra.mxu0 0
      %1569 = vmatprep.subr.bf16.mxu0 0
      %1570 = vmatpush1.bf16.xpose.msra.mxu0 0
      %1571 = vmatprep.subr.bf16.mxu0 0
      %1572 = vmatpush1.bf16.xpose.msra.mxu0 %v1555
      %1573 = vmatprep.subr.bf16.mxu0 0
      %1574 = vmatpush2.bf16.xpose.msra.mxu0 0
      %1575 = vmatprep.subr.bf16.mxu0 0
      %1576 = vmatpush2.bf16.xpose.msra.mxu0 0
      %1577 = vmatprep.subr.bf16.mxu0 0
      %1578 = vmatpush2.bf16.xpose.msra.mxu0 0
      %1579 = vmatprep.subr.bf16.mxu0 0
      %1580 = vmatpush2.bf16.xpose.msra.mxu0 0
      %1581 = vmatprep.subr.bf16.mxu0 0
      %1582 = vmatpush2.bf16.xpose.msra.mxu0 0
      %1583 = vmatprep.subr.bf16.mxu0 0
      %1584 = vmatpush2.bf16.xpose.msra.mxu0 0
      %1585 = vmatprep.subr.bf16.mxu0 0
      %1586 = vmatpush2.bf16.xpose.msra.mxu0 0
      %1587 = vmatprep.subr.bf16.mxu0 0
      %1588 = vmatpush2.bf16.xpose.msra.mxu0 0
      %1589 = vmatprep.mubr.bf16.mxu0 0
      %1590 = vmatmul.mubr.bf16.gmra.mxu0 %v1552
      %v1591 = vpop.f32.mrf.mxu0
      %v1592 = vadd.f32 0.0, %v1591
      %v1593 = vpop.f32.mrf.mxu0
      %v1594 = vpop.f32.mrf.mxu0
      %v1595 = vpop.f32.mrf.mxu0
      %1596 = vdwg.mxu0
      %v1597 = vmul.f32 %v1546, 0.17677669
      %v1598 = vmul.f32 %v1592, 0.17677669
      %vm1599 = vcmask 27648
      %v1600 = vsel %vm1599, %v1597, -inf
      %1601 = vmax.xlane.f32.xlu0 %v1600
      %v1602 = vpop.xlane.xlu0 %1601
      %v1603 = vsel %vm1599, %v1598, -inf
      %1604 = vmax.xlane.f32.xlu0 %v1603
      %v1605 = vpop.xlane.xlu0 %1604
      %v1606 = vsub.f32 %v1597, %v1602
      %v1607 = vsub.f32 %v1598, %v1605
      %v1608 = vmul.f32 %v1606, 1.442695
      %v1609 = vpow.pop %v1608
      %v1610 = vmul.f32 %v1607, 1.442695
      %v1611 = vpow.pop %v1610
      %v1612 = vsel %vm1599, %v1609, 0.0
      %1613 = vadd.xlane.f32.xlu0 %v1612
      %v1614 = vpop.xlane.xlu0 %1613
      %v1615 = vsel %vm1599, %v1611, 0.0
      %1616 = vadd.xlane.f32.xlu0 %v1615
      %v1617 = vpop.xlane.xlu0 %1616
      %v1618 = vrcp.pop %v1614
      %v1619 = vrcp.pop %v1617
      %v1620 = vmul.f32 %v1609, %v1618
      %v1621 = vmul.f32 %v1611, %v1619
      %v1622 = vpack.c.bf16 %v1620, %v1620
      %v1623 = vpack.c.bf16 %v1621, %v1621
      %v1624 = vpack.c.bf16 %v1486, %v1486
      %v1625 = vpack.c.bf16 %v1498, %v1498
      %vm1626 = vcmask 31744
      %v1628 = vsel %vm1626, %v1622, 0
      %vm1630 = vcmask 1041408
      %v1632 = vsel %vm1630, %v1624, 0
      %1634 = vmatprep.subr.bf16.mxu0 0
      %1635 = vmatpush1.bf16.msra.mxu0 0
      %1636 = vmatprep.subr.bf16.mxu0 0
      %1637 = vmatpush1.bf16.msra.mxu0 0
      %1638 = vmatprep.subr.bf16.mxu0 0
      %1639 = vmatpush1.bf16.msra.mxu0 0
      %1640 = vmatprep.subr.bf16.mxu0 0
      %1641 = vmatpush1.bf16.msra.mxu0 0
      %1642 = vmatprep.subr.bf16.mxu0 0
      %1643 = vmatpush1.bf16.msra.mxu0 0
      %1644 = vmatprep.subr.bf16.mxu0 0
      %1645 = vmatpush1.bf16.msra.mxu0 0
      %1646 = vmatprep.subr.bf16.mxu0 0
      %1647 = vmatpush1.bf16.msra.mxu0 0
      %1648 = vmatprep.subr.bf16.mxu0 0
      %1649 = vmatpush1.bf16.msra.mxu0 %v1632
      %1650 = vmatprep.subr.bf16.mxu0 0
      %1651 = vmatpush2.bf16.msra.mxu0 0
      %1652 = vmatprep.subr.bf16.mxu0 0
      %1653 = vmatpush2.bf16.msra.mxu0 0
      %1654 = vmatprep.subr.bf16.mxu0 0
      %1655 = vmatpush2.bf16.msra.mxu0 0
      %1656 = vmatprep.subr.bf16.mxu0 0
      %1657 = vmatpush2.bf16.msra.mxu0 0
      %1658 = vmatprep.subr.bf16.mxu0 0
      %1659 = vmatpush2.bf16.msra.mxu0 0
      %1660 = vmatprep.subr.bf16.mxu0 0
      %1661 = vmatpush2.bf16.msra.mxu0 0
      %1662 = vmatprep.subr.bf16.mxu0 0
      %1663 = vmatpush2.bf16.msra.mxu0 0
      %1664 = vmatprep.subr.bf16.mxu0 0
      %1665 = vmatpush2.bf16.msra.mxu0 0
      %1666 = vmatprep.mubr.bf16.mxu0 0
      %1667 = vmatmul.mubr.bf16.gmra.mxu0 %v1628
      %v1668 = vpop.f32.mrf.mxu0
      %v1669 = vadd.f32 0.0, %v1668
      %v1670 = vpop.f32.mrf.mxu0
      %v1671 = vpop.f32.mrf.mxu0
      %v1672 = vpop.f32.mrf.mxu0
      %1673 = vdwg.mxu0
      %v1675 = vsel %vm1626, %v1623, 0
      %v1678 = vsel %vm1630, %v1625, 0
      %1680 = vmatprep.subr.bf16.mxu0 0
      %1681 = vmatpush1.bf16.msra.mxu0 0
      %1682 = vmatprep.subr.bf16.mxu0 0
      %1683 = vmatpush1.bf16.msra.mxu0 0
      %1684 = vmatprep.subr.bf16.mxu0 0
      %1685 = vmatpush1.bf16.msra.mxu0 0
      %1686 = vmatprep.subr.bf16.mxu0 0
      %1687 = vmatpush1.bf16.msra.mxu0 0
      %1688 = vmatprep.subr.bf16.mxu0 0
      %1689 = vmatpush1.bf16.msra.mxu0 0
      %1690 = vmatprep.subr.bf16.mxu0 0
      %1691 = vmatpush1.bf16.msra.mxu0 0
      %1692 = vmatprep.subr.bf16.mxu0 0
      %1693 = vmatpush1.bf16.msra.mxu0 0
      %1694 = vmatprep.subr.bf16.mxu0 0
      %1695 = vmatpush1.bf16.msra.mxu0 %v1678
      %1696 = vmatprep.subr.bf16.mxu0 0
      %1697 = vmatpush2.bf16.msra.mxu0 0
      %1698 = vmatprep.subr.bf16.mxu0 0
      %1699 = vmatpush2.bf16.msra.mxu0 0
      %1700 = vmatprep.subr.bf16.mxu0 0
      %1701 = vmatpush2.bf16.msra.mxu0 0
      %1702 = vmatprep.subr.bf16.mxu0 0
      %1703 = vmatpush2.bf16.msra.mxu0 0
      %1704 = vmatprep.subr.bf16.mxu0 0
      %1705 = vmatpush2.bf16.msra.mxu0 0
      %1706 = vmatprep.subr.bf16.mxu0 0
      %1707 = vmatpush2.bf16.msra.mxu0 0
      %1708 = vmatprep.subr.bf16.mxu0 0
      %1709 = vmatpush2.bf16.msra.mxu0 0
      %1710 = vmatprep.subr.bf16.mxu0 0
      %1711 = vmatpush2.bf16.msra.mxu0 0
      %1712 = vmatprep.mubr.bf16.mxu0 0
      %1713 = vmatmul.mubr.bf16.gmra.mxu0 %v1675
      %v1714 = vpop.f32.mrf.mxu0
      %v1715 = vadd.f32 0.0, %v1714
      %v1716 = vpop.f32.mrf.mxu0
      %v1717 = vpop.f32.mrf.mxu0
      %v1718 = vpop.f32.mrf.mxu0
      %1719 = vdwg.mxu0
      %v1722 = vcombine.low %v1669, %v1715
      %v1724 = vpack.c.bf16 %v1722, %v1722
      %1726 = vrot.lane.b32.xlu0 %v1500, 96
      %v1727 = vpop.permute.xlu0 %1726
      %1729 = vrot.lane.b32.xlu0 %v1502, 96
      %v1730 = vpop.permute.xlu0 %1729
      %v1732 = vsel %vm1504, %v1727, 0
      %v1735 = vsel %vm1504, %v1730, 0
      %1737 = vmatprep.subr.bf16.mxu0 0
      %1738 = vmatpush1.bf16.xpose.msra.mxu0 0
      %1739 = vmatprep.subr.bf16.mxu0 0
      %1740 = vmatpush1.bf16.xpose.msra.mxu0 0
      %1741 = vmatprep.subr.bf16.mxu0 0
      %1742 = vmatpush1.bf16.xpose.msra.mxu0 0
      %1743 = vmatprep.subr.bf16.mxu0 0
      %1744 = vmatpush1.bf16.xpose.msra.mxu0 0
      %1745 = vmatprep.subr.bf16.mxu0 0
      %1746 = vmatpush1.bf16.xpose.msra.mxu0 0
      %1747 = vmatprep.subr.bf16.mxu0 0
      %1748 = vmatpush1.bf16.xpose.msra.mxu0 0
      %1749 = vmatprep.subr.bf16.mxu0 0
      %1750 = vmatpush1.bf16.xpose.msra.mxu0 0
      %1751 = vmatprep.subr.bf16.mxu0 0
      %1752 = vmatpush1.bf16.xpose.msra.mxu0 %v1735
      %1753 = vmatprep.subr.bf16.mxu0 0
      %1754 = vmatpush2.bf16.xpose.msra.mxu0 0
      %1755 = vmatprep.subr.bf16.mxu0 0
      %1756 = vmatpush2.bf16.xpose.msra.mxu0 0
      %1757 = vmatprep.subr.bf16.mxu0 0
      %1758 = vmatpush2.bf16.xpose.msra.mxu0 0
      %1759 = vmatprep.subr.bf16.mxu0 0
      %1760 = vmatpush2.bf16.xpose.msra.mxu0 0
      %1761 = vmatprep.subr.bf16.mxu0 0
      %1762 = vmatpush2.bf16.xpose.msra.mxu0 0
      %1763 = vmatprep.subr.bf16.mxu0 0
      %1764 = vmatpush2.bf16.xpose.msra.mxu0 0
      %1765 = vmatprep.subr.bf16.mxu0 0
      %1766 = vmatpush2.bf16.xpose.msra.mxu0 0
      %1767 = vmatprep.subr.bf16.mxu0 0
      %1768 = vmatpush2.bf16.xpose.msra.mxu0 0
      %1769 = vmatprep.mubr.bf16.mxu0 0
      %1770 = vmatmul.mubr.bf16.gmra.mxu0 %v1732
      %v1771 = vpop.f32.mrf.mxu0
      %v1772 = vadd.f32 0.0, %v1771
      %v1773 = vpop.f32.mrf.mxu0
      %v1774 = vpop.f32.mrf.mxu0
      %v1775 = vpop.f32.mrf.mxu0
      %1776 = vdwg.mxu0
      %1778 = vrot.lane.b32.xlu0 %v1501, 96
      %v1779 = vpop.permute.xlu0 %1778
      %1781 = vrot.lane.b32.xlu0 %v1503, 96
      %v1782 = vpop.permute.xlu0 %1781
      %v1784 = vsel %vm1504, %v1779, 0
      %v1787 = vsel %vm1504, %v1782, 0
      %1789 = vmatprep.subr.bf16.mxu0 0
      %1790 = vmatpush1.bf16.xpose.msra.mxu0 0
      %1791 = vmatprep.subr.bf16.mxu0 0
      %1792 = vmatpush1.bf16.xpose.msra.mxu0 0
      %1793 = vmatprep.subr.bf16.mxu0 0
      %1794 = vmatpush1.bf16.xpose.msra.mxu0 0
      %1795 = vmatprep.subr.bf16.mxu0 0
      %1796 = vmatpush1.bf16.xpose.msra.mxu0 0
      %1797 = vmatprep.subr.bf16.mxu0 0
      %1798 = vmatpush1.bf16.xpose.msra.mxu0 0
      %1799 = vmatprep.subr.bf16.mxu0 0
      %1800 = vmatpush1.bf16.xpose.msra.mxu0 0
      %1801 = vmatprep.subr.bf16.mxu0 0
      %1802 = vmatpush1.bf16.xpose.msra.mxu0 0
      %1803 = vmatprep.subr.bf16.mxu0 0
      %1804 = vmatpush1.bf16.xpose.msra.mxu0 %v1787
      %1805 = vmatprep.subr.bf16.mxu0 0
      %1806 = vmatpush2.bf16.xpose.msra.mxu0 0
      %1807 = vmatprep.subr.bf16.mxu0 0
      %1808 = vmatpush2.bf16.xpose.msra.mxu0 0
      %1809 = vmatprep.subr.bf16.mxu0 0
      %1810 = vmatpush2.bf16.xpose.msra.mxu0 0
      %1811 = vmatprep.subr.bf16.mxu0 0
      %1812 = vmatpush2.bf16.xpose.msra.mxu0 0
      %1813 = vmatprep.subr.bf16.mxu0 0
      %1814 = vmatpush2.bf16.xpose.msra.mxu0 0
      %1815 = vmatprep.subr.bf16.mxu0 0
      %1816 = vmatpush2.bf16.xpose.msra.mxu0 0
      %1817 = vmatprep.subr.bf16.mxu0 0
      %1818 = vmatpush2.bf16.xpose.msra.mxu0 0
      %1819 = vmatprep.subr.bf16.mxu0 0
      %1820 = vmatpush2.bf16.xpose.msra.mxu0 0
      %1821 = vmatprep.mubr.bf16.mxu0 0
      %1822 = vmatmul.mubr.bf16.gmra.mxu0 %v1784
      %v1823 = vpop.f32.mrf.mxu0
      %v1824 = vadd.f32 0.0, %v1823
      %v1825 = vpop.f32.mrf.mxu0
      %v1826 = vpop.f32.mrf.mxu0
      %v1827 = vpop.f32.mrf.mxu0
      %1828 = vdwg.mxu0
      %v1829 = vmul.f32 %v1772, 0.17677669
      %v1830 = vmul.f32 %v1824, 0.17677669
      %v1831 = vsel %vm1599, %v1829, -inf
      %1832 = vmax.xlane.f32.xlu0 %v1831
      %v1833 = vpop.xlane.xlu0 %1832
      %v1834 = vsel %vm1599, %v1830, -inf
      %1835 = vmax.xlane.f32.xlu0 %v1834
      %v1836 = vpop.xlane.xlu0 %1835
      %v1837 = vsub.f32 %v1829, %v1833
      %v1838 = vsub.f32 %v1830, %v1836
      %v1839 = vmul.f32 %v1837, 1.442695
      %v1840 = vpow.pop %v1839
      %v1841 = vmul.f32 %v1838, 1.442695
      %v1842 = vpow.pop %v1841
      %v1843 = vsel %vm1599, %v1840, 0.0
      %1844 = vadd.xlane.f32.xlu0 %v1843
      %v1845 = vpop.xlane.xlu0 %1844
      %v1846 = vsel %vm1599, %v1842, 0.0
      %1847 = vadd.xlane.f32.xlu0 %v1846
      %v1848 = vpop.xlane.xlu0 %1847
      %v1849 = vrcp.pop %v1845
      %v1850 = vrcp.pop %v1848
      %v1851 = vmul.f32 %v1840, %v1849
      %v1852 = vmul.f32 %v1842, %v1850
      %v1853 = vpack.c.bf16 %v1851, %v1851
      %v1854 = vpack.c.bf16 %v1852, %v1852
      %1856 = vrot.lane.b32.xlu0 %v1624, 96
      %v1857 = vpop.permute.xlu0 %1856
      %v1859 = vsel %vm1626, %v1853, 0
      %v1862 = vsel %vm1630, %v1857, 0
      %1864 = vmatprep.subr.bf16.mxu0 0
      %1865 = vmatpush1.bf16.msra.mxu0 0
      %1866 = vmatprep.subr.bf16.mxu0 0
      %1867 = vmatpush1.bf16.msra.mxu0 0
      %1868 = vmatprep.subr.bf16.mxu0 0
      %1869 = vmatpush1.bf16.msra.mxu0 0
      %1870 = vmatprep.subr.bf16.mxu0 0
      %1871 = vmatpush1.bf16.msra.mxu0 0
      %1872 = vmatprep.subr.bf16.mxu0 0
      %1873 = vmatpush1.bf16.msra.mxu0 0
      %1874 = vmatprep.subr.bf16.mxu0 0
      %1875 = vmatpush1.bf16.msra.mxu0 0
      %1876 = vmatprep.subr.bf16.mxu0 0
      %1877 = vmatpush1.bf16.msra.mxu0 0
      %1878 = vmatprep.subr.bf16.mxu0 0
      %1879 = vmatpush1.bf16.msra.mxu0 %v1862
      %1880 = vmatprep.subr.bf16.mxu0 0
      %1881 = vmatpush2.bf16.msra.mxu0 0
      %1882 = vmatprep.subr.bf16.mxu0 0
      %1883 = vmatpush2.bf16.msra.mxu0 0
      %1884 = vmatprep.subr.bf16.mxu0 0
      %1885 = vmatpush2.bf16.msra.mxu0 0
      %1886 = vmatprep.subr.bf16.mxu0 0
      %1887 = vmatpush2.bf16.msra.mxu0 0
      %1888 = vmatprep.subr.bf16.mxu0 0
      %1889 = vmatpush2.bf16.msra.mxu0 0
      %1890 = vmatprep.subr.bf16.mxu0 0
      %1891 = vmatpush2.bf16.msra.mxu0 0
      %1892 = vmatprep.subr.bf16.mxu0 0
      %1893 = vmatpush2.bf16.msra.mxu0 0
      %1894 = vmatprep.subr.bf16.mxu0 0
      %1895 = vmatpush2.bf16.msra.mxu0 0
      %1896 = vmatprep.mubr.bf16.mxu0 0
      %1897 = vmatmul.mubr.bf16.gmra.mxu0 %v1859
      %v1898 = vpop.f32.mrf.mxu0
      %v1899 = vadd.f32 0.0, %v1898
      %v1900 = vpop.f32.mrf.mxu0
      %v1901 = vpop.f32.mrf.mxu0
      %v1902 = vpop.f32.mrf.mxu0
      %1903 = vdwg.mxu0
      %1905 = vrot.lane.b32.xlu0 %v1625, 96
      %v1906 = vpop.permute.xlu0 %1905
      %v1908 = vsel %vm1626, %v1854, 0
      %v1911 = vsel %vm1630, %v1906, 0
      %1913 = vmatprep.subr.bf16.mxu0 0
      %1914 = vmatpush1.bf16.msra.mxu0 0
      %1915 = vmatprep.subr.bf16.mxu0 0
      %1916 = vmatpush1.bf16.msra.mxu0 0
      %1917 = vmatprep.subr.bf16.mxu0 0
      %1918 = vmatpush1.bf16.msra.mxu0 0
      %1919 = vmatprep.subr.bf16.mxu0 0
      %1920 = vmatpush1.bf16.msra.mxu0 0
      %1921 = vmatprep.subr.bf16.mxu0 0
      %1922 = vmatpush1.bf16.msra.mxu0 0
      %1923 = vmatprep.subr.bf16.mxu0 0
      %1924 = vmatpush1.bf16.msra.mxu0 0
      %1925 = vmatprep.subr.bf16.mxu0 0
      %1926 = vmatpush1.bf16.msra.mxu0 0
      %1927 = vmatprep.subr.bf16.mxu0 0
      %1928 = vmatpush1.bf16.msra.mxu0 %v1911
      %1929 = vmatprep.subr.bf16.mxu0 0
      %1930 = vmatpush2.bf16.msra.mxu0 0
      %1931 = vmatprep.subr.bf16.mxu0 0
      %1932 = vmatpush2.bf16.msra.mxu0 0
      %1933 = vmatprep.subr.bf16.mxu0 0
      %1934 = vmatpush2.bf16.msra.mxu0 0
      %1935 = vmatprep.subr.bf16.mxu0 0
      %1936 = vmatpush2.bf16.msra.mxu0 0
      %1937 = vmatprep.subr.bf16.mxu0 0
      %1938 = vmatpush2.bf16.msra.mxu0 0
      %1939 = vmatprep.subr.bf16.mxu0 0
      %1940 = vmatpush2.bf16.msra.mxu0 0
      %1941 = vmatprep.subr.bf16.mxu0 0
      %1942 = vmatpush2.bf16.msra.mxu0 0
      %1943 = vmatprep.subr.bf16.mxu0 0
      %1944 = vmatpush2.bf16.msra.mxu0 0
      %1945 = vmatprep.mubr.bf16.mxu0 0
      %1946 = vmatmul.mubr.bf16.gmra.mxu0 %v1908
      %v1947 = vpop.f32.mrf.mxu0
      %v1948 = vadd.f32 0.0, %v1947
      %v1949 = vpop.f32.mrf.mxu0
      %v1950 = vpop.f32.mrf.mxu0
      %v1951 = vpop.f32.mrf.mxu0
      %1952 = vdwg.mxu0
      %v1955 = vcombine.low %v1899, %v1948
      %v1957 = vpack.c.bf16 %v1955, %v1955
      %v1962 = vunpack.c.l.b16 %v1253
      %v1963 = vunpack.c.l.b16 %v1254
      %v1964 = vunpack.c.l.b16 %v1255
      %v1965 = vunpack.c.l.b16 %v1256
      %v1966 = vpack.c.b16 %v1963, %v1962
      %v1967 = vpack.c.b16 %v1965, %v1964
      %v1971 = vsel %vm1504, %v1957, 0
      %1973 = vmatprep.subr.bf16.mxu0 0
      %1974 = vmatpush1.bf16.msra.mxu0 0
      %1975 = vmatprep.subr.bf16.mxu0 0
      %1976 = vmatpush1.bf16.msra.mxu0 0
      %1977 = vmatprep.subr.bf16.mxu0 0
      %1978 = vmatpush1.bf16.msra.mxu0 0
      %1979 = vmatprep.subr.bf16.mxu0 0
      %1980 = vmatpush1.bf16.msra.mxu0 0
      %1981 = vmatprep.subr.bf16.mxu0 0
      %1982 = vmatpush1.bf16.msra.mxu0 0
      %1983 = vmatprep.subr.bf16.mxu0 0
      %1984 = vmatpush1.bf16.msra.mxu0 0
      %1985 = vmatprep.subr.bf16.mxu0 0
      %1986 = vmatpush1.bf16.msra.mxu0 %v1967
      %1987 = vmatprep.subr.bf16.mxu0 0
      %1988 = vmatpush1.bf16.msra.mxu0 %v1966
      %1989 = vmatprep.subr.bf16.mxu0 0
      %1990 = vmatpush2.bf16.msra.mxu0 0
      %1991 = vmatprep.subr.bf16.mxu0 0
      %1992 = vmatpush2.bf16.msra.mxu0 0
      %1993 = vmatprep.subr.bf16.mxu0 0
      %1994 = vmatpush2.bf16.msra.mxu0 0
      %1995 = vmatprep.subr.bf16.mxu0 0
      %1996 = vmatpush2.bf16.msra.mxu0 0
      %1997 = vmatprep.subr.bf16.mxu0 0
      %1998 = vmatpush2.bf16.msra.mxu0 0
      %1999 = vmatprep.subr.bf16.mxu0 0
      %2000 = vmatpush2.bf16.msra.mxu0 0
      %2001 = vmatprep.subr.bf16.mxu0 0
      %2002 = vmatpush2.bf16.msra.mxu0 0
      %2003 = vmatprep.subr.bf16.mxu0 0
      %2004 = vmatpush2.bf16.msra.mxu0 0
      %2005 = vmatprep.mubr.bf16.mxu0 0
      %2006 = vmatmul.mubr.bf16.gmra.mxu0 %v1971
      %v2007 = vpop.f32.mrf.mxu0
      %v2008 = vadd.f32 0.0, %v2007
      %v2009 = vpop.f32.mrf.mxu0
      %v2010 = vpop.f32.mrf.mxu0
      %v2011 = vpop.f32.mrf.mxu0
      %2012 = vdwg.mxu0
      %v2017 = vunpack.c.l.b16 %v1249
      %v2018 = vunpack.c.l.b16 %v1250
      %v2019 = vunpack.c.l.b16 %v1251
      %v2020 = vunpack.c.l.b16 %v1252
      %v2021 = vpack.c.b16 %v2018, %v2017
      %v2022 = vpack.c.b16 %v2020, %v2019
      %v2026 = vsel %vm1504, %v1724, 0
      %2028 = vmatprep.subr.bf16.mxu0 0
      %2029 = vmatpush1.bf16.msra.mxu0 0
      %2030 = vmatprep.subr.bf16.mxu0 0
      %2031 = vmatpush1.bf16.msra.mxu0 0
      %2032 = vmatprep.subr.bf16.mxu0 0
      %2033 = vmatpush1.bf16.msra.mxu0 0
      %2034 = vmatprep.subr.bf16.mxu0 0
      %2035 = vmatpush1.bf16.msra.mxu0 0
      %2036 = vmatprep.subr.bf16.mxu0 0
      %2037 = vmatpush1.bf16.msra.mxu0 0
      %2038 = vmatprep.subr.bf16.mxu0 0
      %2039 = vmatpush1.bf16.msra.mxu0 0
      %2040 = vmatprep.subr.bf16.mxu0 0
      %2041 = vmatpush1.bf16.msra.mxu0 %v2022
      %2042 = vmatprep.subr.bf16.mxu0 0
      %2043 = vmatpush1.bf16.msra.mxu0 %v2021
      %2044 = vmatprep.subr.bf16.mxu0 0
      %2045 = vmatpush2.bf16.msra.mxu0 0
      %2046 = vmatprep.subr.bf16.mxu0 0
      %2047 = vmatpush2.bf16.msra.mxu0 0
      %2048 = vmatprep.subr.bf16.mxu0 0
      %2049 = vmatpush2.bf16.msra.mxu0 0
      %2050 = vmatprep.subr.bf16.mxu0 0
      %2051 = vmatpush2.bf16.msra.mxu0 0
      %2052 = vmatprep.subr.bf16.mxu0 0
      %2053 = vmatpush2.bf16.msra.mxu0 0
      %2054 = vmatprep.subr.bf16.mxu0 0
      %2055 = vmatpush2.bf16.msra.mxu0 0
      %2056 = vmatprep.subr.bf16.mxu0 0
      %2057 = vmatpush2.bf16.msra.mxu0 0
      %2058 = vmatprep.subr.bf16.mxu0 0
      %2059 = vmatpush2.bf16.msra.mxu0 0
      %2060 = vmatprep.mubr.bf16.mxu0 0
      %2061 = vmatmul.mubr.bf16.gmra.mxu0 %v2026
      %v2062 = vpop.f32.mrf.mxu0
      %v2063 = vadd.f32 %v2008, %v2062
      %v2064 = vpop.f32.mrf.mxu0
      %v2065 = vpop.f32.mrf.mxu0
      %v2066 = vpop.f32.mrf.mxu0
      %2067 = vdwg.mxu0
      %2068 = vrot.lane.b32.xlu0 %v1500, 64
      %v2069 = vpop.permute.xlu0 %2068
      %2070 = vrot.lane.b32.xlu0 %v1502, 64
      %v2071 = vpop.permute.xlu0 %2070
      %v2073 = vsel %vm1504, %v2069, 0
      %v2076 = vsel %vm1504, %v2071, 0
      %2078 = vmatprep.subr.bf16.mxu0 0
      %2079 = vmatpush1.bf16.xpose.msra.mxu0 0
      %2080 = vmatprep.subr.bf16.mxu0 0
      %2081 = vmatpush1.bf16.xpose.msra.mxu0 0
      %2082 = vmatprep.subr.bf16.mxu0 0
      %2083 = vmatpush1.bf16.xpose.msra.mxu0 0
      %2084 = vmatprep.subr.bf16.mxu0 0
      %2085 = vmatpush1.bf16.xpose.msra.mxu0 0
      %2086 = vmatprep.subr.bf16.mxu0 0
      %2087 = vmatpush1.bf16.xpose.msra.mxu0 0
      %2088 = vmatprep.subr.bf16.mxu0 0
      %2089 = vmatpush1.bf16.xpose.msra.mxu0 0
      %2090 = vmatprep.subr.bf16.mxu0 0
      %2091 = vmatpush1.bf16.xpose.msra.mxu0 0
      %2092 = vmatprep.subr.bf16.mxu0 0
      %2093 = vmatpush1.bf16.xpose.msra.mxu0 %v2076
      %2094 = vmatprep.subr.bf16.mxu0 0
      %2095 = vmatpush2.bf16.xpose.msra.mxu0 0
      %2096 = vmatprep.subr.bf16.mxu0 0
      %2097 = vmatpush2.bf16.xpose.msra.mxu0 0
      %2098 = vmatprep.subr.bf16.mxu0 0
      %2099 = vmatpush2.bf16.xpose.msra.mxu0 0
      %2100 = vmatprep.subr.bf16.mxu0 0
      %2101 = vmatpush2.bf16.xpose.msra.mxu0 0
      %2102 = vmatprep.subr.bf16.mxu0 0
      %2103 = vmatpush2.bf16.xpose.msra.mxu0 0
      %2104 = vmatprep.subr.bf16.mxu0 0
      %2105 = vmatpush2.bf16.xpose.msra.mxu0 0
      %2106 = vmatprep.subr.bf16.mxu0 0
      %2107 = vmatpush2.bf16.xpose.msra.mxu0 0
      %2108 = vmatprep.subr.bf16.mxu0 0
      %2109 = vmatpush2.bf16.xpose.msra.mxu0 0
      %2110 = vmatprep.mubr.bf16.mxu0 0
      %2111 = vmatmul.mubr.bf16.gmra.mxu0 %v2073
      %v2112 = vpop.f32.mrf.mxu0
      %v2113 = vadd.f32 0.0, %v2112
      %v2114 = vpop.f32.mrf.mxu0
      %v2115 = vpop.f32.mrf.mxu0
      %v2116 = vpop.f32.mrf.mxu0
      %2117 = vdwg.mxu0
      %2118 = vrot.lane.b32.xlu0 %v1501, 64
      %v2119 = vpop.permute.xlu0 %2118
      %2120 = vrot.lane.b32.xlu0 %v1503, 64
      %v2121 = vpop.permute.xlu0 %2120
      %v2123 = vsel %vm1504, %v2119, 0
      %v2126 = vsel %vm1504, %v2121, 0
      %2128 = vmatprep.subr.bf16.mxu0 0
      %2129 = vmatpush1.bf16.xpose.msra.mxu0 0
      %2130 = vmatprep.subr.bf16.mxu0 0
      %2131 = vmatpush1.bf16.xpose.msra.mxu0 0
      %2132 = vmatprep.subr.bf16.mxu0 0
      %2133 = vmatpush1.bf16.xpose.msra.mxu0 0
      %2134 = vmatprep.subr.bf16.mxu0 0
      %2135 = vmatpush1.bf16.xpose.msra.mxu0 0
      %2136 = vmatprep.subr.bf16.mxu0 0
      %2137 = vmatpush1.bf16.xpose.msra.mxu0 0
      %2138 = vmatprep.subr.bf16.mxu0 0
      %2139 = vmatpush1.bf16.xpose.msra.mxu0 0
      %2140 = vmatprep.subr.bf16.mxu0 0
      %2141 = vmatpush1.bf16.xpose.msra.mxu0 0
      %2142 = vmatprep.subr.bf16.mxu0 0
      %2143 = vmatpush1.bf16.xpose.msra.mxu0 %v2126
      %2144 = vmatprep.subr.bf16.mxu0 0
      %2145 = vmatpush2.bf16.xpose.msra.mxu0 0
      %2146 = vmatprep.subr.bf16.mxu0 0
      %2147 = vmatpush2.bf16.xpose.msra.mxu0 0
      %2148 = vmatprep.subr.bf16.mxu0 0
      %2149 = vmatpush2.bf16.xpose.msra.mxu0 0
      %2150 = vmatprep.subr.bf16.mxu0 0
      %2151 = vmatpush2.bf16.xpose.msra.mxu0 0
      %2152 = vmatprep.subr.bf16.mxu0 0
      %2153 = vmatpush2.bf16.xpose.msra.mxu0 0
      %2154 = vmatprep.subr.bf16.mxu0 0
      %2155 = vmatpush2.bf16.xpose.msra.mxu0 0
      %2156 = vmatprep.subr.bf16.mxu0 0
      %2157 = vmatpush2.bf16.xpose.msra.mxu0 0
      %2158 = vmatprep.subr.bf16.mxu0 0
      %2159 = vmatpush2.bf16.xpose.msra.mxu0 0
      %2160 = vmatprep.mubr.bf16.mxu0 0
      %2161 = vmatmul.mubr.bf16.gmra.mxu0 %v2123
      %v2162 = vpop.f32.mrf.mxu0
      %v2163 = vadd.f32 0.0, %v2162
      %v2164 = vpop.f32.mrf.mxu0
      %v2165 = vpop.f32.mrf.mxu0
      %v2166 = vpop.f32.mrf.mxu0
      %2167 = vdwg.mxu0
      %v2168 = vmul.f32 %v2113, 0.17677669
      %v2169 = vmul.f32 %v2163, 0.17677669
      %v2170 = vsel %vm1599, %v2168, -inf
      %2171 = vmax.xlane.f32.xlu0 %v2170
      %v2172 = vpop.xlane.xlu0 %2171
      %v2173 = vsel %vm1599, %v2169, -inf
      %2174 = vmax.xlane.f32.xlu0 %v2173
      %v2175 = vpop.xlane.xlu0 %2174
      %v2176 = vsub.f32 %v2168, %v2172
      %v2177 = vsub.f32 %v2169, %v2175
      %v2178 = vmul.f32 %v2176, 1.442695
      %v2179 = vpow.pop %v2178
      %v2180 = vmul.f32 %v2177, 1.442695
      %v2181 = vpow.pop %v2180
      %v2182 = vsel %vm1599, %v2179, 0.0
      %2183 = vadd.xlane.f32.xlu0 %v2182
      %v2184 = vpop.xlane.xlu0 %2183
      %v2185 = vsel %vm1599, %v2181, 0.0
      %2186 = vadd.xlane.f32.xlu0 %v2185
      %v2187 = vpop.xlane.xlu0 %2186
      %v2188 = vrcp.pop %v2184
      %v2189 = vrcp.pop %v2187
      %v2190 = vmul.f32 %v2179, %v2188
      %v2191 = vmul.f32 %v2181, %v2189
      %v2192 = vpack.c.bf16 %v2190, %v2190
      %v2193 = vpack.c.bf16 %v2191, %v2191
      %2194 = vrot.lane.b32.xlu0 %v1624, 64
      %v2195 = vpop.permute.xlu0 %2194
      %v2197 = vsel %vm1626, %v2192, 0
      %v2200 = vsel %vm1630, %v2195, 0
      %2202 = vmatprep.subr.bf16.mxu0 0
      %2203 = vmatpush1.bf16.msra.mxu0 0
      %2204 = vmatprep.subr.bf16.mxu0 0
      %2205 = vmatpush1.bf16.msra.mxu0 0
      %2206 = vmatprep.subr.bf16.mxu0 0
      %2207 = vmatpush1.bf16.msra.mxu0 0
      %2208 = vmatprep.subr.bf16.mxu0 0
      %2209 = vmatpush1.bf16.msra.mxu0 0
      %2210 = vmatprep.subr.bf16.mxu0 0
      %2211 = vmatpush1.bf16.msra.mxu0 0
      %2212 = vmatprep.subr.bf16.mxu0 0
      %2213 = vmatpush1.bf16.msra.mxu0 0
      %2214 = vmatprep.subr.bf16.mxu0 0
      %2215 = vmatpush1.bf16.msra.mxu0 0
      %2216 = vmatprep.subr.bf16.mxu0 0
      %2217 = vmatpush1.bf16.msra.mxu0 %v2200
      %2218 = vmatprep.subr.bf16.mxu0 0
      %2219 = vmatpush2.bf16.msra.mxu0 0
      %2220 = vmatprep.subr.bf16.mxu0 0
      %2221 = vmatpush2.bf16.msra.mxu0 0
      %2222 = vmatprep.subr.bf16.mxu0 0
      %2223 = vmatpush2.bf16.msra.mxu0 0
      %2224 = vmatprep.subr.bf16.mxu0 0
      %2225 = vmatpush2.bf16.msra.mxu0 0
      %2226 = vmatprep.subr.bf16.mxu0 0
      %2227 = vmatpush2.bf16.msra.mxu0 0
      %2228 = vmatprep.subr.bf16.mxu0 0
      %2229 = vmatpush2.bf16.msra.mxu0 0
      %2230 = vmatprep.subr.bf16.mxu0 0
      %2231 = vmatpush2.bf16.msra.mxu0 0
      %2232 = vmatprep.subr.bf16.mxu0 0
      %2233 = vmatpush2.bf16.msra.mxu0 0
      %2234 = vmatprep.mubr.bf16.mxu0 0
      %2235 = vmatmul.mubr.bf16.gmra.mxu0 %v2197
      %v2236 = vpop.f32.mrf.mxu0
      %v2237 = vadd.f32 0.0, %v2236
      %v2238 = vpop.f32.mrf.mxu0
      %v2239 = vpop.f32.mrf.mxu0
      %v2240 = vpop.f32.mrf.mxu0
      %2241 = vdwg.mxu0
      %2242 = vrot.lane.b32.xlu0 %v1625, 64
      %v2243 = vpop.permute.xlu0 %2242
      %v2245 = vsel %vm1626, %v2193, 0
      %v2248 = vsel %vm1630, %v2243, 0
      %2250 = vmatprep.subr.bf16.mxu0 0
      %2251 = vmatpush1.bf16.msra.mxu0 0
      %2252 = vmatprep.subr.bf16.mxu0 0
      %2253 = vmatpush1.bf16.msra.mxu0 0
      %2254 = vmatprep.subr.bf16.mxu0 0
      %2255 = vmatpush1.bf16.msra.mxu0 0
      %2256 = vmatprep.subr.bf16.mxu0 0
      %2257 = vmatpush1.bf16.msra.mxu0 0
      %2258 = vmatprep.subr.bf16.mxu0 0
      %2259 = vmatpush1.bf16.msra.mxu0 0
      %2260 = vmatprep.subr.bf16.mxu0 0
      %2261 = vmatpush1.bf16.msra.mxu0 0
      %2262 = vmatprep.subr.bf16.mxu0 0
      %2263 = vmatpush1.bf16.msra.mxu0 0
      %2264 = vmatprep.subr.bf16.mxu0 0
      %2265 = vmatpush1.bf16.msra.mxu0 %v2248
      %2266 = vmatprep.subr.bf16.mxu0 0
      %2267 = vmatpush2.bf16.msra.mxu0 0
      %2268 = vmatprep.subr.bf16.mxu0 0
      %2269 = vmatpush2.bf16.msra.mxu0 0
      %2270 = vmatprep.subr.bf16.mxu0 0
      %2271 = vmatpush2.bf16.msra.mxu0 0
      %2272 = vmatprep.subr.bf16.mxu0 0
      %2273 = vmatpush2.bf16.msra.mxu0 0
      %2274 = vmatprep.subr.bf16.mxu0 0
      %2275 = vmatpush2.bf16.msra.mxu0 0
      %2276 = vmatprep.subr.bf16.mxu0 0
      %2277 = vmatpush2.bf16.msra.mxu0 0
      %2278 = vmatprep.subr.bf16.mxu0 0
      %2279 = vmatpush2.bf16.msra.mxu0 0
      %2280 = vmatprep.subr.bf16.mxu0 0
      %2281 = vmatpush2.bf16.msra.mxu0 0
      %2282 = vmatprep.mubr.bf16.mxu0 0
      %2283 = vmatmul.mubr.bf16.gmra.mxu0 %v2245
      %v2284 = vpop.f32.mrf.mxu0
      %v2285 = vadd.f32 0.0, %v2284
      %v2286 = vpop.f32.mrf.mxu0
      %v2287 = vpop.f32.mrf.mxu0
      %v2288 = vpop.f32.mrf.mxu0
      %2289 = vdwg.mxu0
      %v2292 = vcombine.low %v2237, %v2285
      %v2294 = vpack.c.bf16 %v2292, %v2292
      %v2299 = vunpack.c.l.b16 %v1257
      %v2300 = vunpack.c.l.b16 %v1258
      %v2301 = vunpack.c.l.b16 %v1259
      %v2302 = vunpack.c.l.b16 %v1260
      %v2303 = vpack.c.b16 %v2300, %v2299
      %v2304 = vpack.c.b16 %v2302, %v2301
      %v2308 = vsel %vm1504, %v2294, 0
      %2310 = vmatprep.subr.bf16.mxu0 0
      %2311 = vmatpush1.bf16.msra.mxu0 0
      %2312 = vmatprep.subr.bf16.mxu0 0
      %2313 = vmatpush1.bf16.msra.mxu0 0
      %2314 = vmatprep.subr.bf16.mxu0 0
      %2315 = vmatpush1.bf16.msra.mxu0 0
      %2316 = vmatprep.subr.bf16.mxu0 0
      %2317 = vmatpush1.bf16.msra.mxu0 0
      %2318 = vmatprep.subr.bf16.mxu0 0
      %2319 = vmatpush1.bf16.msra.mxu0 0
      %2320 = vmatprep.subr.bf16.mxu0 0
      %2321 = vmatpush1.bf16.msra.mxu0 0
      %2322 = vmatprep.subr.bf16.mxu0 0
      %2323 = vmatpush1.bf16.msra.mxu0 %v2304
      %2324 = vmatprep.subr.bf16.mxu0 0
      %2325 = vmatpush1.bf16.msra.mxu0 %v2303
      %2326 = vmatprep.subr.bf16.mxu0 0
      %2327 = vmatpush2.bf16.msra.mxu0 0
      %2328 = vmatprep.subr.bf16.mxu0 0
      %2329 = vmatpush2.bf16.msra.mxu0 0
      %2330 = vmatprep.subr.bf16.mxu0 0
      %2331 = vmatpush2.bf16.msra.mxu0 0
      %2332 = vmatprep.subr.bf16.mxu0 0
      %2333 = vmatpush2.bf16.msra.mxu0 0
      %2334 = vmatprep.subr.bf16.mxu0 0
      %2335 = vmatpush2.bf16.msra.mxu0 0
      %2336 = vmatprep.subr.bf16.mxu0 0
      %2337 = vmatpush2.bf16.msra.mxu0 0
      %2338 = vmatprep.subr.bf16.mxu0 0
      %2339 = vmatpush2.bf16.msra.mxu0 0
      %2340 = vmatprep.subr.bf16.mxu0 0
      %2341 = vmatpush2.bf16.msra.mxu0 0
      %2342 = vmatprep.mubr.bf16.mxu0 0
      %2343 = vmatmul.mubr.bf16.gmra.mxu0 %v2308
      %v2344 = vpop.f32.mrf.mxu0
      %v2345 = vadd.f32 0.0, %v2344
      %v2346 = vpop.f32.mrf.mxu0
      %v2347 = vpop.f32.mrf.mxu0
      %v2348 = vpop.f32.mrf.mxu0
      %2349 = vdwg.mxu0
      %v2350 = vadd.f32 %v2063, %v2345
      %2351 = vrot.lane.b32.xlu0 %v1500, 32
      %v2352 = vpop.permute.xlu0 %2351
      %2353 = vrot.lane.b32.xlu0 %v1502, 32
      %v2354 = vpop.permute.xlu0 %2353
      %v2356 = vsel %vm1504, %v2352, 0
      %v2359 = vsel %vm1504, %v2354, 0
      %2361 = vmatprep.subr.bf16.mxu0 0
      %2362 = vmatpush1.bf16.xpose.msra.mxu0 0
      %2363 = vmatprep.subr.bf16.mxu0 0
      %2364 = vmatpush1.bf16.xpose.msra.mxu0 0
      %2365 = vmatprep.subr.bf16.mxu0 0
      %2366 = vmatpush1.bf16.xpose.msra.mxu0 0
      %2367 = vmatprep.subr.bf16.mxu0 0
      %2368 = vmatpush1.bf16.xpose.msra.mxu0 0
      %2369 = vmatprep.subr.bf16.mxu0 0
      %2370 = vmatpush1.bf16.xpose.msra.mxu0 0
      %2371 = vmatprep.subr.bf16.mxu0 0
      %2372 = vmatpush1.bf16.xpose.msra.mxu0 0
      %2373 = vmatprep.subr.bf16.mxu0 0
      %2374 = vmatpush1.bf16.xpose.msra.mxu0 0
      %2375 = vmatprep.subr.bf16.mxu0 0
      %2376 = vmatpush1.bf16.xpose.msra.mxu0 %v2359
      %2377 = vmatprep.subr.bf16.mxu0 0
      %2378 = vmatpush2.bf16.xpose.msra.mxu0 0
      %2379 = vmatprep.subr.bf16.mxu0 0
      %2380 = vmatpush2.bf16.xpose.msra.mxu0 0
      %2381 = vmatprep.subr.bf16.mxu0 0
      %2382 = vmatpush2.bf16.xpose.msra.mxu0 0
      %2383 = vmatprep.subr.bf16.mxu0 0
      %2384 = vmatpush2.bf16.xpose.msra.mxu0 0
      %2385 = vmatprep.subr.bf16.mxu0 0
      %2386 = vmatpush2.bf16.xpose.msra.mxu0 0
      %2387 = vmatprep.subr.bf16.mxu0 0
      %2388 = vmatpush2.bf16.xpose.msra.mxu0 0
      %2389 = vmatprep.subr.bf16.mxu0 0
      %2390 = vmatpush2.bf16.xpose.msra.mxu0 0
      %2391 = vmatprep.subr.bf16.mxu0 0
      %2392 = vmatpush2.bf16.xpose.msra.mxu0 0
      %2393 = vmatprep.mubr.bf16.mxu0 0
      %2394 = vmatmul.mubr.bf16.gmra.mxu0 %v2356
      %v2395 = vpop.f32.mrf.mxu0
      %v2396 = vadd.f32 0.0, %v2395
      %v2397 = vpop.f32.mrf.mxu0
      %v2398 = vpop.f32.mrf.mxu0
      %v2399 = vpop.f32.mrf.mxu0
      %2400 = vdwg.mxu0
      %2401 = vrot.lane.b32.xlu0 %v1501, 32
      %v2402 = vpop.permute.xlu0 %2401
      %2403 = vrot.lane.b32.xlu0 %v1503, 32
      %v2404 = vpop.permute.xlu0 %2403
      %v2406 = vsel %vm1504, %v2402, 0
      %v2409 = vsel %vm1504, %v2404, 0
      %2411 = vmatprep.subr.bf16.mxu0 0
      %2412 = vmatpush1.bf16.xpose.msra.mxu0 0
      %2413 = vmatprep.subr.bf16.mxu0 0
      %2414 = vmatpush1.bf16.xpose.msra.mxu0 0
      %2415 = vmatprep.subr.bf16.mxu0 0
      %2416 = vmatpush1.bf16.xpose.msra.mxu0 0
      %2417 = vmatprep.subr.bf16.mxu0 0
      %2418 = vmatpush1.bf16.xpose.msra.mxu0 0
      %2419 = vmatprep.subr.bf16.mxu0 0
      %2420 = vmatpush1.bf16.xpose.msra.mxu0 0
      %2421 = vmatprep.subr.bf16.mxu0 0
      %2422 = vmatpush1.bf16.xpose.msra.mxu0 0
      %2423 = vmatprep.subr.bf16.mxu0 0
      %2424 = vmatpush1.bf16.xpose.msra.mxu0 0
      %2425 = vmatprep.subr.bf16.mxu0 0
      %2426 = vmatpush1.bf16.xpose.msra.mxu0 %v2409
      %2427 = vmatprep.subr.bf16.mxu0 0
      %2428 = vmatpush2.bf16.xpose.msra.mxu0 0
      %2429 = vmatprep.subr.bf16.mxu0 0
      %2430 = vmatpush2.bf16.xpose.msra.mxu0 0
      %2431 = vmatprep.subr.bf16.mxu0 0
      %2432 = vmatpush2.bf16.xpose.msra.mxu0 0
      %2433 = vmatprep.subr.bf16.mxu0 0
      %2434 = vmatpush2.bf16.xpose.msra.mxu0 0
      %2435 = vmatprep.subr.bf16.mxu0 0
      %2436 = vmatpush2.bf16.xpose.msra.mxu0 0
      %2437 = vmatprep.subr.bf16.mxu0 0
      %2438 = vmatpush2.bf16.xpose.msra.mxu0 0
      %2439 = vmatprep.subr.bf16.mxu0 0
      %2440 = vmatpush2.bf16.xpose.msra.mxu0 0
      %2441 = vmatprep.subr.bf16.mxu0 0
      %2442 = vmatpush2.bf16.xpose.msra.mxu0 0
      %2443 = vmatprep.mubr.bf16.mxu0 0
      %2444 = vmatmul.mubr.bf16.gmra.mxu0 %v2406
      %v2445 = vpop.f32.mrf.mxu0
      %v2446 = vadd.f32 0.0, %v2445
      %v2447 = vpop.f32.mrf.mxu0
      %v2448 = vpop.f32.mrf.mxu0
      %v2449 = vpop.f32.mrf.mxu0
      %2450 = vdwg.mxu0
      %v2451 = vmul.f32 %v2396, 0.17677669
      %v2452 = vmul.f32 %v2446, 0.17677669
      %v2453 = vsel %vm1599, %v2451, -inf
      %2454 = vmax.xlane.f32.xlu0 %v2453
      %v2455 = vpop.xlane.xlu0 %2454
      %v2456 = vsel %vm1599, %v2452, -inf
      %2457 = vmax.xlane.f32.xlu0 %v2456
      %v2458 = vpop.xlane.xlu0 %2457
      %v2459 = vsub.f32 %v2451, %v2455
      %v2460 = vsub.f32 %v2452, %v2458
      %v2461 = vmul.f32 %v2459, 1.442695
      %v2462 = vpow.pop %v2461
      %v2463 = vmul.f32 %v2460, 1.442695
      %v2464 = vpow.pop %v2463
      %v2465 = vsel %vm1599, %v2462, 0.0
      %2466 = vadd.xlane.f32.xlu0 %v2465
      %v2467 = vpop.xlane.xlu0 %2466
      %v2468 = vsel %vm1599, %v2464, 0.0
      %2469 = vadd.xlane.f32.xlu0 %v2468
      %v2470 = vpop.xlane.xlu0 %2469
      %v2471 = vrcp.pop %v2467
      %v2472 = vrcp.pop %v2470
      %v2473 = vmul.f32 %v2462, %v2471
      %v2474 = vmul.f32 %v2464, %v2472
      %v2475 = vpack.c.bf16 %v2473, %v2473
      %v2476 = vpack.c.bf16 %v2474, %v2474
      %2477 = vrot.lane.b32.xlu0 %v1624, 32
      %v2478 = vpop.permute.xlu0 %2477
      %v2480 = vsel %vm1626, %v2475, 0
      %v2483 = vsel %vm1630, %v2478, 0
      %2485 = vmatprep.subr.bf16.mxu0 0
      %2486 = vmatpush1.bf16.msra.mxu0 0
      %2487 = vmatprep.subr.bf16.mxu0 0
      %2488 = vmatpush1.bf16.msra.mxu0 0
      %2489 = vmatprep.subr.bf16.mxu0 0
      %2490 = vmatpush1.bf16.msra.mxu0 0
      %2491 = vmatprep.subr.bf16.mxu0 0
      %2492 = vmatpush1.bf16.msra.mxu0 0
      %2493 = vmatprep.subr.bf16.mxu0 0
      %2494 = vmatpush1.bf16.msra.mxu0 0
      %2495 = vmatprep.subr.bf16.mxu0 0
      %2496 = vmatpush1.bf16.msra.mxu0 0
      %2497 = vmatprep.subr.bf16.mxu0 0
      %2498 = vmatpush1.bf16.msra.mxu0 0
      %2499 = vmatprep.subr.bf16.mxu0 0
      %2500 = vmatpush1.bf16.msra.mxu0 %v2483
      %2501 = vmatprep.subr.bf16.mxu0 0
      %2502 = vmatpush2.bf16.msra.mxu0 0
      %2503 = vmatprep.subr.bf16.mxu0 0
      %2504 = vmatpush2.bf16.msra.mxu0 0
      %2505 = vmatprep.subr.bf16.mxu0 0
      %2506 = vmatpush2.bf16.msra.mxu0 0
      %2507 = vmatprep.subr.bf16.mxu0 0
      %2508 = vmatpush2.bf16.msra.mxu0 0
      %2509 = vmatprep.subr.bf16.mxu0 0
      %2510 = vmatpush2.bf16.msra.mxu0 0
      %2511 = vmatprep.subr.bf16.mxu0 0
      %2512 = vmatpush2.bf16.msra.mxu0 0
      %2513 = vmatprep.subr.bf16.mxu0 0
      %2514 = vmatpush2.bf16.msra.mxu0 0
      %2515 = vmatprep.subr.bf16.mxu0 0
      %2516 = vmatpush2.bf16.msra.mxu0 0
      %2517 = vmatprep.mubr.bf16.mxu0 0
      %2518 = vmatmul.mubr.bf16.gmra.mxu0 %v2480
      %v2519 = vpop.f32.mrf.mxu0
      %v2520 = vadd.f32 0.0, %v2519
      %v2521 = vpop.f32.mrf.mxu0
      %v2522 = vpop.f32.mrf.mxu0
      %v2523 = vpop.f32.mrf.mxu0
      %2524 = vdwg.mxu0
      %2525 = vrot.lane.b32.xlu0 %v1625, 32
      %v2526 = vpop.permute.xlu0 %2525
      %v2528 = vsel %vm1626, %v2476, 0
      %v2531 = vsel %vm1630, %v2526, 0
      %2533 = vmatprep.subr.bf16.mxu0 0
      %2534 = vmatpush1.bf16.msra.mxu0 0
      %2535 = vmatprep.subr.bf16.mxu0 0
      %2536 = vmatpush1.bf16.msra.mxu0 0
      %2537 = vmatprep.subr.bf16.mxu0 0
      %2538 = vmatpush1.bf16.msra.mxu0 0
      %2539 = vmatprep.subr.bf16.mxu0 0
      %2540 = vmatpush1.bf16.msra.mxu0 0
      %2541 = vmatprep.subr.bf16.mxu0 0
      %2542 = vmatpush1.bf16.msra.mxu0 0
      %2543 = vmatprep.subr.bf16.mxu0 0
      %2544 = vmatpush1.bf16.msra.mxu0 0
      %2545 = vmatprep.subr.bf16.mxu0 0
      %2546 = vmatpush1.bf16.msra.mxu0 0
      %2547 = vmatprep.subr.bf16.mxu0 0
      %2548 = vmatpush1.bf16.msra.mxu0 %v2531
      %2549 = vmatprep.subr.bf16.mxu0 0
      %2550 = vmatpush2.bf16.msra.mxu0 0
      %2551 = vmatprep.subr.bf16.mxu0 0
      %2552 = vmatpush2.bf16.msra.mxu0 0
      %2553 = vmatprep.subr.bf16.mxu0 0
      %2554 = vmatpush2.bf16.msra.mxu0 0
      %2555 = vmatprep.subr.bf16.mxu0 0
      %2556 = vmatpush2.bf16.msra.mxu0 0
      %2557 = vmatprep.subr.bf16.mxu0 0
      %2558 = vmatpush2.bf16.msra.mxu0 0
      %2559 = vmatprep.subr.bf16.mxu0 0
      %2560 = vmatpush2.bf16.msra.mxu0 0
      %2561 = vmatprep.subr.bf16.mxu0 0
      %2562 = vmatpush2.bf16.msra.mxu0 0
      %2563 = vmatprep.subr.bf16.mxu0 0
      %2564 = vmatpush2.bf16.msra.mxu0 0
      %2565 = vmatprep.mubr.bf16.mxu0 0
      %2566 = vmatmul.mubr.bf16.gmra.mxu0 %v2528
      %v2567 = vpop.f32.mrf.mxu0
      %v2568 = vadd.f32 0.0, %v2567
      %v2569 = vpop.f32.mrf.mxu0
      %v2570 = vpop.f32.mrf.mxu0
      %v2571 = vpop.f32.mrf.mxu0
      %2572 = vdwg.mxu0
      %v2575 = vcombine.low %v2520, %v2568
      %v2577 = vpack.c.bf16 %v2575, %v2575
      %v2582 = vunpack.c.l.b16 %v1261
      %v2583 = vunpack.c.l.b16 %v1262
      %v2584 = vunpack.c.l.b16 %v1263
      %v2585 = vunpack.c.l.b16 %v1264
      %v2586 = vpack.c.b16 %v2583, %v2582
      %v2587 = vpack.c.b16 %v2585, %v2584
      %v2591 = vsel %vm1504, %v2577, 0
      %2593 = vmatprep.subr.bf16.mxu0 0
      %2594 = vmatpush1.bf16.msra.mxu0 0
      %2595 = vmatprep.subr.bf16.mxu0 0
      %2596 = vmatpush1.bf16.msra.mxu0 0
      %2597 = vmatprep.subr.bf16.mxu0 0
      %2598 = vmatpush1.bf16.msra.mxu0 0
      %2599 = vmatprep.subr.bf16.mxu0 0
      %2600 = vmatpush1.bf16.msra.mxu0 0
      %2601 = vmatprep.subr.bf16.mxu0 0
      %2602 = vmatpush1.bf16.msra.mxu0 0
      %2603 = vmatprep.subr.bf16.mxu0 0
      %2604 = vmatpush1.bf16.msra.mxu0 0
      %2605 = vmatprep.subr.bf16.mxu0 0
      %2606 = vmatpush1.bf16.msra.mxu0 %v2587
      %2607 = vmatprep.subr.bf16.mxu0 0
      %2608 = vmatpush1.bf16.msra.mxu0 %v2586
      %2609 = vmatprep.subr.bf16.mxu0 0
      %2610 = vmatpush2.bf16.msra.mxu0 0
      %2611 = vmatprep.subr.bf16.mxu0 0
      %2612 = vmatpush2.bf16.msra.mxu0 0
      %2613 = vmatprep.subr.bf16.mxu0 0
      %2614 = vmatpush2.bf16.msra.mxu0 0
      %2615 = vmatprep.subr.bf16.mxu0 0
      %2616 = vmatpush2.bf16.msra.mxu0 0
      %2617 = vmatprep.subr.bf16.mxu0 0
      %2618 = vmatpush2.bf16.msra.mxu0 0
      %2619 = vmatprep.subr.bf16.mxu0 0
      %2620 = vmatpush2.bf16.msra.mxu0 0
      %2621 = vmatprep.subr.bf16.mxu0 0
      %2622 = vmatpush2.bf16.msra.mxu0 0
      %2623 = vmatprep.subr.bf16.mxu0 0
      %2624 = vmatpush2.bf16.msra.mxu0 0
      %2625 = vmatprep.mubr.bf16.mxu0 0
      %2626 = vmatmul.mubr.bf16.gmra.mxu0 %v2591
      %v2627 = vpop.f32.mrf.mxu0
      %v2628 = vadd.f32 0.0, %v2627
      %v2629 = vpop.f32.mrf.mxu0
      %v2630 = vpop.f32.mrf.mxu0
      %v2631 = vpop.f32.mrf.mxu0
      %2632 = vdwg.mxu0
      %v2633 = vadd.f32 %v2350, %v2628
      %v2634 = vadd.f32 %v1187, %v2633
      %v2635 = vld [vmem:[%s634] sm:$0x1]
      %v2637 = vlaneseq
      %v2638 = vshrl.u32 %v2637, 7
      %v2639 = vsub.s32 0, %v2638
      %v2640 = vrot.slane %v2635, %v2639
      %v2642 = vadd.f32 %v2634, %v2640
      %v2643 = vld [vmem:[%s637] sm:$0x1]
      %v2644 = vld [vmem:[%s640] sm:$0x1]
      %2645 = vadd.xlane.f32.xlu0 %v2642
      %v2646 = vpop.xlane.xlu0 %2645
      %v2647 = vmul.f32 %v2646, %v1192
      %v2648 = vsub.f32 %v2642, %v2647
      %v2649 = vmul.f32 %v2648, %v2648
      %2650 = vadd.xlane.f32.xlu0 %v2649
      %v2651 = vpop.xlane.xlu0 %2650
      %v2652 = vmul.f32 %v2651, %v1192
      %v2653 = vadd.f32 %v2652, 1e-06
      %v2654 = vrsqrt.pop %v2653
      %v2655 = vmul.f32 %v2648, %v2654
      %v2657 = vlaneseq
      %v2658 = vshrl.u32 %v2657, 7
      %v2659 = vsub.s32 0, %v2658
      %v2660 = vrot.slane %v2643, %v2659
      %v2662 = vmul.f32 %v2655, %v2660
      %v2664 = vlaneseq
      %v2665 = vshrl.u32 %v2664, 7
      %v2666 = vsub.s32 0, %v2665
      %v2667 = vrot.slane %v2644, %v2666
      %v2669 = vadd.f32 %v2662, %v2667
      %v2670 = vld [vmem:[%s645] sm:$0xff]
      %v2671 = vld [vmem:[%s645 + $0x8] sm:$0xff]
      %v2672 = vld [vmem:[%s645 + $0x10] sm:$0xff]
      %v2673 = vld [vmem:[%s645 + $0x18] sm:$0xff]
      %v2674 = vld [vmem:[%s645 + $0x20] sm:$0xff]
      %v2675 = vld [vmem:[%s645 + $0x28] sm:$0xff]
      %v2676 = vld [vmem:[%s645 + $0x30] sm:$0xff]
      %v2677 = vld [vmem:[%s645 + $0x38] sm:$0xff]
      %v2678 = vld [vmem:[%s645 + $0x40] sm:$0xff]
      %v2679 = vld [vmem:[%s645 + $0x48] sm:$0xff]
      %v2680 = vld [vmem:[%s645 + $0x50] sm:$0xff]
      %v2681 = vld [vmem:[%s645 + $0x58] sm:$0xff]
      %v2682 = vld [vmem:[%s645 + $0x60] sm:$0xff]
      %v2683 = vld [vmem:[%s645 + $0x68] sm:$0xff]
      %v2684 = vld [vmem:[%s645 + $0x70] sm:$0xff]
      %v2685 = vld [vmem:[%s645 + $0x78] sm:$0xff]
      %v2686 = vld [vmem:[%s645 + $0x80] sm:$0xff]
      %v2687 = vld [vmem:[%s645 + $0x88] sm:$0xff]
      %v2688 = vld [vmem:[%s645 + $0x90] sm:$0xff]
      %v2689 = vld [vmem:[%s645 + $0x98] sm:$0xff]
      %v2690 = vld [vmem:[%s645 + $0xa0] sm:$0xff]
      %v2691 = vld [vmem:[%s645 + $0xa8] sm:$0xff]
      %v2692 = vld [vmem:[%s645 + $0xb0] sm:$0xff]
      %v2693 = vld [vmem:[%s645 + $0xb8] sm:$0xff]
      %v2694 = vld [vmem:[%s645 + $0xc0] sm:$0xff]
      %v2695 = vld [vmem:[%s645 + $0xc8] sm:$0xff]
      %v2696 = vld [vmem:[%s645 + $0xd0] sm:$0xff]
      %v2697 = vld [vmem:[%s645 + $0xd8] sm:$0xff]
      %v2698 = vld [vmem:[%s645 + $0xe0] sm:$0xff]
      %v2699 = vld [vmem:[%s645 + $0xe8] sm:$0xff]
      %v2700 = vld [vmem:[%s645 + $0xf0] sm:$0xff]
      %v2701 = vld [vmem:[%s645 + $0xf8] sm:$0xff]
      %v2702 = vpack.c.bf16 %v2669, %v2669
      %v2703 = vld [vmem:[%s649] sm:$0xf]
      %v2705 = vlaneseq
      %v2706 = vshrl.u32 %v2705, 7
      %v2707 = vsub.s32 0, %v2706
      %v2708 = vrot.slane %v2703, %v2707
      %v2709 = vlaneseq
      %v2710 = vshrl.u32 %v2709, 7
      %v2711 = vsub.s32 1, %v2710
      %v2712 = vrot.slane %v2703, %v2711
      %v2713 = vlaneseq
      %v2714 = vshrl.u32 %v2713, 7
      %v2715 = vsub.s32 2, %v2714
      %v2716 = vrot.slane %v2703, %v2715
      %v2717 = vlaneseq
      %v2718 = vshrl.u32 %v2717, 7
      %v2719 = vsub.s32 3, %v2718
      %v2720 = vrot.slane %v2703, %v2719
      %v2757 = vunpack.c.l.b16 %v2670
      %v2758 = vunpack.c.h.b16 %v2670
      %v2759 = vunpack.c.l.b16 %v2671
      %v2760 = vunpack.c.h.b16 %v2671
      %v2761 = vunpack.c.l.b16 %v2672
      %v2762 = vunpack.c.h.b16 %v2672
      %v2763 = vunpack.c.l.b16 %v2673
      %v2764 = vunpack.c.h.b16 %v2673
      %v2765 = vunpack.c.l.b16 %v2674
      %v2766 = vunpack.c.h.b16 %v2674
      %v2767 = vunpack.c.l.b16 %v2675
      %v2768 = vunpack.c.h.b16 %v2675
      %v2769 = vunpack.c.l.b16 %v2676
      %v2770 = vunpack.c.h.b16 %v2676
      %v2771 = vunpack.c.l.b16 %v2677
      %v2772 = vunpack.c.h.b16 %v2677
      %v2773 = vunpack.c.l.b16 %v2678
      %v2774 = vunpack.c.h.b16 %v2678
      %v2775 = vunpack.c.l.b16 %v2679
      %v2776 = vunpack.c.h.b16 %v2679
      %v2777 = vunpack.c.l.b16 %v2680
      %v2778 = vunpack.c.h.b16 %v2680
      %v2779 = vunpack.c.l.b16 %v2681
      %v2780 = vunpack.c.h.b16 %v2681
      %v2781 = vunpack.c.l.b16 %v2682
      %v2782 = vunpack.c.h.b16 %v2682
      %v2783 = vunpack.c.l.b16 %v2683
      %v2784 = vunpack.c.h.b16 %v2683
      %v2785 = vunpack.c.l.b16 %v2684
      %v2786 = vunpack.c.h.b16 %v2684
      %v2787 = vunpack.c.l.b16 %v2685
      %v2788 = vunpack.c.h.b16 %v2685
      %v2789 = vunpack.c.l.b16 %v2686
      %v2790 = vunpack.c.h.b16 %v2686
      %v2791 = vunpack.c.l.b16 %v2687
      %v2792 = vunpack.c.h.b16 %v2687
      %v2793 = vunpack.c.l.b16 %v2688
      %v2794 = vunpack.c.h.b16 %v2688
      %v2795 = vunpack.c.l.b16 %v2689
      %v2796 = vunpack.c.h.b16 %v2689
      %v2797 = vunpack.c.l.b16 %v2690
      %v2798 = vunpack.c.h.b16 %v2690
      %v2799 = vunpack.c.l.b16 %v2691
      %v2800 = vunpack.c.h.b16 %v2691
      %v2801 = vunpack.c.l.b16 %v2692
      %v2802 = vunpack.c.h.b16 %v2692
      %v2803 = vunpack.c.l.b16 %v2693
      %v2804 = vunpack.c.h.b16 %v2693
      %v2805 = vunpack.c.l.b16 %v2694
      %v2806 = vunpack.c.h.b16 %v2694
      %v2807 = vunpack.c.l.b16 %v2695
      %v2808 = vunpack.c.h.b16 %v2695
      %v2809 = vunpack.c.l.b16 %v2696
      %v2810 = vunpack.c.h.b16 %v2696
      %v2811 = vunpack.c.l.b16 %v2697
      %v2812 = vunpack.c.h.b16 %v2697
      %v2813 = vunpack.c.l.b16 %v2698
      %v2814 = vunpack.c.h.b16 %v2698
      %v2815 = vunpack.c.l.b16 %v2699
      %v2816 = vunpack.c.h.b16 %v2699
      %v2817 = vunpack.c.l.b16 %v2700
      %v2818 = vunpack.c.h.b16 %v2700
      %v2819 = vunpack.c.l.b16 %v2701
      %v2820 = vunpack.c.h.b16 %v2701
      %v2821 = vpack.c.b16 %v2761, %v2757
      %v2822 = vpack.c.b16 %v2762, %v2758
      %v2823 = vpack.c.b16 %v2763, %v2759
      %v2824 = vpack.c.b16 %v2764, %v2760
      %v2825 = vpack.c.b16 %v2769, %v2765
      %v2826 = vpack.c.b16 %v2770, %v2766
      %v2827 = vpack.c.b16 %v2771, %v2767
      %v2828 = vpack.c.b16 %v2772, %v2768
      %v2829 = vpack.c.b16 %v2777, %v2773
      %v2830 = vpack.c.b16 %v2778, %v2774
      %v2831 = vpack.c.b16 %v2779, %v2775
      %v2832 = vpack.c.b16 %v2780, %v2776
      %v2833 = vpack.c.b16 %v2785, %v2781
      %v2834 = vpack.c.b16 %v2786, %v2782
      %v2835 = vpack.c.b16 %v2787, %v2783
      %v2836 = vpack.c.b16 %v2788, %v2784
      %v2837 = vpack.c.b16 %v2793, %v2789
      %v2838 = vpack.c.b16 %v2794, %v2790
      %v2839 = vpack.c.b16 %v2795, %v2791
      %v2840 = vpack.c.b16 %v2796, %v2792
      %v2841 = vpack.c.b16 %v2801, %v2797
      %v2842 = vpack.c.b16 %v2802, %v2798
      %v2843 = vpack.c.b16 %v2803, %v2799
      %v2844 = vpack.c.b16 %v2804, %v2800
      %v2845 = vpack.c.b16 %v2809, %v2805
      %v2846 = vpack.c.b16 %v2810, %v2806
      %v2847 = vpack.c.b16 %v2811, %v2807
      %v2848 = vpack.c.b16 %v2812, %v2808
      %v2849 = vpack.c.b16 %v2817, %v2813
      %v2850 = vpack.c.b16 %v2818, %v2814
      %v2851 = vpack.c.b16 %v2819, %v2815
      %v2852 = vpack.c.b16 %v2820, %v2816
      %2885 = vmatprep.subr.bf16.mxu0 %v2850
      %2886 = vmatpush1.bf16.msra.mxu0 %v2849
      %2887 = vmatprep.subr.bf16.mxu0 %v2846
      %2888 = vmatpush1.bf16.msra.mxu0 %v2845
      %2889 = vmatprep.subr.bf16.mxu0 %v2842
      %2890 = vmatpush1.bf16.msra.mxu0 %v2841
      %2891 = vmatprep.subr.bf16.mxu0 %v2838
      %2892 = vmatpush1.bf16.msra.mxu0 %v2837
      %2893 = vmatprep.subr.bf16.mxu0 %v2834
      %2894 = vmatpush1.bf16.msra.mxu0 %v2833
      %2895 = vmatprep.subr.bf16.mxu0 %v2830
      %2896 = vmatpush1.bf16.msra.mxu0 %v2829
      %2897 = vmatprep.subr.bf16.mxu0 %v2826
      %2898 = vmatpush1.bf16.msra.mxu0 %v2825
      %2899 = vmatprep.subr.bf16.mxu0 %v2822
      %2900 = vmatpush1.bf16.msra.mxu0 %v2821
      %2901 = vmatprep.subr.bf16.mxu0 0
      %2902 = vmatpush2.bf16.msra.mxu0 0
      %2903 = vmatprep.subr.bf16.mxu0 0
      %2904 = vmatpush2.bf16.msra.mxu0 0
      %2905 = vmatprep.subr.bf16.mxu0 0
      %2906 = vmatpush2.bf16.msra.mxu0 0
      %2907 = vmatprep.subr.bf16.mxu0 0
      %2908 = vmatpush2.bf16.msra.mxu0 0
      %2909 = vmatprep.subr.bf16.mxu0 0
      %2910 = vmatpush2.bf16.msra.mxu0 0
      %2911 = vmatprep.subr.bf16.mxu0 0
      %2912 = vmatpush2.bf16.msra.mxu0 0
      %2913 = vmatprep.subr.bf16.mxu0 0
      %2914 = vmatpush2.bf16.msra.mxu0 0
      %2915 = vmatprep.subr.bf16.mxu0 0
      %2916 = vmatpush2.bf16.msra.mxu0 0
      %2917 = vmatprep.mubr.bf16.mxu0 0
      %2918 = vmatmul.mubr.bf16.gmra.mxu0 %v2702
      %v2919 = vpop.f32.mrf.mxu0
      %v2920 = vadd.f32 %v2708, %v2919
      %v2921 = vpop.f32.mrf.mxu0
      %v2922 = vadd.f32 %v2712, %v2921
      %v2923 = vpop.f32.mrf.mxu0
      %v2924 = vpop.f32.mrf.mxu0
      %2925 = vdwg.mxu0
      %2926 = vmatprep.subr.bf16.mxu0 %v2852
      %2927 = vmatpush1.bf16.msra.mxu0 %v2851
      %2928 = vmatprep.subr.bf16.mxu0 %v2848
      %2929 = vmatpush1.bf16.msra.mxu0 %v2847
      %2930 = vmatprep.subr.bf16.mxu0 %v2844
      %2931 = vmatpush1.bf16.msra.mxu0 %v2843
      %2932 = vmatprep.subr.bf16.mxu0 %v2840
      %2933 = vmatpush1.bf16.msra.mxu0 %v2839
      %2934 = vmatprep.subr.bf16.mxu0 %v2836
      %2935 = vmatpush1.bf16.msra.mxu0 %v2835
      %2936 = vmatprep.subr.bf16.mxu0 %v2832
      %2937 = vmatpush1.bf16.msra.mxu0 %v2831
      %2938 = vmatprep.subr.bf16.mxu0 %v2828
      %2939 = vmatpush1.bf16.msra.mxu0 %v2827
      %2940 = vmatprep.subr.bf16.mxu0 %v2824
      %2941 = vmatpush1.bf16.msra.mxu0 %v2823
      %2942 = vmatprep.subr.bf16.mxu0 0
      %2943 = vmatpush2.bf16.msra.mxu0 0
      %2944 = vmatprep.subr.bf16.mxu0 0
      %2945 = vmatpush2.bf16.msra.mxu0 0
      %2946 = vmatprep.subr.bf16.mxu0 0
      %2947 = vmatpush2.bf16.msra.mxu0 0
      %2948 = vmatprep.subr.bf16.mxu0 0
      %2949 = vmatpush2.bf16.msra.mxu0 0
      %2950 = vmatprep.subr.bf16.mxu0 0
      %2951 = vmatpush2.bf16.msra.mxu0 0
      %2952 = vmatprep.subr.bf16.mxu0 0
      %2953 = vmatpush2.bf16.msra.mxu0 0
      %2954 = vmatprep.subr.bf16.mxu0 0
      %2955 = vmatpush2.bf16.msra.mxu0 0
      %2956 = vmatprep.subr.bf16.mxu0 0
      %2957 = vmatpush2.bf16.msra.mxu0 0
      %2958 = vmatprep.mubr.bf16.mxu0 0
      %2959 = vmatmul.mubr.bf16.gmra.mxu0 %v2702
      %v2960 = vpop.f32.mrf.mxu0
      %v2961 = vadd.f32 %v2716, %v2960
      %v2962 = vpop.f32.mrf.mxu0
      %v2963 = vadd.f32 %v2720, %v2962
      %v2964 = vpop.f32.mrf.mxu0
      %v2965 = vpop.f32.mrf.mxu0
      %2966 = vdwg.mxu0
      %v2967 = vmul.f32 %v2920, 0.5
      %v2968 = vmul.f32 %v2922, 0.5
      %v2969 = vmul.f32 %v2961, 0.5
      %v2970 = vmul.f32 %v2963, 0.5
      %v2971 = vmul.f32 %v2920, 0.044715
      %v2972 = vmul.f32 %v2922, 0.044715
      %v2973 = vmul.f32 %v2961, 0.044715
      %v2974 = vmul.f32 %v2963, 0.044715
      %v2975 = vmul.f32 %v2971, %v2920
      %v2976 = vmul.f32 %v2972, %v2922
      %v2977 = vmul.f32 %v2973, %v2961
      %v2978 = vmul.f32 %v2974, %v2963
      %v2979 = vmul.f32 %v2975, %v2920
      %v2980 = vmul.f32 %v2976, %v2922
      %v2981 = vmul.f32 %v2977, %v2961
      %v2982 = vmul.f32 %v2978, %v2963
      %v2983 = vadd.f32 %v2920, %v2979
      %v2984 = vadd.f32 %v2922, %v2980
      %v2985 = vadd.f32 %v2961, %v2981
      %v2986 = vadd.f32 %v2963, %v2982
      %v2987 = vmul.f32 %v2983, 0.7978846
      %v2988 = vmul.f32 %v2984, 0.7978846
      %v2989 = vmul.f32 %v2985, 0.7978846
      %v2990 = vmul.f32 %v2986, 0.7978846
      %v2991 = vtanh.pop %v2987
      %v2992 = vtanh.pop %v2988
      %v2993 = vtanh.pop %v2989
      %v2994 = vtanh.pop %v2990
      %v2995 = vadd.f32 %v2991, 1.0
      %v2996 = vadd.f32 %v2992, 1.0
      %v2997 = vadd.f32 %v2993, 1.0
      %v2998 = vadd.f32 %v2994, 1.0
      %v2999 = vmul.f32 %v2967, %v2995
      %v3000 = vmul.f32 %v2968, %v2996
      %v3001 = vmul.f32 %v2969, %v2997
      %v3002 = vmul.f32 %v2970, %v2998
      %v3003 = vld [vmem:[%s654] sm:$0xf]
      %v3004 = vld [vmem:[%s654 + $0x4] sm:$0xf]
      %v3005 = vld [vmem:[%s654 + $0x8] sm:$0xf]
      %v3006 = vld [vmem:[%s654 + $0xc] sm:$0xf]
      %v3007 = vld [vmem:[%s654 + $0x10] sm:$0xf]
      %v3008 = vld [vmem:[%s654 + $0x14] sm:$0xf]
      %v3009 = vld [vmem:[%s654 + $0x18] sm:$0xf]
      %v3010 = vld [vmem:[%s654 + $0x1c] sm:$0xf]
      %v3011 = vld [vmem:[%s654 + $0x20] sm:$0xf]
      %v3012 = vld [vmem:[%s654 + $0x24] sm:$0xf]
      %v3013 = vld [vmem:[%s654 + $0x28] sm:$0xf]
      %v3014 = vld [vmem:[%s654 + $0x2c] sm:$0xf]
      %v3015 = vld [vmem:[%s654 + $0x30] sm:$0xf]
      %v3016 = vld [vmem:[%s654 + $0x34] sm:$0xf]
      %v3017 = vld [vmem:[%s654 + $0x38] sm:$0xf]
      %v3018 = vld [vmem:[%s654 + $0x3c] sm:$0xf]
      %v3019 = vld [vmem:[%s654 + $0x40] sm:$0xf]
      %v3020 = vld [vmem:[%s654 + $0x44] sm:$0xf]
      %v3021 = vld [vmem:[%s654 + $0x48] sm:$0xf]
      %v3022 = vld [vmem:[%s654 + $0x4c] sm:$0xf]
      %v3023 = vld [vmem:[%s654 + $0x50] sm:$0xf]
      %v3024 = vld [vmem:[%s654 + $0x54] sm:$0xf]
      %v3025 = vld [vmem:[%s654 + $0x58] sm:$0xf]
      %v3026 = vld [vmem:[%s654 + $0x5c] sm:$0xf]
      %v3027 = vld [vmem:[%s654 + $0x60] sm:$0xf]
      %v3028 = vld [vmem:[%s654 + $0x64] sm:$0xf]
      %v3029 = vld [vmem:[%s654 + $0x68] sm:$0xf]
      %v3030 = vld [vmem:[%s654 + $0x6c] sm:$0xf]
      %v3031 = vld [vmem:[%s654 + $0x70] sm:$0xf]
      %v3032 = vld [vmem:[%s654 + $0x74] sm:$0xf]
      %v3033 = vld [vmem:[%s654 + $0x78] sm:$0xf]
      %v3034 = vld [vmem:[%s654 + $0x7c] sm:$0xf]
      %v3035 = vld [vmem:[%s654 + $0x80] sm:$0xf]
      %v3036 = vld [vmem:[%s654 + $0x84] sm:$0xf]
      %v3037 = vld [vmem:[%s654 + $0x88] sm:$0xf]
      %v3038 = vld [vmem:[%s654 + $0x8c] sm:$0xf]
      %v3039 = vld [vmem:[%s654 + $0x90] sm:$0xf]
      %v3040 = vld [vmem:[%s654 + $0x94] sm:$0xf]
      %v3041 = vld [vmem:[%s654 + $0x98] sm:$0xf]
      %v3042 = vld [vmem:[%s654 + $0x9c] sm:$0xf]
      %v3043 = vld [vmem:[%s654 + $0xa0] sm:$0xf]
      %v3044 = vld [vmem:[%s654 + $0xa4] sm:$0xf]
      %v3045 = vld [vmem:[%s654 + $0xa8] sm:$0xf]
      %v3046 = vld [vmem:[%s654 + $0xac] sm:$0xf]
      %v3047 = vld [vmem:[%s654 + $0xb0] sm:$0xf]
      %v3048 = vld [vmem:[%s654 + $0xb4] sm:$0xf]
      %v3049 = vld [vmem:[%s654 + $0xb8] sm:$0xf]
      %v3050 = vld [vmem:[%s654 + $0xbc] sm:$0xf]
      %v3051 = vld [vmem:[%s654 + $0xc0] sm:$0xf]
      %v3052 = vld [vmem:[%s654 + $0xc4] sm:$0xf]
      %v3053 = vld [vmem:[%s654 + $0xc8] sm:$0xf]
      %v3054 = vld [vmem:[%s654 + $0xcc] sm:$0xf]
      %v3055 = vld [vmem:[%s654 + $0xd0] sm:$0xf]
      %v3056 = vld [vmem:[%s654 + $0xd4] sm:$0xf]
      %v3057 = vld [vmem:[%s654 + $0xd8] sm:$0xf]
      %v3058 = vld [vmem:[%s654 + $0xdc] sm:$0xf]
      %v3059 = vld [vmem:[%s654 + $0xe0] sm:$0xf]
      %v3060 = vld [vmem:[%s654 + $0xe4] sm:$0xf]
      %v3061 = vld [vmem:[%s654 + $0xe8] sm:$0xf]
      %v3062 = vld [vmem:[%s654 + $0xec] sm:$0xf]
      %v3063 = vld [vmem:[%s654 + $0xf0] sm:$0xf]
      %v3064 = vld [vmem:[%s654 + $0xf4] sm:$0xf]
      %v3065 = vld [vmem:[%s654 + $0xf8] sm:$0xf]
      %v3066 = vld [vmem:[%s654 + $0xfc] sm:$0xf]
      %v3067 = vpack.c.bf16 %v2999, %v2999
      %v3068 = vpack.c.bf16 %v3000, %v3000
      %v3069 = vpack.c.bf16 %v3001, %v3001
      %v3070 = vpack.c.bf16 %v3002, %v3002
      %v3071 = vld [vmem:[%s657] sm:$0x1]
      %v3073 = vlaneseq
      %v3074 = vshrl.u32 %v3073, 7
      %v3075 = vsub.s32 0, %v3074
      %v3076 = vrot.slane %v3071, %v3075
      %v3142 = vunpack.c.l.b16 %v3003
      %v3143 = vunpack.c.l.b16 %v3004
      %v3144 = vunpack.c.l.b16 %v3005
      %v3145 = vunpack.c.l.b16 %v3006
      %v3146 = vunpack.c.l.b16 %v3007
      %v3147 = vunpack.c.l.b16 %v3008
      %v3148 = vunpack.c.l.b16 %v3009
      %v3149 = vunpack.c.l.b16 %v3010
      %v3150 = vunpack.c.l.b16 %v3011
      %v3151 = vunpack.c.l.b16 %v3012
      %v3152 = vunpack.c.l.b16 %v3013
      %v3153 = vunpack.c.l.b16 %v3014
      %v3154 = vunpack.c.l.b16 %v3015
      %v3155 = vunpack.c.l.b16 %v3016
      %v3156 = vunpack.c.l.b16 %v3017
      %v3157 = vunpack.c.l.b16 %v3018
      %v3158 = vunpack.c.l.b16 %v3019
      %v3159 = vunpack.c.l.b16 %v3020
      %v3160 = vunpack.c.l.b16 %v3021
      %v3161 = vunpack.c.l.b16 %v3022
      %v3162 = vunpack.c.l.b16 %v3023
      %v3163 = vunpack.c.l.b16 %v3024
      %v3164 = vunpack.c.l.b16 %v3025
      %v3165 = vunpack.c.l.b16 %v3026
      %v3166 = vunpack.c.l.b16 %v3027
      %v3167 = vunpack.c.l.b16 %v3028
      %v3168 = vunpack.c.l.b16 %v3029
      %v3169 = vunpack.c.l.b16 %v3030
      %v3170 = vunpack.c.l.b16 %v3031
      %v3171 = vunpack.c.l.b16 %v3032
      %v3172 = vunpack.c.l.b16 %v3033
      %v3173 = vunpack.c.l.b16 %v3034
      %v3174 = vunpack.c.l.b16 %v3035
      %v3175 = vunpack.c.l.b16 %v3036
      %v3176 = vunpack.c.l.b16 %v3037
      %v3177 = vunpack.c.l.b16 %v3038
      %v3178 = vunpack.c.l.b16 %v3039
      %v3179 = vunpack.c.l.b16 %v3040
      %v3180 = vunpack.c.l.b16 %v3041
      %v3181 = vunpack.c.l.b16 %v3042
      %v3182 = vunpack.c.l.b16 %v3043
      %v3183 = vunpack.c.l.b16 %v3044
      %v3184 = vunpack.c.l.b16 %v3045
      %v3185 = vunpack.c.l.b16 %v3046
      %v3186 = vunpack.c.l.b16 %v3047
      %v3187 = vunpack.c.l.b16 %v3048
      %v3188 = vunpack.c.l.b16 %v3049
      %v3189 = vunpack.c.l.b16 %v3050
      %v3190 = vunpack.c.l.b16 %v3051
      %v3191 = vunpack.c.l.b16 %v3052
      %v3192 = vunpack.c.l.b16 %v3053
      %v3193 = vunpack.c.l.b16 %v3054
      %v3194 = vunpack.c.l.b16 %v3055
      %v3195 = vunpack.c.l.b16 %v3056
      %v3196 = vunpack.c.l.b16 %v3057
      %v3197 = vunpack.c.l.b16 %v3058
      %v3198 = vunpack.c.l.b16 %v3059
      %v3199 = vunpack.c.l.b16 %v3060
      %v3200 = vunpack.c.l.b16 %v3061
      %v3201 = vunpack.c.l.b16 %v3062
      %v3202 = vunpack.c.l.b16 %v3063
      %v3203 = vunpack.c.l.b16 %v3064
      %v3204 = vunpack.c.l.b16 %v3065
      %v3205 = vunpack.c.l.b16 %v3066
      %v3206 = vpack.c.b16 %v3143, %v3142
      %v3207 = vpack.c.b16 %v3145, %v3144
      %v3208 = vpack.c.b16 %v3147, %v3146
      %v3209 = vpack.c.b16 %v3149, %v3148
      %v3210 = vpack.c.b16 %v3151, %v3150
      %v3211 = vpack.c.b16 %v3153, %v3152
      %v3212 = vpack.c.b16 %v3155, %v3154
      %v3213 = vpack.c.b16 %v3157, %v3156
      %v3214 = vpack.c.b16 %v3159, %v3158
      %v3215 = vpack.c.b16 %v3161, %v3160
      %v3216 = vpack.c.b16 %v3163, %v3162
      %v3217 = vpack.c.b16 %v3165, %v3164
      %v3218 = vpack.c.b16 %v3167, %v3166
      %v3219 = vpack.c.b16 %v3169, %v3168
      %v3220 = vpack.c.b16 %v3171, %v3170
      %v3221 = vpack.c.b16 %v3173, %v3172
      %v3222 = vpack.c.b16 %v3175, %v3174
      %v3223 = vpack.c.b16 %v3177, %v3176
      %v3224 = vpack.c.b16 %v3179, %v3178
      %v3225 = vpack.c.b16 %v3181, %v3180
      %v3226 = vpack.c.b16 %v3183, %v3182
      %v3227 = vpack.c.b16 %v3185, %v3184
      %v3228 = vpack.c.b16 %v3187, %v3186
      %v3229 = vpack.c.b16 %v3189, %v3188
      %v3230 = vpack.c.b16 %v3191, %v3190
      %v3231 = vpack.c.b16 %v3193, %v3192
      %v3232 = vpack.c.b16 %v3195, %v3194
      %v3233 = vpack.c.b16 %v3197, %v3196
      %v3234 = vpack.c.b16 %v3199, %v3198
      %v3235 = vpack.c.b16 %v3201, %v3200
      %v3236 = vpack.c.b16 %v3203, %v3202
      %v3237 = vpack.c.b16 %v3205, %v3204
      %3270 = vmatprep.subr.bf16.mxu0 0
      %3271 = vmatpush1.bf16.msra.mxu0 %v3213
      %3272 = vmatprep.subr.bf16.mxu0 0
      %3273 = vmatpush1.bf16.msra.mxu0 %v3212
      %3274 = vmatprep.subr.bf16.mxu0 0
      %3275 = vmatpush1.bf16.msra.mxu0 %v3211
      %3276 = vmatprep.subr.bf16.mxu0 0
      %3277 = vmatpush1.bf16.msra.mxu0 %v3210
      %3278 = vmatprep.subr.bf16.mxu0 0
      %3279 = vmatpush1.bf16.msra.mxu0 %v3209
      %3280 = vmatprep.subr.bf16.mxu0 0
      %3281 = vmatpush1.bf16.msra.mxu0 %v3208
      %3282 = vmatprep.subr.bf16.mxu0 0
      %3283 = vmatpush1.bf16.msra.mxu0 %v3207
      %3284 = vmatprep.subr.bf16.mxu0 0
      %3285 = vmatpush1.bf16.msra.mxu0 %v3206
      %3286 = vmatprep.subr.bf16.mxu0 0
      %3287 = vmatpush2.bf16.msra.mxu0 %v3221
      %3288 = vmatprep.subr.bf16.mxu0 0
      %3289 = vmatpush2.bf16.msra.mxu0 %v3220
      %3290 = vmatprep.subr.bf16.mxu0 0
      %3291 = vmatpush2.bf16.msra.mxu0 %v3219
      %3292 = vmatprep.subr.bf16.mxu0 0
      %3293 = vmatpush2.bf16.msra.mxu0 %v3218
      %3294 = vmatprep.subr.bf16.mxu0 0
      %3295 = vmatpush2.bf16.msra.mxu0 %v3217
      %3296 = vmatprep.subr.bf16.mxu0 0
      %3297 = vmatpush2.bf16.msra.mxu0 %v3216
      %3298 = vmatprep.subr.bf16.mxu0 0
      %3299 = vmatpush2.bf16.msra.mxu0 %v3215
      %3300 = vmatprep.subr.bf16.mxu0 0
      %3301 = vmatpush2.bf16.msra.mxu0 %v3214
      %3302 = vmatprep.mubr.bf16.mxu0 %v3068
      %3303 = vmatmul.mubr.bf16.gmra.mxu0 %v3067
      %v3304 = vpop.f32.mrf.mxu0
      %v3305 = vadd.f32 %v3076, %v3304
      %v3306 = vpop.f32.mrf.mxu0
      %v3307 = vpop.f32.mrf.mxu0
      %v3308 = vpop.f32.mrf.mxu0
      %3309 = vdwg.mxu0
      %3310 = vmatprep.subr.bf16.mxu0 0
      %3311 = vmatpush1.bf16.msra.mxu0 %v3229
      %3312 = vmatprep.subr.bf16.mxu0 0
      %3313 = vmatpush1.bf16.msra.mxu0 %v3228
      %3314 = vmatprep.subr.bf16.mxu0 0
      %3315 = vmatpush1.bf16.msra.mxu0 %v3227
      %3316 = vmatprep.subr.bf16.mxu0 0
      %3317 = vmatpush1.bf16.msra.mxu0 %v3226
      %3318 = vmatprep.subr.bf16.mxu0 0
      %3319 = vmatpush1.bf16.msra.mxu0 %v3225
      %3320 = vmatprep.subr.bf16.mxu0 0
      %3321 = vmatpush1.bf16.msra.mxu0 %v3224
      %3322 = vmatprep.subr.bf16.mxu0 0
      %3323 = vmatpush1.bf16.msra.mxu0 %v3223
      %3324 = vmatprep.subr.bf16.mxu0 0
      %3325 = vmatpush1.bf16.msra.mxu0 %v3222
      %3326 = vmatprep.subr.bf16.mxu0 0
      %3327 = vmatpush2.bf16.msra.mxu0 %v3237
      %3328 = vmatprep.subr.bf16.mxu0 0
      %3329 = vmatpush2.bf16.msra.mxu0 %v3236
      %3330 = vmatprep.subr.bf16.mxu0 0
      %3331 = vmatpush2.bf16.msra.mxu0 %v3235
      %3332 = vmatprep.subr.bf16.mxu0 0
      %3333 = vmatpush2.bf16.msra.mxu0 %v3234
      %3334 = vmatprep.subr.bf16.mxu0 0
      %3335 = vmatpush2.bf16.msra.mxu0 %v3233
      %3336 = vmatprep.subr.bf16.mxu0 0
      %3337 = vmatpush2.bf16.msra.mxu0 %v3232
      %3338 = vmatprep.subr.bf16.mxu0 0
      %3339 = vmatpush2.bf16.msra.mxu0 %v3231
      %3340 = vmatprep.subr.bf16.mxu0 0
      %3341 = vmatpush2.bf16.msra.mxu0 %v3230
      %3342 = vmatprep.mubr.bf16.mxu0 %v3070
      %3343 = vmatmul.mubr.bf16.gmra.mxu0 %v3069
      %v3344 = vpop.f32.mrf.mxu0
      %v3345 = vadd.f32 %v3305, %v3344
      %v3346 = vpop.f32.mrf.mxu0
      %v3347 = vpop.f32.mrf.mxu0
      %v3348 = vpop.f32.mrf.mxu0
      %3349 = vdwg.mxu0
      %v3350 = vadd.f32 %v2642, %v3345
      %3351 = vst [vmem:[%s15] sm:$0xff] %v3350
      // Predicated region
      $region85: #{bert_image_forward.3} parent=79 // pred_check
        %p3352 = pneg %p414
      $region86: #{bert_image_forward.3} parent=79 // pred_check_branch
        %3354 = sbr.rel (%p3352) target = $region88
      $region87: #{bert_image_forward.3} parent=79 // pred_region
        _
      $region88: #{bert_image_forward.3} parent=79 // pred_fallthru
        _
      // Predicated region
      $region89: #{bert_image_forward.3} parent=79 // pred_check
        %p3355 = pneg %p414
      $region90: #{bert_image_forward.3} parent=79 // pred_check_branch
        %3357 = sbr.rel (%p3355) target = $region92
      $region91: #{bert_image_forward.3} parent=79 // pred_region
        _
      $region92: #{bert_image_forward.3} parent=79 // pred_fallthru
        _
    $region80: #{bert_image_forward.3} parent=5 // pred_fallthru
      _
    %p3358 = scmp.le.s32.totalorder 2, %s21
    // Predicated region
    $region93: #{bert_image_forward.3} parent=5 // pred_check
      %p3359 = pneg %p3358
    $region94: #{bert_image_forward.3} parent=5 // pred_check_branch
      %3361 = sbr.rel (%p3359) target = $region96
    $region95: #{bert_image_forward.3} parent=5 // pred_region
      %s3362 = ssub.s32 %s21, 2
    $region96: #{bert_image_forward.3} parent=5 // pred_fallthru
      _
  $region6: #{bert_image_forward.3} parent=0 // loop_footer
    %s25 = sadd.s32 1, %s21
  $region7: #{bert_image_forward.3} parent=0 // loop_footer_branch
    %20 = sbr.rel target = $region3
  $region8: #{bert_image_forward.3} parent=0 // loop_exit
    _

</llo_original>
